<compile_context>
chip_gen: v5e
topology: v5e:2x2
jax: 0.10.0
libtpu: 0.0.40
codegen_flags: <defaults>
</compile_context>

<pallas_src>
import functools
import math

import jax
import jax.numpy as jnp
from jax.experimental import pallas as pl
from jax.experimental.pallas import tpu as pltpu


_MASK_VALUE = -0.7 * float(jnp.finfo(jnp.float32).max)


def _round_up(x, m):
    return ((x + m - 1) // m) * m


def _lcm(*vals):
    out = 1
    for v in vals:
        out = out * v // math.gcd(out, v)
    return out


def _vmem_limit_bytes():
    """Generation-aware scoped-VMEM budget (~3/4 of physical, capped)."""
    try:
        cap = int(pltpu.get_tpu_info().vmem_capacity_bytes)
    except Exception:
        cap = 64 * 1024 * 1024
    return max(min((cap * 3) // 4, 100 * 1024 * 1024), 32 * 1024 * 1024)


# ---------------------------------------------------------------------------
# Tiled matmul + bias:  out[M, N] = x[M, K] @ w[K, N] + b[N]
# grid = (M/tm, N/tn, K/tk); f32 VMEM accumulator resident across the K axis.
# ---------------------------------------------------------------------------
def _linear_bias_kernel(x_ref, w_ref, b_ref, o_ref, acc_ref):
    kk = pl.program_id(2)

    @pl.when(kk == 0)
    def _():
        acc_ref[...] = jnp.zeros_like(acc_ref)

    # Dot runs in the input dtype (bf16 hits the MXU fast path); f32 accum.
    acc_ref[...] += jnp.dot(x_ref[...], w_ref[...],
                            preferred_element_type=jnp.float32)

    @pl.when(kk == pl.num_programs(2) - 1)
    def _():
        o_ref[...] = (acc_ref[...]
                      + b_ref[...].astype(jnp.float32)).astype(o_ref.dtype)


def _linear(x, w, b, *, tile_m=512, tile_n=512, tile_k=512, vmem_limit=None):
    """x: (M, K), w: (K, N) (already transposed from torch (out,in)), b: (N,)."""
    M, K = x.shape
    Kw, N = w.shape
    assert K == Kw and b.shape == (N,)
    if vmem_limit is None:
        vmem_limit = _vmem_limit_bytes()

    tm = min(tile_m, _round_up(M, 8))
    tn = min(tile_n, _round_up(N, 128))
    tk = min(tile_k, _round_up(K, 128))
    Mp, Np, Kp = _round_up(M, tm), _round_up(N, tn), _round_up(K, tk)

    xp = jnp.pad(x, ((0, Mp - M), (0, Kp - K))) if (Mp, Kp) != (M, K) else x
    wp = jnp.pad(w, ((0, Kp - K), (0, Np - N))) if (Kp, Np) != (K, N) else w
    bp = (jnp.pad(b, (0, Np - N)) if Np != N else b).reshape(1, Np)

    grid = (Mp // tm, Np // tn, Kp // tk)
    out = pl.pallas_call(
        _linear_bias_kernel,
        out_shape=jax.ShapeDtypeStruct((Mp, Np), x.dtype),
        grid_spec=pltpu.PrefetchScalarGridSpec(
            num_scalar_prefetch=0,
            grid=grid,
            in_specs=[
                pl.BlockSpec((tm, tk), lambda i, j, k: (i, k)),   # x
                pl.BlockSpec((tk, tn), lambda i, j, k: (k, j)),   # w
                pl.BlockSpec((1, tn), lambda i, j, k: (0, j)),    # bias
            ],
            out_specs=pl.BlockSpec((tm, tn), lambda i, j, k: (i, j)),
            scratch_shapes=[pltpu.VMEM((tm, tn), jnp.float32)],
        ),
        compiler_params=pltpu.CompilerParams(
            dimension_semantics=("parallel", "parallel", "arbitrary"),
            vmem_limit_bytes=vmem_limit),
        cost_estimate=pl.CostEstimate(
            flops=2 * Mp * Np * Kp,
            transcendentals=0,
            bytes_accessed=(Mp * Kp + Kp * Np + Mp * Np) * x.dtype.itemsize),
    )(xp, wp, bp)

    if (Mp, Np) != (M, N):
        out = out[:M, :N]
    return out


# ---------------------------------------------------------------------------
# Fused QKV split + RoPE (+ softmax scale) prepass.
# grid = (token_tiles, heads). Reads q/k head column-blocks directly from the
# (T, 3*H*D) QKV matrix, writes head-major (H, T, D) rotated q/k.
# ---------------------------------------------------------------------------
def _rope_split_kernel(qkv_q_ref, qkv_k_ref, cos_ref, sin_ref,
                       q_out_ref, k_out_ref, *, sm_scale):
    half = cos_ref.shape[-1] // 2
    cos = cos_ref[...]                       # (ts, D) f32
    sin = sin_ref[...]                       # (ts, D) f32, sign pre-folded
    qf = qkv_q_ref[...].astype(jnp.float32)
    kf = qkv_k_ref[...].astype(jnp.float32)
    q_rot = qf * cos + pltpu.roll(qf, shift=half, axis=1) * sin
    k_rot = kf * cos + pltpu.roll(kf, shift=half, axis=1) * sin
    q_out_ref[0] = (q_rot * sm_scale).astype(q_out_ref.dtype)
    k_out_ref[0] = k_rot.astype(k_out_ref.dtype)


def _rope_split(qkv_p, cos_t, sin_t, *, num_heads, head_dim, sm_scale,
                tile_rows, vmem_limit):
    T_p = qkv_p.shape[0]
    H, D = num_heads, head_dim
    nt = T_p // tile_rows
    kernel = functools.partial(_rope_split_kernel, sm_scale=sm_scale)
    return pl.pallas_call(
        kernel,
        out_shape=(jax.ShapeDtypeStruct((H, T_p, D), qkv_p.dtype),
                   jax.ShapeDtypeStruct((H, T_p, D), qkv_p.dtype)),
        grid_spec=pltpu.PrefetchScalarGridSpec(
            num_scalar_prefetch=0,
            grid=(nt, H),                      # heads innermost: cos/sin DMA
            in_specs=[                         # is skipped across heads
                pl.BlockSpec((tile_rows, D), lambda t, h: (t, h)),        # q
                pl.BlockSpec((tile_rows, D), lambda t, h: (t, H + h)),    # k
                pl.BlockSpec((tile_rows, D), lambda t, h: (t, 0)),        # cos
                pl.BlockSpec((tile_rows, D), lambda t, h: (t, 0)),        # sin
            ],
            out_specs=[
                pl.BlockSpec((1, tile_rows, D), lambda t, h: (h, t, 0)),
                pl.BlockSpec((1, tile_rows, D), lambda t, h: (h, t, 0)),
            ],
        ),
        compiler_params=pltpu.CompilerParams(
            dimension_semantics=("parallel", "parallel"),
            vmem_limit_bytes=vmem_limit),
    )(qkv_p, qkv_p, cos_t, sin_t)


# ---------------------------------------------------------------------------
# Block-diagonal (varlen) flash attention with kv-block skipping.
# grid = (heads, q_tiles, kv_tiles); kv index_map is clamped to the
# scalar-prefetched per-q-block kv range, so out-of-range steps issue no DMA
# and (via pl.when) no compute.
# ---------------------------------------------------------------------------
def _attn_kernel(kv_start_ref, kv_cnt_ref, q_ref, k_ref, v_ref,
                 seg_q_ref, seg_k_ref, o_ref, m_scr, l_scr, acc_scr):
    qi = pl.program_id(1)
    ki = pl.program_id(2)

    @pl.when(ki == 0)
    def _():
        m_scr[...] = jnp.full_like(m_scr, -jnp.inf)
        l_scr[...] = jnp.zeros_like(l_scr)
        acc_scr[...] = jnp.zeros_like(acc_scr)

    @pl.when(ki < kv_cnt_ref[qi])
    def _():
        # q already carries the softmax scale and the RoPE rotation.
        s = jax.lax.dot_general(q_ref[0], k_ref[0], (((1,), (1,)), ((), ())),
                                preferred_element_type=jnp.float32)
        # Segment mask for boundary blocks. A row's first in-range block may
        # still be fully masked for that row; its exp(0)=1 contributions are
        # cancelled exactly by alpha = exp(_MASK_VALUE - m_real) = 0 once an
        # unmasked block arrives (every row's own segment is inside its range).
        s = jnp.where(seg_q_ref[...] == seg_k_ref[...], s, _MASK_VALUE)

        m_prev = m_scr[...]
        m_new = jnp.maximum(m_prev, jnp.max(s, axis=-1, keepdims=True))
        alpha = jnp.exp(m_prev - m_new)
        p = jnp.exp(s - m_new)
        l_scr[...] = alpha * l_scr[...] + jnp.sum(p, axis=-1, keepdims=True)
        acc_scr[...] = alpha * acc_scr[...] + jax.lax.dot_general(
            p.astype(v_ref.dtype), v_ref[...], (((1,), (0,)), ((), ())),
            preferred_element_type=jnp.float32)
        m_scr[...] = m_new

    @pl.when(ki == pl.num_programs(2) - 1)
    def _():
        o_ref[...] = (acc_scr[...] *
                      pl.reciprocal(l_scr[...], approx=True)).astype(o_ref.dtype)


def _flash_attention(q_rot, k_rot, qkv_p, seg_col, seg_row, kv_start, kv_cnt,
                     *, block_q, block_kv, vmem_limit):
    H, T_p, D = q_rot.shape
    nq = T_p // block_q
    nk = T_p // block_kv

    def kv_block(qi, ki, start_ref, cnt_ref):
        # Clamp to the last in-range block so skipped steps keep the same
        # block index (=> Pallas skips their DMA).
        return start_ref[qi] + jnp.minimum(ki, cnt_ref[qi] - 1)

    itemsize = q_rot.dtype.itemsize
    return pl.pallas_call(
        _attn_kernel,
        out_shape=jax.ShapeDtypeStruct((T_p, H * D), q_rot.dtype),
        grid_spec=pltpu.PrefetchScalarGridSpec(
            num_scalar_prefetch=2,
            grid=(H, nq, nk),
            in_specs=[
                pl.BlockSpec((1, block_q, D),                       # q_rot
                             lambda h, qi, ki, st, ct: (h, qi, 0)),
                pl.BlockSpec((1, block_kv, D),                      # k_rot
                             lambda h, qi, ki, st, ct:
                             (h, kv_block(qi, ki, st, ct), 0)),
                pl.BlockSpec((block_kv, D),                         # v (from qkv)
                             lambda h, qi, ki, st, ct:
                             (kv_block(qi, ki, st, ct), 2 * H + h)),
                pl.BlockSpec((block_q, 1),                          # seg ids (q)
                             lambda h, qi, ki, st, ct: (qi, 0)),
                pl.BlockSpec((1, block_kv),                         # seg ids (k)
                             lambda h, qi, ki, st, ct:
                             (0, kv_block(qi, ki, st, ct))),
            ],
            out_specs=pl.BlockSpec((block_q, D),                    # s-major ctx
                                   lambda h, qi, ki, st, ct: (qi, h)),
            scratch_shapes=[
                pltpu.VMEM((block_q, 1), jnp.float32),   # running max
                pltpu.VMEM((block_q, 1), jnp.float32),   # running denom
                pltpu.VMEM((block_q, D), jnp.float32),   # output accumulator
            ],
        ),
        compiler_params=pltpu.CompilerParams(
            dimension_semantics=("parallel", "parallel", "arbitrary"),
            vmem_limit_bytes=vmem_limit),
        cost_estimate=pl.CostEstimate(
            flops=4 * H * T_p * T_p * D,
            transcendentals=H * T_p * T_p,
            bytes_accessed=(2 * H * T_p * D + 2 * nq * H * T_p * D) * itemsize),
    )(kv_start, kv_cnt, q_rot, k_rot, qkv_p, seg_col, seg_row)


# ---------------------------------------------------------------------------
# Module-level wrapper (Qwen2_5_VisionAttention.forward, tp_size == 1).
# ---------------------------------------------------------------------------
def qwen2_5_vision_attention(x, cu_seqlens, rotary_pos_emb,
                             w_qkv, b_qkv, w_proj, b_proj, *, num_heads,
                             block_q=256, block_kv=256, rope_tile=256,
                             tile_m=512, tile_n=512, tile_k=512):
    """x: (seq, bs, embed).  w_qkv: (embed, 3*proj), w_proj: (proj, embed)
    (pre-transposed from torch's (out, in) layout).  Returns (seq, bs, embed)."""
    S, B, E = x.shape
    P = w_qkv.shape[1] // 3
    H = num_heads
    D = P // H
    assert H * D == P and rotary_pos_emb.shape == (S, D // 2)
    # TODO(synk): production Qwen2.5-VL uses head_dim=80. Make it lane-dense at
    # weight-load time: pad each rotary half of every head's q/k columns of
    # w_qkv/b_qkv (and the matching rows of w_proj) with zeros up to 64 lanes
    # so head_dim becomes 128 (cos pad = 1, sin pad = 0); kernels then apply
    # unchanged.
    assert D % 128 == 0, "pad head_dim to a multiple of 128 at weight-load time"
    assert block_q % 8 == 0 and block_kv % 128 == 0 and rope_tile % 8 == 0
    num_imgs = int(cu_seqlens.shape[0]) - 1
    sm_scale = 1.0 / math.sqrt(D)
    vmem_limit = _vmem_limit_bytes()

    # Token axis: rows are (s, b) with b fastest; per-(image, batch) groups are
    # encoded in the segment ids so batches never attend to each other.
    T = S * B

    # ---- QKV projection (Pallas tiled matmul + bias) ----
    qkv = _linear(x.reshape(T, E), w_qkv, b_qkv,
                  tile_m=tile_m, tile_n=tile_n, tile_k=tile_k,
                  vmem_limit=vmem_limit)                      # (T, 3*H*D)

    # ---- pad token axis to a common multiple of every tile size ----
    bq = min(block_q, _round_up(T, 8))
    bkv = min(block_kv, _round_up(T, 128))
    ts = min(rope_tile, _round_up(T, 8))
    T_p = _round_up(T, _lcm(bq, bkv, ts))
    qkv_p = jnp.pad(qkv, ((0, T_p - T), (0, 0))) if T_p != T else qkv

    # ---- RoPE tables at full head_dim width, sign folded into sin ----
    cos_h = jnp.cos(rotary_pos_emb).astype(jnp.float32)       # (S, D/2)
    sin_h = jnp.sin(rotary_pos_emb).astype(jnp.float32)
    cos_t = jnp.concatenate([cos_h, cos_h], axis=-1)          # (S, D)
    sin_t = jnp.concatenate([-sin_h, sin_h], axis=-1)
    if B > 1:
        cos_t = jnp.repeat(cos_t, B, axis=0)
        sin_t = jnp.repeat(sin_t, B, axis=0)
    if T_p != T:
        cos_t = jnp.pad(cos_t, ((0, T_p - T), (0, 0)), constant_values=1.0)
        sin_t = jnp.pad(sin_t, ((0, T_p - T), (0, 0)))

    # ---- fused split + RoPE + softmax-scale prepass (Pallas) ----
    q_rot, k_rot = _rope_split(qkv_p, cos_t, sin_t, num_heads=H, head_dim=D,
                               sm_scale=sm_scale, tile_rows=ts,
                               vmem_limit=vmem_limit)          # (H, T_p, D) x2

    # ---- segment ids + per-q-block kv ranges from cu_seqlens ----
    cu = cu_seqlens.astype(jnp.int32)
    rows = jnp.arange(T_p, dtype=jnp.int32)
    s_of = jnp.minimum(rows // B, S - 1)
    g_of = (jnp.searchsorted(cu, s_of, side="right") - 1).astype(jnp.int32)
    seg = jnp.where(rows < T, g_of * B + rows % B, num_imgs * B)
    seg_col = seg.reshape(T_p, 1)
    seg_row = seg.reshape(1, T_p)

    nq = T_p // bq
    first = jnp.arange(nq, dtype=jnp.int32) * bq
    last = first + bq - 1

    def _seg_of(r):
        return (jnp.searchsorted(cu, jnp.minimum(r // B, S - 1),
                                 side="right") - 1).astype(jnp.int32)

    kv_lo = jnp.where(first >= T, T, cu[_seg_of(first)] * B)
    kv_hi = jnp.where(last >= T, T_p, cu[_seg_of(last) + 1] * B)
    kv_start = (kv_lo // bkv).astype(jnp.int32)
    kv_cnt = ((kv_hi + bkv - 1) // bkv).astype(jnp.int32) - kv_start

    # ---- block-skipping flash attention, s-major lane-dense output ----
    ctx = _flash_attention(q_rot, k_rot, qkv_p, seg_col, seg_row,
                           kv_start, kv_cnt, block_q=bq, block_kv=bkv,
                           vmem_limit=vmem_limit)              # (T_p, H*D)
    if T_p != T:
        ctx = ctx[:T]

    # ---- output projection (Pallas tiled matmul + bias) ----
    out = _linear(ctx, w_proj, b_proj, tile_m=tile_m, tile_n=tile_n,
                  tile_k=tile_k, vmem_limit=vmem_limit)
    return out.reshape(S, B, E)


# ---------------------------------------------------------------------------
# Pure-JAX reference (matches the PyTorch forward for tp_size == 1).
# ---------------------------------------------------------------------------
def _reference(x, cu_seqlens, rotary_pos_emb, w_qkv, b_qkv, w_proj, b_proj,
               *, num_heads):
    S, B, E = x.shape
    P = w_qkv.shape[1] // 3
    H = num_heads
    D = P // H
    sm_scale = 1.0 / math.sqrt(D)

    qkv = x.reshape(S * B, E) @ w_qkv + b_qkv
    qkv = qkv.reshape(S, B, 3, H, D)
    q, k, v = qkv[:, :, 0], qkv[:, :, 1], qkv[:, :, 2]     # (S, B, H, D)

    cos_h = jnp.cos(rotary_pos_emb).astype(jnp.float32)
    sin_h = jnp.sin(rotary_pos_emb).astype(jnp.float32)
    cos_f = jnp.concatenate([cos_h, cos_h], -1)[:, None, None, :]
    sin_f = jnp.concatenate([sin_h, sin_h], -1)[:, None, None, :]

    def rope(t):
        tf = t.astype(jnp.float32)
        t1, t2 = tf[..., :D // 2], tf[..., D // 2:]
        rh = jnp.concatenate([-t2, t1], axis=-1)
        return (tf * cos_f + rh * sin_f).astype(t.dtype)

    q, k = rope(q), rope(k)
    qt = jnp.transpose(q, (1, 2, 0, 3))                    # (B, H, S, D)
    kt = jnp.transpose(k, (1, 2, 0, 3))
    vt = jnp.transpose(v, (1, 2, 0, 3))

    positions = jnp.arange(S, dtype=jnp.int32)
    seg = jnp.searchsorted(cu_seqlens.astype(jnp.int32), positions,
                           side="right") - 1
    mask = seg[:, None] == seg[None, :]

    s = jnp.einsum("bhqd,bhkd->bhqk", qt, kt).astype(jnp.float32) * sm_scale
    s = jnp.where(mask[None, None], s, -jnp.inf)
    p = jax.nn.softmax(s, axis=-1)
    ctx = jnp.einsum("bhqk,bhkd->bhqd", p.astype(vt.dtype), vt)
    ctx = jnp.transpose(ctx, (2, 0, 1, 3)).reshape(S * B, P)
    out = ctx @ w_proj + b_proj
    return out.reshape(S, B, E)


if __name__ == "__main__":
    embed_dim = 256
    num_heads = 2
    head_dim = 128
    projection_size = num_heads * head_dim          # 256
    seq_len = 256
    bs = 1

    key = jax.random.PRNGKey(0)
    k_x, k_wq, k_bq, k_wp, k_bp = jax.random.split(key, 5)

    x = jax.random.normal(k_x, (seq_len, bs, embed_dim), dtype=jnp.float32)
    # Weights created directly in the (in, out) layout the kernels consume
    # (PyTorch nn.Linear stores (out, in) and computes x @ W.T + b).
    w_qkv = 0.05 * jax.random.normal(k_wq, (embed_dim, 3 * projection_size),
                                     dtype=jnp.float32)
    b_qkv = 0.05 * jax.random.normal(k_bq, (3 * projection_size,),
                                     dtype=jnp.float32)
    w_proj = 0.05 * jax.random.normal(k_wp, (projection_size, embed_dim),
                                      dtype=jnp.float32)
    b_proj = 0.05 * jax.random.normal(k_bp, (embed_dim,), dtype=jnp.float32)

    inv_freq = 1.0 / (10000.0 ** (jnp.arange(0, head_dim // 2,
                                             dtype=jnp.float32) * 2.0 / head_dim))
    rotary_pos_emb = (jnp.arange(seq_len, dtype=jnp.float32)[:, None]
                      * inv_freq[None, :])

    # Two variable-length "images": 160 + 96 tokens (ragged across tiles).
    cu_seqlens = jnp.array([0, 160, 256], dtype=jnp.int32)

    # --- run 1: f32, small attention tiles -> exercises multi-block grid,
    # kv-block skipping and in-block segment masking. ---
    attn_small = jax.jit(functools.partial(qwen2_5_vision_attention,
                                           num_heads=num_heads,
                                           block_q=64, block_kv=128))
    out = jax.block_until_ready(attn_small(x, cu_seqlens, rotary_pos_emb,
                                           w_qkv, b_qkv, w_proj, b_proj))
    ref = _reference(x, cu_seqlens, rotary_pos_emb, w_qkv, b_qkv, w_proj,
                     b_proj, num_heads=num_heads)
    assert out.shape == (seq_len, bs, embed_dim), out.shape
    err = float(jnp.max(jnp.abs(out.astype(jnp.float32) - ref.astype(jnp.float32))))
    scale = float(jnp.max(jnp.abs(ref.astype(jnp.float32))))
    assert err <= 2e-2 * scale + 1e-4, (err, scale)

    # --- run 2: bf16 activations/weights, default (production) tiles ->
    # the MXU fast path (f32 accumulation, f32 RoPE/softmax math). ---
    cast = lambda t: t.astype(jnp.bfloat16)
    attn_fast = jax.jit(functools.partial(qwen2_5_vision_attention,
                                          num_heads=num_heads))
    out_bf = jax.block_until_ready(
        attn_fast(cast(x), cu_seqlens, rotary_pos_emb,
                  cast(w_qkv), cast(b_qkv), cast(w_proj), cast(b_proj)))
    ref_bf = _reference(cast(x), cu_seqlens, rotary_pos_emb,
                        cast(w_qkv), cast(b_qkv), cast(w_proj), cast(b_proj),
                        num_heads=num_heads)
    err_bf = float(jnp.max(jnp.abs(out_bf.astype(jnp.float32)
                                   - ref_bf.astype(jnp.float32))))
    scale_bf = float(jnp.max(jnp.abs(ref_bf.astype(jnp.float32))))
    assert out_bf.dtype == jnp.bfloat16
    assert err_bf <= 4e-2 * scale_bf + 1e-2, (err_bf, scale_bf)

    print("KERNEL_OK")
</pallas_src>

<mosaic_0001>
module attributes {stable_mosaic.version = 11 : i64} {
  func.func @_linear_bias_kernel(%arg0: i32, %arg1: i32, %arg2: i32, %arg3: memref<256x256xf32, #tpu.memory_space<vmem>>, %arg4: memref<256x512xf32, #tpu.memory_space<vmem>>, %arg5: memref<1x512xf32, #tpu.memory_space<vmem>>, %arg6: memref<256x512xf32, #tpu.memory_space<vmem>>, %arg7: memref<256x512xf32, #tpu.memory_space<vmem>>) attributes {dimension_semantics = [#tpu.dimension_semantics<parallel>, #tpu.dimension_semantics<parallel>, #tpu.dimension_semantics<arbitrary>], iteration_bounds = array<i64: 1, 2, 1>, scalar_prefetch = 0 : i64, scratch_operands = 1 : i64, tpu.core_type = #tpu.core_type<tc>, window_params = [{transform_indices = @transform_0, window_bounds = array<i64: 256, 256>}, {transform_indices = @transform_1, window_bounds = array<i64: 256, 512>}, {transform_indices = @transform_2, window_bounds = array<i64: 1, 512>}, {transform_indices = @transform_3, window_bounds = array<i64: 256, 512>}]} {
    %c0_i32 = arith.constant 0 : i32
    %0 = arith.cmpi eq, %arg2, %c0_i32 : i32
    %1 = arith.extui %0 : i1 to i32
    %c0_i32_0 = arith.constant 0 : i32
    %2 = arith.cmpi ne, %1, %c0_i32_0 : i32
    scf.if %2 {
      %cst_10 = arith.constant 0.000000e+00 : f32
      %12 = vector.broadcast %cst_10 : f32 to vector<256x512xf32>
      %c0_11 = arith.constant 0 : index
      %c0_12 = arith.constant 0 : index
      %13 = vector.load %arg7[%c0_11, %c0_12] : memref<256x512xf32, #tpu.memory_space<vmem>>, vector<256x512xf32>
      tpu.vector_store %arg7[%c0_11, %c0_12], %12 {strides = array<i32>} : memref<256x512xf32, #tpu.memory_space<vmem>>, vector<256x512xf32>,
    } else {
    }
    %c0 = arith.constant 0 : index
    %c0_1 = arith.constant 0 : index
    %3 = vector.load %arg7[%c0, %c0_1] : memref<256x512xf32, #tpu.memory_space<vmem>>, vector<256x512xf32>
    %c0_2 = arith.constant 0 : index
    %c0_3 = arith.constant 0 : index
    %4 = vector.load %arg3[%c0_2, %c0_3] : memref<256x256xf32, #tpu.memory_space<vmem>>, vector<256x256xf32>
    %c0_4 = arith.constant 0 : index
    %c0_5 = arith.constant 0 : index
    %5 = vector.load %arg4[%c0_4, %c0_5] : memref<256x512xf32, #tpu.memory_space<vmem>>, vector<256x512xf32>
    %cst = arith.constant dense<0.000000e+00> : vector<256x512xf32>
    %6 = tpu.matmul %4, %5, %cst {dimension_numbers = #tpu.dot_dimension_numbers<[1], [0], [0], [1], [0, 0, 1, 1], [], []>} : vector<256x256xf32>, vector<256x512xf32>, vector<256x512xf32> -> vector<256x512xf32>
    %7 = arith.addf %3, %6 : vector<256x512xf32>
    %c0_6 = arith.constant 0 : index
    %c0_7 = arith.constant 0 : index
    %8 = vector.load %arg7[%c0_6, %c0_7] : memref<256x512xf32, #tpu.memory_space<vmem>>, vector<256x512xf32>
    tpu.vector_store %arg7[%c0_6, %c0_7], %7 {strides = array<i32>} : memref<256x512xf32, #tpu.memory_space<vmem>>, vector<256x512xf32>,
    %c0_i32_8 = arith.constant 0 : i32
    %9 = arith.cmpi eq, %arg2, %c0_i32_8 : i32
    %10 = arith.extui %9 : i1 to i32
    %c0_i32_9 = arith.constant 0 : i32
    %11 = arith.cmpi ne, %10, %c0_i32_9 : i32
    scf.if %11 {
      %c0_10 = arith.constant 0 : index
      %c0_11 = arith.constant 0 : index
      %12 = vector.load %arg7[%c0_10, %c0_11] : memref<256x512xf32, #tpu.memory_space<vmem>>, vector<256x512xf32>
      %c0_12 = arith.constant 0 : index
      %c0_13 = arith.constant 0 : index
      %13 = vector.load %arg5[%c0_12, %c0_13] : memref<1x512xf32, #tpu.memory_space<vmem>>, vector<1x512xf32>
      %14 = vector.broadcast %13 : vector<1x512xf32> to vector<256x512xf32>
      %15 = arith.addf %12, %14 : vector<256x512xf32>
      %c0_14 = arith.constant 0 : index
      %c0_15 = arith.constant 0 : index
      %16 = vector.load %arg6[%c0_14, %c0_15] : memref<256x512xf32, #tpu.memory_space<vmem>>, vector<256x512xf32>
      tpu.vector_store %arg6[%c0_14, %c0_15], %15 {strides = array<i32>} : memref<256x512xf32, #tpu.memory_space<vmem>>, vector<256x512xf32>,
    } else {
    }
    return
  }
  func.func @transform_0(%arg0: i32, %arg1: i32, %arg2: i32) -> (i32, i32) {
    %c0_i32 = arith.constant 0 : i32
    return %arg0, %arg2 : i32, i32
  }
  func.func @transform_1(%arg0: i32, %arg1: i32, %arg2: i32) -> (i32, i32) {
    %c0_i32 = arith.constant 0 : i32
    return %arg2, %arg1 : i32, i32
  }
  func.func @transform_2(%arg0: i32, %arg1: i32, %arg2: i32) -> (i32, i32) {
    %c0_i32 = arith.constant 0 : i32
    %c0_i32_0 = arith.constant 0 : i32
    return %c0_i32, %arg1 : i32, i32
  }
  func.func @transform_3(%arg0: i32, %arg1: i32, %arg2: i32) -> (i32, i32) {
    %c0_i32 = arith.constant 0 : i32
    return %arg0, %arg1 : i32, i32
  }
}

module attributes {stable_mosaic.version = 11 : i64} {
  func.func @_rope_split_kernel(%arg0: i32, %arg1: i32, %arg2: memref<256x128xf32, #tpu.memory_space<vmem>>, %arg3: memref<256x128xf32, #tpu.memory_space<vmem>>, %arg4: memref<256x128xf32, #tpu.memory_space<vmem>>, %arg5: memref<256x128xf32, #tpu.memory_space<vmem>>, %arg6: memref<1x256x128xf32, #tpu.memory_space<vmem>>, %arg7: memref<1x256x128xf32, #tpu.memory_space<vmem>>) attributes {dimension_semantics = [#tpu.dimension_semantics<parallel>, #tpu.dimension_semantics<parallel>], iteration_bounds = array<i64: 1, 2>, scalar_prefetch = 0 : i64, scratch_operands = 0 : i64, tpu.core_type = #tpu.core_type<tc>, window_params = [{transform_indices = @transform_0, window_bounds = array<i64: 256, 128>}, {transform_indices = @transform_1, window_bounds = array<i64: 256, 128>}, {transform_indices = @transform_2, window_bounds = array<i64: 256, 128>}, {transform_indices = @transform_3, window_bounds = array<i64: 256, 128>}, {transform_indices = @transform_4, window_bounds = array<i64: 1, 256, 128>}, {transform_indices = @transform_5, window_bounds = array<i64: 1, 256, 128>}]} {
    %c0 = arith.constant 0 : index
    %c0_0 = arith.constant 0 : index
    %0 = vector.load %arg4[%c0, %c0_0] : memref<256x128xf32, #tpu.memory_space<vmem>>, vector<256x128xf32>
    %c0_1 = arith.constant 0 : index
    %c0_2 = arith.constant 0 : index
    %1 = vector.load %arg5[%c0_1, %c0_2] : memref<256x128xf32, #tpu.memory_space<vmem>>, vector<256x128xf32>
    %c0_3 = arith.constant 0 : index
    %c0_4 = arith.constant 0 : index
    %2 = vector.load %arg2[%c0_3, %c0_4] : memref<256x128xf32, #tpu.memory_space<vmem>>, vector<256x128xf32>
    %c0_5 = arith.constant 0 : index
    %c0_6 = arith.constant 0 : index
    %3 = vector.load %arg3[%c0_5, %c0_6] : memref<256x128xf32, #tpu.memory_space<vmem>>, vector<256x128xf32>
    %4 = arith.mulf %2, %0 : vector<256x128xf32>
    %c64_i32 = arith.constant 64 : i32
    %5 = tpu.dynamic_rotate %2 by %c64_i32 dim 1 : vector<256x128xf32>, i32 -> vector<256x128xf32>
    %6 = arith.mulf %5, %1 : vector<256x128xf32>
    %7 = arith.addf %4, %6 : vector<256x128xf32>
    %8 = arith.mulf %3, %0 : vector<256x128xf32>
    %c64_i32_7 = arith.constant 64 : i32
    %9 = tpu.dynamic_rotate %3 by %c64_i32_7 dim 1 : vector<256x128xf32>, i32 -> vector<256x128xf32>
    %10 = arith.mulf %9, %1 : vector<256x128xf32>
    %11 = arith.addf %8, %10 : vector<256x128xf32>
    %cst = arith.constant 0.0883883461 : f32
    %12 = vector.broadcast %cst : f32 to vector<256x128xf32>
    %13 = arith.mulf %7, %12 : vector<256x128xf32>
    %c0_8 = arith.constant 0 : index
    %c0_9 = arith.constant 0 : index
    %c0_10 = arith.constant 0 : index
    %14 = vector.load %arg6[%c0_8, %c0_9, %c0_10] : memref<1x256x128xf32, #tpu.memory_space<vmem>>, vector<1x256x128xf32>
    %15 = vector.shape_cast %14 : vector<1x256x128xf32> to vector<256x128xf32>
    %16 = vector.shape_cast %13 : vector<256x128xf32> to vector<1x256x128xf32>
    tpu.vector_store %arg6[%c0_8, %c0_9, %c0_10], %16 {strides = array<i32>} : memref<1x256x128xf32, #tpu.memory_space<vmem>>, vector<1x256x128xf32>,
    %c0_11 = arith.constant 0 : index
    %c0_12 = arith.constant 0 : index
    %c0_13 = arith.constant 0 : index
    %17 = vector.load %arg7[%c0_11, %c0_12, %c0_13] : memref<1x256x128xf32, #tpu.memory_space<vmem>>, vector<1x256x128xf32>
    %18 = vector.shape_cast %17 : vector<1x256x128xf32> to vector<256x128xf32>
    %19 = vector.shape_cast %11 : vector<256x128xf32> to vector<1x256x128xf32>
    tpu.vector_store %arg7[%c0_11, %c0_12, %c0_13], %19 {strides = array<i32>} : memref<1x256x128xf32, #tpu.memory_space<vmem>>, vector<1x256x128xf32>,
    return
  }
  func.func @transform_0(%arg0: i32, %arg1: i32) -> (i32, i32) {
    %c0_i32 = arith.constant 0 : i32
    return %arg0, %arg1 : i32, i32
  }
  func.func @transform_1(%arg0: i32, %arg1: i32) -> (i32, i32) {
    %c2_i32 = arith.constant 2 : i32
    %0 = arith.addi %c2_i32, %arg1 : i32
    %c0_i32 = arith.constant 0 : i32
    return %arg0, %0 : i32, i32
  }
  func.func @transform_2(%arg0: i32, %arg1: i32) -> (i32, i32) {
    %c0_i32 = arith.constant 0 : i32
    %c0_i32_0 = arith.constant 0 : i32
    return %arg0, %c0_i32 : i32, i32
  }
  func.func @transform_3(%arg0: i32, %arg1: i32) -> (i32, i32) {
    %c0_i32 = arith.constant 0 : i32
    %c0_i32_0 = arith.constant 0 : i32
    return %arg0, %c0_i32 : i32, i32
  }
  func.func @transform_4(%arg0: i32, %arg1: i32) -> (i32, i32, i32) {
    %c0_i32 = arith.constant 0 : i32
    %c0_i32_0 = arith.constant 0 : i32
    return %arg1, %arg0, %c0_i32 : i32, i32, i32
  }
  func.func @transform_5(%arg0: i32, %arg1: i32) -> (i32, i32, i32) {
    %c0_i32 = arith.constant 0 : i32
    %c0_i32_0 = arith.constant 0 : i32
    return %arg1, %arg0, %c0_i32 : i32, i32, i32
  }
}

module attributes {stable_mosaic.version = 11 : i64} {
  func.func @_attn_kernel(%arg0: i32, %arg1: i32, %arg2: i32, %arg3: memref<4xi32, #tpu.memory_space<smem>>, %arg4: memref<4xi32, #tpu.memory_space<smem>>, %arg5: memref<1x64x128xf32, #tpu.memory_space<vmem>>, %arg6: memref<1x128x128xf32, #tpu.memory_space<vmem>>, %arg7: memref<128x128xf32, #tpu.memory_space<vmem>>, %arg8: memref<64x1xi32, #tpu.memory_space<vmem>>, %arg9: memref<1x128xi32, #tpu.memory_space<vmem>>, %arg10: memref<64x128xf32, #tpu.memory_space<vmem>>, %arg11: memref<64x1xf32, #tpu.memory_space<vmem>>, %arg12: memref<64x1xf32, #tpu.memory_space<vmem>>, %arg13: memref<64x128xf32, #tpu.memory_space<vmem>>) attributes {dimension_semantics = [#tpu.dimension_semantics<parallel>, #tpu.dimension_semantics<parallel>, #tpu.dimension_semantics<arbitrary>], iteration_bounds = array<i64: 2, 4, 2>, scalar_prefetch = 2 : i64, scratch_operands = 3 : i64, tpu.core_type = #tpu.core_type<tc>, window_params = [{transform_indices = @transform_0, window_bounds = array<i64: 1, 64, 128>}, {transform_indices = @transform_1, window_bounds = array<i64: 1, 128, 128>}, {transform_indices = @transform_2, window_bounds = array<i64: 128, 128>}, {transform_indices = @transform_3, window_bounds = array<i64: 64, 1>}, {transform_indices = @transform_4, window_bounds = array<i64: 1, 128>}, {transform_indices = @transform_5, window_bounds = array<i64: 64, 128>}]} {
    %c0_i32 = arith.constant 0 : i32
    %0 = arith.cmpi eq, %arg2, %c0_i32 : i32
    %1 = arith.extui %0 : i1 to i32
    %c0_i32_0 = arith.constant 0 : i32
    %2 = arith.cmpi ne, %1, %c0_i32_0 : i32
    scf.if %2 {
      %cst = arith.constant 0xFF800000 : f32
      %11 = vector.broadcast %cst : f32 to vector<64x1xf32>
      %c0 = arith.constant 0 : index
      %c0_3 = arith.constant 0 : index
      %12 = vector.load %arg11[%c0, %c0_3] : memref<64x1xf32, #tpu.memory_space<vmem>>, vector<64x1xf32>
      tpu.vector_store %arg11[%c0, %c0_3], %11 {strides = array<i32>} : memref<64x1xf32, #tpu.memory_space<vmem>>, vector<64x1xf32>,
      %cst_4 = arith.constant 0.000000e+00 : f32
      %13 = vector.broadcast %cst_4 : f32 to vector<64x1xf32>
      %c0_5 = arith.constant 0 : index
      %c0_6 = arith.constant 0 : index
      %14 = vector.load %arg12[%c0_5, %c0_6] : memref<64x1xf32, #tpu.memory_space<vmem>>, vector<64x1xf32>
      tpu.vector_store %arg12[%c0_5, %c0_6], %13 {strides = array<i32>} : memref<64x1xf32, #tpu.memory_space<vmem>>, vector<64x1xf32>,
      %cst_7 = arith.constant 0.000000e+00 : f32
      %15 = vector.broadcast %cst_7 : f32 to vector<64x128xf32>
      %c0_8 = arith.constant 0 : index
      %c0_9 = arith.constant 0 : index
      %16 = vector.load %arg13[%c0_8, %c0_9] : memref<64x128xf32, #tpu.memory_space<vmem>>, vector<64x128xf32>
      tpu.vector_store %arg13[%c0_8, %c0_9], %15 {strides = array<i32>} : memref<64x128xf32, #tpu.memory_space<vmem>>, vector<64x128xf32>,
    } else {
    }
    %3 = arith.index_cast %arg1 : i32 to index
    %4 = memref.load %arg4[%3] : memref<4xi32, #tpu.memory_space<smem>>
    %5 = arith.cmpi slt, %arg2, %4 : i32
    %6 = arith.extui %5 : i1 to i32
    %c0_i32_1 = arith.constant 0 : i32
    %7 = arith.cmpi ne, %6, %c0_i32_1 : i32
    scf.if %7 {
      %c0 = arith.constant 0 : index
      %c0_3 = arith.constant 0 : index
      %c0_4 = arith.constant 0 : index
      %11 = vector.load %arg5[%c0, %c0_3, %c0_4] : memref<1x64x128xf32, #tpu.memory_space<vmem>>, vector<1x64x128xf32>
      %12 = vector.shape_cast %11 : vector<1x64x128xf32> to vector<64x128xf32>
      %c0_5 = arith.constant 0 : index
      %c0_6 = arith.constant 0 : index
      %c0_7 = arith.constant 0 : index
      %13 = vector.load %arg6[%c0_5, %c0_6, %c0_7] : memref<1x128x128xf32, #tpu.memory_space<vmem>>, vector<1x128x128xf32>
      %14 = vector.shape_cast %13 : vector<1x128x128xf32> to vector<128x128xf32>
      %cst = arith.constant dense<0.000000e+00> : vector<64x128xf32>
      %15 = tpu.matmul %12, %14, %cst {dimension_numbers = #tpu.dot_dimension_numbers<[1], [1], [0], [0], [0, 0, 1, 0], [], []>} : vector<64x128xf32>, vector<128x128xf32>, vector<64x128xf32> -> vector<64x128xf32>
      %c0_8 = arith.constant 0 : index
      %c0_9 = arith.constant 0 : index
      %16 = vector.load %arg8[%c0_8, %c0_9] : memref<64x1xi32, #tpu.memory_space<vmem>>, vector<64x1xi32>
      %c0_10 = arith.constant 0 : index
      %c0_11 = arith.constant 0 : index
      %17 = vector.load %arg9[%c0_10, %c0_11] : memref<1x128xi32, #tpu.memory_space<vmem>>, vector<1x128xi32>
      %18 = vector.broadcast %16 : vector<64x1xi32> to vector<64x128xi32>
      %19 = vector.broadcast %17 : vector<1x128xi32> to vector<64x128xi32>
      %20 = arith.cmpi eq, %18, %19 : vector<64x128xi32>
      %cst_12 = arith.constant -2.38197633E+38 : f32
      %21 = vector.broadcast %cst_12 : f32 to vector<64x128xf32>
      %22 = arith.select %20, %15, %21 : vector<64x128xi1>, vector<64x128xf32>
      %c0_13 = arith.constant 0 : index
      %c0_14 = arith.constant 0 : index
      %23 = vector.load %arg11[%c0_13, %c0_14] : memref<64x1xf32, #tpu.memory_space<vmem>>, vector<64x1xf32>
      %cst_15 = arith.constant dense<0xFF800000> : vector<64xf32>
      %24 = vector.multi_reduction <maximumf>, %22, %cst_15 [1] : vector<64x128xf32> to vector<64xf32>
      %25 = vector.shape_cast %24 : vector<64xf32> to vector<64x1xf32>
      %26 = arith.maximumf %23, %25 : vector<64x1xf32>
      %27 = arith.subf %23, %26 : vector<64x1xf32>
      %28 = math.exp %27 : vector<64x1xf32>
      %29 = vector.broadcast %26 : vector<64x1xf32> to vector<64x128xf32>
      %30 = arith.subf %22, %29 : vector<64x128xf32>
      %31 = math.exp %30 : vector<64x128xf32>
      %c0_16 = arith.constant 0 : index
      %c0_17 = arith.constant 0 : index
      %32 = vector.load %arg12[%c0_16, %c0_17] : memref<64x1xf32, #tpu.memory_space<vmem>>, vector<64x1xf32>
      %33 = arith.mulf %28, %32 : vector<64x1xf32>
      %cst_18 = arith.constant dense<0.000000e+00> : vector<64xf32>
      %34 = vector.multi_reduction <add>, %31, %cst_18 [1] : vector<64x128xf32> to vector<64xf32>
      %35 = vector.shape_cast %34 : vector<64xf32> to vector<64x1xf32>
      %36 = arith.addf %33, %35 : vector<64x1xf32>
      %c0_19 = arith.constant 0 : index
      %c0_20 = arith.constant 0 : index
      %37 = vector.load %arg12[%c0_19, %c0_20] : memref<64x1xf32, #tpu.memory_space<vmem>>, vector<64x1xf32>
      tpu.vector_store %arg12[%c0_19, %c0_20], %36 {strides = array<i32>} : memref<64x1xf32, #tpu.memory_space<vmem>>, vector<64x1xf32>,
      %c0_21 = arith.constant 0 : index
      %c0_22 = arith.constant 0 : index
      %38 = vector.load %arg13[%c0_21, %c0_22] : memref<64x128xf32, #tpu.memory_space<vmem>>, vector<64x128xf32>
      %39 = vector.broadcast %28 : vector<64x1xf32> to vector<64x128xf32>
      %40 = arith.mulf %39, %38 : vector<64x128xf32>
      %c0_23 = arith.constant 0 : index
      %c0_24 = arith.constant 0 : index
      %41 = vector.load %arg7[%c0_23, %c0_24] : memref<128x128xf32, #tpu.memory_space<vmem>>, vector<128x128xf32>
      %cst_25 = arith.constant dense<0.000000e+00> : vector<64x128xf32>
      %42 = tpu.matmul %31, %41, %cst_25 {dimension_numbers = #tpu.dot_dimension_numbers<[1], [0], [0], [1], [0, 0, 1, 1], [], []>} : vector<64x128xf32>, vector<128x128xf32>, vector<64x128xf32> -> vector<64x128xf32>
      %43 = arith.addf %40, %42 : vector<64x128xf32>
      %c0_26 = arith.constant 0 : index
      %c0_27 = arith.constant 0 : index
      %44 = vector.load %arg13[%c0_26, %c0_27] : memref<64x128xf32, #tpu.memory_space<vmem>>, vector<64x128xf32>
      tpu.vector_store %arg13[%c0_26, %c0_27], %43 {strides = array<i32>} : memref<64x128xf32, #tpu.memory_space<vmem>>, vector<64x128xf32>,
      %c0_28 = arith.constant 0 : index
      %c0_29 = arith.constant 0 : index
      %45 = vector.load %arg11[%c0_28, %c0_29] : memref<64x1xf32, #tpu.memory_space<vmem>>, vector<64x1xf32>
      tpu.vector_store %arg11[%c0_28, %c0_29], %26 {strides = array<i32>} : memref<64x1xf32, #tpu.memory_space<vmem>>, vector<64x1xf32>,
    } else {
    }
    %c1_i32 = arith.constant 1 : i32
    %8 = arith.cmpi eq, %arg2, %c1_i32 : i32
    %9 = arith.extui %8 : i1 to i32
    %c0_i32_2 = arith.constant 0 : i32
    %10 = arith.cmpi ne, %9, %c0_i32_2 : i32
    scf.if %10 {
      %c0 = arith.constant 0 : index
      %c0_3 = arith.constant 0 : index
      %11 = vector.load %arg13[%c0, %c0_3] : memref<64x128xf32, #tpu.memory_space<vmem>>, vector<64x128xf32>
      %c0_4 = arith.constant 0 : index
      %c0_5 = arith.constant 0 : index
      %12 = vector.load %arg12[%c0_4, %c0_5] : memref<64x1xf32, #tpu.memory_space<vmem>>, vector<64x1xf32>
      %13 = tpu.reciprocal %12 {approx = true} : vector<64x1xf32> -> vector<64x1xf32>
      %14 = vector.broadcast %13 : vector<64x1xf32> to vector<64x128xf32>
      %15 = arith.mulf %11, %14 : vector<64x128xf32>
      %c0_6 = arith.constant 0 : index
      %c0_7 = arith.constant 0 : index
      %16 = vector.load %arg10[%c0_6, %c0_7] : memref<64x128xf32, #tpu.memory_space<vmem>>, vector<64x128xf32>
      tpu.vector_store %arg10[%c0_6, %c0_7], %15 {strides = array<i32>} : memref<64x128xf32, #tpu.memory_space<vmem>>, vector<64x128xf32>,
    } else {
    }
    return
  }
  func.func @transform_0(%arg0: i32, %arg1: i32, %arg2: i32, %arg3: memref<4xi32, #tpu.memory_space<smem>>, %arg4: memref<4xi32, #tpu.memory_space<smem>>) -> (i32, i32, i32) {
    %c0_i32 = arith.constant 0 : i32
    %c0_i32_0 = arith.constant 0 : i32
    return %arg0, %arg1, %c0_i32 : i32, i32, i32
  }
  func.func @transform_1(%arg0: i32, %arg1: i32, %arg2: i32, %arg3: memref<4xi32, #tpu.memory_space<smem>>, %arg4: memref<4xi32, #tpu.memory_space<smem>>) -> (i32, i32, i32) {
    %0 = arith.index_cast %arg1 : i32 to index
    %1 = memref.load %arg3[%0] : memref<4xi32, #tpu.memory_space<smem>>
    %2 = arith.index_cast %arg1 : i32 to index
    %3 = memref.load %arg4[%2] : memref<4xi32, #tpu.memory_space<smem>>
    %c1_i32 = arith.constant 1 : i32
    %4 = arith.subi %3, %c1_i32 : i32
    %5 = arith.minsi %arg2, %4 : i32
    %6 = arith.addi %1, %5 : i32
    %c0_i32 = arith.constant 0 : i32
    %c0_i32_0 = arith.constant 0 : i32
    return %arg0, %6, %c0_i32 : i32, i32, i32
  }
  func.func @transform_2(%arg0: i32, %arg1: i32, %arg2: i32, %arg3: memref<4xi32, #tpu.memory_space<smem>>, %arg4: memref<4xi32, #tpu.memory_space<smem>>) -> (i32, i32) {
    %0 = arith.index_cast %arg1 : i32 to index
    %1 = memref.load %arg3[%0] : memref<4xi32, #tpu.memory_space<smem>>
    %2 = arith.index_cast %arg1 : i32 to index
    %3 = memref.load %arg4[%2] : memref<4xi32, #tpu.memory_space<smem>>
    %c1_i32 = arith.constant 1 : i32
    %4 = arith.subi %3, %c1_i32 : i32
    %5 = arith.minsi %arg2, %4 : i32
    %6 = arith.addi %1, %5 : i32
    %c4_i32 = arith.constant 4 : i32
    %7 = arith.addi %c4_i32, %arg0 : i32
    %c0_i32 = arith.constant 0 : i32
    return %6, %7 : i32, i32
  }
  func.func @transform_3(%arg0: i32, %arg1: i32, %arg2: i32, %arg3: memref<4xi32, #tpu.memory_space<smem>>, %arg4: memref<4xi32, #tpu.memory_space<smem>>) -> (i32, i32) {
    %c0_i32 = arith.constant 0 : i32
    %c0_i32_0 = arith.constant 0 : i32
    return %arg1, %c0_i32 : i32, i32
  }
  func.func @transform_4(%arg0: i32, %arg1: i32, %arg2: i32, %arg3: memref<4xi32, #tpu.memory_space<smem>>, %arg4: memref<4xi32, #tpu.memory_space<smem>>) -> (i32, i32) {
    %0 = arith.index_cast %arg1 : i32 to index
    %1 = memref.load %arg3[%0] : memref<4xi32, #tpu.memory_space<smem>>
    %2 = arith.index_cast %arg1 : i32 to index
    %3 = memref.load %arg4[%2] : memref<4xi32, #tpu.memory_space<smem>>
    %c1_i32 = arith.constant 1 : i32
    %4 = arith.subi %3, %c1_i32 : i32
    %5 = arith.minsi %arg2, %4 : i32
    %6 = arith.addi %1, %5 : i32
    %c0_i32 = arith.constant 0 : i32
    %c0_i32_0 = arith.constant 0 : i32
    return %c0_i32, %6 : i32, i32
  }
  func.func @transform_5(%arg0: i32, %arg1: i32, %arg2: i32, %arg3: memref<4xi32, #tpu.memory_space<smem>>, %arg4: memref<4xi32, #tpu.memory_space<smem>>) -> (i32, i32) {
    %c0_i32 = arith.constant 0 : i32
    return %arg1, %arg0 : i32, i32
  }
}

module attributes {stable_mosaic.version = 11 : i64} {
  func.func @_linear_bias_kernel(%arg0: i32, %arg1: i32, %arg2: i32, %arg3: memref<256x256xf32, #tpu.memory_space<vmem>>, %arg4: memref<256x256xf32, #tpu.memory_space<vmem>>, %arg5: memref<1x256xf32, #tpu.memory_space<vmem>>, %arg6: memref<256x256xf32, #tpu.memory_space<vmem>>, %arg7: memref<256x256xf32, #tpu.memory_space<vmem>>) attributes {dimension_semantics = [#tpu.dimension_semantics<parallel>, #tpu.dimension_semantics<parallel>, #tpu.dimension_semantics<arbitrary>], iteration_bounds = array<i64: 1, 1, 1>, scalar_prefetch = 0 : i64, scratch_operands = 1 : i64, tpu.core_type = #tpu.core_type<tc>, window_params = [{transform_indices = @transform_0, window_bounds = array<i64: 256, 256>}, {transform_indices = @transform_1, window_bounds = array<i64: 256, 256>}, {transform_indices = @transform_2, window_bounds = array<i64: 1, 256>}, {transform_indices = @transform_3, window_bounds = array<i64: 256, 256>}]} {
    %c0_i32 = arith.constant 0 : i32
    %0 = arith.cmpi eq, %arg2, %c0_i32 : i32
    %1 = arith.extui %0 : i1 to i32
    %c0_i32_0 = arith.constant 0 : i32
    %2 = arith.cmpi ne, %1, %c0_i32_0 : i32
    scf.if %2 {
      %cst_10 = arith.constant 0.000000e+00 : f32
      %12 = vector.broadcast %cst_10 : f32 to vector<256x256xf32>
      %c0_11 = arith.constant 0 : index
      %c0_12 = arith.constant 0 : index
      %13 = vector.load %arg7[%c0_11, %c0_12] : memref<256x256xf32, #tpu.memory_space<vmem>>, vector<256x256xf32>
      tpu.vector_store %arg7[%c0_11, %c0_12], %12 {strides = array<i32>} : memref<256x256xf32, #tpu.memory_space<vmem>>, vector<256x256xf32>,
    } else {
    }
    %c0 = arith.constant 0 : index
    %c0_1 = arith.constant 0 : index
    %3 = vector.load %arg7[%c0, %c0_1] : memref<256x256xf32, #tpu.memory_space<vmem>>, vector<256x256xf32>
    %c0_2 = arith.constant 0 : index
    %c0_3 = arith.constant 0 : index
    %4 = vector.load %arg3[%c0_2, %c0_3] : memref<256x256xf32, #tpu.memory_space<vmem>>, vector<256x256xf32>
    %c0_4 = arith.constant 0 : index
    %c0_5 = arith.constant 0 : index
    %5 = vector.load %arg4[%c0_4, %c0_5] : memref<256x256xf32, #tpu.memory_space<vmem>>, vector<256x256xf32>
    %cst = arith.constant dense<0.000000e+00> : vector<256x256xf32>
    %6 = tpu.matmul %4, %5, %cst {dimension_numbers = #tpu.dot_dimension_numbers<[1], [0], [0], [1], [0, 0, 1, 1], [], []>} : vector<256x256xf32>, vector<256x256xf32>, vector<256x256xf32> -> vector<256x256xf32>
    %7 = arith.addf %3, %6 : vector<256x256xf32>
    %c0_6 = arith.constant 0 : index
    %c0_7 = arith.constant 0 : index
    %8 = vector.load %arg7[%c0_6, %c0_7] : memref<256x256xf32, #tpu.memory_space<vmem>>, vector<256x256xf32>
    tpu.vector_store %arg7[%c0_6, %c0_7], %7 {strides = array<i32>} : memref<256x256xf32, #tpu.memory_space<vmem>>, vector<256x256xf32>,
    %c0_i32_8 = arith.constant 0 : i32
    %9 = arith.cmpi eq, %arg2, %c0_i32_8 : i32
    %10 = arith.extui %9 : i1 to i32
    %c0_i32_9 = arith.constant 0 : i32
    %11 = arith.cmpi ne, %10, %c0_i32_9 : i32
    scf.if %11 {
      %c0_10 = arith.constant 0 : index
      %c0_11 = arith.constant 0 : index
      %12 = vector.load %arg7[%c0_10, %c0_11] : memref<256x256xf32, #tpu.memory_space<vmem>>, vector<256x256xf32>
      %c0_12 = arith.constant 0 : index
      %c0_13 = arith.constant 0 : index
      %13 = vector.load %arg5[%c0_12, %c0_13] : memref<1x256xf32, #tpu.memory_space<vmem>>, vector<1x256xf32>
      %14 = vector.broadcast %13 : vector<1x256xf32> to vector<256x256xf32>
      %15 = arith.addf %12, %14 : vector<256x256xf32>
      %c0_14 = arith.constant 0 : index
      %c0_15 = arith.constant 0 : index
      %16 = vector.load %arg6[%c0_14, %c0_15] : memref<256x256xf32, #tpu.memory_space<vmem>>, vector<256x256xf32>
      tpu.vector_store %arg6[%c0_14, %c0_15], %15 {strides = array<i32>} : memref<256x256xf32, #tpu.memory_space<vmem>>, vector<256x256xf32>,
    } else {
    }
    return
  }
  func.func @transform_0(%arg0: i32, %arg1: i32, %arg2: i32) -> (i32, i32) {
    %c0_i32 = arith.constant 0 : i32
    return %arg0, %arg2 : i32, i32
  }
  func.func @transform_1(%arg0: i32, %arg1: i32, %arg2: i32) -> (i32, i32) {
    %c0_i32 = arith.constant 0 : i32
    return %arg2, %arg1 : i32, i32
  }
  func.func @transform_2(%arg0: i32, %arg1: i32, %arg2: i32) -> (i32, i32) {
    %c0_i32 = arith.constant 0 : i32
    %c0_i32_0 = arith.constant 0 : i32
    return %c0_i32, %arg1 : i32, i32
  }
  func.func @transform_3(%arg0: i32, %arg1: i32, %arg2: i32) -> (i32, i32) {
    %c0_i32 = arith.constant 0 : i32
    return %arg0, %arg1 : i32, i32
  }
}

</mosaic_0001>

<llo_original>
// kernel: custom-call.2
$region0: #{custom-call.2}
  %s0 = inlined_call_operand.vmem [shape: u32[4], index: 0, kind: output, shape index: {}]

// kernel: neg.1
$region0: #{neg.1}
  #allocation0 [shape = 's32[1]{0}', space=sflag, size = 0x4, scoped, tag = 'scoped memory for neg.1']
  %s0 = inlined_call_operand.vmem [shape: f32[256,64], index: 0, kind: input, shape index: {}]
  %s1 = inlined_call_operand.vmem [shape: f32[256,64], index: 1, kind: output, shape index: {}]
  %v2 = vld [vmem:[%s0] sm:$0xff]
  %3 = xla_tuple %v2
  %4 = xla_tuple %3
  %v5 = vxor.u32 %v2, 2147483648
  %6 = xla_tuple %v5
  %7 = vst [vmem:[%s1] sm:$0xff] %v5
  %s8 = scalar_lea.vmem %s0, 8
  %v9 = vld [vmem:[%s8] sm:$0xff]
  %10 = xla_tuple %v9
  %11 = xla_tuple %10
  %v12 = vxor.u32 %v9, 2147483648
  %13 = xla_tuple %v12
  %s14 = scalar_lea.vmem %s1, 8
  %15 = vst [vmem:[%s14] sm:$0xff] %v12
  %s16 = scalar_lea.vmem %s0, 16
  %v17 = vld [vmem:[%s16] sm:$0xff]
  %18 = xla_tuple %v17
  %19 = xla_tuple %18
  %v20 = vxor.u32 %v17, 2147483648
  %21 = xla_tuple %v20
  %s22 = scalar_lea.vmem %s1, 16
  %23 = vst [vmem:[%s22] sm:$0xff] %v20
  %s24 = scalar_lea.vmem %s0, 24
  %v25 = vld [vmem:[%s24] sm:$0xff]
  %26 = xla_tuple %v25
  %27 = xla_tuple %26
  %v28 = vxor.u32 %v25, 2147483648
  %29 = xla_tuple %v28
  %s30 = scalar_lea.vmem %s1, 24
  %31 = vst [vmem:[%s30] sm:$0xff] %v28
  %s32 = scalar_lea.vmem %s0, 32
  %v33 = vld [vmem:[%s32] sm:$0xff]
  %34 = xla_tuple %v33
  %35 = xla_tuple %34
  %v36 = vxor.u32 %v33, 2147483648
  %37 = xla_tuple %v36
  %s38 = scalar_lea.vmem %s1, 32
  %39 = vst [vmem:[%s38] sm:$0xff] %v36
  %s40 = scalar_lea.vmem %s0, 40
  %v41 = vld [vmem:[%s40] sm:$0xff]
  %42 = xla_tuple %v41
  %43 = xla_tuple %42
  %v44 = vxor.u32 %v41, 2147483648
  %45 = xla_tuple %v44
  %s46 = scalar_lea.vmem %s1, 40
  %47 = vst [vmem:[%s46] sm:$0xff] %v44
  %s48 = scalar_lea.vmem %s0, 48
  %v49 = vld [vmem:[%s48] sm:$0xff]
  %50 = xla_tuple %v49
  %51 = xla_tuple %50
  %v52 = vxor.u32 %v49, 2147483648
  %53 = xla_tuple %v52
  %s54 = scalar_lea.vmem %s1, 48
  %55 = vst [vmem:[%s54] sm:$0xff] %v52
  %s56 = scalar_lea.vmem %s0, 56
  %v57 = vld [vmem:[%s56] sm:$0xff]
  %58 = xla_tuple %v57
  %59 = xla_tuple %58
  %v60 = vxor.u32 %v57, 2147483648
  %61 = xla_tuple %v60
  %s62 = scalar_lea.vmem %s1, 56
  %63 = vst [vmem:[%s62] sm:$0xff] %v60
  %s64 = scalar_lea.vmem %s0, 64
  %v65 = vld [vmem:[%s64] sm:$0xff]
  %66 = xla_tuple %v65
  %67 = xla_tuple %66
  %v68 = vxor.u32 %v65, 2147483648
  %69 = xla_tuple %v68
  %s70 = scalar_lea.vmem %s1, 64
  %71 = vst [vmem:[%s70] sm:$0xff] %v68
  %s72 = scalar_lea.vmem %s0, 72
  %v73 = vld [vmem:[%s72] sm:$0xff]
  %74 = xla_tuple %v73
  %75 = xla_tuple %74
  %v76 = vxor.u32 %v73, 2147483648
  %77 = xla_tuple %v76
  %s78 = scalar_lea.vmem %s1, 72
  %79 = vst [vmem:[%s78] sm:$0xff] %v76
  %s80 = scalar_lea.vmem %s0, 80
  %v81 = vld [vmem:[%s80] sm:$0xff]
  %82 = xla_tuple %v81
  %83 = xla_tuple %82
  %v84 = vxor.u32 %v81, 2147483648
  %85 = xla_tuple %v84
  %s86 = scalar_lea.vmem %s1, 80
  %87 = vst [vmem:[%s86] sm:$0xff] %v84
  %s88 = scalar_lea.vmem %s0, 88
  %v89 = vld [vmem:[%s88] sm:$0xff]
  %90 = xla_tuple %v89
  %91 = xla_tuple %90
  %v92 = vxor.u32 %v89, 2147483648
  %93 = xla_tuple %v92
  %s94 = scalar_lea.vmem %s1, 88
  %95 = vst [vmem:[%s94] sm:$0xff] %v92
  %s96 = scalar_lea.vmem %s0, 96
  %v97 = vld [vmem:[%s96] sm:$0xff]
  %98 = xla_tuple %v97
  %99 = xla_tuple %98
  %v100 = vxor.u32 %v97, 2147483648
  %101 = xla_tuple %v100
  %s102 = scalar_lea.vmem %s1, 96
  %103 = vst [vmem:[%s102] sm:$0xff] %v100
  %s104 = scalar_lea.vmem %s0, 104
  %v105 = vld [vmem:[%s104] sm:$0xff]
  %106 = xla_tuple %v105
  %107 = xla_tuple %106
  %v108 = vxor.u32 %v105, 2147483648
  %109 = xla_tuple %v108
  %s110 = scalar_lea.vmem %s1, 104
  %111 = vst [vmem:[%s110] sm:$0xff] %v108
  %s112 = scalar_lea.vmem %s0, 112
  %v113 = vld [vmem:[%s112] sm:$0xff]
  %114 = xla_tuple %v113
  %115 = xla_tuple %114
  %v116 = vxor.u32 %v113, 2147483648
  %117 = xla_tuple %v116
  %s118 = scalar_lea.vmem %s1, 112
  %119 = vst [vmem:[%s118] sm:$0xff] %v116
  %s120 = scalar_lea.vmem %s0, 120
  %v121 = vld [vmem:[%s120] sm:$0xff]
  %122 = xla_tuple %v121
  %123 = xla_tuple %122
  %v124 = vxor.u32 %v121, 2147483648
  %125 = xla_tuple %v124
  %s126 = scalar_lea.vmem %s1, 120
  %127 = vst [vmem:[%s126] sm:$0xff] %v124
  %s128 = scalar_lea.vmem %s0, 128
  %v129 = vld [vmem:[%s128] sm:$0xff]
  %130 = xla_tuple %v129
  %131 = xla_tuple %130
  %v132 = vxor.u32 %v129, 2147483648
  %133 = xla_tuple %v132
  %s134 = scalar_lea.vmem %s1, 128
  %135 = vst [vmem:[%s134] sm:$0xff] %v132
  %s136 = scalar_lea.vmem %s0, 136
  %v137 = vld [vmem:[%s136] sm:$0xff]
  %138 = xla_tuple %v137
  %139 = xla_tuple %138
  %v140 = vxor.u32 %v137, 2147483648
  %141 = xla_tuple %v140
  %s142 = scalar_lea.vmem %s1, 136
  %143 = vst [vmem:[%s142] sm:$0xff] %v140
  %s144 = scalar_lea.vmem %s0, 144
  %v145 = vld [vmem:[%s144] sm:$0xff]
  %146 = xla_tuple %v145
  %147 = xla_tuple %146
  %v148 = vxor.u32 %v145, 2147483648
  %149 = xla_tuple %v148
  %s150 = scalar_lea.vmem %s1, 144
  %151 = vst [vmem:[%s150] sm:$0xff] %v148
  %s152 = scalar_lea.vmem %s0, 152
  %v153 = vld [vmem:[%s152] sm:$0xff]
  %154 = xla_tuple %v153
  %155 = xla_tuple %154
  %v156 = vxor.u32 %v153, 2147483648
  %157 = xla_tuple %v156
  %s158 = scalar_lea.vmem %s1, 152
  %159 = vst [vmem:[%s158] sm:$0xff] %v156
  %s160 = scalar_lea.vmem %s0, 160
  %v161 = vld [vmem:[%s160] sm:$0xff]
  %162 = xla_tuple %v161
  %163 = xla_tuple %162
  %v164 = vxor.u32 %v161, 2147483648
  %165 = xla_tuple %v164
  %s166 = scalar_lea.vmem %s1, 160
  %167 = vst [vmem:[%s166] sm:$0xff] %v164
  %s168 = scalar_lea.vmem %s0, 168
  %v169 = vld [vmem:[%s168] sm:$0xff]
  %170 = xla_tuple %v169
  %171 = xla_tuple %170
  %v172 = vxor.u32 %v169, 2147483648
  %173 = xla_tuple %v172
  %s174 = scalar_lea.vmem %s1, 168
  %175 = vst [vmem:[%s174] sm:$0xff] %v172
  %s176 = scalar_lea.vmem %s0, 176
  %v177 = vld [vmem:[%s176] sm:$0xff]
  %178 = xla_tuple %v177
  %179 = xla_tuple %178
  %v180 = vxor.u32 %v177, 2147483648
  %181 = xla_tuple %v180
  %s182 = scalar_lea.vmem %s1, 176
  %183 = vst [vmem:[%s182] sm:$0xff] %v180
  %s184 = scalar_lea.vmem %s0, 184
  %v185 = vld [vmem:[%s184] sm:$0xff]
  %186 = xla_tuple %v185
  %187 = xla_tuple %186
  %v188 = vxor.u32 %v185, 2147483648
  %189 = xla_tuple %v188
  %s190 = scalar_lea.vmem %s1, 184
  %191 = vst [vmem:[%s190] sm:$0xff] %v188
  %s192 = scalar_lea.vmem %s0, 192
  %v193 = vld [vmem:[%s192] sm:$0xff]
  %194 = xla_tuple %v193
  %195 = xla_tuple %194
  %v196 = vxor.u32 %v193, 2147483648
  %197 = xla_tuple %v196
  %s198 = scalar_lea.vmem %s1, 192
  %199 = vst [vmem:[%s198] sm:$0xff] %v196
  %s200 = scalar_lea.vmem %s0, 200
  %v201 = vld [vmem:[%s200] sm:$0xff]
  %202 = xla_tuple %v201
  %203 = xla_tuple %202
  %v204 = vxor.u32 %v201, 2147483648
  %205 = xla_tuple %v204
  %s206 = scalar_lea.vmem %s1, 200
  %207 = vst [vmem:[%s206] sm:$0xff] %v204
  %s208 = scalar_lea.vmem %s0, 208
  %v209 = vld [vmem:[%s208] sm:$0xff]
  %210 = xla_tuple %v209
  %211 = xla_tuple %210
  %v212 = vxor.u32 %v209, 2147483648
  %213 = xla_tuple %v212
  %s214 = scalar_lea.vmem %s1, 208
  %215 = vst [vmem:[%s214] sm:$0xff] %v212
  %s216 = scalar_lea.vmem %s0, 216
  %v217 = vld [vmem:[%s216] sm:$0xff]
  %218 = xla_tuple %v217
  %219 = xla_tuple %218
  %v220 = vxor.u32 %v217, 2147483648
  %221 = xla_tuple %v220
  %s222 = scalar_lea.vmem %s1, 216
  %223 = vst [vmem:[%s222] sm:$0xff] %v220
  %s224 = scalar_lea.vmem %s0, 224
  %v225 = vld [vmem:[%s224] sm:$0xff]
  %226 = xla_tuple %v225
  %227 = xla_tuple %226
  %v228 = vxor.u32 %v225, 2147483648
  %229 = xla_tuple %v228
  %s230 = scalar_lea.vmem %s1, 224
  %231 = vst [vmem:[%s230] sm:$0xff] %v228
  %s232 = scalar_lea.vmem %s0, 232
  %v233 = vld [vmem:[%s232] sm:$0xff]
  %234 = xla_tuple %v233
  %235 = xla_tuple %234
  %v236 = vxor.u32 %v233, 2147483648
  %237 = xla_tuple %v236
  %s238 = scalar_lea.vmem %s1, 232
  %239 = vst [vmem:[%s238] sm:$0xff] %v236
  %s240 = scalar_lea.vmem %s0, 240
  %v241 = vld [vmem:[%s240] sm:$0xff]
  %242 = xla_tuple %v241
  %243 = xla_tuple %242
  %v244 = vxor.u32 %v241, 2147483648
  %245 = xla_tuple %v244
  %s246 = scalar_lea.vmem %s1, 240
  %247 = vst [vmem:[%s246] sm:$0xff] %v244
  %s248 = scalar_lea.vmem %s0, 248
  %v249 = vld [vmem:[%s248] sm:$0xff]
  %250 = xla_tuple %v249
  %251 = xla_tuple %250
  %v252 = vxor.u32 %v249, 2147483648
  %253 = xla_tuple %v252
  %s254 = scalar_lea.vmem %s1, 248
  %255 = vst [vmem:[%s254] sm:$0xff] %v252

// kernel: custom-call.4
$region0: #{custom-call.4}
  %s0 = inlined_call_operand.vmem [shape: u32[256], index: 0, kind: output, shape index: {}]

// kernel: qwen2_5_vision_attention.5
$region0: #{qwen2_5_vision_attention.5}
  #allocation0 [shape = 'u32[]', space=smem, size = 0x4, offset = 0x4, fixed_abs, tag = 'smem constant byte address 0x4 - core index']
  #allocation1 [shape = 'u32[72,128]{1,0:T(1,128)}', space=vmem, size = 0x9000, scoped, tag = 'internal scratch']
  %s0 = inlined_call_operand.vmem [shape: f32[256,768], index: 0, kind: input, shape index: {}, may-alias: {0,1}]
  %s1 = inlined_call_operand.vmem [shape: f32[256,768], index: 1, kind: input, shape index: {}, may-alias: {0,1}]
  %s2 = inlined_call_operand.vmem [shape: f32[256,128], index: 2, kind: input, shape index: {}]
  %s3 = inlined_call_operand.vmem [shape: f32[256,128], index: 3, kind: input, shape index: {}]
  %s4 = inlined_call_operand.vmem [shape: f32[2,256,128], index: 4, kind: output, shape index: {0}]
  %s5 = inlined_call_operand.vmem [shape: f32[2,256,128], index: 5, kind: output, shape index: {1}]
  %6 = xla_tuple %s4, %s5
  %s7 = sld [smem:[#allocation0]]
  $region133: #{qwen2_5_vision_attention.5} parent=0
    _
  %s9 = ssub.s32 1, %s7
  %s10 = scalar_select 0, %s9, %s7
  $region1: #{qwen2_5_vision_attention.5} parent=0
    #allocation2 [shape = 'u8[262144]{0}', space=vmem, size = 0x40000, scoped, tag = 'input window, operand 0']
    #allocation3 [shape = 'u8[262144]{0}', space=vmem, size = 0x40000, scoped, tag = 'input window, operand 1']
    loop: start=0, step=1, limit=4
    $region2: #{qwen2_5_vision_attention.5} parent=1 // loop_pre_header
      _
    $region3: #{qwen2_5_vision_attention.5} parent=1 // loop_header
      %s12 = sphi 0, %s16
      %p13 = scmp.ge.s32.totalorder %s12, 4
      %s19 = sphi 0, %s31
      %s20 = sphi 0, %s27
      %s21 = sphi 0, %s19
      %s22 = sphi 0, %s20
      %s23 = sphi 0, %s21
      %s24 = sphi 0, %s22
      %s36 = sphi 0, %s38
      %s39 = sphi 0, %s36
      %s40 = sphi 0, %s39
      %s56 = sphi 0, %s40
      %s66 = sphi 0, %s68
      %s69 = sphi 0, %s66
      %s70 = sphi 0, %s69
      %s86 = sphi 0, %s70
      %s92 = sphi 0, %s94
      %s95 = sphi 0, %s92
      %s96 = sphi 0, %s95
      %s112 = sphi 0, %s96
      %s118 = sphi 0, %s120
      %s121 = sphi 0, %s118
      %s122 = sphi 0, %s121
      %s138 = sphi 0, %s122
      %s146 = sphi 0, %s148
      %s149 = sphi 0, %s146
      %s150 = sphi 0, %s149
      %s166 = sphi 0, %s150
      %s174 = sphi 0, %s176
      %s177 = sphi 0, %s174
      %s178 = sphi 0, %s177
      %s194 = sphi 0, %s178
    $region4: #{qwen2_5_vision_attention.5} parent=1 // loop_header_branch
      %15 = sbr.rel (%p13) target = $region8
    $region5: #{qwen2_5_vision_attention.5} parent=1 // loop_body
      %s17 = ssub.s32 %s12, 1
      %s18 = ssub.s32 %s12, 2
      %s25 = sadd.s32 1, %s20
      %p26 = scmp.ge.s32.totalorder %s25, 2
      %s27 = scalar_select %p26, 0, %s25
      %s28 = sadd.s32 1, %s19
      %s29 = scalar_select %p26, %s28, %s19
      %p30 = scmp.ge.s32.totalorder %s29, 1
      %s31 = scalar_select %p30, 0, %s29
      %s32 = ssub.s32 %s19, %s31
      %s33 = ssub.s32 %s20, %s27
      %s34 = sor.u32 %s32, %s33
      %p35 = scmp.eq.s32.totalorder %s34, 0
      %s37 = sadd.s32 %s36, 1
      %s38 = scalar_select %p35, %s36, %s37
      %p41 = pneg %p35
      %p42 = scmp.eq.s32.totalorder %s12, 1
      %p43 = por %p41, %p42
      %p44 = scmp.ne.s32.totalorder %s36, %s39
      %p45 = scmp.eq.s32.totalorder %s12, 0
      %p46 = por %p44, %p45
      %p47 = scmp.ne.s32.totalorder %s36, %s39
      %p48 = scmp.eq.s32.totalorder %s17, 1
      %p49 = por %p47, %p48
      %p50 = scmp.ne.s32.totalorder %s39, %s40
      %p51 = scmp.eq.s32.totalorder %s17, 0
      %p52 = por %p50, %p51
      %p53 = scmp.ne.s32.totalorder %s39, %s40
      %p54 = scmp.eq.s32.totalorder %s18, 1
      %p55 = por %p53, %p54
      %p57 = scmp.ne.s32.totalorder %s40, %s56
      %p58 = scmp.eq.s32.totalorder %s18, 0
      %p59 = por %p57, %p58
      %s60 = sadd.s32 %s20, 2
      %s61 = sadd.s32 %s27, 2
      %s62 = ssub.s32 %s19, %s31
      %s63 = ssub.s32 %s60, %s61
      %s64 = sor.u32 %s62, %s63
      %p65 = scmp.eq.s32.totalorder %s64, 0
      %s67 = sadd.s32 %s66, 1
      %s68 = scalar_select %p65, %s66, %s67
      %p71 = pneg %p65
      %p72 = scmp.eq.s32.totalorder %s12, 1
      %p73 = por %p71, %p72
      %p74 = scmp.ne.s32.totalorder %s66, %s69
      %p75 = scmp.eq.s32.totalorder %s12, 0
      %p76 = por %p74, %p75
      %p77 = scmp.ne.s32.totalorder %s66, %s69
      %p78 = scmp.eq.s32.totalorder %s17, 1
      %p79 = por %p77, %p78
      %p80 = scmp.ne.s32.totalorder %s69, %s70
      %p81 = scmp.eq.s32.totalorder %s17, 0
      %p82 = por %p80, %p81
      %p83 = scmp.ne.s32.totalorder %s69, %s70
      %p84 = scmp.eq.s32.totalorder %s18, 1
      %p85 = por %p83, %p84
      %p87 = scmp.ne.s32.totalorder %s70, %s86
      %p88 = scmp.eq.s32.totalorder %s18, 0
      %p89 = por %p87, %p88
      %s90 = ssub.s32 %s19, %s31
      %p91 = scmp.eq.s32.totalorder %s90, 0
      %s93 = sadd.s32 %s92, 1
      %s94 = scalar_select %p91, %s92, %s93
      %p97 = pneg %p91
      %p98 = scmp.eq.s32.totalorder %s12, 1
      %p99 = por %p97, %p98
      %p100 = scmp.ne.s32.totalorder %s92, %s95
      %p101 = scmp.eq.s32.totalorder %s12, 0
      %p102 = por %p100, %p101
      %p103 = scmp.ne.s32.totalorder %s92, %s95
      %p104 = scmp.eq.s32.totalorder %s17, 1
      %p105 = por %p103, %p104
      %p106 = scmp.ne.s32.totalorder %s95, %s96
      %p107 = scmp.eq.s32.totalorder %s17, 0
      %p108 = por %p106, %p107
      %p109 = scmp.ne.s32.totalorder %s95, %s96
      %p110 = scmp.eq.s32.totalorder %s18, 1
      %p111 = por %p109, %p110
      %p113 = scmp.ne.s32.totalorder %s96, %s112
      %p114 = scmp.eq.s32.totalorder %s18, 0
      %p115 = por %p113, %p114
      %s116 = ssub.s32 %s19, %s31
      %p117 = scmp.eq.s32.totalorder %s116, 0
      %s119 = sadd.s32 %s118, 1
      %s120 = scalar_select %p117, %s118, %s119
      %p123 = pneg %p117
      %p124 = scmp.eq.s32.totalorder %s12, 1
      %p125 = por %p123, %p124
      %p126 = scmp.ne.s32.totalorder %s118, %s121
      %p127 = scmp.eq.s32.totalorder %s12, 0
      %p128 = por %p126, %p127
      %p129 = scmp.ne.s32.totalorder %s118, %s121
      %p130 = scmp.eq.s32.totalorder %s17, 1
      %p131 = por %p129, %p130
      %p132 = scmp.ne.s32.totalorder %s121, %s122
      %p133 = scmp.eq.s32.totalorder %s17, 0
      %p134 = por %p132, %p133
      %p135 = scmp.ne.s32.totalorder %s121, %s122
      %p136 = scmp.eq.s32.totalorder %s18, 1
      %p137 = por %p135, %p136
      %p139 = scmp.ne.s32.totalorder %s122, %s138
      %p140 = scmp.eq.s32.totalorder %s18, 0
      %p141 = por %p139, %p140
      %s142 = ssub.s32 %s20, %s27
      %s143 = ssub.s32 %s19, %s31
      %s144 = sor.u32 %s142, %s143
      %p145 = scmp.eq.s32.totalorder %s144, 0
      %s147 = sadd.s32 %s146, 1
      %s148 = scalar_select %p145, %s146, %s147
      %p151 = pneg %p145
      %p152 = scmp.eq.s32.totalorder %s12, 1
      %p153 = por %p151, %p152
      %p154 = scmp.ne.s32.totalorder %s146, %s149
      %p155 = scmp.eq.s32.totalorder %s12, 0
      %p156 = por %p154, %p155
      %p157 = scmp.ne.s32.totalorder %s146, %s149
      %p158 = scmp.eq.s32.totalorder %s17, 1
      %p159 = por %p157, %p158
      %p160 = scmp.ne.s32.totalorder %s149, %s150
      %p161 = scmp.eq.s32.totalorder %s17, 0
      %p162 = por %p160, %p161
      %p163 = scmp.ne.s32.totalorder %s149, %s150
      %p164 = scmp.eq.s32.totalorder %s18, 1
      %p165 = por %p163, %p164
      %p167 = scmp.ne.s32.totalorder %s150, %s166
      %p168 = scmp.eq.s32.totalorder %s18, 0
      %p169 = por %p167, %p168
      %s170 = ssub.s32 %s20, %s27
      %s171 = ssub.s32 %s19, %s31
      %s172 = sor.u32 %s170, %s171
      %p173 = scmp.eq.s32.totalorder %s172, 0
      %s175 = sadd.s32 %s174, 1
      %s176 = scalar_select %p173, %s174, %s175
      %p179 = pneg %p173
      %p180 = scmp.eq.s32.totalorder %s12, 1
      %p181 = por %p179, %p180
      %p182 = scmp.ne.s32.totalorder %s174, %s177
      %p183 = scmp.eq.s32.totalorder %s12, 0
      %p184 = por %p182, %p183
      %p185 = scmp.ne.s32.totalorder %s174, %s177
      %p186 = scmp.eq.s32.totalorder %s17, 1
      %p187 = por %p185, %p186
      %p188 = scmp.ne.s32.totalorder %s177, %s178
      %p189 = scmp.eq.s32.totalorder %s17, 0
      %p190 = por %p188, %p189
      %p191 = scmp.ne.s32.totalorder %s177, %s178
      %p192 = scmp.eq.s32.totalorder %s18, 1
      %p193 = por %p191, %p192
      %p195 = scmp.ne.s32.totalorder %s178, %s194
      %p196 = scmp.eq.s32.totalorder %s18, 0
      %p197 = por %p195, %p196
      %p198 = scmp.le.s32.totalorder 1, %s12
      %p199 = scmp.lt.s32.totalorder %s12, 3
      %p200 = pnand %p198, %p199
      %p201 = pneg %p200
      // Predicated region
      $region9: #{qwen2_5_vision_attention.5} parent=5 // pred_check
        _
      $region10: #{qwen2_5_vision_attention.5} parent=5 // pred_check_branch
        %203 = sbr.rel (%p200) target = $region12
      $region11: #{qwen2_5_vision_attention.5} parent=5 // pred_region
        %s204 = ssub.s32 %s12, 1
        // Predicated region
        $region13: #{qwen2_5_vision_attention.5} parent=11 // pred_check
          %p205 = pneg %p108
        $region14: #{qwen2_5_vision_attention.5} parent=11 // pred_check_branch
          %207 = sbr.rel (%p205) target = $region16
        $region15: #{qwen2_5_vision_attention.5} parent=11 // pred_region
          %s208 = smul.u32 32, %s21
          %p209 = scmp.lt.s32.totalorder %s208, 31
          %s210 = scalar_select %p209, %s208, 31
          %s211 = smul.addr %s210, 8
          %s212 = scalar_lea.vmem %s2, %s211
          %s213 = smul.u32 32, %s21
        $region16: #{qwen2_5_vision_attention.5} parent=11 // pred_fallthru
          _
        // Predicated region
        $region17: #{qwen2_5_vision_attention.5} parent=11 // pred_check
          %p214 = pneg %p134
        $region18: #{qwen2_5_vision_attention.5} parent=11 // pred_check_branch
          %216 = sbr.rel (%p214) target = $region20
        $region19: #{qwen2_5_vision_attention.5} parent=11 // pred_region
          %s217 = smul.u32 32, %s21
          %p218 = scmp.lt.s32.totalorder %s217, 31
          %s219 = scalar_select %p218, %s217, 31
          %s220 = smul.addr %s219, 8
          %s221 = scalar_lea.vmem %s3, %s220
          %s222 = smul.u32 32, %s21
        $region20: #{qwen2_5_vision_attention.5} parent=11 // pred_fallthru
          _
      $region12: #{qwen2_5_vision_attention.5} parent=5 // pred_fallthru
        _
      %p223 = scmp.lt.s32.totalorder %s12, 2
      // Predicated region
      $region21: #{qwen2_5_vision_attention.5} parent=5 // pred_check
        %p224 = pneg %p223
      $region22: #{qwen2_5_vision_attention.5} parent=5 // pred_check_branch
        %226 = sbr.rel (%p224) target = $region24
      $region23: #{qwen2_5_vision_attention.5} parent=5 // pred_region
        // Predicated region
        $region25: #{qwen2_5_vision_attention.5} parent=23 // pred_check
          %p227 = pneg %p46
        $region26: #{qwen2_5_vision_attention.5} parent=23 // pred_check_branch
          %229 = sbr.rel (%p227) target = $region28
        $region27: #{qwen2_5_vision_attention.5} parent=23 // pred_region
          %s230 = sand.u32 %s36, 1
          %s231 = sand.u32 %s36, 1
          %s232 = smul.addr %s231, 256
          %s233 = scalar_lea.vmem [#allocation2], %s232
          %s234 = smul.u32 32, %s19
          %s235 = smul.addr %s234, 6
          %s236 = sadd.s32 %s20, %s235
          %s237 = smul.addr %s236, 8
          %s238 = scalar_lea.vmem %s0, %s237
          // Predicated region
          $region29: #{qwen2_5_vision_attention.5} parent=27 // pred_check
            _
          $region30: #{qwen2_5_vision_attention.5} parent=27 // pred_check_branch
            %240 = sbr.rel (0) target = $region32
          $region31: #{qwen2_5_vision_attention.5} parent=27 // pred_region
            // Predicated region
            $region33: #{qwen2_5_vision_attention.5} parent=31 // pred_check
              _
            $region34: #{qwen2_5_vision_attention.5} parent=31 // pred_check_branch
              %242 = sbr.rel (0) target = $region36
            $region35: #{qwen2_5_vision_attention.5} parent=31 // pred_region
              // Predicated region
              $region48: #{qwen2_5_vision_attention.5} parent=35 // pred_check
                _
              $region49: #{qwen2_5_vision_attention.5} parent=35 // pred_check_branch
                %320 = sbr.rel (0) target = $region51
              $region50: #{qwen2_5_vision_attention.5} parent=35 // pred_region
                loop: start=0, step=1, limit=1
                $region52: #{qwen2_5_vision_attention.5} parent=50 // loop_pre_header
                  _
                $region53: #{qwen2_5_vision_attention.5} parent=50 // loop_header
                  %s322 = sphi 0, %s326
                  %p323 = scmp.ge.s32.totalorder %s322, 1
                  %s327 = sphi %s238, %s238
                  %s328 = sphi %s233, %s233
                $region54: #{qwen2_5_vision_attention.5} parent=50 // loop_header_branch
                  %325 = sbr.rel (%p323) target = $region58
                $region55: #{qwen2_5_vision_attention.5} parent=50 // loop_body
                  %v329 = vld [vmem:[%s327] sm:$0xff]
                  %330 = vst [vmem:[%s328] sm:$0xff] %v329
                  %v331 = vld [vmem:[%s327 + $0x30] sm:$0xff]
                  %332 = vst [vmem:[%s328 + $0x8] sm:$0xff] %v331
                  %v333 = vld [vmem:[%s327 + $0x60] sm:$0xff]
                  %334 = vst [vmem:[%s328 + $0x10] sm:$0xff] %v333
                  %v335 = vld [vmem:[%s327 + $0x90] sm:$0xff]
                  %336 = vst [vmem:[%s328 + $0x18] sm:$0xff] %v335
                  %v337 = vld [vmem:[%s327 + $0xc0] sm:$0xff]
                  %338 = vst [vmem:[%s328 + $0x20] sm:$0xff] %v337
                  %v339 = vld [vmem:[%s327 + $0xf0] sm:$0xff]
                  %340 = vst [vmem:[%s328 + $0x28] sm:$0xff] %v339
                  %v341 = vld [vmem:[%s327 + $0x120] sm:$0xff]
                  %342 = vst [vmem:[%s328 + $0x30] sm:$0xff] %v341
                  %v343 = vld [vmem:[%s327 + $0x150] sm:$0xff]
                  %344 = vst [vmem:[%s328 + $0x38] sm:$0xff] %v343
                  %v345 = vld [vmem:[%s327 + $0x180] sm:$0xff]
                  %346 = vst [vmem:[%s328 + $0x40] sm:$0xff] %v345
                  %v347 = vld [vmem:[%s327 + $0x1b0] sm:$0xff]
                  %348 = vst [vmem:[%s328 + $0x48] sm:$0xff] %v347
                  %v349 = vld [vmem:[%s327 + $0x1e0] sm:$0xff]
                  %350 = vst [vmem:[%s328 + $0x50] sm:$0xff] %v349
                  %v351 = vld [vmem:[%s327 + $0x210] sm:$0xff]
                  %352 = vst [vmem:[%s328 + $0x58] sm:$0xff] %v351
                  %v353 = vld [vmem:[%s327 + $0x240] sm:$0xff]
                  %354 = vst [vmem:[%s328 + $0x60] sm:$0xff] %v353
                  %v355 = vld [vmem:[%s327 + $0x270] sm:$0xff]
                  %356 = vst [vmem:[%s328 + $0x68] sm:$0xff] %v355
                  %v357 = vld [vmem:[%s327 + $0x2a0] sm:$0xff]
                  %358 = vst [vmem:[%s328 + $0x70] sm:$0xff] %v357
                  %v359 = vld [vmem:[%s327 + $0x2d0] sm:$0xff]
                  %360 = vst [vmem:[%s328 + $0x78] sm:$0xff] %v359
                  %v361 = vld [vmem:[%s327 + $0x300] sm:$0xff]
                  %362 = vst [vmem:[%s328 + $0x80] sm:$0xff] %v361
                  %v363 = vld [vmem:[%s327 + $0x330] sm:$0xff]
                  %364 = vst [vmem:[%s328 + $0x88] sm:$0xff] %v363
                  %v365 = vld [vmem:[%s327 + $0x360] sm:$0xff]
                  %366 = vst [vmem:[%s328 + $0x90] sm:$0xff] %v365
                  %v367 = vld [vmem:[%s327 + $0x390] sm:$0xff]
                  %368 = vst [vmem:[%s328 + $0x98] sm:$0xff] %v367
                  %v369 = vld [vmem:[%s327 + $0x3c0] sm:$0xff]
                  %370 = vst [vmem:[%s328 + $0xa0] sm:$0xff] %v369
                  %v371 = vld [vmem:[%s327 + $0x3f0] sm:$0xff]
                  %372 = vst [vmem:[%s328 + $0xa8] sm:$0xff] %v371
                  %v373 = vld [vmem:[%s327 + $0x420] sm:$0xff]
                  %374 = vst [vmem:[%s328 + $0xb0] sm:$0xff] %v373
                  %v375 = vld [vmem:[%s327 + $0x450] sm:$0xff]
                  %376 = vst [vmem:[%s328 + $0xb8] sm:$0xff] %v375
                  %v377 = vld [vmem:[%s327 + $0x480] sm:$0xff]
                  %378 = vst [vmem:[%s328 + $0xc0] sm:$0xff] %v377
                  %v379 = vld [vmem:[%s327 + $0x4b0] sm:$0xff]
                  %380 = vst [vmem:[%s328 + $0xc8] sm:$0xff] %v379
                  %v381 = vld [vmem:[%s327 + $0x4e0] sm:$0xff]
                  %382 = vst [vmem:[%s328 + $0xd0] sm:$0xff] %v381
                  %v383 = vld [vmem:[%s327 + $0x510] sm:$0xff]
                  %384 = vst [vmem:[%s328 + $0xd8] sm:$0xff] %v383
                  %v385 = vld [vmem:[%s327 + $0x540] sm:$0xff]
                  %386 = vst [vmem:[%s328 + $0xe0] sm:$0xff] %v385
                  %v387 = vld [vmem:[%s327 + $0x570] sm:$0xff]
                  %388 = vst [vmem:[%s328 + $0xe8] sm:$0xff] %v387
                  %v389 = vld [vmem:[%s327 + $0x5a0] sm:$0xff]
                  %390 = vst [vmem:[%s328 + $0xf0] sm:$0xff] %v389
                  %v391 = vld [vmem:[%s327 + $0x5d0] sm:$0xff]
                  %392 = vst [vmem:[%s328 + $0xf8] sm:$0xff] %v391
                $region56: #{qwen2_5_vision_attention.5} parent=50 // loop_footer
                  %s326 = sadd.s32 1, %s322
                $region57: #{qwen2_5_vision_attention.5} parent=50 // loop_footer_branch
                  %321 = sbr.rel target = $region53
                $region58: #{qwen2_5_vision_attention.5} parent=50 // loop_exit
                  _
              $region51: #{qwen2_5_vision_attention.5} parent=35 // pred_fallthru
                _
              // Predicated region
              $region59: #{qwen2_5_vision_attention.5} parent=35 // pred_check
                _
              $region60: #{qwen2_5_vision_attention.5} parent=35 // pred_check_branch
                %394 = sbr.rel target = $region62
              $region61: #{qwen2_5_vision_attention.5} parent=35 // pred_region
                _
              $region62: #{qwen2_5_vision_attention.5} parent=35 // pred_fallthru
                _
            $region36: #{qwen2_5_vision_attention.5} parent=31 // pred_fallthru
              _
            // Predicated region
            $region37: #{qwen2_5_vision_attention.5} parent=31 // pred_check
              _
            $region38: #{qwen2_5_vision_attention.5} parent=31 // pred_check_branch
              %244 = sbr.rel target = $region40
            $region39: #{qwen2_5_vision_attention.5} parent=31 // pred_region
              %s246 = ssub.s32 256, 1
              loop: start=0, step=1, limit=1
              $region41: #{qwen2_5_vision_attention.5} parent=39 // loop_pre_header
                _
              $region42: #{qwen2_5_vision_attention.5} parent=39 // loop_header
                %s248 = sphi 0, %s252
                %p249 = scmp.ge.s32.totalorder %s248, 1
                %s253 = sphi %s238, %s238
                %s254 = sphi %s233, %s233
              $region43: #{qwen2_5_vision_attention.5} parent=39 // loop_header_branch
                %251 = sbr.rel (%p249) target = $region47
              $region44: #{qwen2_5_vision_attention.5} parent=39 // loop_body
                %v255 = vld [vmem:[%s253] sm:%s246]
                %256 = vst [vmem:[%s254] sm:%s246] %v255
                %v257 = vld [vmem:[%s253 + $0x30] sm:%s246]
                %258 = vst [vmem:[%s254 + $0x8] sm:%s246] %v257
                %v259 = vld [vmem:[%s253 + $0x60] sm:%s246]
                %260 = vst [vmem:[%s254 + $0x10] sm:%s246] %v259
                %v261 = vld [vmem:[%s253 + $0x90] sm:%s246]
                %262 = vst [vmem:[%s254 + $0x18] sm:%s246] %v261
                %v263 = vld [vmem:[%s253 + $0xc0] sm:%s246]
                %264 = vst [vmem:[%s254 + $0x20] sm:%s246] %v263
                %v265 = vld [vmem:[%s253 + $0xf0] sm:%s246]
                %266 = vst [vmem:[%s254 + $0x28] sm:%s246] %v265
                %v267 = vld [vmem:[%s253 + $0x120] sm:%s246]
                %268 = vst [vmem:[%s254 + $0x30] sm:%s246] %v267
                %v269 = vld [vmem:[%s253 + $0x150] sm:%s246]
                %270 = vst [vmem:[%s254 + $0x38] sm:%s246] %v269
                %v271 = vld [vmem:[%s253 + $0x180] sm:%s246]
                %272 = vst [vmem:[%s254 + $0x40] sm:%s246] %v271
                %v273 = vld [vmem:[%s253 + $0x1b0] sm:%s246]
                %274 = vst [vmem:[%s254 + $0x48] sm:%s246] %v273
                %v275 = vld [vmem:[%s253 + $0x1e0] sm:%s246]
                %276 = vst [vmem:[%s254 + $0x50] sm:%s246] %v275
                %v277 = vld [vmem:[%s253 + $0x210] sm:%s246]
                %278 = vst [vmem:[%s254 + $0x58] sm:%s246] %v277
                %v279 = vld [vmem:[%s253 + $0x240] sm:%s246]
                %280 = vst [vmem:[%s254 + $0x60] sm:%s246] %v279
                %v281 = vld [vmem:[%s253 + $0x270] sm:%s246]
                %282 = vst [vmem:[%s254 + $0x68] sm:%s246] %v281
                %v283 = vld [vmem:[%s253 + $0x2a0] sm:%s246]
                %284 = vst [vmem:[%s254 + $0x70] sm:%s246] %v283
                %v285 = vld [vmem:[%s253 + $0x2d0] sm:%s246]
                %286 = vst [vmem:[%s254 + $0x78] sm:%s246] %v285
                %v287 = vld [vmem:[%s253 + $0x300] sm:%s246]
                %288 = vst [vmem:[%s254 + $0x80] sm:%s246] %v287
                %v289 = vld [vmem:[%s253 + $0x330] sm:%s246]
                %290 = vst [vmem:[%s254 + $0x88] sm:%s246] %v289
                %v291 = vld [vmem:[%s253 + $0x360] sm:%s246]
                %292 = vst [vmem:[%s254 + $0x90] sm:%s246] %v291
                %v293 = vld [vmem:[%s253 + $0x390] sm:%s246]
                %294 = vst [vmem:[%s254 + $0x98] sm:%s246] %v293
                %v295 = vld [vmem:[%s253 + $0x3c0] sm:%s246]
                %296 = vst [vmem:[%s254 + $0xa0] sm:%s246] %v295
                %v297 = vld [vmem:[%s253 + $0x3f0] sm:%s246]
                %298 = vst [vmem:[%s254 + $0xa8] sm:%s246] %v297
                %v299 = vld [vmem:[%s253 + $0x420] sm:%s246]
                %300 = vst [vmem:[%s254 + $0xb0] sm:%s246] %v299
                %v301 = vld [vmem:[%s253 + $0x450] sm:%s246]
                %302 = vst [vmem:[%s254 + $0xb8] sm:%s246] %v301
                %v303 = vld [vmem:[%s253 + $0x480] sm:%s246]
                %304 = vst [vmem:[%s254 + $0xc0] sm:%s246] %v303
                %v305 = vld [vmem:[%s253 + $0x4b0] sm:%s246]
                %306 = vst [vmem:[%s254 + $0xc8] sm:%s246] %v305
                %v307 = vld [vmem:[%s253 + $0x4e0] sm:%s246]
                %308 = vst [vmem:[%s254 + $0xd0] sm:%s246] %v307
                %v309 = vld [vmem:[%s253 + $0x510] sm:%s246]
                %310 = vst [vmem:[%s254 + $0xd8] sm:%s246] %v309
                %v311 = vld [vmem:[%s253 + $0x540] sm:%s246]
                %312 = vst [vmem:[%s254 + $0xe0] sm:%s246] %v311
                %v313 = vld [vmem:[%s253 + $0x570] sm:%s246]
                %314 = vst [vmem:[%s254 + $0xe8] sm:%s246] %v313
                %v315 = vld [vmem:[%s253 + $0x5a0] sm:%s246]
                %316 = vst [vmem:[%s254 + $0xf0] sm:%s246] %v315
                %v317 = vld [vmem:[%s253 + $0x5d0] sm:%s246]
                %318 = vst [vmem:[%s254 + $0xf8] sm:%s246] %v317
              $region45: #{qwen2_5_vision_attention.5} parent=39 // loop_footer
                %s252 = sadd.s32 1, %s248
              $region46: #{qwen2_5_vision_attention.5} parent=39 // loop_footer_branch
                %247 = sbr.rel target = $region42
              $region47: #{qwen2_5_vision_attention.5} parent=39 // loop_exit
                _
            $region40: #{qwen2_5_vision_attention.5} parent=31 // pred_fallthru
              _
          $region32: #{qwen2_5_vision_attention.5} parent=27 // pred_fallthru
            _
          %395 = vnop
        $region28: #{qwen2_5_vision_attention.5} parent=23 // pred_fallthru
          _
        // Predicated region
        $region63: #{qwen2_5_vision_attention.5} parent=23 // pred_check
          %p396 = pneg %p76
        $region64: #{qwen2_5_vision_attention.5} parent=23 // pred_check_branch
          %398 = sbr.rel (%p396) target = $region66
        $region65: #{qwen2_5_vision_attention.5} parent=23 // pred_region
          %s399 = sand.u32 %s66, 1
          %s400 = sand.u32 %s66, 1
          %s401 = smul.addr %s400, 256
          %s402 = scalar_lea.vmem [#allocation3], %s401
          %s403 = sadd.s32 %s20, 2
          %s404 = smul.u32 32, %s19
          %s405 = smul.addr %s404, 6
          %s406 = sadd.s32 %s403, %s405
          %s407 = smul.addr %s406, 8
          %s408 = scalar_lea.vmem %s1, %s407
          // Predicated region
          $region67: #{qwen2_5_vision_attention.5} parent=65 // pred_check
            _
          $region68: #{qwen2_5_vision_attention.5} parent=65 // pred_check_branch
            %410 = sbr.rel (0) target = $region70
          $region69: #{qwen2_5_vision_attention.5} parent=65 // pred_region
            // Predicated region
            $region71: #{qwen2_5_vision_attention.5} parent=69 // pred_check
              _
            $region72: #{qwen2_5_vision_attention.5} parent=69 // pred_check_branch
              %412 = sbr.rel (0) target = $region74
            $region73: #{qwen2_5_vision_attention.5} parent=69 // pred_region
              // Predicated region
              $region86: #{qwen2_5_vision_attention.5} parent=73 // pred_check
                _
              $region87: #{qwen2_5_vision_attention.5} parent=73 // pred_check_branch
                %490 = sbr.rel (0) target = $region89
              $region88: #{qwen2_5_vision_attention.5} parent=73 // pred_region
                loop: start=0, step=1, limit=1
                $region90: #{qwen2_5_vision_attention.5} parent=88 // loop_pre_header
                  _
                $region91: #{qwen2_5_vision_attention.5} parent=88 // loop_header
                  %s492 = sphi 0, %s496
                  %p493 = scmp.ge.s32.totalorder %s492, 1
                  %s497 = sphi %s408, %s408
                  %s498 = sphi %s402, %s402
                $region92: #{qwen2_5_vision_attention.5} parent=88 // loop_header_branch
                  %495 = sbr.rel (%p493) target = $region96
                $region93: #{qwen2_5_vision_attention.5} parent=88 // loop_body
                  %v499 = vld [vmem:[%s497] sm:$0xff]
                  %500 = vst [vmem:[%s498] sm:$0xff] %v499
                  %v501 = vld [vmem:[%s497 + $0x30] sm:$0xff]
                  %502 = vst [vmem:[%s498 + $0x8] sm:$0xff] %v501
                  %v503 = vld [vmem:[%s497 + $0x60] sm:$0xff]
                  %504 = vst [vmem:[%s498 + $0x10] sm:$0xff] %v503
                  %v505 = vld [vmem:[%s497 + $0x90] sm:$0xff]
                  %506 = vst [vmem:[%s498 + $0x18] sm:$0xff] %v505
                  %v507 = vld [vmem:[%s497 + $0xc0] sm:$0xff]
                  %508 = vst [vmem:[%s498 + $0x20] sm:$0xff] %v507
                  %v509 = vld [vmem:[%s497 + $0xf0] sm:$0xff]
                  %510 = vst [vmem:[%s498 + $0x28] sm:$0xff] %v509
                  %v511 = vld [vmem:[%s497 + $0x120] sm:$0xff]
                  %512 = vst [vmem:[%s498 + $0x30] sm:$0xff] %v511
                  %v513 = vld [vmem:[%s497 + $0x150] sm:$0xff]
                  %514 = vst [vmem:[%s498 + $0x38] sm:$0xff] %v513
                  %v515 = vld [vmem:[%s497 + $0x180] sm:$0xff]
                  %516 = vst [vmem:[%s498 + $0x40] sm:$0xff] %v515
                  %v517 = vld [vmem:[%s497 + $0x1b0] sm:$0xff]
                  %518 = vst [vmem:[%s498 + $0x48] sm:$0xff] %v517
                  %v519 = vld [vmem:[%s497 + $0x1e0] sm:$0xff]
                  %520 = vst [vmem:[%s498 + $0x50] sm:$0xff] %v519
                  %v521 = vld [vmem:[%s497 + $0x210] sm:$0xff]
                  %522 = vst [vmem:[%s498 + $0x58] sm:$0xff] %v521
                  %v523 = vld [vmem:[%s497 + $0x240] sm:$0xff]
                  %524 = vst [vmem:[%s498 + $0x60] sm:$0xff] %v523
                  %v525 = vld [vmem:[%s497 + $0x270] sm:$0xff]
                  %526 = vst [vmem:[%s498 + $0x68] sm:$0xff] %v525
                  %v527 = vld [vmem:[%s497 + $0x2a0] sm:$0xff]
                  %528 = vst [vmem:[%s498 + $0x70] sm:$0xff] %v527
                  %v529 = vld [vmem:[%s497 + $0x2d0] sm:$0xff]
                  %530 = vst [vmem:[%s498 + $0x78] sm:$0xff] %v529
                  %v531 = vld [vmem:[%s497 + $0x300] sm:$0xff]
                  %532 = vst [vmem:[%s498 + $0x80] sm:$0xff] %v531
                  %v533 = vld [vmem:[%s497 + $0x330] sm:$0xff]
                  %534 = vst [vmem:[%s498 + $0x88] sm:$0xff] %v533
                  %v535 = vld [vmem:[%s497 + $0x360] sm:$0xff]
                  %536 = vst [vmem:[%s498 + $0x90] sm:$0xff] %v535
                  %v537 = vld [vmem:[%s497 + $0x390] sm:$0xff]
                  %538 = vst [vmem:[%s498 + $0x98] sm:$0xff] %v537
                  %v539 = vld [vmem:[%s497 + $0x3c0] sm:$0xff]
                  %540 = vst [vmem:[%s498 + $0xa0] sm:$0xff] %v539
                  %v541 = vld [vmem:[%s497 + $0x3f0] sm:$0xff]
                  %542 = vst [vmem:[%s498 + $0xa8] sm:$0xff] %v541
                  %v543 = vld [vmem:[%s497 + $0x420] sm:$0xff]
                  %544 = vst [vmem:[%s498 + $0xb0] sm:$0xff] %v543
                  %v545 = vld [vmem:[%s497 + $0x450] sm:$0xff]
                  %546 = vst [vmem:[%s498 + $0xb8] sm:$0xff] %v545
                  %v547 = vld [vmem:[%s497 + $0x480] sm:$0xff]
                  %548 = vst [vmem:[%s498 + $0xc0] sm:$0xff] %v547
                  %v549 = vld [vmem:[%s497 + $0x4b0] sm:$0xff]
                  %550 = vst [vmem:[%s498 + $0xc8] sm:$0xff] %v549
                  %v551 = vld [vmem:[%s497 + $0x4e0] sm:$0xff]
                  %552 = vst [vmem:[%s498 + $0xd0] sm:$0xff] %v551
                  %v553 = vld [vmem:[%s497 + $0x510] sm:$0xff]
                  %554 = vst [vmem:[%s498 + $0xd8] sm:$0xff] %v553
                  %v555 = vld [vmem:[%s497 + $0x540] sm:$0xff]
                  %556 = vst [vmem:[%s498 + $0xe0] sm:$0xff] %v555
                  %v557 = vld [vmem:[%s497 + $0x570] sm:$0xff]
                  %558 = vst [vmem:[%s498 + $0xe8] sm:$0xff] %v557
                  %v559 = vld [vmem:[%s497 + $0x5a0] sm:$0xff]
                  %560 = vst [vmem:[%s498 + $0xf0] sm:$0xff] %v559
                  %v561 = vld [vmem:[%s497 + $0x5d0] sm:$0xff]
                  %562 = vst [vmem:[%s498 + $0xf8] sm:$0xff] %v561
                $region94: #{qwen2_5_vision_attention.5} parent=88 // loop_footer
                  %s496 = sadd.s32 1, %s492
                $region95: #{qwen2_5_vision_attention.5} parent=88 // loop_footer_branch
                  %491 = sbr.rel target = $region91
                $region96: #{qwen2_5_vision_attention.5} parent=88 // loop_exit
                  _
              $region89: #{qwen2_5_vision_attention.5} parent=73 // pred_fallthru
                _
              // Predicated region
              $region97: #{qwen2_5_vision_attention.5} parent=73 // pred_check
                _
              $region98: #{qwen2_5_vision_attention.5} parent=73 // pred_check_branch
                %564 = sbr.rel target = $region100
              $region99: #{qwen2_5_vision_attention.5} parent=73 // pred_region
                _
              $region100: #{qwen2_5_vision_attention.5} parent=73 // pred_fallthru
                _
            $region74: #{qwen2_5_vision_attention.5} parent=69 // pred_fallthru
              _
            // Predicated region
            $region75: #{qwen2_5_vision_attention.5} parent=69 // pred_check
              _
            $region76: #{qwen2_5_vision_attention.5} parent=69 // pred_check_branch
              %414 = sbr.rel target = $region78
            $region77: #{qwen2_5_vision_attention.5} parent=69 // pred_region
              %s416 = ssub.s32 256, 1
              loop: start=0, step=1, limit=1
              $region79: #{qwen2_5_vision_attention.5} parent=77 // loop_pre_header
                _
              $region80: #{qwen2_5_vision_attention.5} parent=77 // loop_header
                %s418 = sphi 0, %s422
                %p419 = scmp.ge.s32.totalorder %s418, 1
                %s423 = sphi %s408, %s408
                %s424 = sphi %s402, %s402
              $region81: #{qwen2_5_vision_attention.5} parent=77 // loop_header_branch
                %421 = sbr.rel (%p419) target = $region85
              $region82: #{qwen2_5_vision_attention.5} parent=77 // loop_body
                %v425 = vld [vmem:[%s423] sm:%s416]
                %426 = vst [vmem:[%s424] sm:%s416] %v425
                %v427 = vld [vmem:[%s423 + $0x30] sm:%s416]
                %428 = vst [vmem:[%s424 + $0x8] sm:%s416] %v427
                %v429 = vld [vmem:[%s423 + $0x60] sm:%s416]
                %430 = vst [vmem:[%s424 + $0x10] sm:%s416] %v429
                %v431 = vld [vmem:[%s423 + $0x90] sm:%s416]
                %432 = vst [vmem:[%s424 + $0x18] sm:%s416] %v431
                %v433 = vld [vmem:[%s423 + $0xc0] sm:%s416]
                %434 = vst [vmem:[%s424 + $0x20] sm:%s416] %v433
                %v435 = vld [vmem:[%s423 + $0xf0] sm:%s416]
                %436 = vst [vmem:[%s424 + $0x28] sm:%s416] %v435
                %v437 = vld [vmem:[%s423 + $0x120] sm:%s416]
                %438 = vst [vmem:[%s424 + $0x30] sm:%s416] %v437
                %v439 = vld [vmem:[%s423 + $0x150] sm:%s416]
                %440 = vst [vmem:[%s424 + $0x38] sm:%s416] %v439
                %v441 = vld [vmem:[%s423 + $0x180] sm:%s416]
                %442 = vst [vmem:[%s424 + $0x40] sm:%s416] %v441
                %v443 = vld [vmem:[%s423 + $0x1b0] sm:%s416]
                %444 = vst [vmem:[%s424 + $0x48] sm:%s416] %v443
                %v445 = vld [vmem:[%s423 + $0x1e0] sm:%s416]
                %446 = vst [vmem:[%s424 + $0x50] sm:%s416] %v445
                %v447 = vld [vmem:[%s423 + $0x210] sm:%s416]
                %448 = vst [vmem:[%s424 + $0x58] sm:%s416] %v447
                %v449 = vld [vmem:[%s423 + $0x240] sm:%s416]
                %450 = vst [vmem:[%s424 + $0x60] sm:%s416] %v449
                %v451 = vld [vmem:[%s423 + $0x270] sm:%s416]
                %452 = vst [vmem:[%s424 + $0x68] sm:%s416] %v451
                %v453 = vld [vmem:[%s423 + $0x2a0] sm:%s416]
                %454 = vst [vmem:[%s424 + $0x70] sm:%s416] %v453
                %v455 = vld [vmem:[%s423 + $0x2d0] sm:%s416]
                %456 = vst [vmem:[%s424 + $0x78] sm:%s416] %v455
                %v457 = vld [vmem:[%s423 + $0x300] sm:%s416]
                %458 = vst [vmem:[%s424 + $0x80] sm:%s416] %v457
                %v459 = vld [vmem:[%s423 + $0x330] sm:%s416]
                %460 = vst [vmem:[%s424 + $0x88] sm:%s416] %v459
                %v461 = vld [vmem:[%s423 + $0x360] sm:%s416]
                %462 = vst [vmem:[%s424 + $0x90] sm:%s416] %v461
                %v463 = vld [vmem:[%s423 + $0x390] sm:%s416]
                %464 = vst [vmem:[%s424 + $0x98] sm:%s416] %v463
                %v465 = vld [vmem:[%s423 + $0x3c0] sm:%s416]
                %466 = vst [vmem:[%s424 + $0xa0] sm:%s416] %v465
                %v467 = vld [vmem:[%s423 + $0x3f0] sm:%s416]
                %468 = vst [vmem:[%s424 + $0xa8] sm:%s416] %v467
                %v469 = vld [vmem:[%s423 + $0x420] sm:%s416]
                %470 = vst [vmem:[%s424 + $0xb0] sm:%s416] %v469
                %v471 = vld [vmem:[%s423 + $0x450] sm:%s416]
                %472 = vst [vmem:[%s424 + $0xb8] sm:%s416] %v471
                %v473 = vld [vmem:[%s423 + $0x480] sm:%s416]
                %474 = vst [vmem:[%s424 + $0xc0] sm:%s416] %v473
                %v475 = vld [vmem:[%s423 + $0x4b0] sm:%s416]
                %476 = vst [vmem:[%s424 + $0xc8] sm:%s416] %v475
                %v477 = vld [vmem:[%s423 + $0x4e0] sm:%s416]
                %478 = vst [vmem:[%s424 + $0xd0] sm:%s416] %v477
                %v479 = vld [vmem:[%s423 + $0x510] sm:%s416]
                %480 = vst [vmem:[%s424 + $0xd8] sm:%s416] %v479
                %v481 = vld [vmem:[%s423 + $0x540] sm:%s416]
                %482 = vst [vmem:[%s424 + $0xe0] sm:%s416] %v481
                %v483 = vld [vmem:[%s423 + $0x570] sm:%s416]
                %484 = vst [vmem:[%s424 + $0xe8] sm:%s416] %v483
                %v485 = vld [vmem:[%s423 + $0x5a0] sm:%s416]
                %486 = vst [vmem:[%s424 + $0xf0] sm:%s416] %v485
                %v487 = vld [vmem:[%s423 + $0x5d0] sm:%s416]
                %488 = vst [vmem:[%s424 + $0xf8] sm:%s416] %v487
              $region83: #{qwen2_5_vision_attention.5} parent=77 // loop_footer
                %s422 = sadd.s32 1, %s418
              $region84: #{qwen2_5_vision_attention.5} parent=77 // loop_footer_branch
                %417 = sbr.rel target = $region80
              $region85: #{qwen2_5_vision_attention.5} parent=77 // loop_exit
                _
            $region78: #{qwen2_5_vision_attention.5} parent=69 // pred_fallthru
              _
          $region70: #{qwen2_5_vision_attention.5} parent=65 // pred_fallthru
            _
          %565 = vnop
        $region66: #{qwen2_5_vision_attention.5} parent=23 // pred_fallthru
          _
      $region24: #{qwen2_5_vision_attention.5} parent=5 // pred_fallthru
        _
      %p566 = scmp.le.s32.totalorder 1, %s12
      %p567 = scmp.lt.s32.totalorder %s12, 3
      %p568 = pnand %p566, %p567
      %p569 = pneg %p568
      // Predicated region
      $region101: #{qwen2_5_vision_attention.5} parent=5 // pred_check
        _
      $region102: #{qwen2_5_vision_attention.5} parent=5 // pred_check_branch
        %571 = sbr.rel (%p568) target = $region104
      $region103: #{qwen2_5_vision_attention.5} parent=5 // pred_region
        %s572 = ssub.s32 %s12, 1
        %s573 = sand.u32 %s39, 1
        %s574 = sand.u32 %s39, 1
        %s575 = smul.addr %s574, 256
        %s576 = scalar_lea.vmem [#allocation2], %s575
        // Predicated region
        $region105: #{qwen2_5_vision_attention.5} parent=103 // pred_check
          %p577 = pneg %p52
        $region106: #{qwen2_5_vision_attention.5} parent=103 // pred_check_branch
          %579 = sbr.rel (%p577) target = $region108
        $region107: #{qwen2_5_vision_attention.5} parent=103 // pred_region
          _
        $region108: #{qwen2_5_vision_attention.5} parent=103 // pred_fallthru
          _
        %s580 = sand.u32 %s69, 1
        %s581 = sand.u32 %s69, 1
        %s582 = smul.addr %s581, 256
        %s583 = scalar_lea.vmem [#allocation3], %s582
        // Predicated region
        $region109: #{qwen2_5_vision_attention.5} parent=103 // pred_check
          %p584 = pneg %p82
        $region110: #{qwen2_5_vision_attention.5} parent=103 // pred_check_branch
          %586 = sbr.rel (%p584) target = $region112
        $region111: #{qwen2_5_vision_attention.5} parent=103 // pred_region
          _
        $region112: #{qwen2_5_vision_attention.5} parent=103 // pred_fallthru
          _
        %s587 = sand.u32 %s39, 1
        %s588 = sand.u32 %s39, 1
        %s589 = smul.addr %s588, 256
        %s590 = scalar_lea.vmem [#allocation2], %s589
        %p591 = pneg %p52
        %p592 = pneg %p49
        %s593 = sand.u32 %s69, 1
        %s594 = sand.u32 %s69, 1
        %s595 = smul.addr %s594, 256
        %s596 = scalar_lea.vmem [#allocation3], %s595
        %p597 = pneg %p82
        %p598 = pneg %p79
        %s599 = smul.u32 32, %s21
        %p600 = scmp.lt.s32.totalorder %s599, 31
        %s601 = scalar_select %p600, %s599, 31
        %s602 = smul.addr %s601, 8
        %s603 = scalar_lea.vmem %s2, %s602
        %p604 = pneg %p108
        %p605 = pneg %p105
        %s606 = smul.u32 32, %s21
        %p607 = scmp.lt.s32.totalorder %s606, 31
        %s608 = scalar_select %p607, %s606, 31
        %s609 = smul.addr %s608, 8
        %s610 = scalar_lea.vmem %s3, %s609
        %p611 = pneg %p134
        %p612 = pneg %p131
        %p613 = pneg %p162
        %p614 = pneg %p159
        %s615 = smul.u32 32, %s21
        %p616 = scmp.lt.s32.totalorder %s22, 1
        %s617 = scalar_select %p616, %s22, 1
        %p618 = scmp.lt.s32.totalorder %s615, 31
        %s619 = scalar_select %p618, %s615, 31
        %s620 = smul.addr %s617, 32
        %s621 = sadd.s32 %s619, %s620
        %s622 = smul.addr %s621, 8
        %s623 = scalar_lea.vmem %s4, %s622
        %p624 = pneg %p190
        %p625 = pneg %p187
        %s626 = smul.u32 32, %s21
        %p627 = scmp.lt.s32.totalorder %s22, 1
        %s628 = scalar_select %p627, %s22, 1
        %p629 = scmp.lt.s32.totalorder %s626, 31
        %s630 = scalar_select %p629, %s626, 31
        %s631 = smul.addr %s628, 32
        %s632 = sadd.s32 %s630, %s631
        %s633 = smul.addr %s632, 8
        %s634 = scalar_lea.vmem %s5, %s633
        %s635 = smul.u32 32, %s21
        %s636 = sadd.s32 %s22, 2
        %s637 = smul.u32 32, %s21
        %s638 = smul.u32 32, %s21
        %p639 = scmp.lt.s32.totalorder %s638, 31
        %s640 = scalar_select %p639, %s638, 31
        %s641 = smul.addr %s640, 8
        %s642 = scalar_lea.vmem %s2, %s641
        %s643 = smul.u32 32, %s21
        %s644 = smul.u32 32, %s21
        %p645 = scmp.lt.s32.totalorder %s644, 31
        %s646 = scalar_select %p645, %s644, 31
        %s647 = smul.addr %s646, 8
        %s648 = scalar_lea.vmem %s3, %s647
        %s649 = smul.u32 32, %s21
        %s650 = smul.u32 32, %s21
        %p651 = scmp.lt.s32.totalorder %s22, 1
        %s652 = scalar_select %p651, %s22, 1
        %p653 = scmp.lt.s32.totalorder %s650, 31
        %s654 = scalar_select %p653, %s650, 31
        %s655 = smul.addr %s652, 32
        %s656 = sadd.s32 %s654, %s655
        %s657 = smul.addr %s656, 8
        %s658 = scalar_lea.vmem %s4, %s657
        %s659 = smul.u32 32, %s21
        %s660 = smul.u32 32, %s21
        %p661 = scmp.lt.s32.totalorder %s22, 1
        %s662 = scalar_select %p661, %s22, 1
        %p663 = scmp.lt.s32.totalorder %s660, 31
        %s664 = scalar_select %p663, %s660, 31
        %s665 = smul.addr %s662, 32
        %s666 = sadd.s32 %s664, %s665
        %s667 = smul.addr %s666, 8
        %s668 = scalar_lea.vmem %s5, %s667
        %s669 = smul.u32 32, %s21
        %v670 = vld [vmem:[%s642] sm:$0xff]
        %v671 = vld [vmem:[%s642 + $0x8] sm:$0xff]
        %v672 = vld [vmem:[%s642 + $0x10] sm:$0xff]
        %v673 = vld [vmem:[%s642 + $0x18] sm:$0xff]
        %v674 = vld [vmem:[%s642 + $0x20] sm:$0xff]
        %v675 = vld [vmem:[%s642 + $0x28] sm:$0xff]
        %v676 = vld [vmem:[%s642 + $0x30] sm:$0xff]
        %v677 = vld [vmem:[%s642 + $0x38] sm:$0xff]
        %v678 = vld [vmem:[%s642 + $0x40] sm:$0xff]
        %v679 = vld [vmem:[%s642 + $0x48] sm:$0xff]
        %v680 = vld [vmem:[%s642 + $0x50] sm:$0xff]
        %v681 = vld [vmem:[%s642 + $0x58] sm:$0xff]
        %v682 = vld [vmem:[%s642 + $0x60] sm:$0xff]
        %v683 = vld [vmem:[%s642 + $0x68] sm:$0xff]
        %v684 = vld [vmem:[%s642 + $0x70] sm:$0xff]
        %v685 = vld [vmem:[%s642 + $0x78] sm:$0xff]
        %v686 = vld [vmem:[%s642 + $0x80] sm:$0xff]
        %v687 = vld [vmem:[%s642 + $0x88] sm:$0xff]
        %v688 = vld [vmem:[%s642 + $0x90] sm:$0xff]
        %v689 = vld [vmem:[%s642 + $0x98] sm:$0xff]
        %v690 = vld [vmem:[%s642 + $0xa0] sm:$0xff]
        %v691 = vld [vmem:[%s642 + $0xa8] sm:$0xff]
        %v692 = vld [vmem:[%s642 + $0xb0] sm:$0xff]
        %v693 = vld [vmem:[%s642 + $0xb8] sm:$0xff]
        %v694 = vld [vmem:[%s642 + $0xc0] sm:$0xff]
        %v695 = vld [vmem:[%s642 + $0xc8] sm:$0xff]
        %v696 = vld [vmem:[%s642 + $0xd0] sm:$0xff]
        %v697 = vld [vmem:[%s642 + $0xd8] sm:$0xff]
        %v698 = vld [vmem:[%s642 + $0xe0] sm:$0xff]
        %v699 = vld [vmem:[%s642 + $0xe8] sm:$0xff]
        %v700 = vld [vmem:[%s642 + $0xf0] sm:$0xff]
        %v701 = vld [vmem:[%s642 + $0xf8] sm:$0xff]
        %v702 = vld [vmem:[%s648] sm:$0xff]
        %v703 = vld [vmem:[%s648 + $0x8] sm:$0xff]
        %v704 = vld [vmem:[%s648 + $0x10] sm:$0xff]
        %v705 = vld [vmem:[%s648 + $0x18] sm:$0xff]
        %v706 = vld [vmem:[%s648 + $0x20] sm:$0xff]
        %v707 = vld [vmem:[%s648 + $0x28] sm:$0xff]
        %v708 = vld [vmem:[%s648 + $0x30] sm:$0xff]
        %v709 = vld [vmem:[%s648 + $0x38] sm:$0xff]
        %v710 = vld [vmem:[%s648 + $0x40] sm:$0xff]
        %v711 = vld [vmem:[%s648 + $0x48] sm:$0xff]
        %v712 = vld [vmem:[%s648 + $0x50] sm:$0xff]
        %v713 = vld [vmem:[%s648 + $0x58] sm:$0xff]
        %v714 = vld [vmem:[%s648 + $0x60] sm:$0xff]
        %v715 = vld [vmem:[%s648 + $0x68] sm:$0xff]
        %v716 = vld [vmem:[%s648 + $0x70] sm:$0xff]
        %v717 = vld [vmem:[%s648 + $0x78] sm:$0xff]
        %v718 = vld [vmem:[%s648 + $0x80] sm:$0xff]
        %v719 = vld [vmem:[%s648 + $0x88] sm:$0xff]
        %v720 = vld [vmem:[%s648 + $0x90] sm:$0xff]
        %v721 = vld [vmem:[%s648 + $0x98] sm:$0xff]
        %v722 = vld [vmem:[%s648 + $0xa0] sm:$0xff]
        %v723 = vld [vmem:[%s648 + $0xa8] sm:$0xff]
        %v724 = vld [vmem:[%s648 + $0xb0] sm:$0xff]
        %v725 = vld [vmem:[%s648 + $0xb8] sm:$0xff]
        %v726 = vld [vmem:[%s648 + $0xc0] sm:$0xff]
        %v727 = vld [vmem:[%s648 + $0xc8] sm:$0xff]
        %v728 = vld [vmem:[%s648 + $0xd0] sm:$0xff]
        %v729 = vld [vmem:[%s648 + $0xd8] sm:$0xff]
        %v730 = vld [vmem:[%s648 + $0xe0] sm:$0xff]
        %v731 = vld [vmem:[%s648 + $0xe8] sm:$0xff]
        %v732 = vld [vmem:[%s648 + $0xf0] sm:$0xff]
        %v733 = vld [vmem:[%s648 + $0xf8] sm:$0xff]
        %v734 = vld [vmem:[%s576] sm:$0xff]
        %v735 = vld [vmem:[%s576 + $0x8] sm:$0xff]
        %v736 = vld [vmem:[%s576 + $0x10] sm:$0xff]
        %v737 = vld [vmem:[%s576 + $0x18] sm:$0xff]
        %v738 = vld [vmem:[%s576 + $0x20] sm:$0xff]
        %v739 = vld [vmem:[%s576 + $0x28] sm:$0xff]
        %v740 = vld [vmem:[%s576 + $0x30] sm:$0xff]
        %v741 = vld [vmem:[%s576 + $0x38] sm:$0xff]
        %v742 = vld [vmem:[%s576 + $0x40] sm:$0xff]
        %v743 = vld [vmem:[%s576 + $0x48] sm:$0xff]
        %v744 = vld [vmem:[%s576 + $0x50] sm:$0xff]
        %v745 = vld [vmem:[%s576 + $0x58] sm:$0xff]
        %v746 = vld [vmem:[%s576 + $0x60] sm:$0xff]
        %v747 = vld [vmem:[%s576 + $0x68] sm:$0xff]
        %v748 = vld [vmem:[%s576 + $0x70] sm:$0xff]
        %v749 = vld [vmem:[%s576 + $0x78] sm:$0xff]
        %v750 = vld [vmem:[%s576 + $0x80] sm:$0xff]
        %v751 = vld [vmem:[%s576 + $0x88] sm:$0xff]
        %v752 = vld [vmem:[%s576 + $0x90] sm:$0xff]
        %v753 = vld [vmem:[%s576 + $0x98] sm:$0xff]
        %v754 = vld [vmem:[%s576 + $0xa0] sm:$0xff]
        %v755 = vld [vmem:[%s576 + $0xa8] sm:$0xff]
        %v756 = vld [vmem:[%s576 + $0xb0] sm:$0xff]
        %v757 = vld [vmem:[%s576 + $0xb8] sm:$0xff]
        %v758 = vld [vmem:[%s576 + $0xc0] sm:$0xff]
        %v759 = vld [vmem:[%s576 + $0xc8] sm:$0xff]
        %v760 = vld [vmem:[%s576 + $0xd0] sm:$0xff]
        %v761 = vld [vmem:[%s576 + $0xd8] sm:$0xff]
        %v762 = vld [vmem:[%s576 + $0xe0] sm:$0xff]
        %v763 = vld [vmem:[%s576 + $0xe8] sm:$0xff]
        %v764 = vld [vmem:[%s576 + $0xf0] sm:$0xff]
        %v765 = vld [vmem:[%s576 + $0xf8] sm:$0xff]
        %v766 = vld [vmem:[%s583] sm:$0xff]
        %v767 = vld [vmem:[%s583 + $0x8] sm:$0xff]
        %v768 = vld [vmem:[%s583 + $0x10] sm:$0xff]
        %v769 = vld [vmem:[%s583 + $0x18] sm:$0xff]
        %v770 = vld [vmem:[%s583 + $0x20] sm:$0xff]
        %v771 = vld [vmem:[%s583 + $0x28] sm:$0xff]
        %v772 = vld [vmem:[%s583 + $0x30] sm:$0xff]
        %v773 = vld [vmem:[%s583 + $0x38] sm:$0xff]
        %v774 = vld [vmem:[%s583 + $0x40] sm:$0xff]
        %v775 = vld [vmem:[%s583 + $0x48] sm:$0xff]
        %v776 = vld [vmem:[%s583 + $0x50] sm:$0xff]
        %v777 = vld [vmem:[%s583 + $0x58] sm:$0xff]
        %v778 = vld [vmem:[%s583 + $0x60] sm:$0xff]
        %v779 = vld [vmem:[%s583 + $0x68] sm:$0xff]
        %v780 = vld [vmem:[%s583 + $0x70] sm:$0xff]
        %v781 = vld [vmem:[%s583 + $0x78] sm:$0xff]
        %v782 = vld [vmem:[%s583 + $0x80] sm:$0xff]
        %v783 = vld [vmem:[%s583 + $0x88] sm:$0xff]
        %v784 = vld [vmem:[%s583 + $0x90] sm:$0xff]
        %v785 = vld [vmem:[%s583 + $0x98] sm:$0xff]
        %v786 = vld [vmem:[%s583 + $0xa0] sm:$0xff]
        %v787 = vld [vmem:[%s583 + $0xa8] sm:$0xff]
        %v788 = vld [vmem:[%s583 + $0xb0] sm:$0xff]
        %v789 = vld [vmem:[%s583 + $0xb8] sm:$0xff]
        %v790 = vld [vmem:[%s583 + $0xc0] sm:$0xff]
        %v791 = vld [vmem:[%s583 + $0xc8] sm:$0xff]
        %v792 = vld [vmem:[%s583 + $0xd0] sm:$0xff]
        %v793 = vld [vmem:[%s583 + $0xd8] sm:$0xff]
        %v794 = vld [vmem:[%s583 + $0xe0] sm:$0xff]
        %v795 = vld [vmem:[%s583 + $0xe8] sm:$0xff]
        %v796 = vld [vmem:[%s583 + $0xf0] sm:$0xff]
        %v797 = vld [vmem:[%s583 + $0xf8] sm:$0xff]
        %v798 = vmul.f32 %v734, %v670
        %v799 = vmul.f32 %v735, %v671
        %v800 = vmul.f32 %v736, %v672
        %v801 = vmul.f32 %v737, %v673
        %v802 = vmul.f32 %v738, %v674
        %v803 = vmul.f32 %v739, %v675
        %v804 = vmul.f32 %v740, %v676
        %v805 = vmul.f32 %v741, %v677
        %v806 = vmul.f32 %v742, %v678
        %v807 = vmul.f32 %v743, %v679
        %v808 = vmul.f32 %v744, %v680
        %v809 = vmul.f32 %v745, %v681
        %v810 = vmul.f32 %v746, %v682
        %v811 = vmul.f32 %v747, %v683
        %v812 = vmul.f32 %v748, %v684
        %v813 = vmul.f32 %v749, %v685
        %v814 = vmul.f32 %v750, %v686
        %v815 = vmul.f32 %v751, %v687
        %v816 = vmul.f32 %v752, %v688
        %v817 = vmul.f32 %v753, %v689
        %v818 = vmul.f32 %v754, %v690
        %v819 = vmul.f32 %v755, %v691
        %v820 = vmul.f32 %v756, %v692
        %v821 = vmul.f32 %v757, %v693
        %v822 = vmul.f32 %v758, %v694
        %v823 = vmul.f32 %v759, %v695
        %v824 = vmul.f32 %v760, %v696
        %v825 = vmul.f32 %v761, %v697
        %v826 = vmul.f32 %v762, %v698
        %v827 = vmul.f32 %v763, %v699
        %v828 = vmul.f32 %v764, %v700
        %v829 = vmul.f32 %v765, %v701
        %830 = vrot.lane.b32.xlu0 %v734, 64
        %v831 = vpop.permute.xlu0 %830
        %832 = vrot.lane.b32.xlu0 %v735, 64
        %v833 = vpop.permute.xlu0 %832
        %834 = vrot.lane.b32.xlu0 %v736, 64
        %v835 = vpop.permute.xlu0 %834
        %836 = vrot.lane.b32.xlu0 %v737, 64
        %v837 = vpop.permute.xlu0 %836
        %838 = vrot.lane.b32.xlu0 %v738, 64
        %v839 = vpop.permute.xlu0 %838
        %840 = vrot.lane.b32.xlu0 %v739, 64
        %v841 = vpop.permute.xlu0 %840
        %842 = vrot.lane.b32.xlu0 %v740, 64
        %v843 = vpop.permute.xlu0 %842
        %844 = vrot.lane.b32.xlu0 %v741, 64
        %v845 = vpop.permute.xlu0 %844
        %846 = vrot.lane.b32.xlu0 %v742, 64
        %v847 = vpop.permute.xlu0 %846
        %848 = vrot.lane.b32.xlu0 %v743, 64
        %v849 = vpop.permute.xlu0 %848
        %850 = vrot.lane.b32.xlu0 %v744, 64
        %v851 = vpop.permute.xlu0 %850
        %852 = vrot.lane.b32.xlu0 %v745, 64
        %v853 = vpop.permute.xlu0 %852
        %854 = vrot.lane.b32.xlu0 %v746, 64
        %v855 = vpop.permute.xlu0 %854
        %856 = vrot.lane.b32.xlu0 %v747, 64
        %v857 = vpop.permute.xlu0 %856
        %858 = vrot.lane.b32.xlu0 %v748, 64
        %v859 = vpop.permute.xlu0 %858
        %860 = vrot.lane.b32.xlu0 %v749, 64
        %v861 = vpop.permute.xlu0 %860
        %862 = vrot.lane.b32.xlu0 %v750, 64
        %v863 = vpop.permute.xlu0 %862
        %864 = vrot.lane.b32.xlu0 %v751, 64
        %v865 = vpop.permute.xlu0 %864
        %866 = vrot.lane.b32.xlu0 %v752, 64
        %v867 = vpop.permute.xlu0 %866
        %868 = vrot.lane.b32.xlu0 %v753, 64
        %v869 = vpop.permute.xlu0 %868
        %870 = vrot.lane.b32.xlu0 %v754, 64
        %v871 = vpop.permute.xlu0 %870
        %872 = vrot.lane.b32.xlu0 %v755, 64
        %v873 = vpop.permute.xlu0 %872
        %874 = vrot.lane.b32.xlu0 %v756, 64
        %v875 = vpop.permute.xlu0 %874
        %876 = vrot.lane.b32.xlu0 %v757, 64
        %v877 = vpop.permute.xlu0 %876
        %878 = vrot.lane.b32.xlu0 %v758, 64
        %v879 = vpop.permute.xlu0 %878
        %880 = vrot.lane.b32.xlu0 %v759, 64
        %v881 = vpop.permute.xlu0 %880
        %882 = vrot.lane.b32.xlu0 %v760, 64
        %v883 = vpop.permute.xlu0 %882
        %884 = vrot.lane.b32.xlu0 %v761, 64
        %v885 = vpop.permute.xlu0 %884
        %886 = vrot.lane.b32.xlu0 %v762, 64
        %v887 = vpop.permute.xlu0 %886
        %888 = vrot.lane.b32.xlu0 %v763, 64
        %v889 = vpop.permute.xlu0 %888
        %890 = vrot.lane.b32.xlu0 %v764, 64
        %v891 = vpop.permute.xlu0 %890
        %892 = vrot.lane.b32.xlu0 %v765, 64
        %v893 = vpop.permute.xlu0 %892
        %v894 = vmul.f32 %v831, %v702
        %v895 = vmul.f32 %v833, %v703
        %v896 = vmul.f32 %v835, %v704
        %v897 = vmul.f32 %v837, %v705
        %v898 = vmul.f32 %v839, %v706
        %v899 = vmul.f32 %v841, %v707
        %v900 = vmul.f32 %v843, %v708
        %v901 = vmul.f32 %v845, %v709
        %v902 = vmul.f32 %v847, %v710
        %v903 = vmul.f32 %v849, %v711
        %v904 = vmul.f32 %v851, %v712
        %v905 = vmul.f32 %v853, %v713
        %v906 = vmul.f32 %v855, %v714
        %v907 = vmul.f32 %v857, %v715
        %v908 = vmul.f32 %v859, %v716
        %v909 = vmul.f32 %v861, %v717
        %v910 = vmul.f32 %v863, %v718
        %v911 = vmul.f32 %v865, %v719
        %v912 = vmul.f32 %v867, %v720
        %v913 = vmul.f32 %v869, %v721
        %v914 = vmul.f32 %v871, %v722
        %v915 = vmul.f32 %v873, %v723
        %v916 = vmul.f32 %v875, %v724
        %v917 = vmul.f32 %v877, %v725
        %v918 = vmul.f32 %v879, %v726
        %v919 = vmul.f32 %v881, %v727
        %v920 = vmul.f32 %v883, %v728
        %v921 = vmul.f32 %v885, %v729
        %v922 = vmul.f32 %v887, %v730
        %v923 = vmul.f32 %v889, %v731
        %v924 = vmul.f32 %v891, %v732
        %v925 = vmul.f32 %v893, %v733
        %v926 = vadd.f32 %v798, %v894
        %v927 = vadd.f32 %v799, %v895
        %v928 = vadd.f32 %v800, %v896
        %v929 = vadd.f32 %v801, %v897
        %v930 = vadd.f32 %v802, %v898
        %v931 = vadd.f32 %v803, %v899
        %v932 = vadd.f32 %v804, %v900
        %v933 = vadd.f32 %v805, %v901
        %v934 = vadd.f32 %v806, %v902
        %v935 = vadd.f32 %v807, %v903
        %v936 = vadd.f32 %v808, %v904
        %v937 = vadd.f32 %v809, %v905
        %v938 = vadd.f32 %v810, %v906
        %v939 = vadd.f32 %v811, %v907
        %v940 = vadd.f32 %v812, %v908
        %v941 = vadd.f32 %v813, %v909
        %v942 = vadd.f32 %v814, %v910
        %v943 = vadd.f32 %v815, %v911
        %v944 = vadd.f32 %v816, %v912
        %v945 = vadd.f32 %v817, %v913
        %v946 = vadd.f32 %v818, %v914
        %v947 = vadd.f32 %v819, %v915
        %v948 = vadd.f32 %v820, %v916
        %v949 = vadd.f32 %v821, %v917
        %v950 = vadd.f32 %v822, %v918
        %v951 = vadd.f32 %v823, %v919
        %v952 = vadd.f32 %v824, %v920
        %v953 = vadd.f32 %v825, %v921
        %v954 = vadd.f32 %v826, %v922
        %v955 = vadd.f32 %v827, %v923
        %v956 = vadd.f32 %v828, %v924
        %v957 = vadd.f32 %v829, %v925
        %v958 = vmul.f32 %v766, %v670
        %v959 = vmul.f32 %v767, %v671
        %v960 = vmul.f32 %v768, %v672
        %v961 = vmul.f32 %v769, %v673
        %v962 = vmul.f32 %v770, %v674
        %v963 = vmul.f32 %v771, %v675
        %v964 = vmul.f32 %v772, %v676
        %v965 = vmul.f32 %v773, %v677
        %v966 = vmul.f32 %v774, %v678
        %v967 = vmul.f32 %v775, %v679
        %v968 = vmul.f32 %v776, %v680
        %v969 = vmul.f32 %v777, %v681
        %v970 = vmul.f32 %v778, %v682
        %v971 = vmul.f32 %v779, %v683
        %v972 = vmul.f32 %v780, %v684
        %v973 = vmul.f32 %v781, %v685
        %v974 = vmul.f32 %v782, %v686
        %v975 = vmul.f32 %v783, %v687
        %v976 = vmul.f32 %v784, %v688
        %v977 = vmul.f32 %v785, %v689
        %v978 = vmul.f32 %v786, %v690
        %v979 = vmul.f32 %v787, %v691
        %v980 = vmul.f32 %v788, %v692
        %v981 = vmul.f32 %v789, %v693
        %v982 = vmul.f32 %v790, %v694
        %v983 = vmul.f32 %v791, %v695
        %v984 = vmul.f32 %v792, %v696
        %v985 = vmul.f32 %v793, %v697
        %v986 = vmul.f32 %v794, %v698
        %v987 = vmul.f32 %v795, %v699
        %v988 = vmul.f32 %v796, %v700
        %v989 = vmul.f32 %v797, %v701
        %990 = vrot.lane.b32.xlu0 %v766, 64
        %v991 = vpop.permute.xlu0 %990
        %992 = vrot.lane.b32.xlu0 %v767, 64
        %v993 = vpop.permute.xlu0 %992
        %994 = vrot.lane.b32.xlu0 %v768, 64
        %v995 = vpop.permute.xlu0 %994
        %996 = vrot.lane.b32.xlu0 %v769, 64
        %v997 = vpop.permute.xlu0 %996
        %998 = vrot.lane.b32.xlu0 %v770, 64
        %v999 = vpop.permute.xlu0 %998
        %1000 = vrot.lane.b32.xlu0 %v771, 64
        %v1001 = vpop.permute.xlu0 %1000
        %1002 = vrot.lane.b32.xlu0 %v772, 64
        %v1003 = vpop.permute.xlu0 %1002
        %1004 = vrot.lane.b32.xlu0 %v773, 64
        %v1005 = vpop.permute.xlu0 %1004
        %1006 = vrot.lane.b32.xlu0 %v774, 64
        %v1007 = vpop.permute.xlu0 %1006
        %1008 = vrot.lane.b32.xlu0 %v775, 64
        %v1009 = vpop.permute.xlu0 %1008
        %1010 = vrot.lane.b32.xlu0 %v776, 64
        %v1011 = vpop.permute.xlu0 %1010
        %1012 = vrot.lane.b32.xlu0 %v777, 64
        %v1013 = vpop.permute.xlu0 %1012
        %1014 = vrot.lane.b32.xlu0 %v778, 64
        %v1015 = vpop.permute.xlu0 %1014
        %1016 = vrot.lane.b32.xlu0 %v779, 64
        %v1017 = vpop.permute.xlu0 %1016
        %1018 = vrot.lane.b32.xlu0 %v780, 64
        %v1019 = vpop.permute.xlu0 %1018
        %1020 = vrot.lane.b32.xlu0 %v781, 64
        %v1021 = vpop.permute.xlu0 %1020
        %1022 = vrot.lane.b32.xlu0 %v782, 64
        %v1023 = vpop.permute.xlu0 %1022
        %1024 = vrot.lane.b32.xlu0 %v783, 64
        %v1025 = vpop.permute.xlu0 %1024
        %1026 = vrot.lane.b32.xlu0 %v784, 64
        %v1027 = vpop.permute.xlu0 %1026
        %1028 = vrot.lane.b32.xlu0 %v785, 64
        %v1029 = vpop.permute.xlu0 %1028
        %1030 = vrot.lane.b32.xlu0 %v786, 64
        %v1031 = vpop.permute.xlu0 %1030
        %1032 = vrot.lane.b32.xlu0 %v787, 64
        %v1033 = vpop.permute.xlu0 %1032
        %1034 = vrot.lane.b32.xlu0 %v788, 64
        %v1035 = vpop.permute.xlu0 %1034
        %1036 = vrot.lane.b32.xlu0 %v789, 64
        %v1037 = vpop.permute.xlu0 %1036
        %1038 = vrot.lane.b32.xlu0 %v790, 64
        %v1039 = vpop.permute.xlu0 %1038
        %1040 = vrot.lane.b32.xlu0 %v791, 64
        %v1041 = vpop.permute.xlu0 %1040
        %1042 = vrot.lane.b32.xlu0 %v792, 64
        %v1043 = vpop.permute.xlu0 %1042
        %1044 = vrot.lane.b32.xlu0 %v793, 64
        %v1045 = vpop.permute.xlu0 %1044
        %1046 = vrot.lane.b32.xlu0 %v794, 64
        %v1047 = vpop.permute.xlu0 %1046
        %1048 = vrot.lane.b32.xlu0 %v795, 64
        %v1049 = vpop.permute.xlu0 %1048
        %1050 = vrot.lane.b32.xlu0 %v796, 64
        %v1051 = vpop.permute.xlu0 %1050
        %1052 = vrot.lane.b32.xlu0 %v797, 64
        %v1053 = vpop.permute.xlu0 %1052
        %v1054 = vmul.f32 %v991, %v702
        %v1055 = vmul.f32 %v993, %v703
        %v1056 = vmul.f32 %v995, %v704
        %v1057 = vmul.f32 %v997, %v705
        %v1058 = vmul.f32 %v999, %v706
        %v1059 = vmul.f32 %v1001, %v707
        %v1060 = vmul.f32 %v1003, %v708
        %v1061 = vmul.f32 %v1005, %v709
        %v1062 = vmul.f32 %v1007, %v710
        %v1063 = vmul.f32 %v1009, %v711
        %v1064 = vmul.f32 %v1011, %v712
        %v1065 = vmul.f32 %v1013, %v713
        %v1066 = vmul.f32 %v1015, %v714
        %v1067 = vmul.f32 %v1017, %v715
        %v1068 = vmul.f32 %v1019, %v716
        %v1069 = vmul.f32 %v1021, %v717
        %v1070 = vmul.f32 %v1023, %v718
        %v1071 = vmul.f32 %v1025, %v719
        %v1072 = vmul.f32 %v1027, %v720
        %v1073 = vmul.f32 %v1029, %v721
        %v1074 = vmul.f32 %v1031, %v722
        %v1075 = vmul.f32 %v1033, %v723
        %v1076 = vmul.f32 %v1035, %v724
        %v1077 = vmul.f32 %v1037, %v725
        %v1078 = vmul.f32 %v1039, %v726
        %v1079 = vmul.f32 %v1041, %v727
        %v1080 = vmul.f32 %v1043, %v728
        %v1081 = vmul.f32 %v1045, %v729
        %v1082 = vmul.f32 %v1047, %v730
        %v1083 = vmul.f32 %v1049, %v731
        %v1084 = vmul.f32 %v1051, %v732
        %v1085 = vmul.f32 %v1053, %v733
        %v1086 = vadd.f32 %v958, %v1054
        %v1087 = vadd.f32 %v959, %v1055
        %v1088 = vadd.f32 %v960, %v1056
        %v1089 = vadd.f32 %v961, %v1057
        %v1090 = vadd.f32 %v962, %v1058
        %v1091 = vadd.f32 %v963, %v1059
        %v1092 = vadd.f32 %v964, %v1060
        %v1093 = vadd.f32 %v965, %v1061
        %v1094 = vadd.f32 %v966, %v1062
        %v1095 = vadd.f32 %v967, %v1063
        %v1096 = vadd.f32 %v968, %v1064
        %v1097 = vadd.f32 %v969, %v1065
        %v1098 = vadd.f32 %v970, %v1066
        %v1099 = vadd.f32 %v971, %v1067
        %v1100 = vadd.f32 %v972, %v1068
        %v1101 = vadd.f32 %v973, %v1069
        %v1102 = vadd.f32 %v974, %v1070
        %v1103 = vadd.f32 %v975, %v1071
        %v1104 = vadd.f32 %v976, %v1072
        %v1105 = vadd.f32 %v977, %v1073
        %v1106 = vadd.f32 %v978, %v1074
        %v1107 = vadd.f32 %v979, %v1075
        %v1108 = vadd.f32 %v980, %v1076
        %v1109 = vadd.f32 %v981, %v1077
        %v1110 = vadd.f32 %v982, %v1078
        %v1111 = vadd.f32 %v983, %v1079
        %v1112 = vadd.f32 %v984, %v1080
        %v1113 = vadd.f32 %v985, %v1081
        %v1114 = vadd.f32 %v986, %v1082
        %v1115 = vadd.f32 %v987, %v1083
        %v1116 = vadd.f32 %v988, %v1084
        %v1117 = vadd.f32 %v989, %v1085
        %v1118 = vmul.f32 %v926, 0.088388346
        %v1119 = vmul.f32 %v927, 0.088388346
        %v1120 = vmul.f32 %v928, 0.088388346
        %v1121 = vmul.f32 %v929, 0.088388346
        %v1122 = vmul.f32 %v930, 0.088388346
        %v1123 = vmul.f32 %v931, 0.088388346
        %v1124 = vmul.f32 %v932, 0.088388346
        %v1125 = vmul.f32 %v933, 0.088388346
        %v1126 = vmul.f32 %v934, 0.088388346
        %v1127 = vmul.f32 %v935, 0.088388346
        %v1128 = vmul.f32 %v936, 0.088388346
        %v1129 = vmul.f32 %v937, 0.088388346
        %v1130 = vmul.f32 %v938, 0.088388346
        %v1131 = vmul.f32 %v939, 0.088388346
        %v1132 = vmul.f32 %v940, 0.088388346
        %v1133 = vmul.f32 %v941, 0.088388346
        %v1134 = vmul.f32 %v942, 0.088388346
        %v1135 = vmul.f32 %v943, 0.088388346
        %v1136 = vmul.f32 %v944, 0.088388346
        %v1137 = vmul.f32 %v945, 0.088388346
        %v1138 = vmul.f32 %v946, 0.088388346
        %v1139 = vmul.f32 %v947, 0.088388346
        %v1140 = vmul.f32 %v948, 0.088388346
        %v1141 = vmul.f32 %v949, 0.088388346
        %v1142 = vmul.f32 %v950, 0.088388346
        %v1143 = vmul.f32 %v951, 0.088388346
        %v1144 = vmul.f32 %v952, 0.088388346
        %v1145 = vmul.f32 %v953, 0.088388346
        %v1146 = vmul.f32 %v954, 0.088388346
        %v1147 = vmul.f32 %v955, 0.088388346
        %v1148 = vmul.f32 %v956, 0.088388346
        %v1149 = vmul.f32 %v957, 0.088388346
        %1150 = vst [vmem:[%s658] sm:$0xff] %v1118
        %1151 = vst [vmem:[%s658 + $0x8] sm:$0xff] %v1119
        %1152 = vst [vmem:[%s658 + $0x10] sm:$0xff] %v1120
        %1153 = vst [vmem:[%s658 + $0x18] sm:$0xff] %v1121
        %1154 = vst [vmem:[%s658 + $0x20] sm:$0xff] %v1122
        %1155 = vst [vmem:[%s658 + $0x28] sm:$0xff] %v1123
        %1156 = vst [vmem:[%s658 + $0x30] sm:$0xff] %v1124
        %1157 = vst [vmem:[%s658 + $0x38] sm:$0xff] %v1125
        %1158 = vst [vmem:[%s658 + $0x40] sm:$0xff] %v1126
        %1159 = vst [vmem:[%s658 + $0x48] sm:$0xff] %v1127
        %1160 = vst [vmem:[%s658 + $0x50] sm:$0xff] %v1128
        %1161 = vst [vmem:[%s658 + $0x58] sm:$0xff] %v1129
        %1162 = vst [vmem:[%s658 + $0x60] sm:$0xff] %v1130
        %1163 = vst [vmem:[%s658 + $0x68] sm:$0xff] %v1131
        %1164 = vst [vmem:[%s658 + $0x70] sm:$0xff] %v1132
        %1165 = vst [vmem:[%s658 + $0x78] sm:$0xff] %v1133
        %1166 = vst [vmem:[%s658 + $0x80] sm:$0xff] %v1134
        %1167 = vst [vmem:[%s658 + $0x88] sm:$0xff] %v1135
        %1168 = vst [vmem:[%s658 + $0x90] sm:$0xff] %v1136
        %1169 = vst [vmem:[%s658 + $0x98] sm:$0xff] %v1137
        %1170 = vst [vmem:[%s658 + $0xa0] sm:$0xff] %v1138
        %1171 = vst [vmem:[%s658 + $0xa8] sm:$0xff] %v1139
        %1172 = vst [vmem:[%s658 + $0xb0] sm:$0xff] %v1140
        %1173 = vst [vmem:[%s658 + $0xb8] sm:$0xff] %v1141
        %1174 = vst [vmem:[%s658 + $0xc0] sm:$0xff] %v1142
        %1175 = vst [vmem:[%s658 + $0xc8] sm:$0xff] %v1143
        %1176 = vst [vmem:[%s658 + $0xd0] sm:$0xff] %v1144
        %1177 = vst [vmem:[%s658 + $0xd8] sm:$0xff] %v1145
        %1178 = vst [vmem:[%s658 + $0xe0] sm:$0xff] %v1146
        %1179 = vst [vmem:[%s658 + $0xe8] sm:$0xff] %v1147
        %1180 = vst [vmem:[%s658 + $0xf0] sm:$0xff] %v1148
        %1181 = vst [vmem:[%s658 + $0xf8] sm:$0xff] %v1149
        %1182 = vst [vmem:[%s668] sm:$0xff] %v1086
        %1183 = vst [vmem:[%s668 + $0x8] sm:$0xff] %v1087
        %1184 = vst [vmem:[%s668 + $0x10] sm:$0xff] %v1088
        %1185 = vst [vmem:[%s668 + $0x18] sm:$0xff] %v1089
        %1186 = vst [vmem:[%s668 + $0x20] sm:$0xff] %v1090
        %1187 = vst [vmem:[%s668 + $0x28] sm:$0xff] %v1091
        %1188 = vst [vmem:[%s668 + $0x30] sm:$0xff] %v1092
        %1189 = vst [vmem:[%s668 + $0x38] sm:$0xff] %v1093
        %1190 = vst [vmem:[%s668 + $0x40] sm:$0xff] %v1094
        %1191 = vst [vmem:[%s668 + $0x48] sm:$0xff] %v1095
        %1192 = vst [vmem:[%s668 + $0x50] sm:$0xff] %v1096
        %1193 = vst [vmem:[%s668 + $0x58] sm:$0xff] %v1097
        %1194 = vst [vmem:[%s668 + $0x60] sm:$0xff] %v1098
        %1195 = vst [vmem:[%s668 + $0x68] sm:$0xff] %v1099
        %1196 = vst [vmem:[%s668 + $0x70] sm:$0xff] %v1100
        %1197 = vst [vmem:[%s668 + $0x78] sm:$0xff] %v1101
        %1198 = vst [vmem:[%s668 + $0x80] sm:$0xff] %v1102
        %1199 = vst [vmem:[%s668 + $0x88] sm:$0xff] %v1103
        %1200 = vst [vmem:[%s668 + $0x90] sm:$0xff] %v1104
        %1201 = vst [vmem:[%s668 + $0x98] sm:$0xff] %v1105
        %1202 = vst [vmem:[%s668 + $0xa0] sm:$0xff] %v1106
        %1203 = vst [vmem:[%s668 + $0xa8] sm:$0xff] %v1107
        %1204 = vst [vmem:[%s668 + $0xb0] sm:$0xff] %v1108
        %1205 = vst [vmem:[%s668 + $0xb8] sm:$0xff] %v1109
        %1206 = vst [vmem:[%s668 + $0xc0] sm:$0xff] %v1110
        %1207 = vst [vmem:[%s668 + $0xc8] sm:$0xff] %v1111
        %1208 = vst [vmem:[%s668 + $0xd0] sm:$0xff] %v1112
        %1209 = vst [vmem:[%s668 + $0xd8] sm:$0xff] %v1113
        %1210 = vst [vmem:[%s668 + $0xe0] sm:$0xff] %v1114
        %1211 = vst [vmem:[%s668 + $0xe8] sm:$0xff] %v1115
        %1212 = vst [vmem:[%s668 + $0xf0] sm:$0xff] %v1116
        %1213 = vst [vmem:[%s668 + $0xf8] sm:$0xff] %v1117
        %s1214 = smul.u32 32, %s21
        %p1215 = scmp.lt.s32.totalorder %s22, 1
        %s1216 = scalar_select %p1215, %s22, 1
        %p1217 = scmp.lt.s32.totalorder %s1214, 31
        %s1218 = scalar_select %p1217, %s1214, 31
        %s1219 = smul.addr %s1216, 32
        %s1220 = sadd.s32 %s1218, %s1219
        %s1221 = smul.addr %s1220, 8
        %s1222 = scalar_lea.vmem %s4, %s1221
        %s1223 = smul.u32 32, %s21
        %p1224 = scmp.lt.s32.totalorder %s22, 1
        %s1225 = scalar_select %p1224, %s22, 1
        %p1226 = scmp.lt.s32.totalorder %s1223, 31
        %s1227 = scalar_select %p1226, %s1223, 31
        %s1228 = smul.addr %s1225, 32
        %s1229 = sadd.s32 %s1227, %s1228
        %s1230 = smul.addr %s1229, 8
        %s1231 = scalar_lea.vmem %s5, %s1230
        // Predicated region
        $region113: #{qwen2_5_vision_attention.5} parent=103 // pred_check
          %p1232 = pneg %p159
        $region114: #{qwen2_5_vision_attention.5} parent=103 // pred_check_branch
          %1234 = sbr.rel (%p1232) target = $region116
        $region115: #{qwen2_5_vision_attention.5} parent=103 // pred_region
          %s1235 = smul.u32 32, %s21
        $region116: #{qwen2_5_vision_attention.5} parent=103 // pred_fallthru
          _
        // Predicated region
        $region117: #{qwen2_5_vision_attention.5} parent=103 // pred_check
          %p1236 = pneg %p187
        $region118: #{qwen2_5_vision_attention.5} parent=103 // pred_check_branch
          %1238 = sbr.rel (%p1236) target = $region120
        $region119: #{qwen2_5_vision_attention.5} parent=103 // pred_region
          %s1239 = smul.u32 32, %s21
        $region120: #{qwen2_5_vision_attention.5} parent=103 // pred_fallthru
          _
      $region104: #{qwen2_5_vision_attention.5} parent=5 // pred_fallthru
        _
      %p1240 = scmp.le.s32.totalorder 2, %s12
      // Predicated region
      $region121: #{qwen2_5_vision_attention.5} parent=5 // pred_check
        %p1241 = pneg %p1240
      $region122: #{qwen2_5_vision_attention.5} parent=5 // pred_check_branch
        %1243 = sbr.rel (%p1241) target = $region124
      $region123: #{qwen2_5_vision_attention.5} parent=5 // pred_region
        %s1244 = ssub.s32 %s12, 2
        // Predicated region
        $region125: #{qwen2_5_vision_attention.5} parent=123 // pred_check
          %p1245 = pneg %p165
        $region126: #{qwen2_5_vision_attention.5} parent=123 // pred_check_branch
          %1247 = sbr.rel (%p1245) target = $region128
        $region127: #{qwen2_5_vision_attention.5} parent=123 // pred_region
          %s1248 = smul.u32 32, %s23
          %p1249 = scmp.lt.s32.totalorder %s24, 1
          %s1250 = scalar_select %p1249, %s24, 1
          %p1251 = scmp.lt.s32.totalorder %s1248, 31
          %s1252 = scalar_select %p1251, %s1248, 31
          %s1253 = smul.addr %s1250, 32
          %s1254 = sadd.s32 %s1252, %s1253
          %s1255 = smul.addr %s1254, 8
          %s1256 = scalar_lea.vmem %s4, %s1255
        $region128: #{qwen2_5_vision_attention.5} parent=123 // pred_fallthru
          _
        // Predicated region
        $region129: #{qwen2_5_vision_attention.5} parent=123 // pred_check
          %p1257 = pneg %p193
        $region130: #{qwen2_5_vision_attention.5} parent=123 // pred_check_branch
          %1259 = sbr.rel (%p1257) target = $region132
        $region131: #{qwen2_5_vision_attention.5} parent=123 // pred_region
          %s1260 = smul.u32 32, %s23
          %p1261 = scmp.lt.s32.totalorder %s24, 1
          %s1262 = scalar_select %p1261, %s24, 1
          %p1263 = scmp.lt.s32.totalorder %s1260, 31
          %s1264 = scalar_select %p1263, %s1260, 31
          %s1265 = smul.addr %s1262, 32
          %s1266 = sadd.s32 %s1264, %s1265
          %s1267 = smul.addr %s1266, 8
          %s1268 = scalar_lea.vmem %s5, %s1267
        $region132: #{qwen2_5_vision_attention.5} parent=123 // pred_fallthru
          _
      $region124: #{qwen2_5_vision_attention.5} parent=5 // pred_fallthru
        _
    $region6: #{qwen2_5_vision_attention.5} parent=1 // loop_footer
      %s16 = sadd.s32 1, %s12
    $region7: #{qwen2_5_vision_attention.5} parent=1 // loop_footer_branch
      %11 = sbr.rel target = $region3
    $region8: #{qwen2_5_vision_attention.5} parent=1 // loop_exit
      _

// kernel: qwen2_5_vision_attention.6
$region0: #{qwen2_5_vision_attention.6}
  #allocation0 [shape = 'u32[]', space=smem, size = 0x4, offset = 0x4, fixed_abs, tag = 'smem constant byte address 0x4 - core index']
  #allocation1 [shape = 'u32[72,128]{1,0:T(1,128)}', space=vmem, size = 0x9000, scoped, tag = 'internal scratch']
  #allocation2 [shape = 'f32[64,1]{1,0:T(8,128)}', space=vmem, size = 0x8000, scoped, tag = 'scratch operand']
  #allocation3 [shape = 'f32[64,1]{1,0:T(8,128)}', space=vmem, size = 0x8000, scoped, tag = 'scratch operand']
  #allocation4 [shape = 'f32[64,128]{1,0:T(8,128)}', space=vmem, size = 0x8000, scoped, tag = 'scratch operand']
  #allocation5 [shape = 's32[1]{0}', space=sflag, size = 0x4, scoped, tag = 'scoped memory for qwen2_5_vision_attention.6']
  #allocation6 [shape = 'u8[512]{0}', space=smem, size = 0x200, scoped, tag = 'prefetched SMEM operand 0']
  #allocation7 [shape = 'u8[512]{0}', space=smem, size = 0x200, scoped, tag = 'prefetched SMEM operand 1']
  %s0 = inlined_call_operand.vmem [shape: s32[4], index: 0, kind: input, shape index: {}]
  %s1 = inlined_call_operand.vmem [shape: s32[4], index: 1, kind: input, shape index: {}]
  %s2 = inlined_call_operand.vmem [shape: f32[2,256,128], index: 2, kind: input, shape index: {}]
  %s3 = inlined_call_operand.vmem [shape: f32[2,256,128], index: 3, kind: input, shape index: {}]
  %s4 = inlined_call_operand.vmem [shape: f32[256,768], index: 4, kind: input, shape index: {}]
  %s5 = inlined_call_operand.vmem [shape: s32[256,1], index: 5, kind: input, shape index: {}]
  %s6 = inlined_call_operand.vmem [shape: s32[1,256], index: 6, kind: input, shape index: {}]
  %s7 = inlined_call_operand.vmem [shape: f32[256,256], index: 7, kind: output, shape index: {}]
  %s8 = sld [smem:[#allocation0]]
  $region137: #{qwen2_5_vision_attention.6} parent=0
    _
  %s10 = ssub.s32 1, %s8
  %s11 = scalar_select 0, %s10, %s8
  %s13 = sshll.u32 %s0, 4
  %s14 = int_to_ptr.vmem [resolvable:$true] %s13
  %16 = dma.vmem_to_smem %s14, 16, [#allocation6], [#allocation5]
  %s18 = sshll.u32 %s1, 4
  %s19 = int_to_ptr.vmem [resolvable:$true] %s18
  %21 = dma.vmem_to_smem %s19, 16, [#allocation7], [#allocation5]
  %23 = dma.done [#allocation5], 32
  %24 = sfence
  $region1: #{qwen2_5_vision_attention.6} parent=0
    #allocation8 [shape = 'u8[131072]{0}', space=vmem, size = 0x20000, scoped, tag = 'input window, operand 4']
    #allocation9 [shape = 'u8[65536]{0}', space=vmem, size = 0x10000, scoped, tag = 'output window, operand 0']
    loop: start=0, step=1, limit=18
    $region2: #{qwen2_5_vision_attention.6} parent=1 // loop_pre_header
      _
    $region3: #{qwen2_5_vision_attention.6} parent=1 // loop_header
      %s26 = sphi 0, %s30
      %p27 = scmp.ge.s32.totalorder %s26, 18
      %s33 = sphi 0, %s52
      %s34 = sphi 0, %s48
      %s35 = sphi 0, %s44
      %s36 = sphi 0, %s33
      %s37 = sphi 0, %s34
      %s38 = sphi 0, %s35
      %s39 = sphi 0, %s36
      %s40 = sphi 0, %s37
      %s41 = sphi 0, %s38
      %s57 = sphi 0, %s59
      %s60 = sphi 0, %s57
      %s61 = sphi 0, %s60
      %s77 = sphi 0, %s61
      %s97 = sphi 0, %s99
      %s100 = sphi 0, %s97
      %s101 = sphi 0, %s100
      %s117 = sphi 0, %s101
      %s139 = sphi 0, %s141
      %s142 = sphi 0, %s139
      %s143 = sphi 0, %s142
      %s159 = sphi 0, %s143
      %s165 = sphi 0, %s167
      %s168 = sphi 0, %s165
      %s169 = sphi 0, %s168
      %s185 = sphi 0, %s169
      %s203 = sphi 0, %s205
      %s206 = sphi 0, %s203
      %s207 = sphi 0, %s206
      %s223 = sphi 0, %s207
      %s231 = sphi 0, %s233
      %s234 = sphi 0, %s231
      %s235 = sphi 0, %s234
      %s251 = sphi 0, %s235
    $region4: #{qwen2_5_vision_attention.6} parent=1 // loop_header_branch
      %29 = sbr.rel (%p27) target = $region8
    $region5: #{qwen2_5_vision_attention.6} parent=1 // loop_body
      %s31 = ssub.s32 %s26, 1
      %s32 = ssub.s32 %s26, 2
      %s42 = sadd.s32 1, %s35
      %p43 = scmp.ge.s32.totalorder %s42, 2
      %s44 = scalar_select %p43, 0, %s42
      %s45 = sadd.s32 1, %s34
      %s46 = scalar_select %p43, %s45, %s34
      %p47 = scmp.ge.s32.totalorder %s46, 4
      %s48 = scalar_select %p47, 0, %s46
      %s49 = sadd.s32 1, %s33
      %s50 = scalar_select %p47, %s49, %s33
      %p51 = scmp.ge.s32.totalorder %s50, 2
      %s52 = scalar_select %p51, 0, %s50
      %s53 = ssub.s32 %s33, %s52
      %s54 = ssub.s32 %s34, %s48
      %s55 = sor.u32 %s53, %s54
      %p56 = scmp.eq.s32.totalorder %s55, 0
      %s58 = sadd.s32 %s57, 1
      %s59 = scalar_select %p56, %s57, %s58
      %p62 = pneg %p56
      %p63 = scmp.eq.s32.totalorder %s26, 15
      %p64 = por %p62, %p63
      %p65 = scmp.ne.s32.totalorder %s57, %s60
      %p66 = scmp.eq.s32.totalorder %s26, 0
      %p67 = por %p65, %p66
      %p68 = scmp.ne.s32.totalorder %s57, %s60
      %p69 = scmp.eq.s32.totalorder %s31, 15
      %p70 = por %p68, %p69
      %p71 = scmp.ne.s32.totalorder %s60, %s61
      %p72 = scmp.eq.s32.totalorder %s31, 0
      %p73 = por %p71, %p72
      %p74 = scmp.ne.s32.totalorder %s60, %s61
      %p75 = scmp.eq.s32.totalorder %s32, 15
      %p76 = por %p74, %p75
      %p78 = scmp.ne.s32.totalorder %s61, %s77
      %p79 = scmp.eq.s32.totalorder %s32, 0
      %p80 = por %p78, %p79
      %s81 = sld [smem:[#allocation6 + %s34]]
      %s82 = sld [smem:[#allocation7 + %s34]]
      %s83 = ssub.s32 %s82, 1
      %p84 = scmp.lt.s32.totalorder %s35, %s83
      %s85 = scalar_select %p84, %s35, %s83
      %s86 = sadd.s32 %s81, %s85
      %s87 = sld [smem:[#allocation6 + %s48]]
      %s88 = sld [smem:[#allocation7 + %s48]]
      %s89 = ssub.s32 %s88, 1
      %p90 = scmp.lt.s32.totalorder %s44, %s89
      %s91 = scalar_select %p90, %s44, %s89
      %s92 = sadd.s32 %s87, %s91
      %s93 = ssub.s32 %s33, %s52
      %s94 = ssub.s32 %s86, %s92
      %s95 = sor.u32 %s93, %s94
      %p96 = scmp.eq.s32.totalorder %s95, 0
      %s98 = sadd.s32 %s97, 1
      %s99 = scalar_select %p96, %s97, %s98
      %p102 = pneg %p96
      %p103 = scmp.eq.s32.totalorder %s26, 15
      %p104 = por %p102, %p103
      %p105 = scmp.ne.s32.totalorder %s97, %s100
      %p106 = scmp.eq.s32.totalorder %s26, 0
      %p107 = por %p105, %p106
      %p108 = scmp.ne.s32.totalorder %s97, %s100
      %p109 = scmp.eq.s32.totalorder %s31, 15
      %p110 = por %p108, %p109
      %p111 = scmp.ne.s32.totalorder %s100, %s101
      %p112 = scmp.eq.s32.totalorder %s31, 0
      %p113 = por %p111, %p112
      %p114 = scmp.ne.s32.totalorder %s100, %s101
      %p115 = scmp.eq.s32.totalorder %s32, 15
      %p116 = por %p114, %p115
      %p118 = scmp.ne.s32.totalorder %s101, %s117
      %p119 = scmp.eq.s32.totalorder %s32, 0
      %p120 = por %p118, %p119
      %s121 = sld [smem:[#allocation6 + %s34]]
      %s122 = sld [smem:[#allocation7 + %s34]]
      %s123 = ssub.s32 %s122, 1
      %p124 = scmp.lt.s32.totalorder %s35, %s123
      %s125 = scalar_select %p124, %s35, %s123
      %s126 = sadd.s32 %s121, %s125
      %s127 = sadd.s32 %s33, 4
      %s128 = sld [smem:[#allocation6 + %s48]]
      %s129 = sld [smem:[#allocation7 + %s48]]
      %s130 = ssub.s32 %s129, 1
      %p131 = scmp.lt.s32.totalorder %s44, %s130
      %s132 = scalar_select %p131, %s44, %s130
      %s133 = sadd.s32 %s128, %s132
      %s134 = sadd.s32 %s52, 4
      %s135 = ssub.s32 %s126, %s133
      %s136 = ssub.s32 %s127, %s134
      %s137 = sor.u32 %s135, %s136
      %p138 = scmp.eq.s32.totalorder %s137, 0
      %s140 = sadd.s32 %s139, 1
      %s141 = scalar_select %p138, %s139, %s140
      %p144 = pneg %p138
      %p145 = scmp.eq.s32.totalorder %s26, 15
      %p146 = por %p144, %p145
      %p147 = scmp.ne.s32.totalorder %s139, %s142
      %p148 = scmp.eq.s32.totalorder %s26, 0
      %p149 = por %p147, %p148
      %p150 = scmp.ne.s32.totalorder %s139, %s142
      %p151 = scmp.eq.s32.totalorder %s31, 15
      %p152 = por %p150, %p151
      %p153 = scmp.ne.s32.totalorder %s142, %s143
      %p154 = scmp.eq.s32.totalorder %s31, 0
      %p155 = por %p153, %p154
      %p156 = scmp.ne.s32.totalorder %s142, %s143
      %p157 = scmp.eq.s32.totalorder %s32, 15
      %p158 = por %p156, %p157
      %p160 = scmp.ne.s32.totalorder %s143, %s159
      %p161 = scmp.eq.s32.totalorder %s32, 0
      %p162 = por %p160, %p161
      %s163 = ssub.s32 %s34, %s48
      %p164 = scmp.eq.s32.totalorder %s163, 0
      %s166 = sadd.s32 %s165, 1
      %s167 = scalar_select %p164, %s165, %s166
      %p170 = pneg %p164
      %p171 = scmp.eq.s32.totalorder %s26, 15
      %p172 = por %p170, %p171
      %p173 = scmp.ne.s32.totalorder %s165, %s168
      %p174 = scmp.eq.s32.totalorder %s26, 0
      %p175 = por %p173, %p174
      %p176 = scmp.ne.s32.totalorder %s165, %s168
      %p177 = scmp.eq.s32.totalorder %s31, 15
      %p178 = por %p176, %p177
      %p179 = scmp.ne.s32.totalorder %s168, %s169
      %p180 = scmp.eq.s32.totalorder %s31, 0
      %p181 = por %p179, %p180
      %p182 = scmp.ne.s32.totalorder %s168, %s169
      %p183 = scmp.eq.s32.totalorder %s32, 15
      %p184 = por %p182, %p183
      %p186 = scmp.ne.s32.totalorder %s169, %s185
      %p187 = scmp.eq.s32.totalorder %s32, 0
      %p188 = por %p186, %p187
      %s189 = sld [smem:[#allocation6 + %s34]]
      %s190 = sld [smem:[#allocation7 + %s34]]
      %s191 = ssub.s32 %s190, 1
      %p192 = scmp.lt.s32.totalorder %s35, %s191
      %s193 = scalar_select %p192, %s35, %s191
      %s194 = sadd.s32 %s189, %s193
      %s195 = sld [smem:[#allocation6 + %s48]]
      %s196 = sld [smem:[#allocation7 + %s48]]
      %s197 = ssub.s32 %s196, 1
      %p198 = scmp.lt.s32.totalorder %s44, %s197
      %s199 = scalar_select %p198, %s44, %s197
      %s200 = sadd.s32 %s195, %s199
      %s201 = ssub.s32 %s194, %s200
      %p202 = scmp.eq.s32.totalorder %s201, 0
      %s204 = sadd.s32 %s203, 1
      %s205 = scalar_select %p202, %s203, %s204
      %p208 = pneg %p202
      %p209 = scmp.eq.s32.totalorder %s26, 15
      %p210 = por %p208, %p209
      %p211 = scmp.ne.s32.totalorder %s203, %s206
      %p212 = scmp.eq.s32.totalorder %s26, 0
      %p213 = por %p211, %p212
      %p214 = scmp.ne.s32.totalorder %s203, %s206
      %p215 = scmp.eq.s32.totalorder %s31, 15
      %p216 = por %p214, %p215
      %p217 = scmp.ne.s32.totalorder %s206, %s207
      %p218 = scmp.eq.s32.totalorder %s31, 0
      %p219 = por %p217, %p218
      %p220 = scmp.ne.s32.totalorder %s206, %s207
      %p221 = scmp.eq.s32.totalorder %s32, 15
      %p222 = por %p220, %p221
      %p224 = scmp.ne.s32.totalorder %s207, %s223
      %p225 = scmp.eq.s32.totalorder %s32, 0
      %p226 = por %p224, %p225
      %s227 = ssub.s32 %s34, %s48
      %s228 = ssub.s32 %s33, %s52
      %s229 = sor.u32 %s227, %s228
      %p230 = scmp.eq.s32.totalorder %s229, 0
      %s232 = sadd.s32 %s231, 1
      %s233 = scalar_select %p230, %s231, %s232
      %p236 = pneg %p230
      %p237 = scmp.eq.s32.totalorder %s26, 15
      %p238 = por %p236, %p237
      %p239 = scmp.ne.s32.totalorder %s231, %s234
      %p240 = scmp.eq.s32.totalorder %s26, 0
      %p241 = por %p239, %p240
      %p242 = scmp.ne.s32.totalorder %s231, %s234
      %p243 = scmp.eq.s32.totalorder %s31, 15
      %p244 = por %p242, %p243
      %p245 = scmp.ne.s32.totalorder %s234, %s235
      %p246 = scmp.eq.s32.totalorder %s31, 0
      %p247 = por %p245, %p246
      %p248 = scmp.ne.s32.totalorder %s234, %s235
      %p249 = scmp.eq.s32.totalorder %s32, 15
      %p250 = por %p248, %p249
      %p252 = scmp.ne.s32.totalorder %s235, %s251
      %p253 = scmp.eq.s32.totalorder %s32, 0
      %p254 = por %p252, %p253
      %p255 = scmp.le.s32.totalorder 1, %s26
      %p256 = scmp.lt.s32.totalorder %s26, 17
      %p257 = pnand %p255, %p256
      %p258 = pneg %p257
      // Predicated region
      $region9: #{qwen2_5_vision_attention.6} parent=5 // pred_check
        _
      $region10: #{qwen2_5_vision_attention.6} parent=5 // pred_check_branch
        %260 = sbr.rel (%p257) target = $region12
      $region11: #{qwen2_5_vision_attention.6} parent=5 // pred_region
        %s261 = ssub.s32 %s26, 1
      $region12: #{qwen2_5_vision_attention.6} parent=5 // pred_fallthru
        _
      %p262 = scmp.lt.s32.totalorder %s26, 16
      // Predicated region
      $region13: #{qwen2_5_vision_attention.6} parent=5 // pred_check
        %p263 = pneg %p262
      $region14: #{qwen2_5_vision_attention.6} parent=5 // pred_check_branch
        %265 = sbr.rel (%p263) target = $region16
      $region15: #{qwen2_5_vision_attention.6} parent=5 // pred_region
        // Predicated region
        $region17: #{qwen2_5_vision_attention.6} parent=15 // pred_check
          %p266 = pneg %p67
        $region18: #{qwen2_5_vision_attention.6} parent=15 // pred_check_branch
          %268 = sbr.rel (%p266) target = $region20
        $region19: #{qwen2_5_vision_attention.6} parent=15 // pred_region
          %s269 = smul.u32 8, %s34
          %p270 = scmp.lt.s32.totalorder %s33, 1
          %s271 = scalar_select %p270, %s33, 1
          %p272 = scmp.lt.s32.totalorder %s269, 31
          %s273 = scalar_select %p272, %s269, 31
          %s274 = smul.addr %s271, 32
          %s275 = sadd.s32 %s273, %s274
          %s276 = smul.addr %s275, 8
          %s277 = scalar_lea.vmem %s2, %s276
          %s278 = smul.u32 8, %s34
        $region20: #{qwen2_5_vision_attention.6} parent=15 // pred_fallthru
          _
        // Predicated region
        $region21: #{qwen2_5_vision_attention.6} parent=15 // pred_check
          %p279 = pneg %p107
        $region22: #{qwen2_5_vision_attention.6} parent=15 // pred_check_branch
          %281 = sbr.rel (%p279) target = $region24
        $region23: #{qwen2_5_vision_attention.6} parent=15 // pred_region
          %s282 = sld [smem:[#allocation6 + %s34]]
          %s283 = sld [smem:[#allocation7 + %s34]]
          %s284 = ssub.s32 %s283, 1
          %p285 = scmp.lt.s32.totalorder %s35, %s284
          %s286 = scalar_select %p285, %s35, %s284
          %s287 = sadd.s32 %s282, %s286
          %s288 = smul.u32 16, %s287
          %p289 = scmp.lt.s32.totalorder %s33, 1
          %s290 = scalar_select %p289, %s33, 1
          %p291 = scmp.lt.s32.totalorder %s288, 31
          %s292 = scalar_select %p291, %s288, 31
          %s293 = smul.addr %s290, 32
          %s294 = sadd.s32 %s292, %s293
          %s295 = smul.addr %s294, 8
          %s296 = scalar_lea.vmem %s3, %s295
          %s297 = sld [smem:[#allocation6 + %s34]]
          %s298 = sld [smem:[#allocation7 + %s34]]
          %s299 = ssub.s32 %s298, 1
          %p300 = scmp.lt.s32.totalorder %s35, %s299
          %s301 = scalar_select %p300, %s35, %s299
          %s302 = sadd.s32 %s297, %s301
          %s303 = smul.u32 16, %s302
        $region24: #{qwen2_5_vision_attention.6} parent=15 // pred_fallthru
          _
        // Predicated region
        $region25: #{qwen2_5_vision_attention.6} parent=15 // pred_check
          %p304 = pneg %p149
        $region26: #{qwen2_5_vision_attention.6} parent=15 // pred_check_branch
          %306 = sbr.rel (%p304) target = $region28
        $region27: #{qwen2_5_vision_attention.6} parent=15 // pred_region
          %s307 = sand.u32 %s139, 1
          %s308 = sand.u32 %s139, 1
          %s309 = smul.addr %s308, 128
          %s310 = scalar_lea.vmem [#allocation8], %s309
          %s311 = sld [smem:[#allocation6 + %s34]]
          %s312 = sld [smem:[#allocation7 + %s34]]
          %s313 = ssub.s32 %s312, 1
          %p314 = scmp.lt.s32.totalorder %s35, %s313
          %s315 = scalar_select %p314, %s35, %s313
          %s316 = sadd.s32 %s311, %s315
          %s317 = sadd.s32 %s33, 4
          %s318 = smul.u32 16, %s316
          %s319 = smul.addr %s318, 6
          %s320 = sadd.s32 %s317, %s319
          %s321 = smul.addr %s320, 8
          %s322 = scalar_lea.vmem %s4, %s321
          // Predicated region
          $region29: #{qwen2_5_vision_attention.6} parent=27 // pred_check
            _
          $region30: #{qwen2_5_vision_attention.6} parent=27 // pred_check_branch
            %324 = sbr.rel (0) target = $region32
          $region31: #{qwen2_5_vision_attention.6} parent=27 // pred_region
            // Predicated region
            $region33: #{qwen2_5_vision_attention.6} parent=31 // pred_check
              _
            $region34: #{qwen2_5_vision_attention.6} parent=31 // pred_check_branch
              %326 = sbr.rel (0) target = $region36
            $region35: #{qwen2_5_vision_attention.6} parent=31 // pred_region
              // Predicated region
              $region48: #{qwen2_5_vision_attention.6} parent=35 // pred_check
                _
              $region49: #{qwen2_5_vision_attention.6} parent=35 // pred_check_branch
                %372 = sbr.rel (0) target = $region51
              $region50: #{qwen2_5_vision_attention.6} parent=35 // pred_region
                loop: start=0, step=1, limit=1
                $region52: #{qwen2_5_vision_attention.6} parent=50 // loop_pre_header
                  _
                $region53: #{qwen2_5_vision_attention.6} parent=50 // loop_header
                  %s374 = sphi 0, %s378
                  %p375 = scmp.ge.s32.totalorder %s374, 1
                  %s379 = sphi %s322, %s322
                  %s380 = sphi %s310, %s310
                $region54: #{qwen2_5_vision_attention.6} parent=50 // loop_header_branch
                  %377 = sbr.rel (%p375) target = $region58
                $region55: #{qwen2_5_vision_attention.6} parent=50 // loop_body
                  %v381 = vld [vmem:[%s379] sm:$0xff]
                  %382 = vst [vmem:[%s380] sm:$0xff] %v381
                  %v383 = vld [vmem:[%s379 + $0x30] sm:$0xff]
                  %384 = vst [vmem:[%s380 + $0x8] sm:$0xff] %v383
                  %v385 = vld [vmem:[%s379 + $0x60] sm:$0xff]
                  %386 = vst [vmem:[%s380 + $0x10] sm:$0xff] %v385
                  %v387 = vld [vmem:[%s379 + $0x90] sm:$0xff]
                  %388 = vst [vmem:[%s380 + $0x18] sm:$0xff] %v387
                  %v389 = vld [vmem:[%s379 + $0xc0] sm:$0xff]
                  %390 = vst [vmem:[%s380 + $0x20] sm:$0xff] %v389
                  %v391 = vld [vmem:[%s379 + $0xf0] sm:$0xff]
                  %392 = vst [vmem:[%s380 + $0x28] sm:$0xff] %v391
                  %v393 = vld [vmem:[%s379 + $0x120] sm:$0xff]
                  %394 = vst [vmem:[%s380 + $0x30] sm:$0xff] %v393
                  %v395 = vld [vmem:[%s379 + $0x150] sm:$0xff]
                  %396 = vst [vmem:[%s380 + $0x38] sm:$0xff] %v395
                  %v397 = vld [vmem:[%s379 + $0x180] sm:$0xff]
                  %398 = vst [vmem:[%s380 + $0x40] sm:$0xff] %v397
                  %v399 = vld [vmem:[%s379 + $0x1b0] sm:$0xff]
                  %400 = vst [vmem:[%s380 + $0x48] sm:$0xff] %v399
                  %v401 = vld [vmem:[%s379 + $0x1e0] sm:$0xff]
                  %402 = vst [vmem:[%s380 + $0x50] sm:$0xff] %v401
                  %v403 = vld [vmem:[%s379 + $0x210] sm:$0xff]
                  %404 = vst [vmem:[%s380 + $0x58] sm:$0xff] %v403
                  %v405 = vld [vmem:[%s379 + $0x240] sm:$0xff]
                  %406 = vst [vmem:[%s380 + $0x60] sm:$0xff] %v405
                  %v407 = vld [vmem:[%s379 + $0x270] sm:$0xff]
                  %408 = vst [vmem:[%s380 + $0x68] sm:$0xff] %v407
                  %v409 = vld [vmem:[%s379 + $0x2a0] sm:$0xff]
                  %410 = vst [vmem:[%s380 + $0x70] sm:$0xff] %v409
                  %v411 = vld [vmem:[%s379 + $0x2d0] sm:$0xff]
                  %412 = vst [vmem:[%s380 + $0x78] sm:$0xff] %v411
                $region56: #{qwen2_5_vision_attention.6} parent=50 // loop_footer
                  %s378 = sadd.s32 1, %s374
                $region57: #{qwen2_5_vision_attention.6} parent=50 // loop_footer_branch
                  %373 = sbr.rel target = $region53
                $region58: #{qwen2_5_vision_attention.6} parent=50 // loop_exit
                  _
              $region51: #{qwen2_5_vision_attention.6} parent=35 // pred_fallthru
                _
              // Predicated region
              $region59: #{qwen2_5_vision_attention.6} parent=35 // pred_check
                _
              $region60: #{qwen2_5_vision_attention.6} parent=35 // pred_check_branch
                %414 = sbr.rel target = $region62
              $region61: #{qwen2_5_vision_attention.6} parent=35 // pred_region
                _
              $region62: #{qwen2_5_vision_attention.6} parent=35 // pred_fallthru
                _
            $region36: #{qwen2_5_vision_attention.6} parent=31 // pred_fallthru
              _
            // Predicated region
            $region37: #{qwen2_5_vision_attention.6} parent=31 // pred_check
              _
            $region38: #{qwen2_5_vision_attention.6} parent=31 // pred_check_branch
              %328 = sbr.rel target = $region40
            $region39: #{qwen2_5_vision_attention.6} parent=31 // pred_region
              %s330 = ssub.s32 256, 1
              loop: start=0, step=1, limit=1
              $region41: #{qwen2_5_vision_attention.6} parent=39 // loop_pre_header
                _
              $region42: #{qwen2_5_vision_attention.6} parent=39 // loop_header
                %s332 = sphi 0, %s336
                %p333 = scmp.ge.s32.totalorder %s332, 1
                %s337 = sphi %s322, %s322
                %s338 = sphi %s310, %s310
              $region43: #{qwen2_5_vision_attention.6} parent=39 // loop_header_branch
                %335 = sbr.rel (%p333) target = $region47
              $region44: #{qwen2_5_vision_attention.6} parent=39 // loop_body
                %v339 = vld [vmem:[%s337] sm:%s330]
                %340 = vst [vmem:[%s338] sm:%s330] %v339
                %v341 = vld [vmem:[%s337 + $0x30] sm:%s330]
                %342 = vst [vmem:[%s338 + $0x8] sm:%s330] %v341
                %v343 = vld [vmem:[%s337 + $0x60] sm:%s330]
                %344 = vst [vmem:[%s338 + $0x10] sm:%s330] %v343
                %v345 = vld [vmem:[%s337 + $0x90] sm:%s330]
                %346 = vst [vmem:[%s338 + $0x18] sm:%s330] %v345
                %v347 = vld [vmem:[%s337 + $0xc0] sm:%s330]
                %348 = vst [vmem:[%s338 + $0x20] sm:%s330] %v347
                %v349 = vld [vmem:[%s337 + $0xf0] sm:%s330]
                %350 = vst [vmem:[%s338 + $0x28] sm:%s330] %v349
                %v351 = vld [vmem:[%s337 + $0x120] sm:%s330]
                %352 = vst [vmem:[%s338 + $0x30] sm:%s330] %v351
                %v353 = vld [vmem:[%s337 + $0x150] sm:%s330]
                %354 = vst [vmem:[%s338 + $0x38] sm:%s330] %v353
                %v355 = vld [vmem:[%s337 + $0x180] sm:%s330]
                %356 = vst [vmem:[%s338 + $0x40] sm:%s330] %v355
                %v357 = vld [vmem:[%s337 + $0x1b0] sm:%s330]
                %358 = vst [vmem:[%s338 + $0x48] sm:%s330] %v357
                %v359 = vld [vmem:[%s337 + $0x1e0] sm:%s330]
                %360 = vst [vmem:[%s338 + $0x50] sm:%s330] %v359
                %v361 = vld [vmem:[%s337 + $0x210] sm:%s330]
                %362 = vst [vmem:[%s338 + $0x58] sm:%s330] %v361
                %v363 = vld [vmem:[%s337 + $0x240] sm:%s330]
                %364 = vst [vmem:[%s338 + $0x60] sm:%s330] %v363
                %v365 = vld [vmem:[%s337 + $0x270] sm:%s330]
                %366 = vst [vmem:[%s338 + $0x68] sm:%s330] %v365
                %v367 = vld [vmem:[%s337 + $0x2a0] sm:%s330]
                %368 = vst [vmem:[%s338 + $0x70] sm:%s330] %v367
                %v369 = vld [vmem:[%s337 + $0x2d0] sm:%s330]
                %370 = vst [vmem:[%s338 + $0x78] sm:%s330] %v369
              $region45: #{qwen2_5_vision_attention.6} parent=39 // loop_footer
                %s336 = sadd.s32 1, %s332
              $region46: #{qwen2_5_vision_attention.6} parent=39 // loop_footer_branch
                %331 = sbr.rel target = $region42
              $region47: #{qwen2_5_vision_attention.6} parent=39 // loop_exit
                _
            $region40: #{qwen2_5_vision_attention.6} parent=31 // pred_fallthru
              _
          $region32: #{qwen2_5_vision_attention.6} parent=27 // pred_fallthru
            _
          %415 = vnop
        $region28: #{qwen2_5_vision_attention.6} parent=15 // pred_fallthru
          _
        // Predicated region
        $region63: #{qwen2_5_vision_attention.6} parent=15 // pred_check
          %p416 = pneg %p175
        $region64: #{qwen2_5_vision_attention.6} parent=15 // pred_check_branch
          %418 = sbr.rel (%p416) target = $region66
        $region65: #{qwen2_5_vision_attention.6} parent=15 // pred_region
          %s419 = smul.u32 8, %s34
          %p420 = scmp.lt.s32.totalorder %s419, 31
          %s421 = scalar_select %p420, %s419, 31
          %s422 = smul.addr %s421, 8
          %s423 = scalar_lea.vmem %s5, %s422
          %s424 = smul.u32 8, %s34
        $region66: #{qwen2_5_vision_attention.6} parent=15 // pred_fallthru
          _
        // Predicated region
        $region67: #{qwen2_5_vision_attention.6} parent=15 // pred_check
          %p425 = pneg %p213
        $region68: #{qwen2_5_vision_attention.6} parent=15 // pred_check_branch
          %427 = sbr.rel (%p425) target = $region70
        $region69: #{qwen2_5_vision_attention.6} parent=15 // pred_region
          %s428 = sld [smem:[#allocation6 + %s34]]
          %s429 = sld [smem:[#allocation7 + %s34]]
          %s430 = ssub.s32 %s429, 1
          %p431 = scmp.lt.s32.totalorder %s35, %s430
          %s432 = scalar_select %p431, %s35, %s430
          %s433 = sadd.s32 %s428, %s432
          %p434 = scmp.lt.s32.totalorder %s433, 1
          %s435 = scalar_select %p434, %s433, 1
          %s436 = scalar_lea.vmem %s6, %s435
          %s437 = sld [smem:[#allocation6 + %s34]]
          %s438 = sld [smem:[#allocation7 + %s34]]
          %s439 = ssub.s32 %s438, 1
          %p440 = scmp.lt.s32.totalorder %s35, %s439
          %s441 = scalar_select %p440, %s35, %s439
          %s442 = sadd.s32 %s437, %s441
        $region70: #{qwen2_5_vision_attention.6} parent=15 // pred_fallthru
          _
      $region16: #{qwen2_5_vision_attention.6} parent=5 // pred_fallthru
        _
      %p443 = scmp.le.s32.totalorder 1, %s26
      %p444 = scmp.lt.s32.totalorder %s26, 17
      %p445 = pnand %p443, %p444
      %p446 = pneg %p445
      // Predicated region
      $region71: #{qwen2_5_vision_attention.6} parent=5 // pred_check
        _
      $region72: #{qwen2_5_vision_attention.6} parent=5 // pred_check_branch
        %448 = sbr.rel (%p445) target = $region74
      $region73: #{qwen2_5_vision_attention.6} parent=5 // pred_region
        %s449 = ssub.s32 %s26, 1
        %s450 = sand.u32 %s142, 1
        %s451 = sand.u32 %s142, 1
        %s452 = smul.addr %s451, 128
        %s453 = scalar_lea.vmem [#allocation8], %s452
        // Predicated region
        $region75: #{qwen2_5_vision_attention.6} parent=73 // pred_check
          %p454 = pneg %p155
        $region76: #{qwen2_5_vision_attention.6} parent=73 // pred_check_branch
          %456 = sbr.rel (%p454) target = $region78
        $region77: #{qwen2_5_vision_attention.6} parent=73 // pred_region
          _
        $region78: #{qwen2_5_vision_attention.6} parent=73 // pred_fallthru
          _
        %s457 = smul.u32 8, %s37
        %p458 = scmp.lt.s32.totalorder %s36, 1
        %s459 = scalar_select %p458, %s36, 1
        %p460 = scmp.lt.s32.totalorder %s457, 31
        %s461 = scalar_select %p460, %s457, 31
        %s462 = smul.addr %s459, 32
        %s463 = sadd.s32 %s461, %s462
        %s464 = smul.addr %s463, 8
        %s465 = scalar_lea.vmem %s2, %s464
        %p466 = pneg %p73
        %p467 = pneg %p70
        %s468 = sld [smem:[#allocation6 + %s37]]
        %s469 = sld [smem:[#allocation7 + %s37]]
        %s470 = ssub.s32 %s469, 1
        %p471 = scmp.lt.s32.totalorder %s38, %s470
        %s472 = scalar_select %p471, %s38, %s470
        %s473 = sadd.s32 %s468, %s472
        %s474 = smul.u32 16, %s473
        %p475 = scmp.lt.s32.totalorder %s36, 1
        %s476 = scalar_select %p475, %s36, 1
        %p477 = scmp.lt.s32.totalorder %s474, 31
        %s478 = scalar_select %p477, %s474, 31
        %s479 = smul.addr %s476, 32
        %s480 = sadd.s32 %s478, %s479
        %s481 = smul.addr %s480, 8
        %s482 = scalar_lea.vmem %s3, %s481
        %p483 = pneg %p113
        %p484 = pneg %p110
        %s485 = sand.u32 %s142, 1
        %s486 = sand.u32 %s142, 1
        %s487 = smul.addr %s486, 128
        %s488 = scalar_lea.vmem [#allocation8], %s487
        %p489 = pneg %p155
        %p490 = pneg %p152
        %s491 = smul.u32 8, %s37
        %p492 = scmp.lt.s32.totalorder %s491, 31
        %s493 = scalar_select %p492, %s491, 31
        %s494 = smul.addr %s493, 8
        %s495 = scalar_lea.vmem %s5, %s494
        %p496 = pneg %p181
        %p497 = pneg %p178
        %s498 = sld [smem:[#allocation6 + %s37]]
        %s499 = sld [smem:[#allocation7 + %s37]]
        %s500 = ssub.s32 %s499, 1
        %p501 = scmp.lt.s32.totalorder %s38, %s500
        %s502 = scalar_select %p501, %s38, %s500
        %s503 = sadd.s32 %s498, %s502
        %p504 = scmp.lt.s32.totalorder %s503, 1
        %s505 = scalar_select %p504, %s503, 1
        %s506 = scalar_lea.vmem %s6, %s505
        %p507 = pneg %p219
        %p508 = pneg %p216
        %p509 = pneg %p247
        %p510 = pneg %p244
        %s511 = sand.u32 %s234, 1
        %s512 = sand.u32 %s234, 1
        %s513 = smul.addr %s512, 64
        %s514 = scalar_lea.vmem [#allocation9], %s513
        %s515 = smul.u32 8, %s37
        %p516 = scmp.lt.s32.totalorder %s36, 1
        %s517 = scalar_select %p516, %s36, 1
        %p518 = scmp.lt.s32.totalorder %s515, 31
        %s519 = scalar_select %p518, %s515, 31
        %s520 = smul.addr %s517, 32
        %s521 = sadd.s32 %s519, %s520
        %s522 = smul.addr %s521, 8
        %s523 = scalar_lea.vmem %s2, %s522
        %s524 = smul.u32 8, %s37
        %s525 = sld [smem:[#allocation6 + %s37]]
        %s526 = sld [smem:[#allocation7 + %s37]]
        %s527 = ssub.s32 %s526, 1
        %p528 = scmp.lt.s32.totalorder %s38, %s527
        %s529 = scalar_select %p528, %s38, %s527
        %s530 = sadd.s32 %s525, %s529
        %s531 = smul.u32 16, %s530
        %p532 = scmp.lt.s32.totalorder %s36, 1
        %s533 = scalar_select %p532, %s36, 1
        %p534 = scmp.lt.s32.totalorder %s531, 31
        %s535 = scalar_select %p534, %s531, 31
        %s536 = smul.addr %s533, 32
        %s537 = sadd.s32 %s535, %s536
        %s538 = smul.addr %s537, 8
        %s539 = scalar_lea.vmem %s3, %s538
        %s540 = sld [smem:[#allocation6 + %s37]]
        %s541 = sld [smem:[#allocation7 + %s37]]
        %s542 = ssub.s32 %s541, 1
        %p543 = scmp.lt.s32.totalorder %s38, %s542
        %s544 = scalar_select %p543, %s38, %s542
        %s545 = sadd.s32 %s540, %s544
        %s546 = smul.u32 16, %s545
        %s547 = sld [smem:[#allocation6 + %s37]]
        %s548 = sld [smem:[#allocation7 + %s37]]
        %s549 = ssub.s32 %s548, 1
        %p550 = scmp.lt.s32.totalorder %s38, %s549
        %s551 = scalar_select %p550, %s38, %s549
        %s552 = sadd.s32 %s547, %s551
        %s553 = sadd.s32 %s36, 4
        %s554 = smul.u32 16, %s552
        %s555 = smul.u32 8, %s37
        %p556 = scmp.lt.s32.totalorder %s555, 31
        %s557 = scalar_select %p556, %s555, 31
        %s558 = smul.addr %s557, 8
        %s559 = scalar_lea.vmem %s5, %s558
        %s560 = smul.u32 8, %s37
        %s561 = sld [smem:[#allocation6 + %s37]]
        %s562 = sld [smem:[#allocation7 + %s37]]
        %s563 = ssub.s32 %s562, 1
        %p564 = scmp.lt.s32.totalorder %s38, %s563
        %s565 = scalar_select %p564, %s38, %s563
        %s566 = sadd.s32 %s561, %s565
        %p567 = scmp.lt.s32.totalorder %s566, 1
        %s568 = scalar_select %p567, %s566, 1
        %s569 = scalar_lea.vmem %s6, %s568
        %s570 = sld [smem:[#allocation6 + %s37]]
        %s571 = sld [smem:[#allocation7 + %s37]]
        %s572 = ssub.s32 %s571, 1
        %p573 = scmp.lt.s32.totalorder %s38, %s572
        %s574 = scalar_select %p573, %s38, %s572
        %s575 = sadd.s32 %s570, %s574
        %s576 = smul.u32 8, %s37
        %p577 = scmp.eq.s32.totalorder %s38, 0
        // Predicated region
        $region79: #{qwen2_5_vision_attention.6} parent=73 // pred_check
          %p578 = pneg %p577
        $region80: #{qwen2_5_vision_attention.6} parent=73 // pred_check_branch
          %580 = sbr.rel (%p578) target = $region82
        $region81: #{qwen2_5_vision_attention.6} parent=73 // pred_region
          %vm581 = vcmask 7168
          %582 = vst.msk [vmem:[#allocation2] sm:$0xff] %vm581, -inf
          %583 = vst.msk [vmem:[#allocation2 + $0x8] sm:$0xff] %vm581, -inf
          %584 = vst.msk [vmem:[#allocation2 + $0x10] sm:$0xff] %vm581, -inf
          %585 = vst.msk [vmem:[#allocation2 + $0x18] sm:$0xff] %vm581, -inf
          %586 = vst.msk [vmem:[#allocation2 + $0x20] sm:$0xff] %vm581, -inf
          %587 = vst.msk [vmem:[#allocation2 + $0x28] sm:$0xff] %vm581, -inf
          %588 = vst.msk [vmem:[#allocation2 + $0x30] sm:$0xff] %vm581, -inf
          %589 = vst.msk [vmem:[#allocation2 + $0x38] sm:$0xff] %vm581, -inf
          %590 = vst.msk [vmem:[#allocation3] sm:$0xff] %vm581, 0.0
          %591 = vst.msk [vmem:[#allocation3 + $0x8] sm:$0xff] %vm581, 0.0
          %592 = vst.msk [vmem:[#allocation3 + $0x10] sm:$0xff] %vm581, 0.0
          %593 = vst.msk [vmem:[#allocation3 + $0x18] sm:$0xff] %vm581, 0.0
          %594 = vst.msk [vmem:[#allocation3 + $0x20] sm:$0xff] %vm581, 0.0
          %595 = vst.msk [vmem:[#allocation3 + $0x28] sm:$0xff] %vm581, 0.0
          %596 = vst.msk [vmem:[#allocation3 + $0x30] sm:$0xff] %vm581, 0.0
          %597 = vst.msk [vmem:[#allocation3 + $0x38] sm:$0xff] %vm581, 0.0
          %598 = vst [vmem:[#allocation4] sm:$0xff] 0.0
          %599 = vst [vmem:[#allocation4 + $0x8] sm:$0xff] 0.0
          %600 = vst [vmem:[#allocation4 + $0x10] sm:$0xff] 0.0
          %601 = vst [vmem:[#allocation4 + $0x18] sm:$0xff] 0.0
          %602 = vst [vmem:[#allocation4 + $0x20] sm:$0xff] 0.0
          %603 = vst [vmem:[#allocation4 + $0x28] sm:$0xff] 0.0
          %604 = vst [vmem:[#allocation4 + $0x30] sm:$0xff] 0.0
          %605 = vst [vmem:[#allocation4 + $0x38] sm:$0xff] 0.0
        $region82: #{qwen2_5_vision_attention.6} parent=73 // pred_fallthru
          _
        %s606 = sld [smem:[#allocation7 + %s37]]
        %p607 = scmp.lt.s32.totalorder %s38, %s606
        // Predicated region
        $region83: #{qwen2_5_vision_attention.6} parent=73 // pred_check
          %p608 = pneg %p607
        $region84: #{qwen2_5_vision_attention.6} parent=73 // pred_check_branch
          %610 = sbr.rel (%p608) target = $region86
        $region85: #{qwen2_5_vision_attention.6} parent=73 // pred_region
          %v611 = vld [vmem:[%s523] sm:$0xff]
          %v612 = vld [vmem:[%s523 + $0x8] sm:$0xff]
          %v613 = vld [vmem:[%s523 + $0x10] sm:$0xff]
          %v614 = vld [vmem:[%s523 + $0x18] sm:$0xff]
          %v615 = vld [vmem:[%s523 + $0x20] sm:$0xff]
          %v616 = vld [vmem:[%s523 + $0x28] sm:$0xff]
          %v617 = vld [vmem:[%s523 + $0x30] sm:$0xff]
          %v618 = vld [vmem:[%s523 + $0x38] sm:$0xff]
          %v619 = vld [vmem:[%s539] sm:$0xff]
          %v620 = vld [vmem:[%s539 + $0x8] sm:$0xff]
          %v621 = vld [vmem:[%s539 + $0x10] sm:$0xff]
          %v622 = vld [vmem:[%s539 + $0x18] sm:$0xff]
          %v623 = vld [vmem:[%s539 + $0x20] sm:$0xff]
          %v624 = vld [vmem:[%s539 + $0x28] sm:$0xff]
          %v625 = vld [vmem:[%s539 + $0x30] sm:$0xff]
          %v626 = vld [vmem:[%s539 + $0x38] sm:$0xff]
          %v627 = vld [vmem:[%s539 + $0x40] sm:$0xff]
          %v628 = vld [vmem:[%s539 + $0x48] sm:$0xff]
          %v629 = vld [vmem:[%s539 + $0x50] sm:$0xff]
          %v630 = vld [vmem:[%s539 + $0x58] sm:$0xff]
          %v631 = vld [vmem:[%s539 + $0x60] sm:$0xff]
          %v632 = vld [vmem:[%s539 + $0x68] sm:$0xff]
          %v633 = vld [vmem:[%s539 + $0x70] sm:$0xff]
          %v634 = vld [vmem:[%s539 + $0x78] sm:$0xff]
          %635 = vmatpush.xpose.msra.mxu0 %v634
          %636 = vmatpush.xpose.msra.mxu0 %v633
          %637 = vmatpush.xpose.msra.mxu0 %v632
          %638 = vmatpush.xpose.msra.mxu0 %v631
          %639 = vmatpush.xpose.msra.mxu0 %v630
          %640 = vmatpush.xpose.msra.mxu0 %v629
          %641 = vmatpush.xpose.msra.mxu0 %v628
          %642 = vmatpush.xpose.msra.mxu0 %v627
          %643 = vmatpush.xpose.msra.mxu0 %v626
          %644 = vmatpush.xpose.msra.mxu0 %v625
          %645 = vmatpush.xpose.msra.mxu0 %v624
          %646 = vmatpush.xpose.msra.mxu0 %v623
          %647 = vmatpush.xpose.msra.mxu0 %v622
          %648 = vmatpush.xpose.msra.mxu0 %v621
          %649 = vmatpush.xpose.msra.mxu0 %v620
          %650 = vmatpush.xpose.msra.mxu0 %v619
          %651 = vmatmul.f32.gmra.mxu0 %v611
          %v652 = vpop.f32.mrf.mxu0
          %v653 = vadd.f32 0.0, %v652
          %654 = vmatmul.f32.gmra.mxu0 %v612
          %v655 = vpop.f32.mrf.mxu0
          %v656 = vadd.f32 0.0, %v655
          %657 = vmatmul.f32.gmra.mxu0 %v613
          %v658 = vpop.f32.mrf.mxu0
          %v659 = vadd.f32 0.0, %v658
          %660 = vmatmul.f32.gmra.mxu0 %v614
          %v661 = vpop.f32.mrf.mxu0
          %v662 = vadd.f32 0.0, %v661
          %663 = vmatmul.f32.gmra.mxu0 %v615
          %v664 = vpop.f32.mrf.mxu0
          %v665 = vadd.f32 0.0, %v664
          %666 = vmatmul.f32.gmra.mxu0 %v616
          %v667 = vpop.f32.mrf.mxu0
          %v668 = vadd.f32 0.0, %v667
          %669 = vmatmul.f32.gmra.mxu0 %v617
          %v670 = vpop.f32.mrf.mxu0
          %v671 = vadd.f32 0.0, %v670
          %672 = vmatmul.f32.gmra.mxu0 %v618
          %v673 = vpop.f32.mrf.mxu0
          %v674 = vadd.f32 0.0, %v673
          %675 = vdwg.mxu0
          %v676 = vld [vmem:[%s559] sm:$0xff]
          %v677 = vld [vmem:[%s559 + $0x8] sm:$0xff]
          %v678 = vld [vmem:[%s559 + $0x10] sm:$0xff]
          %v679 = vld [vmem:[%s559 + $0x18] sm:$0xff]
          %v680 = vld [vmem:[%s559 + $0x20] sm:$0xff]
          %v681 = vld [vmem:[%s559 + $0x28] sm:$0xff]
          %v682 = vld [vmem:[%s559 + $0x30] sm:$0xff]
          %v683 = vld [vmem:[%s559 + $0x38] sm:$0xff]
          %v684 = vld [vmem:[%s569] sm:$0x1]
          %685 = vset.pattern.permute.xlu0 0
          %686 = vperm.xlu0 %685, %v676
          %v687 = vpop.permute.xlu0 %686
          %688 = vset.pattern.permute.xlu0 0
          %689 = vperm.xlu0 %688, %v677
          %v690 = vpop.permute.xlu0 %689
          %691 = vset.pattern.permute.xlu0 0
          %692 = vperm.xlu0 %691, %v678
          %v693 = vpop.permute.xlu0 %692
          %694 = vset.pattern.permute.xlu0 0
          %695 = vperm.xlu0 %694, %v679
          %v696 = vpop.permute.xlu0 %695
          %697 = vset.pattern.permute.xlu0 0
          %698 = vperm.xlu0 %697, %v680
          %v699 = vpop.permute.xlu0 %698
          %700 = vset.pattern.permute.xlu0 0
          %701 = vperm.xlu0 %700, %v681
          %v702 = vpop.permute.xlu0 %701
          %703 = vset.pattern.permute.xlu0 0
          %704 = vperm.xlu0 %703, %v682
          %v705 = vpop.permute.xlu0 %704
          %706 = vset.pattern.permute.xlu0 0
          %707 = vperm.xlu0 %706, %v683
          %v708 = vpop.permute.xlu0 %707
          %v709 = vperm.slane %v684, 0
          %vm710 = vcmp.eq.s32.totalorder %v687, %v709
          %vm711 = vcmp.eq.s32.totalorder %v690, %v709
          %vm712 = vcmp.eq.s32.totalorder %v693, %v709
          %vm713 = vcmp.eq.s32.totalorder %v696, %v709
          %vm714 = vcmp.eq.s32.totalorder %v699, %v709
          %vm715 = vcmp.eq.s32.totalorder %v702, %v709
          %vm716 = vcmp.eq.s32.totalorder %v705, %v709
          %vm717 = vcmp.eq.s32.totalorder %v708, %v709
          %v718 = vsel %vm710, %v653, -2.3819763e+38
          %v719 = vsel %vm711, %v656, -2.3819763e+38
          %v720 = vsel %vm712, %v659, -2.3819763e+38
          %v721 = vsel %vm713, %v662, -2.3819763e+38
          %v722 = vsel %vm714, %v665, -2.3819763e+38
          %v723 = vsel %vm715, %v668, -2.3819763e+38
          %v724 = vsel %vm716, %v671, -2.3819763e+38
          %v725 = vsel %vm717, %v674, -2.3819763e+38
          %v726 = vld [vmem:[#allocation2] sm:$0xff]
          %v727 = vld [vmem:[#allocation2 + $0x8] sm:$0xff]
          %v728 = vld [vmem:[#allocation2 + $0x10] sm:$0xff]
          %v729 = vld [vmem:[#allocation2 + $0x18] sm:$0xff]
          %v730 = vld [vmem:[#allocation2 + $0x20] sm:$0xff]
          %v731 = vld [vmem:[#allocation2 + $0x28] sm:$0xff]
          %v732 = vld [vmem:[#allocation2 + $0x30] sm:$0xff]
          %v733 = vld [vmem:[#allocation2 + $0x38] sm:$0xff]
          %734 = vmax.xlane.f32.xlu0 %v718
          %v735 = vpop.xlane.xlu0 %734
          %736 = vmax.xlane.f32.xlu0 %v719
          %v737 = vpop.xlane.xlu0 %736
          %738 = vmax.xlane.f32.xlu0 %v720
          %v739 = vpop.xlane.xlu0 %738
          %740 = vmax.xlane.f32.xlu0 %v721
          %v741 = vpop.xlane.xlu0 %740
          %742 = vmax.xlane.f32.xlu0 %v722
          %v743 = vpop.xlane.xlu0 %742
          %744 = vmax.xlane.f32.xlu0 %v723
          %v745 = vpop.xlane.xlu0 %744
          %746 = vmax.xlane.f32.xlu0 %v724
          %v747 = vpop.xlane.xlu0 %746
          %748 = vmax.xlane.f32.xlu0 %v725
          %v749 = vpop.xlane.xlu0 %748
          %v750 = vmax.f32 %v726, %v735
          %v751 = vmax.f32 %v727, %v737
          %v752 = vmax.f32 %v728, %v739
          %v753 = vmax.f32 %v729, %v741
          %v754 = vmax.f32 %v730, %v743
          %v755 = vmax.f32 %v731, %v745
          %v756 = vmax.f32 %v732, %v747
          %v757 = vmax.f32 %v733, %v749
          %v758 = vsub.f32 %v726, %v750
          %v759 = vsub.f32 %v727, %v751
          %v760 = vsub.f32 %v728, %v752
          %v761 = vsub.f32 %v729, %v753
          %v762 = vsub.f32 %v730, %v754
          %v763 = vsub.f32 %v731, %v755
          %v764 = vsub.f32 %v732, %v756
          %v765 = vsub.f32 %v733, %v757
          %v766 = vmul.f32 %v758, 1.442695
          %v767 = vpow.pop %v766
          %v768 = vmul.f32 %v759, 1.442695
          %v769 = vpow.pop %v768
          %v770 = vmul.f32 %v760, 1.442695
          %v771 = vpow.pop %v770
          %v772 = vmul.f32 %v761, 1.442695
          %v773 = vpow.pop %v772
          %v774 = vmul.f32 %v762, 1.442695
          %v775 = vpow.pop %v774
          %v776 = vmul.f32 %v763, 1.442695
          %v777 = vpow.pop %v776
          %v778 = vmul.f32 %v764, 1.442695
          %v779 = vpow.pop %v778
          %v780 = vmul.f32 %v765, 1.442695
          %v781 = vpow.pop %v780
          %783 = vset.pattern.permute.xlu0 0
          %784 = vperm.xlu0 %783, %v750
          %v785 = vpop.permute.xlu0 %784
          %788 = vset.pattern.permute.xlu0 0
          %789 = vperm.xlu0 %788, %v751
          %v790 = vpop.permute.xlu0 %789
          %793 = vset.pattern.permute.xlu0 0
          %794 = vperm.xlu0 %793, %v752
          %v795 = vpop.permute.xlu0 %794
          %798 = vset.pattern.permute.xlu0 0
          %799 = vperm.xlu0 %798, %v753
          %v800 = vpop.permute.xlu0 %799
          %803 = vset.pattern.permute.xlu0 0
          %804 = vperm.xlu0 %803, %v754
          %v805 = vpop.permute.xlu0 %804
          %808 = vset.pattern.permute.xlu0 0
          %809 = vperm.xlu0 %808, %v755
          %v810 = vpop.permute.xlu0 %809
          %813 = vset.pattern.permute.xlu0 0
          %814 = vperm.xlu0 %813, %v756
          %v815 = vpop.permute.xlu0 %814
          %818 = vset.pattern.permute.xlu0 0
          %819 = vperm.xlu0 %818, %v757
          %v820 = vpop.permute.xlu0 %819
          %v822 = vsub.f32 %v718, %v785
          %v823 = vsub.f32 %v719, %v790
          %v824 = vsub.f32 %v720, %v795
          %v825 = vsub.f32 %v721, %v800
          %v826 = vsub.f32 %v722, %v805
          %v827 = vsub.f32 %v723, %v810
          %v828 = vsub.f32 %v724, %v815
          %v829 = vsub.f32 %v725, %v820
          %v830 = vmul.f32 %v822, 1.442695
          %v831 = vpow.pop %v830
          %v832 = vmul.f32 %v823, 1.442695
          %v833 = vpow.pop %v832
          %v834 = vmul.f32 %v824, 1.442695
          %v835 = vpow.pop %v834
          %v836 = vmul.f32 %v825, 1.442695
          %v837 = vpow.pop %v836
          %v838 = vmul.f32 %v826, 1.442695
          %v839 = vpow.pop %v838
          %v840 = vmul.f32 %v827, 1.442695
          %v841 = vpow.pop %v840
          %v842 = vmul.f32 %v828, 1.442695
          %v843 = vpow.pop %v842
          %v844 = vmul.f32 %v829, 1.442695
          %v845 = vpow.pop %v844
          %v846 = vld [vmem:[#allocation3] sm:$0xff]
          %v847 = vld [vmem:[#allocation3 + $0x8] sm:$0xff]
          %v848 = vld [vmem:[#allocation3 + $0x10] sm:$0xff]
          %v849 = vld [vmem:[#allocation3 + $0x18] sm:$0xff]
          %v850 = vld [vmem:[#allocation3 + $0x20] sm:$0xff]
          %v851 = vld [vmem:[#allocation3 + $0x28] sm:$0xff]
          %v852 = vld [vmem:[#allocation3 + $0x30] sm:$0xff]
          %v853 = vld [vmem:[#allocation3 + $0x38] sm:$0xff]
          %v854 = vmul.f32 %v767, %v846
          %v855 = vmul.f32 %v769, %v847
          %v856 = vmul.f32 %v771, %v848
          %v857 = vmul.f32 %v773, %v849
          %v858 = vmul.f32 %v775, %v850
          %v859 = vmul.f32 %v777, %v851
          %v860 = vmul.f32 %v779, %v852
          %v861 = vmul.f32 %v781, %v853
          %862 = vadd.xlane.f32.xlu0 %v831
          %v863 = vpop.xlane.xlu0 %862
          %864 = vadd.xlane.f32.xlu0 %v833
          %v865 = vpop.xlane.xlu0 %864
          %866 = vadd.xlane.f32.xlu0 %v835
          %v867 = vpop.xlane.xlu0 %866
          %868 = vadd.xlane.f32.xlu0 %v837
          %v869 = vpop.xlane.xlu0 %868
          %870 = vadd.xlane.f32.xlu0 %v839
          %v871 = vpop.xlane.xlu0 %870
          %872 = vadd.xlane.f32.xlu0 %v841
          %v873 = vpop.xlane.xlu0 %872
          %874 = vadd.xlane.f32.xlu0 %v843
          %v875 = vpop.xlane.xlu0 %874
          %876 = vadd.xlane.f32.xlu0 %v845
          %v877 = vpop.xlane.xlu0 %876
          %v878 = vadd.f32 %v854, %v863
          %v879 = vadd.f32 %v855, %v865
          %v880 = vadd.f32 %v856, %v867
          %v881 = vadd.f32 %v857, %v869
          %v882 = vadd.f32 %v858, %v871
          %v883 = vadd.f32 %v859, %v873
          %v884 = vadd.f32 %v860, %v875
          %v885 = vadd.f32 %v861, %v877
          %vm886 = vcmask 7168
          %887 = vst.msk [vmem:[#allocation3] sm:$0xff] %vm886, %v878
          %888 = vst.msk [vmem:[#allocation3 + $0x8] sm:$0xff] %vm886, %v879
          %889 = vst.msk [vmem:[#allocation3 + $0x10] sm:$0xff] %vm886, %v880
          %890 = vst.msk [vmem:[#allocation3 + $0x18] sm:$0xff] %vm886, %v881
          %891 = vst.msk [vmem:[#allocation3 + $0x20] sm:$0xff] %vm886, %v882
          %892 = vst.msk [vmem:[#allocation3 + $0x28] sm:$0xff] %vm886, %v883
          %893 = vst.msk [vmem:[#allocation3 + $0x30] sm:$0xff] %vm886, %v884
          %894 = vst.msk [vmem:[#allocation3 + $0x38] sm:$0xff] %vm886, %v885
          %v895 = vld [vmem:[#allocation4] sm:$0xff]
          %v896 = vld [vmem:[#allocation4 + $0x8] sm:$0xff]
          %v897 = vld [vmem:[#allocation4 + $0x10] sm:$0xff]
          %v898 = vld [vmem:[#allocation4 + $0x18] sm:$0xff]
          %v899 = vld [vmem:[#allocation4 + $0x20] sm:$0xff]
          %v900 = vld [vmem:[#allocation4 + $0x28] sm:$0xff]
          %v901 = vld [vmem:[#allocation4 + $0x30] sm:$0xff]
          %v902 = vld [vmem:[#allocation4 + $0x38] sm:$0xff]
          %904 = vset.pattern.permute.xlu0 0
          %905 = vperm.xlu0 %904, %v767
          %v906 = vpop.permute.xlu0 %905
          %909 = vset.pattern.permute.xlu0 0
          %910 = vperm.xlu0 %909, %v769
          %v911 = vpop.permute.xlu0 %910
          %914 = vset.pattern.permute.xlu0 0
          %915 = vperm.xlu0 %914, %v771
          %v916 = vpop.permute.xlu0 %915
          %919 = vset.pattern.permute.xlu0 0
          %920 = vperm.xlu0 %919, %v773
          %v921 = vpop.permute.xlu0 %920
          %924 = vset.pattern.permute.xlu0 0
          %925 = vperm.xlu0 %924, %v775
          %v926 = vpop.permute.xlu0 %925
          %929 = vset.pattern.permute.xlu0 0
          %930 = vperm.xlu0 %929, %v777
          %v931 = vpop.permute.xlu0 %930
          %934 = vset.pattern.permute.xlu0 0
          %935 = vperm.xlu0 %934, %v779
          %v936 = vpop.permute.xlu0 %935
          %939 = vset.pattern.permute.xlu0 0
          %940 = vperm.xlu0 %939, %v781
          %v941 = vpop.permute.xlu0 %940
          %v943 = vmul.f32 %v906, %v895
          %v944 = vmul.f32 %v911, %v896
          %v945 = vmul.f32 %v916, %v897
          %v946 = vmul.f32 %v921, %v898
          %v947 = vmul.f32 %v926, %v899
          %v948 = vmul.f32 %v931, %v900
          %v949 = vmul.f32 %v936, %v901
          %v950 = vmul.f32 %v941, %v902
          %v951 = vld [vmem:[%s453] sm:$0xff]
          %v952 = vld [vmem:[%s453 + $0x8] sm:$0xff]
          %v953 = vld [vmem:[%s453 + $0x10] sm:$0xff]
          %v954 = vld [vmem:[%s453 + $0x18] sm:$0xff]
          %v955 = vld [vmem:[%s453 + $0x20] sm:$0xff]
          %v956 = vld [vmem:[%s453 + $0x28] sm:$0xff]
          %v957 = vld [vmem:[%s453 + $0x30] sm:$0xff]
          %v958 = vld [vmem:[%s453 + $0x38] sm:$0xff]
          %v959 = vld [vmem:[%s453 + $0x40] sm:$0xff]
          %v960 = vld [vmem:[%s453 + $0x48] sm:$0xff]
          %v961 = vld [vmem:[%s453 + $0x50] sm:$0xff]
          %v962 = vld [vmem:[%s453 + $0x58] sm:$0xff]
          %v963 = vld [vmem:[%s453 + $0x60] sm:$0xff]
          %v964 = vld [vmem:[%s453 + $0x68] sm:$0xff]
          %v965 = vld [vmem:[%s453 + $0x70] sm:$0xff]
          %v966 = vld [vmem:[%s453 + $0x78] sm:$0xff]
          %967 = vmatpush.msra.mxu0 %v966
          %968 = vmatpush.msra.mxu0 %v965
          %969 = vmatpush.msra.mxu0 %v964
          %970 = vmatpush.msra.mxu0 %v963
          %971 = vmatpush.msra.mxu0 %v962
          %972 = vmatpush.msra.mxu0 %v961
          %973 = vmatpush.msra.mxu0 %v960
          %974 = vmatpush.msra.mxu0 %v959
          %975 = vmatpush.msra.mxu0 %v958
          %976 = vmatpush.msra.mxu0 %v957
          %977 = vmatpush.msra.mxu0 %v956
          %978 = vmatpush.msra.mxu0 %v955
          %979 = vmatpush.msra.mxu0 %v954
          %980 = vmatpush.msra.mxu0 %v953
          %981 = vmatpush.msra.mxu0 %v952
          %982 = vmatpush.msra.mxu0 %v951
          %983 = vmatmul.f32.gmra.mxu0 %v831
          %v984 = vpop.f32.mrf.mxu0
          %v985 = vadd.f32 0.0, %v984
          %986 = vmatmul.f32.gmra.mxu0 %v833
          %v987 = vpop.f32.mrf.mxu0
          %v988 = vadd.f32 0.0, %v987
          %989 = vmatmul.f32.gmra.mxu0 %v835
          %v990 = vpop.f32.mrf.mxu0
          %v991 = vadd.f32 0.0, %v990
          %992 = vmatmul.f32.gmra.mxu0 %v837
          %v993 = vpop.f32.mrf.mxu0
          %v994 = vadd.f32 0.0, %v993
          %995 = vmatmul.f32.gmra.mxu0 %v839
          %v996 = vpop.f32.mrf.mxu0
          %v997 = vadd.f32 0.0, %v996
          %998 = vmatmul.f32.gmra.mxu0 %v841
          %v999 = vpop.f32.mrf.mxu0
          %v1000 = vadd.f32 0.0, %v999
          %1001 = vmatmul.f32.gmra.mxu0 %v843
          %v1002 = vpop.f32.mrf.mxu0
          %v1003 = vadd.f32 0.0, %v1002
          %1004 = vmatmul.f32.gmra.mxu0 %v845
          %v1005 = vpop.f32.mrf.mxu0
          %v1006 = vadd.f32 0.0, %v1005
          %1007 = vdwg.mxu0
          %v1008 = vadd.f32 %v943, %v985
          %v1009 = vadd.f32 %v944, %v988
          %v1010 = vadd.f32 %v945, %v991
          %v1011 = vadd.f32 %v946, %v994
          %v1012 = vadd.f32 %v947, %v997
          %v1013 = vadd.f32 %v948, %v1000
          %v1014 = vadd.f32 %v949, %v1003
          %v1015 = vadd.f32 %v950, %v1006
          %1016 = vst [vmem:[#allocation4] sm:$0xff] %v1008
          %1017 = vst [vmem:[#allocation4 + $0x8] sm:$0xff] %v1009
          %1018 = vst [vmem:[#allocation4 + $0x10] sm:$0xff] %v1010
          %1019 = vst [vmem:[#allocation4 + $0x18] sm:$0xff] %v1011
          %1020 = vst [vmem:[#allocation4 + $0x20] sm:$0xff] %v1012
          %1021 = vst [vmem:[#allocation4 + $0x28] sm:$0xff] %v1013
          %1022 = vst [vmem:[#allocation4 + $0x30] sm:$0xff] %v1014
          %1023 = vst [vmem:[#allocation4 + $0x38] sm:$0xff] %v1015
          %1024 = vst.msk [vmem:[#allocation2] sm:$0xff] %vm886, %v750
          %1025 = vst.msk [vmem:[#allocation2 + $0x8] sm:$0xff] %vm886, %v751
          %1026 = vst.msk [vmem:[#allocation2 + $0x10] sm:$0xff] %vm886, %v752
          %1027 = vst.msk [vmem:[#allocation2 + $0x18] sm:$0xff] %vm886, %v753
          %1028 = vst.msk [vmem:[#allocation2 + $0x20] sm:$0xff] %vm886, %v754
          %1029 = vst.msk [vmem:[#allocation2 + $0x28] sm:$0xff] %vm886, %v755
          %1030 = vst.msk [vmem:[#allocation2 + $0x30] sm:$0xff] %vm886, %v756
          %1031 = vst.msk [vmem:[#allocation2 + $0x38] sm:$0xff] %vm886, %v757
        $region86: #{qwen2_5_vision_attention.6} parent=73 // pred_fallthru
          _
        %p1032 = scmp.eq.s32.totalorder %s38, 1
        // Predicated region
        $region87: #{qwen2_5_vision_attention.6} parent=73 // pred_check
          %p1033 = pneg %p1032
        $region88: #{qwen2_5_vision_attention.6} parent=73 // pred_check_branch
          %1035 = sbr.rel (%p1033) target = $region90
        $region89: #{qwen2_5_vision_attention.6} parent=73 // pred_region
          %v1036 = vld [vmem:[#allocation4] sm:$0xff]
          %v1037 = vld [vmem:[#allocation4 + $0x8] sm:$0xff]
          %v1038 = vld [vmem:[#allocation4 + $0x10] sm:$0xff]
          %v1039 = vld [vmem:[#allocation4 + $0x18] sm:$0xff]
          %v1040 = vld [vmem:[#allocation4 + $0x20] sm:$0xff]
          %v1041 = vld [vmem:[#allocation4 + $0x28] sm:$0xff]
          %v1042 = vld [vmem:[#allocation4 + $0x30] sm:$0xff]
          %v1043 = vld [vmem:[#allocation4 + $0x38] sm:$0xff]
          %v1044 = vld [vmem:[#allocation3] sm:$0xff]
          %v1045 = vld [vmem:[#allocation3 + $0x8] sm:$0xff]
          %v1046 = vld [vmem:[#allocation3 + $0x10] sm:$0xff]
          %v1047 = vld [vmem:[#allocation3 + $0x18] sm:$0xff]
          %v1048 = vld [vmem:[#allocation3 + $0x20] sm:$0xff]
          %v1049 = vld [vmem:[#allocation3 + $0x28] sm:$0xff]
          %v1050 = vld [vmem:[#allocation3 + $0x30] sm:$0xff]
          %v1051 = vld [vmem:[#allocation3 + $0x38] sm:$0xff]
          %v1052 = vrcp.pop %v1044
          %v1053 = vrcp.pop %v1045
          %v1054 = vrcp.pop %v1046
          %v1055 = vrcp.pop %v1047
          %v1056 = vrcp.pop %v1048
          %v1057 = vrcp.pop %v1049
          %v1058 = vrcp.pop %v1050
          %v1059 = vrcp.pop %v1051
          %1061 = vset.pattern.permute.xlu0 0
          %1062 = vperm.xlu0 %1061, %v1052
          %v1063 = vpop.permute.xlu0 %1062
          %1066 = vset.pattern.permute.xlu0 0
          %1067 = vperm.xlu0 %1066, %v1053
          %v1068 = vpop.permute.xlu0 %1067
          %1071 = vset.pattern.permute.xlu0 0
          %1072 = vperm.xlu0 %1071, %v1054
          %v1073 = vpop.permute.xlu0 %1072
          %1076 = vset.pattern.permute.xlu0 0
          %1077 = vperm.xlu0 %1076, %v1055
          %v1078 = vpop.permute.xlu0 %1077
          %1081 = vset.pattern.permute.xlu0 0
          %1082 = vperm.xlu0 %1081, %v1056
          %v1083 = vpop.permute.xlu0 %1082
          %1086 = vset.pattern.permute.xlu0 0
          %1087 = vperm.xlu0 %1086, %v1057
          %v1088 = vpop.permute.xlu0 %1087
          %1091 = vset.pattern.permute.xlu0 0
          %1092 = vperm.xlu0 %1091, %v1058
          %v1093 = vpop.permute.xlu0 %1092
          %1096 = vset.pattern.permute.xlu0 0
          %1097 = vperm.xlu0 %1096, %v1059
          %v1098 = vpop.permute.xlu0 %1097
          %v1100 = vmul.f32 %v1036, %v1063
          %v1101 = vmul.f32 %v1037, %v1068
          %v1102 = vmul.f32 %v1038, %v1073
          %v1103 = vmul.f32 %v1039, %v1078
          %v1104 = vmul.f32 %v1040, %v1083
          %v1105 = vmul.f32 %v1041, %v1088
          %v1106 = vmul.f32 %v1042, %v1093
          %v1107 = vmul.f32 %v1043, %v1098
          %1108 = vst [vmem:[%s514] sm:$0xff] %v1100
          %1109 = vst [vmem:[%s514 + $0x8] sm:$0xff] %v1101
          %1110 = vst [vmem:[%s514 + $0x10] sm:$0xff] %v1102
          %1111 = vst [vmem:[%s514 + $0x18] sm:$0xff] %v1103
          %1112 = vst [vmem:[%s514 + $0x20] sm:$0xff] %v1104
          %1113 = vst [vmem:[%s514 + $0x28] sm:$0xff] %v1105
          %1114 = vst [vmem:[%s514 + $0x30] sm:$0xff] %v1106
          %1115 = vst [vmem:[%s514 + $0x38] sm:$0xff] %v1107
        $region90: #{qwen2_5_vision_attention.6} parent=73 // pred_fallthru
          _
        %s1116 = sand.u32 %s234, 1
        %s1117 = sand.u32 %s234, 1
        %s1118 = smul.addr %s1117, 64
        %s1119 = scalar_lea.vmem [#allocation9], %s1118
        // Predicated region
        $region91: #{qwen2_5_vision_attention.6} parent=73 // pred_check
          %p1120 = pneg %p244
        $region92: #{qwen2_5_vision_attention.6} parent=73 // pred_check_branch
          %1122 = sbr.rel (%p1120) target = $region94
        $region93: #{qwen2_5_vision_attention.6} parent=73 // pred_region
          %s1123 = smul.u32 8, %s37
          %s1124 = smul.addr %s1123, 2
          %s1125 = sadd.s32 %s36, %s1124
          %s1126 = smul.addr %s1125, 8
          %s1127 = scalar_lea.vmem %s7, %s1126
          // Predicated region
          $region95: #{qwen2_5_vision_attention.6} parent=93 // pred_check
            _
          $region96: #{qwen2_5_vision_attention.6} parent=93 // pred_check_branch
            %1129 = sbr.rel (0) target = $region98
          $region97: #{qwen2_5_vision_attention.6} parent=93 // pred_region
            // Predicated region
            $region99: #{qwen2_5_vision_attention.6} parent=97 // pred_check
              _
            $region100: #{qwen2_5_vision_attention.6} parent=97 // pred_check_branch
              %1131 = sbr.rel (0) target = $region102
            $region101: #{qwen2_5_vision_attention.6} parent=97 // pred_region
              // Predicated region
              $region114: #{qwen2_5_vision_attention.6} parent=101 // pred_check
                _
              $region115: #{qwen2_5_vision_attention.6} parent=101 // pred_check_branch
                %1161 = sbr.rel (0) target = $region117
              $region116: #{qwen2_5_vision_attention.6} parent=101 // pred_region
                loop: start=0, step=1, limit=1
                $region118: #{qwen2_5_vision_attention.6} parent=116 // loop_pre_header
                  _
                $region119: #{qwen2_5_vision_attention.6} parent=116 // loop_header
                  %s1163 = sphi 0, %s1167
                  %p1164 = scmp.ge.s32.totalorder %s1163, 1
                  %s1168 = sphi %s1119, %s1119
                  %s1169 = sphi %s1127, %s1127
                $region120: #{qwen2_5_vision_attention.6} parent=116 // loop_header_branch
                  %1166 = sbr.rel (%p1164) target = $region124
                $region121: #{qwen2_5_vision_attention.6} parent=116 // loop_body
                  %v1170 = vld [vmem:[%s1168] sm:$0xff]
                  %1171 = vst [vmem:[%s1169] sm:$0xff] %v1170
                  %v1172 = vld [vmem:[%s1168 + $0x8] sm:$0xff]
                  %1173 = vst [vmem:[%s1169 + $0x10] sm:$0xff] %v1172
                  %v1174 = vld [vmem:[%s1168 + $0x10] sm:$0xff]
                  %1175 = vst [vmem:[%s1169 + $0x20] sm:$0xff] %v1174
                  %v1176 = vld [vmem:[%s1168 + $0x18] sm:$0xff]
                  %1177 = vst [vmem:[%s1169 + $0x30] sm:$0xff] %v1176
                  %v1178 = vld [vmem:[%s1168 + $0x20] sm:$0xff]
                  %1179 = vst [vmem:[%s1169 + $0x40] sm:$0xff] %v1178
                  %v1180 = vld [vmem:[%s1168 + $0x28] sm:$0xff]
                  %1181 = vst [vmem:[%s1169 + $0x50] sm:$0xff] %v1180
                  %v1182 = vld [vmem:[%s1168 + $0x30] sm:$0xff]
                  %1183 = vst [vmem:[%s1169 + $0x60] sm:$0xff] %v1182
                  %v1184 = vld [vmem:[%s1168 + $0x38] sm:$0xff]
                  %1185 = vst [vmem:[%s1169 + $0x70] sm:$0xff] %v1184
                $region122: #{qwen2_5_vision_attention.6} parent=116 // loop_footer
                  %s1167 = sadd.s32 1, %s1163
                $region123: #{qwen2_5_vision_attention.6} parent=116 // loop_footer_branch
                  %1162 = sbr.rel target = $region119
                $region124: #{qwen2_5_vision_attention.6} parent=116 // loop_exit
                  _
              $region117: #{qwen2_5_vision_attention.6} parent=101 // pred_fallthru
                _
              // Predicated region
              $region125: #{qwen2_5_vision_attention.6} parent=101 // pred_check
                _
              $region126: #{qwen2_5_vision_attention.6} parent=101 // pred_check_branch
                %1187 = sbr.rel target = $region128
              $region127: #{qwen2_5_vision_attention.6} parent=101 // pred_region
                _
              $region128: #{qwen2_5_vision_attention.6} parent=101 // pred_fallthru
                _
            $region102: #{qwen2_5_vision_attention.6} parent=97 // pred_fallthru
              _
            // Predicated region
            $region103: #{qwen2_5_vision_attention.6} parent=97 // pred_check
              _
            $region104: #{qwen2_5_vision_attention.6} parent=97 // pred_check_branch
              %1133 = sbr.rel target = $region106
            $region105: #{qwen2_5_vision_attention.6} parent=97 // pred_region
              %s1135 = ssub.s32 256, 1
              loop: start=0, step=1, limit=1
              $region107: #{qwen2_5_vision_attention.6} parent=105 // loop_pre_header
                _
              $region108: #{qwen2_5_vision_attention.6} parent=105 // loop_header
                %s1137 = sphi 0, %s1141
                %p1138 = scmp.ge.s32.totalorder %s1137, 1
                %s1142 = sphi %s1119, %s1119
                %s1143 = sphi %s1127, %s1127
              $region109: #{qwen2_5_vision_attention.6} parent=105 // loop_header_branch
                %1140 = sbr.rel (%p1138) target = $region113
              $region110: #{qwen2_5_vision_attention.6} parent=105 // loop_body
                %v1144 = vld [vmem:[%s1142] sm:%s1135]
                %1145 = vst [vmem:[%s1143] sm:%s1135] %v1144
                %v1146 = vld [vmem:[%s1142 + $0x8] sm:%s1135]
                %1147 = vst [vmem:[%s1143 + $0x10] sm:%s1135] %v1146
                %v1148 = vld [vmem:[%s1142 + $0x10] sm:%s1135]
                %1149 = vst [vmem:[%s1143 + $0x20] sm:%s1135] %v1148
                %v1150 = vld [vmem:[%s1142 + $0x18] sm:%s1135]
                %1151 = vst [vmem:[%s1143 + $0x30] sm:%s1135] %v1150
                %v1152 = vld [vmem:[%s1142 + $0x20] sm:%s1135]
                %1153 = vst [vmem:[%s1143 + $0x40] sm:%s1135] %v1152
                %v1154 = vld [vmem:[%s1142 + $0x28] sm:%s1135]
                %1155 = vst [vmem:[%s1143 + $0x50] sm:%s1135] %v1154
                %v1156 = vld [vmem:[%s1142 + $0x30] sm:%s1135]
                %1157 = vst [vmem:[%s1143 + $0x60] sm:%s1135] %v1156
                %v1158 = vld [vmem:[%s1142 + $0x38] sm:%s1135]
                %1159 = vst [vmem:[%s1143 + $0x70] sm:%s1135] %v1158
              $region111: #{qwen2_5_vision_attention.6} parent=105 // loop_footer
                %s1141 = sadd.s32 1, %s1137
              $region112: #{qwen2_5_vision_attention.6} parent=105 // loop_footer_branch
                %1136 = sbr.rel target = $region108
              $region113: #{qwen2_5_vision_attention.6} parent=105 // loop_exit
                _
            $region106: #{qwen2_5_vision_attention.6} parent=97 // pred_fallthru
              _
          $region98: #{qwen2_5_vision_attention.6} parent=93 // pred_fallthru
            _
          %1188 = vnop
        $region94: #{qwen2_5_vision_attention.6} parent=73 // pred_fallthru
          _
      $region74: #{qwen2_5_vision_attention.6} parent=5 // pred_fallthru
        _
      %p1189 = scmp.le.s32.totalorder 2, %s26
      // Predicated region
      $region129: #{qwen2_5_vision_attention.6} parent=5 // pred_check
        %p1190 = pneg %p1189
      $region130: #{qwen2_5_vision_attention.6} parent=5 // pred_check_branch
        %1192 = sbr.rel (%p1190) target = $region132
      $region131: #{qwen2_5_vision_attention.6} parent=5 // pred_region
        %s1193 = ssub.s32 %s26, 2
        // Predicated region
        $region133: #{qwen2_5_vision_attention.6} parent=131 // pred_check
          %p1194 = pneg %p250
        $region134: #{qwen2_5_vision_attention.6} parent=131 // pred_check_branch
          %1196 = sbr.rel (%p1194) target = $region136
        $region135: #{qwen2_5_vision_attention.6} parent=131 // pred_region
          %s1197 = sand.u32 %s235, 1
          %s1198 = sand.u32 %s235, 1
          %s1199 = smul.addr %s1198, 64
          %s1200 = scalar_lea.vmem [#allocation9], %s1199
        $region136: #{qwen2_5_vision_attention.6} parent=131 // pred_fallthru
          _
      $region132: #{qwen2_5_vision_attention.6} parent=5 // pred_fallthru
        _
    $region6: #{qwen2_5_vision_attention.6} parent=1 // loop_footer
      %s30 = sadd.s32 1, %s26
    $region7: #{qwen2_5_vision_attention.6} parent=1 // loop_footer_branch
      %25 = sbr.rel target = $region3
    $region8: #{qwen2_5_vision_attention.6} parent=1 // loop_exit
      _

// kernel: qwen2_5_vision_attention.7
$region0: #{qwen2_5_vision_attention.7}
  #allocation0 [shape = 'u32[]', space=smem, size = 0x4, offset = 0x4, fixed_abs, tag = 'smem constant byte address 0x4 - core index']
  #allocation1 [shape = 'u32[72,128]{1,0:T(1,128)}', space=vmem, size = 0x9000, scoped, tag = 'internal scratch']
  #allocation2 [shape = 'f32[256,256]{1,0:T(8,128)}', space=vmem, size = 0x40000, scoped, tag = 'scratch operand']
  %s0 = inlined_call_operand.vmem [shape: f32[256,256], index: 0, kind: input, shape index: {}]
  %s1 = inlined_call_operand.vmem [shape: f32[256,256], index: 1, kind: input, shape index: {}]
  %s2 = inlined_call_operand.vmem [shape: f32[1,256], index: 2, kind: input, shape index: {}]
  %s3 = inlined_call_operand.vmem [shape: f32[256,256], index: 3, kind: output, shape index: {}]
  %s4 = sld [smem:[#allocation0]]
  $region30: #{qwen2_5_vision_attention.7} parent=0
    _
  %s6 = ssub.s32 1, %s4
  %s7 = scalar_select 0, %s6, %s4
  // Predicated region
  $region2: #{qwen2_5_vision_attention.7} parent=0 // pred_check
    _
  $region3: #{qwen2_5_vision_attention.7} parent=0 // pred_check_branch
    %9 = sbr.rel (0) target = $region5
  $region4: #{qwen2_5_vision_attention.7} parent=0 // pred_region
    _
  $region5: #{qwen2_5_vision_attention.7} parent=0 // pred_fallthru
    _
  // Predicated region
  $region6: #{qwen2_5_vision_attention.7} parent=0 // pred_check
    _
  $region7: #{qwen2_5_vision_attention.7} parent=0 // pred_check_branch
    %11 = sbr.rel (0) target = $region9
  $region8: #{qwen2_5_vision_attention.7} parent=0 // pred_region
    _
  $region9: #{qwen2_5_vision_attention.7} parent=0 // pred_fallthru
    _
  // Predicated region
  $region10: #{qwen2_5_vision_attention.7} parent=0 // pred_check
    _
  $region11: #{qwen2_5_vision_attention.7} parent=0 // pred_check_branch
    %13 = sbr.rel (0) target = $region13
  $region12: #{qwen2_5_vision_attention.7} parent=0 // pred_region
    _
  $region13: #{qwen2_5_vision_attention.7} parent=0 // pred_fallthru
    _
  %p14 = scmp.eq.s32.totalorder 0, 0
  // Predicated region
  $region14: #{qwen2_5_vision_attention.7} parent=0 // pred_check
    %p15 = pneg %p14
  $region15: #{qwen2_5_vision_attention.7} parent=0 // pred_check_branch
    %17 = sbr.rel (%p15) target = $region17
  $region16: #{qwen2_5_vision_attention.7} parent=0 // pred_region
    %18 = vst [vmem:[#allocation2] sm:$0xff] 0.0
    %19 = vst [vmem:[#allocation2 + $0x8] sm:$0xff] 0.0
    %20 = vst [vmem:[#allocation2 + $0x10] sm:$0xff] 0.0
    %21 = vst [vmem:[#allocation2 + $0x18] sm:$0xff] 0.0
    %22 = vst [vmem:[#allocation2 + $0x20] sm:$0xff] 0.0
    %23 = vst [vmem:[#allocation2 + $0x28] sm:$0xff] 0.0
    %24 = vst [vmem:[#allocation2 + $0x30] sm:$0xff] 0.0
    %25 = vst [vmem:[#allocation2 + $0x38] sm:$0xff] 0.0
    %26 = vst [vmem:[#allocation2 + $0x40] sm:$0xff] 0.0
    %27 = vst [vmem:[#allocation2 + $0x48] sm:$0xff] 0.0
    %28 = vst [vmem:[#allocation2 + $0x50] sm:$0xff] 0.0
    %29 = vst [vmem:[#allocation2 + $0x58] sm:$0xff] 0.0
    %30 = vst [vmem:[#allocation2 + $0x60] sm:$0xff] 0.0
    %31 = vst [vmem:[#allocation2 + $0x68] sm:$0xff] 0.0
    %32 = vst [vmem:[#allocation2 + $0x70] sm:$0xff] 0.0
    %33 = vst [vmem:[#allocation2 + $0x78] sm:$0xff] 0.0
    %34 = vst [vmem:[#allocation2 + $0x80] sm:$0xff] 0.0
    %35 = vst [vmem:[#allocation2 + $0x88] sm:$0xff] 0.0
    %36 = vst [vmem:[#allocation2 + $0x90] sm:$0xff] 0.0
    %37 = vst [vmem:[#allocation2 + $0x98] sm:$0xff] 0.0
    %38 = vst [vmem:[#allocation2 + $0xa0] sm:$0xff] 0.0
    %39 = vst [vmem:[#allocation2 + $0xa8] sm:$0xff] 0.0
    %40 = vst [vmem:[#allocation2 + $0xb0] sm:$0xff] 0.0
    %41 = vst [vmem:[#allocation2 + $0xb8] sm:$0xff] 0.0
    %42 = vst [vmem:[#allocation2 + $0xc0] sm:$0xff] 0.0
    %43 = vst [vmem:[#allocation2 + $0xc8] sm:$0xff] 0.0
    %44 = vst [vmem:[#allocation2 + $0xd0] sm:$0xff] 0.0
    %45 = vst [vmem:[#allocation2 + $0xd8] sm:$0xff] 0.0
    %46 = vst [vmem:[#allocation2 + $0xe0] sm:$0xff] 0.0
    %47 = vst [vmem:[#allocation2 + $0xe8] sm:$0xff] 0.0
    %48 = vst [vmem:[#allocation2 + $0xf0] sm:$0xff] 0.0
    %49 = vst [vmem:[#allocation2 + $0xf8] sm:$0xff] 0.0
    %50 = vst [vmem:[#allocation2 + $0x100] sm:$0xff] 0.0
    %51 = vst [vmem:[#allocation2 + $0x108] sm:$0xff] 0.0
    %52 = vst [vmem:[#allocation2 + $0x110] sm:$0xff] 0.0
    %53 = vst [vmem:[#allocation2 + $0x118] sm:$0xff] 0.0
    %54 = vst [vmem:[#allocation2 + $0x120] sm:$0xff] 0.0
    %55 = vst [vmem:[#allocation2 + $0x128] sm:$0xff] 0.0
    %56 = vst [vmem:[#allocation2 + $0x130] sm:$0xff] 0.0
    %57 = vst [vmem:[#allocation2 + $0x138] sm:$0xff] 0.0
    %58 = vst [vmem:[#allocation2 + $0x140] sm:$0xff] 0.0
    %59 = vst [vmem:[#allocation2 + $0x148] sm:$0xff] 0.0
    %60 = vst [vmem:[#allocation2 + $0x150] sm:$0xff] 0.0
    %61 = vst [vmem:[#allocation2 + $0x158] sm:$0xff] 0.0
    %62 = vst [vmem:[#allocation2 + $0x160] sm:$0xff] 0.0
    %63 = vst [vmem:[#allocation2 + $0x168] sm:$0xff] 0.0
    %64 = vst [vmem:[#allocation2 + $0x170] sm:$0xff] 0.0
    %65 = vst [vmem:[#allocation2 + $0x178] sm:$0xff] 0.0
    %66 = vst [vmem:[#allocation2 + $0x180] sm:$0xff] 0.0
    %67 = vst [vmem:[#allocation2 + $0x188] sm:$0xff] 0.0
    %68 = vst [vmem:[#allocation2 + $0x190] sm:$0xff] 0.0
    %69 = vst [vmem:[#allocation2 + $0x198] sm:$0xff] 0.0
    %70 = vst [vmem:[#allocation2 + $0x1a0] sm:$0xff] 0.0
    %71 = vst [vmem:[#allocation2 + $0x1a8] sm:$0xff] 0.0
    %72 = vst [vmem:[#allocation2 + $0x1b0] sm:$0xff] 0.0
    %73 = vst [vmem:[#allocation2 + $0x1b8] sm:$0xff] 0.0
    %74 = vst [vmem:[#allocation2 + $0x1c0] sm:$0xff] 0.0
    %75 = vst [vmem:[#allocation2 + $0x1c8] sm:$0xff] 0.0
    %76 = vst [vmem:[#allocation2 + $0x1d0] sm:$0xff] 0.0
    %77 = vst [vmem:[#allocation2 + $0x1d8] sm:$0xff] 0.0
    %78 = vst [vmem:[#allocation2 + $0x1e0] sm:$0xff] 0.0
    %79 = vst [vmem:[#allocation2 + $0x1e8] sm:$0xff] 0.0
    %80 = vst [vmem:[#allocation2 + $0x1f0] sm:$0xff] 0.0
    %81 = vst [vmem:[#allocation2 + $0x1f8] sm:$0xff] 0.0
  $region17: #{qwen2_5_vision_attention.7} parent=0 // pred_fallthru
    _
  %v82 = vld [vmem:[#allocation2] sm:$0xff]
  %v83 = vld [vmem:[#allocation2 + $0x8] sm:$0xff]
  %v84 = vld [vmem:[#allocation2 + $0x10] sm:$0xff]
  %v85 = vld [vmem:[#allocation2 + $0x18] sm:$0xff]
  %v86 = vld [vmem:[#allocation2 + $0x20] sm:$0xff]
  %v87 = vld [vmem:[#allocation2 + $0x28] sm:$0xff]
  %v88 = vld [vmem:[#allocation2 + $0x30] sm:$0xff]
  %v89 = vld [vmem:[#allocation2 + $0x38] sm:$0xff]
  %v90 = vld [vmem:[#allocation2 + $0x40] sm:$0xff]
  %v91 = vld [vmem:[#allocation2 + $0x48] sm:$0xff]
  %v92 = vld [vmem:[#allocation2 + $0x50] sm:$0xff]
  %v93 = vld [vmem:[#allocation2 + $0x58] sm:$0xff]
  %v94 = vld [vmem:[#allocation2 + $0x60] sm:$0xff]
  %v95 = vld [vmem:[#allocation2 + $0x68] sm:$0xff]
  %v96 = vld [vmem:[#allocation2 + $0x70] sm:$0xff]
  %v97 = vld [vmem:[#allocation2 + $0x78] sm:$0xff]
  %v98 = vld [vmem:[#allocation2 + $0x80] sm:$0xff]
  %v99 = vld [vmem:[#allocation2 + $0x88] sm:$0xff]
  %v100 = vld [vmem:[#allocation2 + $0x90] sm:$0xff]
  %v101 = vld [vmem:[#allocation2 + $0x98] sm:$0xff]
  %v102 = vld [vmem:[#allocation2 + $0xa0] sm:$0xff]
  %v103 = vld [vmem:[#allocation2 + $0xa8] sm:$0xff]
  %v104 = vld [vmem:[#allocation2 + $0xb0] sm:$0xff]
  %v105 = vld [vmem:[#allocation2 + $0xb8] sm:$0xff]
  %v106 = vld [vmem:[#allocation2 + $0xc0] sm:$0xff]
  %v107 = vld [vmem:[#allocation2 + $0xc8] sm:$0xff]
  %v108 = vld [vmem:[#allocation2 + $0xd0] sm:$0xff]
  %v109 = vld [vmem:[#allocation2 + $0xd8] sm:$0xff]
  %v110 = vld [vmem:[#allocation2 + $0xe0] sm:$0xff]
  %v111 = vld [vmem:[#allocation2 + $0xe8] sm:$0xff]
  %v112 = vld [vmem:[#allocation2 + $0xf0] sm:$0xff]
  %v113 = vld [vmem:[#allocation2 + $0xf8] sm:$0xff]
  %v114 = vld [vmem:[#allocation2 + $0x100] sm:$0xff]
  %v115 = vld [vmem:[#allocation2 + $0x108] sm:$0xff]
  %v116 = vld [vmem:[#allocation2 + $0x110] sm:$0xff]
  %v117 = vld [vmem:[#allocation2 + $0x118] sm:$0xff]
  %v118 = vld [vmem:[#allocation2 + $0x120] sm:$0xff]
  %v119 = vld [vmem:[#allocation2 + $0x128] sm:$0xff]
  %v120 = vld [vmem:[#allocation2 + $0x130] sm:$0xff]
  %v121 = vld [vmem:[#allocation2 + $0x138] sm:$0xff]
  %v122 = vld [vmem:[#allocation2 + $0x140] sm:$0xff]
  %v123 = vld [vmem:[#allocation2 + $0x148] sm:$0xff]
  %v124 = vld [vmem:[#allocation2 + $0x150] sm:$0xff]
  %v125 = vld [vmem:[#allocation2 + $0x158] sm:$0xff]
  %v126 = vld [vmem:[#allocation2 + $0x160] sm:$0xff]
  %v127 = vld [vmem:[#allocation2 + $0x168] sm:$0xff]
  %v128 = vld [vmem:[#allocation2 + $0x170] sm:$0xff]
  %v129 = vld [vmem:[#allocation2 + $0x178] sm:$0xff]
  %v130 = vld [vmem:[#allocation2 + $0x180] sm:$0xff]
  %v131 = vld [vmem:[#allocation2 + $0x188] sm:$0xff]
  %v132 = vld [vmem:[#allocation2 + $0x190] sm:$0xff]
  %v133 = vld [vmem:[#allocation2 + $0x198] sm:$0xff]
  %v134 = vld [vmem:[#allocation2 + $0x1a0] sm:$0xff]
  %v135 = vld [vmem:[#allocation2 + $0x1a8] sm:$0xff]
  %v136 = vld [vmem:[#allocation2 + $0x1b0] sm:$0xff]
  %v137 = vld [vmem:[#allocation2 + $0x1b8] sm:$0xff]
  %v138 = vld [vmem:[#allocation2 + $0x1c0] sm:$0xff]
  %v139 = vld [vmem:[#allocation2 + $0x1c8] sm:$0xff]
  %v140 = vld [vmem:[#allocation2 + $0x1d0] sm:$0xff]
  %v141 = vld [vmem:[#allocation2 + $0x1d8] sm:$0xff]
  %v142 = vld [vmem:[#allocation2 + $0x1e0] sm:$0xff]
  %v143 = vld [vmem:[#allocation2 + $0x1e8] sm:$0xff]
  %v144 = vld [vmem:[#allocation2 + $0x1f0] sm:$0xff]
  %v145 = vld [vmem:[#allocation2 + $0x1f8] sm:$0xff]
  %v146 = vld [vmem:[%s0] sm:$0xff]
  %v147 = vld [vmem:[%s0 + $0x8] sm:$0xff]
  %v148 = vld [vmem:[%s0 + $0x10] sm:$0xff]
  %v149 = vld [vmem:[%s0 + $0x18] sm:$0xff]
  %v150 = vld [vmem:[%s0 + $0x20] sm:$0xff]
  %v151 = vld [vmem:[%s0 + $0x28] sm:$0xff]
  %v152 = vld [vmem:[%s0 + $0x30] sm:$0xff]
  %v153 = vld [vmem:[%s0 + $0x38] sm:$0xff]
  %v154 = vld [vmem:[%s0 + $0x40] sm:$0xff]
  %v155 = vld [vmem:[%s0 + $0x48] sm:$0xff]
  %v156 = vld [vmem:[%s0 + $0x50] sm:$0xff]
  %v157 = vld [vmem:[%s0 + $0x58] sm:$0xff]
  %v158 = vld [vmem:[%s0 + $0x60] sm:$0xff]
  %v159 = vld [vmem:[%s0 + $0x68] sm:$0xff]
  %v160 = vld [vmem:[%s0 + $0x70] sm:$0xff]
  %v161 = vld [vmem:[%s0 + $0x78] sm:$0xff]
  %v162 = vld [vmem:[%s0 + $0x80] sm:$0xff]
  %v163 = vld [vmem:[%s0 + $0x88] sm:$0xff]
  %v164 = vld [vmem:[%s0 + $0x90] sm:$0xff]
  %v165 = vld [vmem:[%s0 + $0x98] sm:$0xff]
  %v166 = vld [vmem:[%s0 + $0xa0] sm:$0xff]
  %v167 = vld [vmem:[%s0 + $0xa8] sm:$0xff]
  %v168 = vld [vmem:[%s0 + $0xb0] sm:$0xff]
  %v169 = vld [vmem:[%s0 + $0xb8] sm:$0xff]
  %v170 = vld [vmem:[%s0 + $0xc0] sm:$0xff]
  %v171 = vld [vmem:[%s0 + $0xc8] sm:$0xff]
  %v172 = vld [vmem:[%s0 + $0xd0] sm:$0xff]
  %v173 = vld [vmem:[%s0 + $0xd8] sm:$0xff]
  %v174 = vld [vmem:[%s0 + $0xe0] sm:$0xff]
  %v175 = vld [vmem:[%s0 + $0xe8] sm:$0xff]
  %v176 = vld [vmem:[%s0 + $0xf0] sm:$0xff]
  %v177 = vld [vmem:[%s0 + $0xf8] sm:$0xff]
  %v178 = vld [vmem:[%s0 + $0x100] sm:$0xff]
  %v179 = vld [vmem:[%s0 + $0x108] sm:$0xff]
  %v180 = vld [vmem:[%s0 + $0x110] sm:$0xff]
  %v181 = vld [vmem:[%s0 + $0x118] sm:$0xff]
  %v182 = vld [vmem:[%s0 + $0x120] sm:$0xff]
  %v183 = vld [vmem:[%s0 + $0x128] sm:$0xff]
  %v184 = vld [vmem:[%s0 + $0x130] sm:$0xff]
  %v185 = vld [vmem:[%s0 + $0x138] sm:$0xff]
  %v186 = vld [vmem:[%s0 + $0x140] sm:$0xff]
  %v187 = vld [vmem:[%s0 + $0x148] sm:$0xff]
  %v188 = vld [vmem:[%s0 + $0x150] sm:$0xff]
  %v189 = vld [vmem:[%s0 + $0x158] sm:$0xff]
  %v190 = vld [vmem:[%s0 + $0x160] sm:$0xff]
  %v191 = vld [vmem:[%s0 + $0x168] sm:$0xff]
  %v192 = vld [vmem:[%s0 + $0x170] sm:$0xff]
  %v193 = vld [vmem:[%s0 + $0x178] sm:$0xff]
  %v194 = vld [vmem:[%s0 + $0x180] sm:$0xff]
  %v195 = vld [vmem:[%s0 + $0x188] sm:$0xff]
  %v196 = vld [vmem:[%s0 + $0x190] sm:$0xff]
  %v197 = vld [vmem:[%s0 + $0x198] sm:$0xff]
  %v198 = vld [vmem:[%s0 + $0x1a0] sm:$0xff]
  %v199 = vld [vmem:[%s0 + $0x1a8] sm:$0xff]
  %v200 = vld [vmem:[%s0 + $0x1b0] sm:$0xff]
  %v201 = vld [vmem:[%s0 + $0x1b8] sm:$0xff]
  %v202 = vld [vmem:[%s0 + $0x1c0] sm:$0xff]
  %v203 = vld [vmem:[%s0 + $0x1c8] sm:$0xff]
  %v204 = vld [vmem:[%s0 + $0x1d0] sm:$0xff]
  %v205 = vld [vmem:[%s0 + $0x1d8] sm:$0xff]
  %v206 = vld [vmem:[%s0 + $0x1e0] sm:$0xff]
  %v207 = vld [vmem:[%s0 + $0x1e8] sm:$0xff]
  %v208 = vld [vmem:[%s0 + $0x1f0] sm:$0xff]
  %v209 = vld [vmem:[%s0 + $0x1f8] sm:$0xff]
  %v210 = vld [vmem:[%s1] sm:$0xff]
  %v211 = vld [vmem:[%s1 + $0x8] sm:$0xff]
  %v212 = vld [vmem:[%s1 + $0x10] sm:$0xff]
  %v213 = vld [vmem:[%s1 + $0x18] sm:$0xff]
  %v214 = vld [vmem:[%s1 + $0x20] sm:$0xff]
  %v215 = vld [vmem:[%s1 + $0x28] sm:$0xff]
  %v216 = vld [vmem:[%s1 + $0x30] sm:$0xff]
  %v217 = vld [vmem:[%s1 + $0x38] sm:$0xff]
  %v218 = vld [vmem:[%s1 + $0x40] sm:$0xff]
  %v219 = vld [vmem:[%s1 + $0x48] sm:$0xff]
  %v220 = vld [vmem:[%s1 + $0x50] sm:$0xff]
  %v221 = vld [vmem:[%s1 + $0x58] sm:$0xff]
  %v222 = vld [vmem:[%s1 + $0x60] sm:$0xff]
  %v223 = vld [vmem:[%s1 + $0x68] sm:$0xff]
  %v224 = vld [vmem:[%s1 + $0x70] sm:$0xff]
  %v225 = vld [vmem:[%s1 + $0x78] sm:$0xff]
  %v226 = vld [vmem:[%s1 + $0x80] sm:$0xff]
  %v227 = vld [vmem:[%s1 + $0x88] sm:$0xff]
  %v228 = vld [vmem:[%s1 + $0x90] sm:$0xff]
  %v229 = vld [vmem:[%s1 + $0x98] sm:$0xff]
  %v230 = vld [vmem:[%s1 + $0xa0] sm:$0xff]
  %v231 = vld [vmem:[%s1 + $0xa8] sm:$0xff]
  %v232 = vld [vmem:[%s1 + $0xb0] sm:$0xff]
  %v233 = vld [vmem:[%s1 + $0xb8] sm:$0xff]
  %v234 = vld [vmem:[%s1 + $0xc0] sm:$0xff]
  %v235 = vld [vmem:[%s1 + $0xc8] sm:$0xff]
  %v236 = vld [vmem:[%s1 + $0xd0] sm:$0xff]
  %v237 = vld [vmem:[%s1 + $0xd8] sm:$0xff]
  %v238 = vld [vmem:[%s1 + $0xe0] sm:$0xff]
  %v239 = vld [vmem:[%s1 + $0xe8] sm:$0xff]
  %v240 = vld [vmem:[%s1 + $0xf0] sm:$0xff]
  %v241 = vld [vmem:[%s1 + $0xf8] sm:$0xff]
  %v242 = vld [vmem:[%s1 + $0x100] sm:$0xff]
  %v243 = vld [vmem:[%s1 + $0x108] sm:$0xff]
  %v244 = vld [vmem:[%s1 + $0x110] sm:$0xff]
  %v245 = vld [vmem:[%s1 + $0x118] sm:$0xff]
  %v246 = vld [vmem:[%s1 + $0x120] sm:$0xff]
  %v247 = vld [vmem:[%s1 + $0x128] sm:$0xff]
  %v248 = vld [vmem:[%s1 + $0x130] sm:$0xff]
  %v249 = vld [vmem:[%s1 + $0x138] sm:$0xff]
  %v250 = vld [vmem:[%s1 + $0x140] sm:$0xff]
  %v251 = vld [vmem:[%s1 + $0x148] sm:$0xff]
  %v252 = vld [vmem:[%s1 + $0x150] sm:$0xff]
  %v253 = vld [vmem:[%s1 + $0x158] sm:$0xff]
  %v254 = vld [vmem:[%s1 + $0x160] sm:$0xff]
  %v255 = vld [vmem:[%s1 + $0x168] sm:$0xff]
  %v256 = vld [vmem:[%s1 + $0x170] sm:$0xff]
  %v257 = vld [vmem:[%s1 + $0x178] sm:$0xff]
  %v258 = vld [vmem:[%s1 + $0x180] sm:$0xff]
  %v259 = vld [vmem:[%s1 + $0x188] sm:$0xff]
  %v260 = vld [vmem:[%s1 + $0x190] sm:$0xff]
  %v261 = vld [vmem:[%s1 + $0x198] sm:$0xff]
  %v262 = vld [vmem:[%s1 + $0x1a0] sm:$0xff]
  %v263 = vld [vmem:[%s1 + $0x1a8] sm:$0xff]
  %v264 = vld [vmem:[%s1 + $0x1b0] sm:$0xff]
  %v265 = vld [vmem:[%s1 + $0x1b8] sm:$0xff]
  %v266 = vld [vmem:[%s1 + $0x1c0] sm:$0xff]
  %v267 = vld [vmem:[%s1 + $0x1c8] sm:$0xff]
  %v268 = vld [vmem:[%s1 + $0x1d0] sm:$0xff]
  %v269 = vld [vmem:[%s1 + $0x1d8] sm:$0xff]
  %v270 = vld [vmem:[%s1 + $0x1e0] sm:$0xff]
  %v271 = vld [vmem:[%s1 + $0x1e8] sm:$0xff]
  %v272 = vld [vmem:[%s1 + $0x1f0] sm:$0xff]
  %v273 = vld [vmem:[%s1 + $0x1f8] sm:$0xff]
  %274 = vmatpush.msra.mxu0 %v240
  %275 = vmatpush.msra.mxu0 %v238
  %276 = vmatpush.msra.mxu0 %v236
  %277 = vmatpush.msra.mxu0 %v234
  %278 = vmatpush.msra.mxu0 %v232
  %279 = vmatpush.msra.mxu0 %v230
  %280 = vmatpush.msra.mxu0 %v228
  %281 = vmatpush.msra.mxu0 %v226
  %282 = vmatpush.msra.mxu0 %v224
  %283 = vmatpush.msra.mxu0 %v222
  %284 = vmatpush.msra.mxu0 %v220
  %285 = vmatpush.msra.mxu0 %v218
  %286 = vmatpush.msra.mxu0 %v216
  %287 = vmatpush.msra.mxu0 %v214
  %288 = vmatpush.msra.mxu0 %v212
  %289 = vmatpush.msra.mxu0 %v210
  %290 = vmatmul.f32.gmra.mxu0 %v146
  %v291 = vpop.f32.mrf.mxu0
  %v292 = vadd.f32 0.0, %v291
  %293 = vmatmul.f32.gmra.mxu0 %v148
  %v294 = vpop.f32.mrf.mxu0
  %v295 = vadd.f32 0.0, %v294
  %296 = vmatmul.f32.gmra.mxu0 %v150
  %v297 = vpop.f32.mrf.mxu0
  %v298 = vadd.f32 0.0, %v297
  %299 = vmatmul.f32.gmra.mxu0 %v152
  %v300 = vpop.f32.mrf.mxu0
  %v301 = vadd.f32 0.0, %v300
  %302 = vmatmul.f32.gmra.mxu0 %v154
  %v303 = vpop.f32.mrf.mxu0
  %v304 = vadd.f32 0.0, %v303
  %305 = vmatmul.f32.gmra.mxu0 %v156
  %v306 = vpop.f32.mrf.mxu0
  %v307 = vadd.f32 0.0, %v306
  %308 = vmatmul.f32.gmra.mxu0 %v158
  %v309 = vpop.f32.mrf.mxu0
  %v310 = vadd.f32 0.0, %v309
  %311 = vmatmul.f32.gmra.mxu0 %v160
  %v312 = vpop.f32.mrf.mxu0
  %v313 = vadd.f32 0.0, %v312
  %314 = vmatmul.f32.gmra.mxu0 %v162
  %v315 = vpop.f32.mrf.mxu0
  %v316 = vadd.f32 0.0, %v315
  %317 = vmatmul.f32.gmra.mxu0 %v164
  %v318 = vpop.f32.mrf.mxu0
  %v319 = vadd.f32 0.0, %v318
  %320 = vmatmul.f32.gmra.mxu0 %v166
  %v321 = vpop.f32.mrf.mxu0
  %v322 = vadd.f32 0.0, %v321
  %323 = vmatmul.f32.gmra.mxu0 %v168
  %v324 = vpop.f32.mrf.mxu0
  %v325 = vadd.f32 0.0, %v324
  %326 = vmatmul.f32.gmra.mxu0 %v170
  %v327 = vpop.f32.mrf.mxu0
  %v328 = vadd.f32 0.0, %v327
  %329 = vmatmul.f32.gmra.mxu0 %v172
  %v330 = vpop.f32.mrf.mxu0
  %v331 = vadd.f32 0.0, %v330
  %332 = vmatmul.f32.gmra.mxu0 %v174
  %v333 = vpop.f32.mrf.mxu0
  %v334 = vadd.f32 0.0, %v333
  %335 = vmatmul.f32.gmra.mxu0 %v176
  %v336 = vpop.f32.mrf.mxu0
  %v337 = vadd.f32 0.0, %v336
  %338 = vmatmul.f32.gmra.mxu0 %v178
  %v339 = vpop.f32.mrf.mxu0
  %v340 = vadd.f32 0.0, %v339
  %341 = vmatmul.f32.gmra.mxu0 %v180
  %v342 = vpop.f32.mrf.mxu0
  %v343 = vadd.f32 0.0, %v342
  %344 = vmatmul.f32.gmra.mxu0 %v182
  %v345 = vpop.f32.mrf.mxu0
  %v346 = vadd.f32 0.0, %v345
  %347 = vmatmul.f32.gmra.mxu0 %v184
  %v348 = vpop.f32.mrf.mxu0
  %v349 = vadd.f32 0.0, %v348
  %350 = vmatmul.f32.gmra.mxu0 %v186
  %v351 = vpop.f32.mrf.mxu0
  %v352 = vadd.f32 0.0, %v351
  %353 = vmatmul.f32.gmra.mxu0 %v188
  %v354 = vpop.f32.mrf.mxu0
  %v355 = vadd.f32 0.0, %v354
  %356 = vmatmul.f32.gmra.mxu0 %v190
  %v357 = vpop.f32.mrf.mxu0
  %v358 = vadd.f32 0.0, %v357
  %359 = vmatmul.f32.gmra.mxu0 %v192
  %v360 = vpop.f32.mrf.mxu0
  %v361 = vadd.f32 0.0, %v360
  %362 = vmatmul.f32.gmra.mxu0 %v194
  %v363 = vpop.f32.mrf.mxu0
  %v364 = vadd.f32 0.0, %v363
  %365 = vmatmul.f32.gmra.mxu0 %v196
  %v366 = vpop.f32.mrf.mxu0
  %v367 = vadd.f32 0.0, %v366
  %368 = vmatmul.f32.gmra.mxu0 %v198
  %v369 = vpop.f32.mrf.mxu0
  %v370 = vadd.f32 0.0, %v369
  %371 = vmatmul.f32.gmra.mxu0 %v200
  %v372 = vpop.f32.mrf.mxu0
  %v373 = vadd.f32 0.0, %v372
  %374 = vmatmul.f32.gmra.mxu0 %v202
  %v375 = vpop.f32.mrf.mxu0
  %v376 = vadd.f32 0.0, %v375
  %377 = vmatmul.f32.gmra.mxu0 %v204
  %v378 = vpop.f32.mrf.mxu0
  %v379 = vadd.f32 0.0, %v378
  %380 = vmatmul.f32.gmra.mxu0 %v206
  %v381 = vpop.f32.mrf.mxu0
  %v382 = vadd.f32 0.0, %v381
  %383 = vmatmul.f32.gmra.mxu0 %v208
  %v384 = vpop.f32.mrf.mxu0
  %v385 = vadd.f32 0.0, %v384
  %386 = vdwg.mxu0
  %387 = vmatpush.msra.mxu0 %v272
  %388 = vmatpush.msra.mxu0 %v270
  %389 = vmatpush.msra.mxu0 %v268
  %390 = vmatpush.msra.mxu0 %v266
  %391 = vmatpush.msra.mxu0 %v264
  %392 = vmatpush.msra.mxu0 %v262
  %393 = vmatpush.msra.mxu0 %v260
  %394 = vmatpush.msra.mxu0 %v258
  %395 = vmatpush.msra.mxu0 %v256
  %396 = vmatpush.msra.mxu0 %v254
  %397 = vmatpush.msra.mxu0 %v252
  %398 = vmatpush.msra.mxu0 %v250
  %399 = vmatpush.msra.mxu0 %v248
  %400 = vmatpush.msra.mxu0 %v246
  %401 = vmatpush.msra.mxu0 %v244
  %402 = vmatpush.msra.mxu0 %v242
  %403 = vmatmul.f32.gmra.mxu0 %v147
  %v404 = vpop.f32.mrf.mxu0
  %v405 = vadd.f32 %v292, %v404
  %406 = vmatmul.f32.gmra.mxu0 %v149
  %v407 = vpop.f32.mrf.mxu0
  %v408 = vadd.f32 %v295, %v407
  %409 = vmatmul.f32.gmra.mxu0 %v151
  %v410 = vpop.f32.mrf.mxu0
  %v411 = vadd.f32 %v298, %v410
  %412 = vmatmul.f32.gmra.mxu0 %v153
  %v413 = vpop.f32.mrf.mxu0
  %v414 = vadd.f32 %v301, %v413
  %415 = vmatmul.f32.gmra.mxu0 %v155
  %v416 = vpop.f32.mrf.mxu0
  %v417 = vadd.f32 %v304, %v416
  %418 = vmatmul.f32.gmra.mxu0 %v157
  %v419 = vpop.f32.mrf.mxu0
  %v420 = vadd.f32 %v307, %v419
  %421 = vmatmul.f32.gmra.mxu0 %v159
  %v422 = vpop.f32.mrf.mxu0
  %v423 = vadd.f32 %v310, %v422
  %424 = vmatmul.f32.gmra.mxu0 %v161
  %v425 = vpop.f32.mrf.mxu0
  %v426 = vadd.f32 %v313, %v425
  %427 = vmatmul.f32.gmra.mxu0 %v163
  %v428 = vpop.f32.mrf.mxu0
  %v429 = vadd.f32 %v316, %v428
  %430 = vmatmul.f32.gmra.mxu0 %v165
  %v431 = vpop.f32.mrf.mxu0
  %v432 = vadd.f32 %v319, %v431
  %433 = vmatmul.f32.gmra.mxu0 %v167
  %v434 = vpop.f32.mrf.mxu0
  %v435 = vadd.f32 %v322, %v434
  %436 = vmatmul.f32.gmra.mxu0 %v169
  %v437 = vpop.f32.mrf.mxu0
  %v438 = vadd.f32 %v325, %v437
  %439 = vmatmul.f32.gmra.mxu0 %v171
  %v440 = vpop.f32.mrf.mxu0
  %v441 = vadd.f32 %v328, %v440
  %442 = vmatmul.f32.gmra.mxu0 %v173
  %v443 = vpop.f32.mrf.mxu0
  %v444 = vadd.f32 %v331, %v443
  %445 = vmatmul.f32.gmra.mxu0 %v175
  %v446 = vpop.f32.mrf.mxu0
  %v447 = vadd.f32 %v334, %v446
  %448 = vmatmul.f32.gmra.mxu0 %v177
  %v449 = vpop.f32.mrf.mxu0
  %v450 = vadd.f32 %v337, %v449
  %451 = vmatmul.f32.gmra.mxu0 %v179
  %v452 = vpop.f32.mrf.mxu0
  %v453 = vadd.f32 %v340, %v452
  %454 = vmatmul.f32.gmra.mxu0 %v181
  %v455 = vpop.f32.mrf.mxu0
  %v456 = vadd.f32 %v343, %v455
  %457 = vmatmul.f32.gmra.mxu0 %v183
  %v458 = vpop.f32.mrf.mxu0
  %v459 = vadd.f32 %v346, %v458
  %460 = vmatmul.f32.gmra.mxu0 %v185
  %v461 = vpop.f32.mrf.mxu0
  %v462 = vadd.f32 %v349, %v461
  %463 = vmatmul.f32.gmra.mxu0 %v187
  %v464 = vpop.f32.mrf.mxu0
  %v465 = vadd.f32 %v352, %v464
  %466 = vmatmul.f32.gmra.mxu0 %v189
  %v467 = vpop.f32.mrf.mxu0
  %v468 = vadd.f32 %v355, %v467
  %469 = vmatmul.f32.gmra.mxu0 %v191
  %v470 = vpop.f32.mrf.mxu0
  %v471 = vadd.f32 %v358, %v470
  %472 = vmatmul.f32.gmra.mxu0 %v193
  %v473 = vpop.f32.mrf.mxu0
  %v474 = vadd.f32 %v361, %v473
  %475 = vmatmul.f32.gmra.mxu0 %v195
  %v476 = vpop.f32.mrf.mxu0
  %v477 = vadd.f32 %v364, %v476
  %478 = vmatmul.f32.gmra.mxu0 %v197
  %v479 = vpop.f32.mrf.mxu0
  %v480 = vadd.f32 %v367, %v479
  %481 = vmatmul.f32.gmra.mxu0 %v199
  %v482 = vpop.f32.mrf.mxu0
  %v483 = vadd.f32 %v370, %v482
  %484 = vmatmul.f32.gmra.mxu0 %v201
  %v485 = vpop.f32.mrf.mxu0
  %v486 = vadd.f32 %v373, %v485
  %487 = vmatmul.f32.gmra.mxu0 %v203
  %v488 = vpop.f32.mrf.mxu0
  %v489 = vadd.f32 %v376, %v488
  %490 = vmatmul.f32.gmra.mxu0 %v205
  %v491 = vpop.f32.mrf.mxu0
  %v492 = vadd.f32 %v379, %v491
  %493 = vmatmul.f32.gmra.mxu0 %v207
  %v494 = vpop.f32.mrf.mxu0
  %v495 = vadd.f32 %v382, %v494
  %496 = vmatmul.f32.gmra.mxu0 %v209
  %v497 = vpop.f32.mrf.mxu0
  %v498 = vadd.f32 %v385, %v497
  %499 = vdwg.mxu0
  %500 = vmatpush.msra.mxu0 %v241
  %501 = vmatpush.msra.mxu0 %v239
  %502 = vmatpush.msra.mxu0 %v237
  %503 = vmatpush.msra.mxu0 %v235
  %504 = vmatpush.msra.mxu0 %v233
  %505 = vmatpush.msra.mxu0 %v231
  %506 = vmatpush.msra.mxu0 %v229
  %507 = vmatpush.msra.mxu0 %v227
  %508 = vmatpush.msra.mxu0 %v225
  %509 = vmatpush.msra.mxu0 %v223
  %510 = vmatpush.msra.mxu0 %v221
  %511 = vmatpush.msra.mxu0 %v219
  %512 = vmatpush.msra.mxu0 %v217
  %513 = vmatpush.msra.mxu0 %v215
  %514 = vmatpush.msra.mxu0 %v213
  %515 = vmatpush.msra.mxu0 %v211
  %516 = vmatmul.f32.gmra.mxu0 %v146
  %v517 = vpop.f32.mrf.mxu0
  %v518 = vadd.f32 0.0, %v517
  %519 = vmatmul.f32.gmra.mxu0 %v148
  %v520 = vpop.f32.mrf.mxu0
  %v521 = vadd.f32 0.0, %v520
  %522 = vmatmul.f32.gmra.mxu0 %v150
  %v523 = vpop.f32.mrf.mxu0
  %v524 = vadd.f32 0.0, %v523
  %525 = vmatmul.f32.gmra.mxu0 %v152
  %v526 = vpop.f32.mrf.mxu0
  %v527 = vadd.f32 0.0, %v526
  %528 = vmatmul.f32.gmra.mxu0 %v154
  %v529 = vpop.f32.mrf.mxu0
  %v530 = vadd.f32 0.0, %v529
  %531 = vmatmul.f32.gmra.mxu0 %v156
  %v532 = vpop.f32.mrf.mxu0
  %v533 = vadd.f32 0.0, %v532
  %534 = vmatmul.f32.gmra.mxu0 %v158
  %v535 = vpop.f32.mrf.mxu0
  %v536 = vadd.f32 0.0, %v535
  %537 = vmatmul.f32.gmra.mxu0 %v160
  %v538 = vpop.f32.mrf.mxu0
  %v539 = vadd.f32 0.0, %v538
  %540 = vmatmul.f32.gmra.mxu0 %v162
  %v541 = vpop.f32.mrf.mxu0
  %v542 = vadd.f32 0.0, %v541
  %543 = vmatmul.f32.gmra.mxu0 %v164
  %v544 = vpop.f32.mrf.mxu0
  %v545 = vadd.f32 0.0, %v544
  %546 = vmatmul.f32.gmra.mxu0 %v166
  %v547 = vpop.f32.mrf.mxu0
  %v548 = vadd.f32 0.0, %v547
  %549 = vmatmul.f32.gmra.mxu0 %v168
  %v550 = vpop.f32.mrf.mxu0
  %v551 = vadd.f32 0.0, %v550
  %552 = vmatmul.f32.gmra.mxu0 %v170
  %v553 = vpop.f32.mrf.mxu0
  %v554 = vadd.f32 0.0, %v553
  %555 = vmatmul.f32.gmra.mxu0 %v172
  %v556 = vpop.f32.mrf.mxu0
  %v557 = vadd.f32 0.0, %v556
  %558 = vmatmul.f32.gmra.mxu0 %v174
  %v559 = vpop.f32.mrf.mxu0
  %v560 = vadd.f32 0.0, %v559
  %561 = vmatmul.f32.gmra.mxu0 %v176
  %v562 = vpop.f32.mrf.mxu0
  %v563 = vadd.f32 0.0, %v562
  %564 = vmatmul.f32.gmra.mxu0 %v178
  %v565 = vpop.f32.mrf.mxu0
  %v566 = vadd.f32 0.0, %v565
  %567 = vmatmul.f32.gmra.mxu0 %v180
  %v568 = vpop.f32.mrf.mxu0
  %v569 = vadd.f32 0.0, %v568
  %570 = vmatmul.f32.gmra.mxu0 %v182
  %v571 = vpop.f32.mrf.mxu0
  %v572 = vadd.f32 0.0, %v571
  %573 = vmatmul.f32.gmra.mxu0 %v184
  %v574 = vpop.f32.mrf.mxu0
  %v575 = vadd.f32 0.0, %v574
  %576 = vmatmul.f32.gmra.mxu0 %v186
  %v577 = vpop.f32.mrf.mxu0
  %v578 = vadd.f32 0.0, %v577
  %579 = vmatmul.f32.gmra.mxu0 %v188
  %v580 = vpop.f32.mrf.mxu0
  %v581 = vadd.f32 0.0, %v580
  %582 = vmatmul.f32.gmra.mxu0 %v190
  %v583 = vpop.f32.mrf.mxu0
  %v584 = vadd.f32 0.0, %v583
  %585 = vmatmul.f32.gmra.mxu0 %v192
  %v586 = vpop.f32.mrf.mxu0
  %v587 = vadd.f32 0.0, %v586
  %588 = vmatmul.f32.gmra.mxu0 %v194
  %v589 = vpop.f32.mrf.mxu0
  %v590 = vadd.f32 0.0, %v589
  %591 = vmatmul.f32.gmra.mxu0 %v196
  %v592 = vpop.f32.mrf.mxu0
  %v593 = vadd.f32 0.0, %v592
  %594 = vmatmul.f32.gmra.mxu0 %v198
  %v595 = vpop.f32.mrf.mxu0
  %v596 = vadd.f32 0.0, %v595
  %597 = vmatmul.f32.gmra.mxu0 %v200
  %v598 = vpop.f32.mrf.mxu0
  %v599 = vadd.f32 0.0, %v598
  %600 = vmatmul.f32.gmra.mxu0 %v202
  %v601 = vpop.f32.mrf.mxu0
  %v602 = vadd.f32 0.0, %v601
  %603 = vmatmul.f32.gmra.mxu0 %v204
  %v604 = vpop.f32.mrf.mxu0
  %v605 = vadd.f32 0.0, %v604
  %606 = vmatmul.f32.gmra.mxu0 %v206
  %v607 = vpop.f32.mrf.mxu0
  %v608 = vadd.f32 0.0, %v607
  %609 = vmatmul.f32.gmra.mxu0 %v208
  %v610 = vpop.f32.mrf.mxu0
  %v611 = vadd.f32 0.0, %v610
  %612 = vdwg.mxu0
  %613 = vmatpush.msra.mxu0 %v273
  %614 = vmatpush.msra.mxu0 %v271
  %615 = vmatpush.msra.mxu0 %v269
  %616 = vmatpush.msra.mxu0 %v267
  %617 = vmatpush.msra.mxu0 %v265
  %618 = vmatpush.msra.mxu0 %v263
  %619 = vmatpush.msra.mxu0 %v261
  %620 = vmatpush.msra.mxu0 %v259
  %621 = vmatpush.msra.mxu0 %v257
  %622 = vmatpush.msra.mxu0 %v255
  %623 = vmatpush.msra.mxu0 %v253
  %624 = vmatpush.msra.mxu0 %v251
  %625 = vmatpush.msra.mxu0 %v249
  %626 = vmatpush.msra.mxu0 %v247
  %627 = vmatpush.msra.mxu0 %v245
  %628 = vmatpush.msra.mxu0 %v243
  %629 = vmatmul.f32.gmra.mxu0 %v147
  %v630 = vpop.f32.mrf.mxu0
  %v631 = vadd.f32 %v518, %v630
  %632 = vmatmul.f32.gmra.mxu0 %v149
  %v633 = vpop.f32.mrf.mxu0
  %v634 = vadd.f32 %v521, %v633
  %635 = vmatmul.f32.gmra.mxu0 %v151
  %v636 = vpop.f32.mrf.mxu0
  %v637 = vadd.f32 %v524, %v636
  %638 = vmatmul.f32.gmra.mxu0 %v153
  %v639 = vpop.f32.mrf.mxu0
  %v640 = vadd.f32 %v527, %v639
  %641 = vmatmul.f32.gmra.mxu0 %v155
  %v642 = vpop.f32.mrf.mxu0
  %v643 = vadd.f32 %v530, %v642
  %644 = vmatmul.f32.gmra.mxu0 %v157
  %v645 = vpop.f32.mrf.mxu0
  %v646 = vadd.f32 %v533, %v645
  %647 = vmatmul.f32.gmra.mxu0 %v159
  %v648 = vpop.f32.mrf.mxu0
  %v649 = vadd.f32 %v536, %v648
  %650 = vmatmul.f32.gmra.mxu0 %v161
  %v651 = vpop.f32.mrf.mxu0
  %v652 = vadd.f32 %v539, %v651
  %653 = vmatmul.f32.gmra.mxu0 %v163
  %v654 = vpop.f32.mrf.mxu0
  %v655 = vadd.f32 %v542, %v654
  %656 = vmatmul.f32.gmra.mxu0 %v165
  %v657 = vpop.f32.mrf.mxu0
  %v658 = vadd.f32 %v545, %v657
  %659 = vmatmul.f32.gmra.mxu0 %v167
  %v660 = vpop.f32.mrf.mxu0
  %v661 = vadd.f32 %v548, %v660
  %662 = vmatmul.f32.gmra.mxu0 %v169
  %v663 = vpop.f32.mrf.mxu0
  %v664 = vadd.f32 %v551, %v663
  %665 = vmatmul.f32.gmra.mxu0 %v171
  %v666 = vpop.f32.mrf.mxu0
  %v667 = vadd.f32 %v554, %v666
  %668 = vmatmul.f32.gmra.mxu0 %v173
  %v669 = vpop.f32.mrf.mxu0
  %v670 = vadd.f32 %v557, %v669
  %671 = vmatmul.f32.gmra.mxu0 %v175
  %v672 = vpop.f32.mrf.mxu0
  %v673 = vadd.f32 %v560, %v672
  %674 = vmatmul.f32.gmra.mxu0 %v177
  %v675 = vpop.f32.mrf.mxu0
  %v676 = vadd.f32 %v563, %v675
  %677 = vmatmul.f32.gmra.mxu0 %v179
  %v678 = vpop.f32.mrf.mxu0
  %v679 = vadd.f32 %v566, %v678
  %680 = vmatmul.f32.gmra.mxu0 %v181
  %v681 = vpop.f32.mrf.mxu0
  %v682 = vadd.f32 %v569, %v681
  %683 = vmatmul.f32.gmra.mxu0 %v183
  %v684 = vpop.f32.mrf.mxu0
  %v685 = vadd.f32 %v572, %v684
  %686 = vmatmul.f32.gmra.mxu0 %v185
  %v687 = vpop.f32.mrf.mxu0
  %v688 = vadd.f32 %v575, %v687
  %689 = vmatmul.f32.gmra.mxu0 %v187
  %v690 = vpop.f32.mrf.mxu0
  %v691 = vadd.f32 %v578, %v690
  %692 = vmatmul.f32.gmra.mxu0 %v189
  %v693 = vpop.f32.mrf.mxu0
  %v694 = vadd.f32 %v581, %v693
  %695 = vmatmul.f32.gmra.mxu0 %v191
  %v696 = vpop.f32.mrf.mxu0
  %v697 = vadd.f32 %v584, %v696
  %698 = vmatmul.f32.gmra.mxu0 %v193
  %v699 = vpop.f32.mrf.mxu0
  %v700 = vadd.f32 %v587, %v699
  %701 = vmatmul.f32.gmra.mxu0 %v195
  %v702 = vpop.f32.mrf.mxu0
  %v703 = vadd.f32 %v590, %v702
  %704 = vmatmul.f32.gmra.mxu0 %v197
  %v705 = vpop.f32.mrf.mxu0
  %v706 = vadd.f32 %v593, %v705
  %707 = vmatmul.f32.gmra.mxu0 %v199
  %v708 = vpop.f32.mrf.mxu0
  %v709 = vadd.f32 %v596, %v708
  %710 = vmatmul.f32.gmra.mxu0 %v201
  %v711 = vpop.f32.mrf.mxu0
  %v712 = vadd.f32 %v599, %v711
  %713 = vmatmul.f32.gmra.mxu0 %v203
  %v714 = vpop.f32.mrf.mxu0
  %v715 = vadd.f32 %v602, %v714
  %716 = vmatmul.f32.gmra.mxu0 %v205
  %v717 = vpop.f32.mrf.mxu0
  %v718 = vadd.f32 %v605, %v717
  %719 = vmatmul.f32.gmra.mxu0 %v207
  %v720 = vpop.f32.mrf.mxu0
  %v721 = vadd.f32 %v608, %v720
  %722 = vmatmul.f32.gmra.mxu0 %v209
  %v723 = vpop.f32.mrf.mxu0
  %v724 = vadd.f32 %v611, %v723
  %725 = vdwg.mxu0
  %v726 = vadd.f32 %v82, %v405
  %v727 = vadd.f32 %v83, %v631
  %v728 = vadd.f32 %v84, %v408
  %v729 = vadd.f32 %v85, %v634
  %v730 = vadd.f32 %v86, %v411
  %v731 = vadd.f32 %v87, %v637
  %v732 = vadd.f32 %v88, %v414
  %v733 = vadd.f32 %v89, %v640
  %v734 = vadd.f32 %v90, %v417
  %v735 = vadd.f32 %v91, %v643
  %v736 = vadd.f32 %v92, %v420
  %v737 = vadd.f32 %v93, %v646
  %v738 = vadd.f32 %v94, %v423
  %v739 = vadd.f32 %v95, %v649
  %v740 = vadd.f32 %v96, %v426
  %v741 = vadd.f32 %v97, %v652
  %v742 = vadd.f32 %v98, %v429
  %v743 = vadd.f32 %v99, %v655
  %v744 = vadd.f32 %v100, %v432
  %v745 = vadd.f32 %v101, %v658
  %v746 = vadd.f32 %v102, %v435
  %v747 = vadd.f32 %v103, %v661
  %v748 = vadd.f32 %v104, %v438
  %v749 = vadd.f32 %v105, %v664
  %v750 = vadd.f32 %v106, %v441
  %v751 = vadd.f32 %v107, %v667
  %v752 = vadd.f32 %v108, %v444
  %v753 = vadd.f32 %v109, %v670
  %v754 = vadd.f32 %v110, %v447
  %v755 = vadd.f32 %v111, %v673
  %v756 = vadd.f32 %v112, %v450
  %v757 = vadd.f32 %v113, %v676
  %v758 = vadd.f32 %v114, %v453
  %v759 = vadd.f32 %v115, %v679
  %v760 = vadd.f32 %v116, %v456
  %v761 = vadd.f32 %v117, %v682
  %v762 = vadd.f32 %v118, %v459
  %v763 = vadd.f32 %v119, %v685
  %v764 = vadd.f32 %v120, %v462
  %v765 = vadd.f32 %v121, %v688
  %v766 = vadd.f32 %v122, %v465
  %v767 = vadd.f32 %v123, %v691
  %v768 = vadd.f32 %v124, %v468
  %v769 = vadd.f32 %v125, %v694
  %v770 = vadd.f32 %v126, %v471
  %v771 = vadd.f32 %v127, %v697
  %v772 = vadd.f32 %v128, %v474
  %v773 = vadd.f32 %v129, %v700
  %v774 = vadd.f32 %v130, %v477
  %v775 = vadd.f32 %v131, %v703
  %v776 = vadd.f32 %v132, %v480
  %v777 = vadd.f32 %v133, %v706
  %v778 = vadd.f32 %v134, %v483
  %v779 = vadd.f32 %v135, %v709
  %v780 = vadd.f32 %v136, %v486
  %v781 = vadd.f32 %v137, %v712
  %v782 = vadd.f32 %v138, %v489
  %v783 = vadd.f32 %v139, %v715
  %v784 = vadd.f32 %v140, %v492
  %v785 = vadd.f32 %v141, %v718
  %v786 = vadd.f32 %v142, %v495
  %v787 = vadd.f32 %v143, %v721
  %v788 = vadd.f32 %v144, %v498
  %v789 = vadd.f32 %v145, %v724
  %790 = vst [vmem:[#allocation2] sm:$0xff] %v726
  %791 = vst [vmem:[#allocation2 + $0x8] sm:$0xff] %v727
  %792 = vst [vmem:[#allocation2 + $0x10] sm:$0xff] %v728
  %793 = vst [vmem:[#allocation2 + $0x18] sm:$0xff] %v729
  %794 = vst [vmem:[#allocation2 + $0x20] sm:$0xff] %v730
  %795 = vst [vmem:[#allocation2 + $0x28] sm:$0xff] %v731
  %796 = vst [vmem:[#allocation2 + $0x30] sm:$0xff] %v732
  %797 = vst [vmem:[#allocation2 + $0x38] sm:$0xff] %v733
  %798 = vst [vmem:[#allocation2 + $0x40] sm:$0xff] %v734
  %799 = vst [vmem:[#allocation2 + $0x48] sm:$0xff] %v735
  %800 = vst [vmem:[#allocation2 + $0x50] sm:$0xff] %v736
  %801 = vst [vmem:[#allocation2 + $0x58] sm:$0xff] %v737
  %802 = vst [vmem:[#allocation2 + $0x60] sm:$0xff] %v738
  %803 = vst [vmem:[#allocation2 + $0x68] sm:$0xff] %v739
  %804 = vst [vmem:[#allocation2 + $0x70] sm:$0xff] %v740
  %805 = vst [vmem:[#allocation2 + $0x78] sm:$0xff] %v741
  %806 = vst [vmem:[#allocation2 + $0x80] sm:$0xff] %v742
  %807 = vst [vmem:[#allocation2 + $0x88] sm:$0xff] %v743
  %808 = vst [vmem:[#allocation2 + $0x90] sm:$0xff] %v744
  %809 = vst [vmem:[#allocation2 + $0x98] sm:$0xff] %v745
  %810 = vst [vmem:[#allocation2 + $0xa0] sm:$0xff] %v746
  %811 = vst [vmem:[#allocation2 + $0xa8] sm:$0xff] %v747
  %812 = vst [vmem:[#allocation2 + $0xb0] sm:$0xff] %v748
  %813 = vst [vmem:[#allocation2 + $0xb8] sm:$0xff] %v749
  %814 = vst [vmem:[#allocation2 + $0xc0] sm:$0xff] %v750
  %815 = vst [vmem:[#allocation2 + $0xc8] sm:$0xff] %v751
  %816 = vst [vmem:[#allocation2 + $0xd0] sm:$0xff] %v752
  %817 = vst [vmem:[#allocation2 + $0xd8] sm:$0xff] %v753
  %818 = vst [vmem:[#allocation2 + $0xe0] sm:$0xff] %v754
  %819 = vst [vmem:[#allocation2 + $0xe8] sm:$0xff] %v755
  %820 = vst [vmem:[#allocation2 + $0xf0] sm:$0xff] %v756
  %821 = vst [vmem:[#allocation2 + $0xf8] sm:$0xff] %v757
  %822 = vst [vmem:[#allocation2 + $0x100] sm:$0xff] %v758
  %823 = vst [vmem:[#allocation2 + $0x108] sm:$0xff] %v759
  %824 = vst [vmem:[#allocation2 + $0x110] sm:$0xff] %v760
  %825 = vst [vmem:[#allocation2 + $0x118] sm:$0xff] %v761
  %826 = vst [vmem:[#allocation2 + $0x120] sm:$0xff] %v762
  %827 = vst [vmem:[#allocation2 + $0x128] sm:$0xff] %v763
  %828 = vst [vmem:[#allocation2 + $0x130] sm:$0xff] %v764
  %829 = vst [vmem:[#allocation2 + $0x138] sm:$0xff] %v765
  %830 = vst [vmem:[#allocation2 + $0x140] sm:$0xff] %v766
  %831 = vst [vmem:[#allocation2 + $0x148] sm:$0xff] %v767
  %832 = vst [vmem:[#allocation2 + $0x150] sm:$0xff] %v768
  %833 = vst [vmem:[#allocation2 + $0x158] sm:$0xff] %v769
  %834 = vst [vmem:[#allocation2 + $0x160] sm:$0xff] %v770
  %835 = vst [vmem:[#allocation2 + $0x168] sm:$0xff] %v771
  %836 = vst [vmem:[#allocation2 + $0x170] sm:$0xff] %v772
  %837 = vst [vmem:[#allocation2 + $0x178] sm:$0xff] %v773
  %838 = vst [vmem:[#allocation2 + $0x180] sm:$0xff] %v774
  %839 = vst [vmem:[#allocation2 + $0x188] sm:$0xff] %v775
  %840 = vst [vmem:[#allocation2 + $0x190] sm:$0xff] %v776
  %841 = vst [vmem:[#allocation2 + $0x198] sm:$0xff] %v777
  %842 = vst [vmem:[#allocation2 + $0x1a0] sm:$0xff] %v778
  %843 = vst [vmem:[#allocation2 + $0x1a8] sm:$0xff] %v779
  %844 = vst [vmem:[#allocation2 + $0x1b0] sm:$0xff] %v780
  %845 = vst [vmem:[#allocation2 + $0x1b8] sm:$0xff] %v781
  %846 = vst [vmem:[#allocation2 + $0x1c0] sm:$0xff] %v782
  %847 = vst [vmem:[#allocation2 + $0x1c8] sm:$0xff] %v783
  %848 = vst [vmem:[#allocation2 + $0x1d0] sm:$0xff] %v784
  %849 = vst [vmem:[#allocation2 + $0x1d8] sm:$0xff] %v785
  %850 = vst [vmem:[#allocation2 + $0x1e0] sm:$0xff] %v786
  %851 = vst [vmem:[#allocation2 + $0x1e8] sm:$0xff] %v787
  %852 = vst [vmem:[#allocation2 + $0x1f0] sm:$0xff] %v788
  %853 = vst [vmem:[#allocation2 + $0x1f8] sm:$0xff] %v789
  // Predicated region
  $region18: #{qwen2_5_vision_attention.7} parent=0 // pred_check
    %p854 = pneg %p14
  $region19: #{qwen2_5_vision_attention.7} parent=0 // pred_check_branch
    %856 = sbr.rel (%p854) target = $region21
  $region20: #{qwen2_5_vision_attention.7} parent=0 // pred_region
    %v857 = vld [vmem:[#allocation2] sm:$0xff]
    %v858 = vld [vmem:[#allocation2 + $0x8] sm:$0xff]
    %v859 = vld [vmem:[#allocation2 + $0x10] sm:$0xff]
    %v860 = vld [vmem:[#allocation2 + $0x18] sm:$0xff]
    %v861 = vld [vmem:[#allocation2 + $0x20] sm:$0xff]
    %v862 = vld [vmem:[#allocation2 + $0x28] sm:$0xff]
    %v863 = vld [vmem:[#allocation2 + $0x30] sm:$0xff]
    %v864 = vld [vmem:[#allocation2 + $0x38] sm:$0xff]
    %v865 = vld [vmem:[#allocation2 + $0x40] sm:$0xff]
    %v866 = vld [vmem:[#allocation2 + $0x48] sm:$0xff]
    %v867 = vld [vmem:[#allocation2 + $0x50] sm:$0xff]
    %v868 = vld [vmem:[#allocation2 + $0x58] sm:$0xff]
    %v869 = vld [vmem:[#allocation2 + $0x60] sm:$0xff]
    %v870 = vld [vmem:[#allocation2 + $0x68] sm:$0xff]
    %v871 = vld [vmem:[#allocation2 + $0x70] sm:$0xff]
    %v872 = vld [vmem:[#allocation2 + $0x78] sm:$0xff]
    %v873 = vld [vmem:[#allocation2 + $0x80] sm:$0xff]
    %v874 = vld [vmem:[#allocation2 + $0x88] sm:$0xff]
    %v875 = vld [vmem:[#allocation2 + $0x90] sm:$0xff]
    %v876 = vld [vmem:[#allocation2 + $0x98] sm:$0xff]
    %v877 = vld [vmem:[#allocation2 + $0xa0] sm:$0xff]
    %v878 = vld [vmem:[#allocation2 + $0xa8] sm:$0xff]
    %v879 = vld [vmem:[#allocation2 + $0xb0] sm:$0xff]
    %v880 = vld [vmem:[#allocation2 + $0xb8] sm:$0xff]
    %v881 = vld [vmem:[#allocation2 + $0xc0] sm:$0xff]
    %v882 = vld [vmem:[#allocation2 + $0xc8] sm:$0xff]
    %v883 = vld [vmem:[#allocation2 + $0xd0] sm:$0xff]
    %v884 = vld [vmem:[#allocation2 + $0xd8] sm:$0xff]
    %v885 = vld [vmem:[#allocation2 + $0xe0] sm:$0xff]
    %v886 = vld [vmem:[#allocation2 + $0xe8] sm:$0xff]
    %v887 = vld [vmem:[#allocation2 + $0xf0] sm:$0xff]
    %v888 = vld [vmem:[#allocation2 + $0xf8] sm:$0xff]
    %v889 = vld [vmem:[#allocation2 + $0x100] sm:$0xff]
    %v890 = vld [vmem:[#allocation2 + $0x108] sm:$0xff]
    %v891 = vld [vmem:[#allocation2 + $0x110] sm:$0xff]
    %v892 = vld [vmem:[#allocation2 + $0x118] sm:$0xff]
    %v893 = vld [vmem:[#allocation2 + $0x120] sm:$0xff]
    %v894 = vld [vmem:[#allocation2 + $0x128] sm:$0xff]
    %v895 = vld [vmem:[#allocation2 + $0x130] sm:$0xff]
    %v896 = vld [vmem:[#allocation2 + $0x138] sm:$0xff]
    %v897 = vld [vmem:[#allocation2 + $0x140] sm:$0xff]
    %v898 = vld [vmem:[#allocation2 + $0x148] sm:$0xff]
    %v899 = vld [vmem:[#allocation2 + $0x150] sm:$0xff]
    %v900 = vld [vmem:[#allocation2 + $0x158] sm:$0xff]
    %v901 = vld [vmem:[#allocation2 + $0x160] sm:$0xff]
    %v902 = vld [vmem:[#allocation2 + $0x168] sm:$0xff]
    %v903 = vld [vmem:[#allocation2 + $0x170] sm:$0xff]
    %v904 = vld [vmem:[#allocation2 + $0x178] sm:$0xff]
    %v905 = vld [vmem:[#allocation2 + $0x180] sm:$0xff]
    %v906 = vld [vmem:[#allocation2 + $0x188] sm:$0xff]
    %v907 = vld [vmem:[#allocation2 + $0x190] sm:$0xff]
    %v908 = vld [vmem:[#allocation2 + $0x198] sm:$0xff]
    %v909 = vld [vmem:[#allocation2 + $0x1a0] sm:$0xff]
    %v910 = vld [vmem:[#allocation2 + $0x1a8] sm:$0xff]
    %v911 = vld [vmem:[#allocation2 + $0x1b0] sm:$0xff]
    %v912 = vld [vmem:[#allocation2 + $0x1b8] sm:$0xff]
    %v913 = vld [vmem:[#allocation2 + $0x1c0] sm:$0xff]
    %v914 = vld [vmem:[#allocation2 + $0x1c8] sm:$0xff]
    %v915 = vld [vmem:[#allocation2 + $0x1d0] sm:$0xff]
    %v916 = vld [vmem:[#allocation2 + $0x1d8] sm:$0xff]
    %v917 = vld [vmem:[#allocation2 + $0x1e0] sm:$0xff]
    %v918 = vld [vmem:[#allocation2 + $0x1e8] sm:$0xff]
    %v919 = vld [vmem:[#allocation2 + $0x1f0] sm:$0xff]
    %v920 = vld [vmem:[#allocation2 + $0x1f8] sm:$0xff]
    %v921 = vld [vmem:[%s2] sm:$0x3]
    %v923 = vperm.slane %v921, 0
    %v924 = vperm.slane %v921, 1
    %v927 = vadd.f32 %v857, %v923
    %v928 = vadd.f32 %v858, %v924
    %v929 = vadd.f32 %v859, %v923
    %v930 = vadd.f32 %v860, %v924
    %v931 = vadd.f32 %v861, %v923
    %v932 = vadd.f32 %v862, %v924
    %v933 = vadd.f32 %v863, %v923
    %v934 = vadd.f32 %v864, %v924
    %v935 = vadd.f32 %v865, %v923
    %v936 = vadd.f32 %v866, %v924
    %v937 = vadd.f32 %v867, %v923
    %v938 = vadd.f32 %v868, %v924
    %v939 = vadd.f32 %v869, %v923
    %v940 = vadd.f32 %v870, %v924
    %v941 = vadd.f32 %v871, %v923
    %v942 = vadd.f32 %v872, %v924
    %v943 = vadd.f32 %v873, %v923
    %v944 = vadd.f32 %v874, %v924
    %v945 = vadd.f32 %v875, %v923
    %v946 = vadd.f32 %v876, %v924
    %v947 = vadd.f32 %v877, %v923
    %v948 = vadd.f32 %v878, %v924
    %v949 = vadd.f32 %v879, %v923
    %v950 = vadd.f32 %v880, %v924
    %v951 = vadd.f32 %v881, %v923
    %v952 = vadd.f32 %v882, %v924
    %v953 = vadd.f32 %v883, %v923
    %v954 = vadd.f32 %v884, %v924
    %v955 = vadd.f32 %v885, %v923
    %v956 = vadd.f32 %v886, %v924
    %v957 = vadd.f32 %v887, %v923
    %v958 = vadd.f32 %v888, %v924
    %v959 = vadd.f32 %v889, %v923
    %v960 = vadd.f32 %v890, %v924
    %v961 = vadd.f32 %v891, %v923
    %v962 = vadd.f32 %v892, %v924
    %v963 = vadd.f32 %v893, %v923
    %v964 = vadd.f32 %v894, %v924
    %v965 = vadd.f32 %v895, %v923
    %v966 = vadd.f32 %v896, %v924
    %v967 = vadd.f32 %v897, %v923
    %v968 = vadd.f32 %v898, %v924
    %v969 = vadd.f32 %v899, %v923
    %v970 = vadd.f32 %v900, %v924
    %v971 = vadd.f32 %v901, %v923
    %v972 = vadd.f32 %v902, %v924
    %v973 = vadd.f32 %v903, %v923
    %v974 = vadd.f32 %v904, %v924
    %v975 = vadd.f32 %v905, %v923
    %v976 = vadd.f32 %v906, %v924
    %v977 = vadd.f32 %v907, %v923
    %v978 = vadd.f32 %v908, %v924
    %v979 = vadd.f32 %v909, %v923
    %v980 = vadd.f32 %v910, %v924
    %v981 = vadd.f32 %v911, %v923
    %v982 = vadd.f32 %v912, %v924
    %v983 = vadd.f32 %v913, %v923
    %v984 = vadd.f32 %v914, %v924
    %v985 = vadd.f32 %v915, %v923
    %v986 = vadd.f32 %v916, %v924
    %v987 = vadd.f32 %v917, %v923
    %v988 = vadd.f32 %v918, %v924
    %v989 = vadd.f32 %v919, %v923
    %v990 = vadd.f32 %v920, %v924
    %991 = vst [vmem:[%s3] sm:$0xff] %v927
    %992 = vst [vmem:[%s3 + $0x8] sm:$0xff] %v928
    %993 = vst [vmem:[%s3 + $0x10] sm:$0xff] %v929
    %994 = vst [vmem:[%s3 + $0x18] sm:$0xff] %v930
    %995 = vst [vmem:[%s3 + $0x20] sm:$0xff] %v931
    %996 = vst [vmem:[%s3 + $0x28] sm:$0xff] %v932
    %997 = vst [vmem:[%s3 + $0x30] sm:$0xff] %v933
    %998 = vst [vmem:[%s3 + $0x38] sm:$0xff] %v934
    %999 = vst [vmem:[%s3 + $0x40] sm:$0xff] %v935
    %1000 = vst [vmem:[%s3 + $0x48] sm:$0xff] %v936
    %1001 = vst [vmem:[%s3 + $0x50] sm:$0xff] %v937
    %1002 = vst [vmem:[%s3 + $0x58] sm:$0xff] %v938
    %1003 = vst [vmem:[%s3 + $0x60] sm:$0xff] %v939
    %1004 = vst [vmem:[%s3 + $0x68] sm:$0xff] %v940
    %1005 = vst [vmem:[%s3 + $0x70] sm:$0xff] %v941
    %1006 = vst [vmem:[%s3 + $0x78] sm:$0xff] %v942
    %1007 = vst [vmem:[%s3 + $0x80] sm:$0xff] %v943
    %1008 = vst [vmem:[%s3 + $0x88] sm:$0xff] %v944
    %1009 = vst [vmem:[%s3 + $0x90] sm:$0xff] %v945
    %1010 = vst [vmem:[%s3 + $0x98] sm:$0xff] %v946
    %1011 = vst [vmem:[%s3 + $0xa0] sm:$0xff] %v947
    %1012 = vst [vmem:[%s3 + $0xa8] sm:$0xff] %v948
    %1013 = vst [vmem:[%s3 + $0xb0] sm:$0xff] %v949
    %1014 = vst [vmem:[%s3 + $0xb8] sm:$0xff] %v950
    %1015 = vst [vmem:[%s3 + $0xc0] sm:$0xff] %v951
    %1016 = vst [vmem:[%s3 + $0xc8] sm:$0xff] %v952
    %1017 = vst [vmem:[%s3 + $0xd0] sm:$0xff] %v953
    %1018 = vst [vmem:[%s3 + $0xd8] sm:$0xff] %v954
    %1019 = vst [vmem:[%s3 + $0xe0] sm:$0xff] %v955
    %1020 = vst [vmem:[%s3 + $0xe8] sm:$0xff] %v956
    %1021 = vst [vmem:[%s3 + $0xf0] sm:$0xff] %v957
    %1022 = vst [vmem:[%s3 + $0xf8] sm:$0xff] %v958
    %1023 = vst [vmem:[%s3 + $0x100] sm:$0xff] %v959
    %1024 = vst [vmem:[%s3 + $0x108] sm:$0xff] %v960
    %1025 = vst [vmem:[%s3 + $0x110] sm:$0xff] %v961
    %1026 = vst [vmem:[%s3 + $0x118] sm:$0xff] %v962
    %1027 = vst [vmem:[%s3 + $0x120] sm:$0xff] %v963
    %1028 = vst [vmem:[%s3 + $0x128] sm:$0xff] %v964
    %1029 = vst [vmem:[%s3 + $0x130] sm:$0xff] %v965
    %1030 = vst [vmem:[%s3 + $0x138] sm:$0xff] %v966
    %1031 = vst [vmem:[%s3 + $0x140] sm:$0xff] %v967
    %1032 = vst [vmem:[%s3 + $0x148] sm:$0xff] %v968
    %1033 = vst [vmem:[%s3 + $0x150] sm:$0xff] %v969
    %1034 = vst [vmem:[%s3 + $0x158] sm:$0xff] %v970
    %1035 = vst [vmem:[%s3 + $0x160] sm:$0xff] %v971
    %1036 = vst [vmem:[%s3 + $0x168] sm:$0xff] %v972
    %1037 = vst [vmem:[%s3 + $0x170] sm:$0xff] %v973
    %1038 = vst [vmem:[%s3 + $0x178] sm:$0xff] %v974
    %1039 = vst [vmem:[%s3 + $0x180] sm:$0xff] %v975
    %1040 = vst [vmem:[%s3 + $0x188] sm:$0xff] %v976
    %1041 = vst [vmem:[%s3 + $0x190] sm:$0xff] %v977
    %1042 = vst [vmem:[%s3 + $0x198] sm:$0xff] %v978
    %1043 = vst [vmem:[%s3 + $0x1a0] sm:$0xff] %v979
    %1044 = vst [vmem:[%s3 + $0x1a8] sm:$0xff] %v980
    %1045 = vst [vmem:[%s3 + $0x1b0] sm:$0xff] %v981
    %1046 = vst [vmem:[%s3 + $0x1b8] sm:$0xff] %v982
    %1047 = vst [vmem:[%s3 + $0x1c0] sm:$0xff] %v983
    %1048 = vst [vmem:[%s3 + $0x1c8] sm:$0xff] %v984
    %1049 = vst [vmem:[%s3 + $0x1d0] sm:$0xff] %v985
    %1050 = vst [vmem:[%s3 + $0x1d8] sm:$0xff] %v986
    %1051 = vst [vmem:[%s3 + $0x1e0] sm:$0xff] %v987
    %1052 = vst [vmem:[%s3 + $0x1e8] sm:$0xff] %v988
    %1053 = vst [vmem:[%s3 + $0x1f0] sm:$0xff] %v989
    %1054 = vst [vmem:[%s3 + $0x1f8] sm:$0xff] %v990
  $region21: #{qwen2_5_vision_attention.7} parent=0 // pred_fallthru
    _
  // Predicated region
  $region22: #{qwen2_5_vision_attention.7} parent=0 // pred_check
    _
  $region23: #{qwen2_5_vision_attention.7} parent=0 // pred_check_branch
    %1056 = sbr.rel (0) target = $region25
  $region24: #{qwen2_5_vision_attention.7} parent=0 // pred_region
    _
  $region25: #{qwen2_5_vision_attention.7} parent=0 // pred_fallthru
    _
  // Predicated region
  $region26: #{qwen2_5_vision_attention.7} parent=0 // pred_check
    _
  $region27: #{qwen2_5_vision_attention.7} parent=0 // pred_check_branch
    %1058 = sbr.rel (0) target = $region29
  $region28: #{qwen2_5_vision_attention.7} parent=0 // pred_region
    _
  $region29: #{qwen2_5_vision_attention.7} parent=0 // pred_fallthru
    _

// kernel: qwen2_5_vision_attention.4
$region0: #{qwen2_5_vision_attention.4}
  #allocation0 [shape = 'u32[]', space=smem, size = 0x4, offset = 0x4, fixed_abs, tag = 'smem constant byte address 0x4 - core index']
  #allocation1 [shape = 'u32[72,128]{1,0:T(1,128)}', space=vmem, size = 0x9000, scoped, tag = 'internal scratch']
  #allocation2 [shape = 'f32[256,512]{1,0:T(8,128)}', space=vmem, size = 0x80000, scoped, tag = 'scratch operand']
  %s0 = inlined_call_operand.vmem [shape: f32[256,256], index: 0, kind: input, shape index: {}]
  %s1 = inlined_call_operand.vmem [shape: f32[256,1024], index: 1, kind: input, shape index: {}]
  %s2 = inlined_call_operand.vmem [shape: f32[1,1024], index: 2, kind: input, shape index: {}]
  %s3 = inlined_call_operand.vmem [shape: f32[256,1024], index: 3, kind: output, shape index: {}]
  %s4 = sld [smem:[#allocation0]]
  $region95: #{qwen2_5_vision_attention.4} parent=0
    _
  %s6 = ssub.s32 1, %s4
  %s7 = scalar_select 0, %s6, %s4
  $region1: #{qwen2_5_vision_attention.4} parent=0
    #allocation3 [shape = 'u8[1048576]{0}', space=vmem, size = 0x100000, scoped, tag = 'input window, operand 1']
    #allocation4 [shape = 'u8[1048576]{0}', space=vmem, size = 0x100000, scoped, tag = 'output window, operand 0']
    loop: start=0, step=1, limit=4
    $region2: #{qwen2_5_vision_attention.4} parent=1 // loop_pre_header
      _
    $region3: #{qwen2_5_vision_attention.4} parent=1 // loop_header
      %s9 = sphi 0, %s13
      %p10 = scmp.ge.s32.totalorder %s9, 4
      %s16 = sphi 0, %s35
      %s17 = sphi 0, %s31
      %s18 = sphi 0, %s27
      %s19 = sphi 0, %s16
      %s20 = sphi 0, %s17
      %s21 = sphi 0, %s18
      %s22 = sphi 0, %s19
      %s23 = sphi 0, %s20
      %s24 = sphi 0, %s21
      %s40 = sphi 0, %s42
      %s43 = sphi 0, %s40
      %s44 = sphi 0, %s43
      %s60 = sphi 0, %s44
      %s68 = sphi 0, %s70
      %s71 = sphi 0, %s68
      %s72 = sphi 0, %s71
      %s88 = sphi 0, %s72
      %s94 = sphi 0, %s96
      %s97 = sphi 0, %s94
      %s98 = sphi 0, %s97
      %s114 = sphi 0, %s98
      %s122 = sphi 0, %s124
      %s125 = sphi 0, %s122
      %s126 = sphi 0, %s125
      %s142 = sphi 0, %s126
    $region4: #{qwen2_5_vision_attention.4} parent=1 // loop_header_branch
      %12 = sbr.rel (%p10) target = $region8
    $region5: #{qwen2_5_vision_attention.4} parent=1 // loop_body
      %s14 = ssub.s32 %s9, 1
      %s15 = ssub.s32 %s9, 2
      %s25 = sadd.s32 1, %s18
      %p26 = scmp.ge.s32.totalorder %s25, 1
      %s27 = scalar_select %p26, 0, %s25
      %s28 = sadd.s32 1, %s17
      %s29 = scalar_select %p26, %s28, %s17
      %p30 = scmp.ge.s32.totalorder %s29, 2
      %s31 = scalar_select %p30, 0, %s29
      %s32 = sadd.s32 1, %s16
      %s33 = scalar_select %p30, %s32, %s16
      %p34 = scmp.ge.s32.totalorder %s33, 1
      %s35 = scalar_select %p34, 0, %s33
      %s36 = ssub.s32 %s16, %s35
      %s37 = ssub.s32 %s18, %s27
      %s38 = sor.u32 %s36, %s37
      %p39 = scmp.eq.s32.totalorder %s38, 0
      %s41 = sadd.s32 %s40, 1
      %s42 = scalar_select %p39, %s40, %s41
      %p45 = pneg %p39
      %p46 = scmp.eq.s32.totalorder %s9, 1
      %p47 = por %p45, %p46
      %p48 = scmp.ne.s32.totalorder %s40, %s43
      %p49 = scmp.eq.s32.totalorder %s9, 0
      %p50 = por %p48, %p49
      %p51 = scmp.ne.s32.totalorder %s40, %s43
      %p52 = scmp.eq.s32.totalorder %s14, 1
      %p53 = por %p51, %p52
      %p54 = scmp.ne.s32.totalorder %s43, %s44
      %p55 = scmp.eq.s32.totalorder %s14, 0
      %p56 = por %p54, %p55
      %p57 = scmp.ne.s32.totalorder %s43, %s44
      %p58 = scmp.eq.s32.totalorder %s15, 1
      %p59 = por %p57, %p58
      %p61 = scmp.ne.s32.totalorder %s44, %s60
      %p62 = scmp.eq.s32.totalorder %s15, 0
      %p63 = por %p61, %p62
      %s64 = ssub.s32 %s18, %s27
      %s65 = ssub.s32 %s17, %s31
      %s66 = sor.u32 %s64, %s65
      %p67 = scmp.eq.s32.totalorder %s66, 0
      %s69 = sadd.s32 %s68, 1
      %s70 = scalar_select %p67, %s68, %s69
      %p73 = pneg %p67
      %p74 = scmp.eq.s32.totalorder %s9, 1
      %p75 = por %p73, %p74
      %p76 = scmp.ne.s32.totalorder %s68, %s71
      %p77 = scmp.eq.s32.totalorder %s9, 0
      %p78 = por %p76, %p77
      %p79 = scmp.ne.s32.totalorder %s68, %s71
      %p80 = scmp.eq.s32.totalorder %s14, 1
      %p81 = por %p79, %p80
      %p82 = scmp.ne.s32.totalorder %s71, %s72
      %p83 = scmp.eq.s32.totalorder %s14, 0
      %p84 = por %p82, %p83
      %p85 = scmp.ne.s32.totalorder %s71, %s72
      %p86 = scmp.eq.s32.totalorder %s15, 1
      %p87 = por %p85, %p86
      %p89 = scmp.ne.s32.totalorder %s72, %s88
      %p90 = scmp.eq.s32.totalorder %s15, 0
      %p91 = por %p89, %p90
      %s92 = ssub.s32 %s17, %s31
      %p93 = scmp.eq.s32.totalorder %s92, 0
      %s95 = sadd.s32 %s94, 1
      %s96 = scalar_select %p93, %s94, %s95
      %p99 = pneg %p93
      %p100 = scmp.eq.s32.totalorder %s9, 1
      %p101 = por %p99, %p100
      %p102 = scmp.ne.s32.totalorder %s94, %s97
      %p103 = scmp.eq.s32.totalorder %s9, 0
      %p104 = por %p102, %p103
      %p105 = scmp.ne.s32.totalorder %s94, %s97
      %p106 = scmp.eq.s32.totalorder %s14, 1
      %p107 = por %p105, %p106
      %p108 = scmp.ne.s32.totalorder %s97, %s98
      %p109 = scmp.eq.s32.totalorder %s14, 0
      %p110 = por %p108, %p109
      %p111 = scmp.ne.s32.totalorder %s97, %s98
      %p112 = scmp.eq.s32.totalorder %s15, 1
      %p113 = por %p111, %p112
      %p115 = scmp.ne.s32.totalorder %s98, %s114
      %p116 = scmp.eq.s32.totalorder %s15, 0
      %p117 = por %p115, %p116
      %s118 = ssub.s32 %s16, %s35
      %s119 = ssub.s32 %s17, %s31
      %s120 = sor.u32 %s118, %s119
      %p121 = scmp.eq.s32.totalorder %s120, 0
      %s123 = sadd.s32 %s122, 1
      %s124 = scalar_select %p121, %s122, %s123
      %p127 = pneg %p121
      %p128 = scmp.eq.s32.totalorder %s9, 1
      %p129 = por %p127, %p128
      %p130 = scmp.ne.s32.totalorder %s122, %s125
      %p131 = scmp.eq.s32.totalorder %s9, 0
      %p132 = por %p130, %p131
      %p133 = scmp.ne.s32.totalorder %s122, %s125
      %p134 = scmp.eq.s32.totalorder %s14, 1
      %p135 = por %p133, %p134
      %p136 = scmp.ne.s32.totalorder %s125, %s126
      %p137 = scmp.eq.s32.totalorder %s14, 0
      %p138 = por %p136, %p137
      %p139 = scmp.ne.s32.totalorder %s125, %s126
      %p140 = scmp.eq.s32.totalorder %s15, 1
      %p141 = por %p139, %p140
      %p143 = scmp.ne.s32.totalorder %s126, %s142
      %p144 = scmp.eq.s32.totalorder %s15, 0
      %p145 = por %p143, %p144
      %p146 = scmp.le.s32.totalorder 1, %s9
      %p147 = scmp.lt.s32.totalorder %s9, 3
      %p148 = pnand %p146, %p147
      %p149 = pneg %p148
      // Predicated region
      $region9: #{qwen2_5_vision_attention.4} parent=5 // pred_check
        _
      $region10: #{qwen2_5_vision_attention.4} parent=5 // pred_check_branch
        %151 = sbr.rel (%p148) target = $region12
      $region11: #{qwen2_5_vision_attention.4} parent=5 // pred_region
        %s152 = ssub.s32 %s9, 1
        // Predicated region
        $region13: #{qwen2_5_vision_attention.4} parent=11 // pred_check
          %p153 = pneg %p56
        $region14: #{qwen2_5_vision_attention.4} parent=11 // pred_check_branch
          %155 = sbr.rel (%p153) target = $region16
        $region15: #{qwen2_5_vision_attention.4} parent=11 // pred_region
          %s156 = smul.u32 32, %s19
          %s157 = smul.u32 2, %s21
          %p158 = scmp.lt.s32.totalorder %s156, 31
          %s159 = scalar_select %p158, %s156, 31
          %p160 = scmp.lt.s32.totalorder %s157, 1
          %s161 = scalar_select %p160, %s157, 1
          %s162 = smul.addr %s159, 2
          %s163 = sadd.s32 %s161, %s162
          %s164 = smul.addr %s163, 8
          %s165 = scalar_lea.vmem %s0, %s164
          %s166 = smul.u32 32, %s19
          %s167 = smul.u32 2, %s21
        $region16: #{qwen2_5_vision_attention.4} parent=11 // pred_fallthru
          _
      $region12: #{qwen2_5_vision_attention.4} parent=5 // pred_fallthru
        _
      %p168 = scmp.lt.s32.totalorder %s9, 2
      // Predicated region
      $region17: #{qwen2_5_vision_attention.4} parent=5 // pred_check
        %p169 = pneg %p168
      $region18: #{qwen2_5_vision_attention.4} parent=5 // pred_check_branch
        %171 = sbr.rel (%p169) target = $region20
      $region19: #{qwen2_5_vision_attention.4} parent=5 // pred_region
        // Predicated region
        $region21: #{qwen2_5_vision_attention.4} parent=19 // pred_check
          %p172 = pneg %p78
        $region22: #{qwen2_5_vision_attention.4} parent=19 // pred_check_branch
          %174 = sbr.rel (%p172) target = $region24
        $region23: #{qwen2_5_vision_attention.4} parent=19 // pred_region
          %s175 = sand.u32 %s68, 1
          %s176 = sand.u32 %s68, 1
          %s177 = smul.addr %s176, 1024
          %s178 = scalar_lea.vmem [#allocation3], %s177
          %s179 = smul.u32 32, %s18
          %s180 = smul.u32 4, %s17
          %s181 = smul.addr %s179, 8
          %s182 = sadd.s32 %s180, %s181
          %s183 = smul.addr %s182, 8
          %s184 = scalar_lea.vmem %s1, %s183
          // Predicated region
          $region25: #{qwen2_5_vision_attention.4} parent=23 // pred_check
            _
          $region26: #{qwen2_5_vision_attention.4} parent=23 // pred_check_branch
            %186 = sbr.rel (0) target = $region28
          $region27: #{qwen2_5_vision_attention.4} parent=23 // pred_region
            // Predicated region
            $region29: #{qwen2_5_vision_attention.4} parent=27 // pred_check
              _
            $region30: #{qwen2_5_vision_attention.4} parent=27 // pred_check_branch
              %188 = sbr.rel (0) target = $region32
            $region31: #{qwen2_5_vision_attention.4} parent=27 // pred_region
              loop: start=0, step=1, limit=1
              $region33: #{qwen2_5_vision_attention.4} parent=31 // loop_pre_header
                _
              $region34: #{qwen2_5_vision_attention.4} parent=31 // loop_header
                %s190 = sphi 0, %s194
                %p191 = scmp.ge.s32.totalorder %s190, 1
                %s195 = sphi %s184, %s184
                %s196 = sphi %s178, %s178
              $region35: #{qwen2_5_vision_attention.4} parent=31 // loop_header_branch
                %193 = sbr.rel (%p191) target = $region39
              $region36: #{qwen2_5_vision_attention.4} parent=31 // loop_body
                %v197 = vld [vmem:[%s195] sm:$0xff]
                %198 = vst [vmem:[%s196] sm:$0xff] %v197
                %v199 = vld [vmem:[%s195 + $0x8] sm:$0xff]
                %200 = vst [vmem:[%s196 + $0x8] sm:$0xff] %v199
                %v201 = vld [vmem:[%s195 + $0x10] sm:$0xff]
                %202 = vst [vmem:[%s196 + $0x10] sm:$0xff] %v201
                %v203 = vld [vmem:[%s195 + $0x18] sm:$0xff]
                %204 = vst [vmem:[%s196 + $0x18] sm:$0xff] %v203
                %v205 = vld [vmem:[%s195 + $0x40] sm:$0xff]
                %206 = vst [vmem:[%s196 + $0x20] sm:$0xff] %v205
                %v207 = vld [vmem:[%s195 + $0x48] sm:$0xff]
                %208 = vst [vmem:[%s196 + $0x28] sm:$0xff] %v207
                %v209 = vld [vmem:[%s195 + $0x50] sm:$0xff]
                %210 = vst [vmem:[%s196 + $0x30] sm:$0xff] %v209
                %v211 = vld [vmem:[%s195 + $0x58] sm:$0xff]
                %212 = vst [vmem:[%s196 + $0x38] sm:$0xff] %v211
                %v213 = vld [vmem:[%s195 + $0x80] sm:$0xff]
                %214 = vst [vmem:[%s196 + $0x40] sm:$0xff] %v213
                %v215 = vld [vmem:[%s195 + $0x88] sm:$0xff]
                %216 = vst [vmem:[%s196 + $0x48] sm:$0xff] %v215
                %v217 = vld [vmem:[%s195 + $0x90] sm:$0xff]
                %218 = vst [vmem:[%s196 + $0x50] sm:$0xff] %v217
                %v219 = vld [vmem:[%s195 + $0x98] sm:$0xff]
                %220 = vst [vmem:[%s196 + $0x58] sm:$0xff] %v219
                %v221 = vld [vmem:[%s195 + $0xc0] sm:$0xff]
                %222 = vst [vmem:[%s196 + $0x60] sm:$0xff] %v221
                %v223 = vld [vmem:[%s195 + $0xc8] sm:$0xff]
                %224 = vst [vmem:[%s196 + $0x68] sm:$0xff] %v223
                %v225 = vld [vmem:[%s195 + $0xd0] sm:$0xff]
                %226 = vst [vmem:[%s196 + $0x70] sm:$0xff] %v225
                %v227 = vld [vmem:[%s195 + $0xd8] sm:$0xff]
                %228 = vst [vmem:[%s196 + $0x78] sm:$0xff] %v227
                %v229 = vld [vmem:[%s195 + $0x100] sm:$0xff]
                %230 = vst [vmem:[%s196 + $0x80] sm:$0xff] %v229
                %v231 = vld [vmem:[%s195 + $0x108] sm:$0xff]
                %232 = vst [vmem:[%s196 + $0x88] sm:$0xff] %v231
                %v233 = vld [vmem:[%s195 + $0x110] sm:$0xff]
                %234 = vst [vmem:[%s196 + $0x90] sm:$0xff] %v233
                %v235 = vld [vmem:[%s195 + $0x118] sm:$0xff]
                %236 = vst [vmem:[%s196 + $0x98] sm:$0xff] %v235
                %v237 = vld [vmem:[%s195 + $0x140] sm:$0xff]
                %238 = vst [vmem:[%s196 + $0xa0] sm:$0xff] %v237
                %v239 = vld [vmem:[%s195 + $0x148] sm:$0xff]
                %240 = vst [vmem:[%s196 + $0xa8] sm:$0xff] %v239
                %v241 = vld [vmem:[%s195 + $0x150] sm:$0xff]
                %242 = vst [vmem:[%s196 + $0xb0] sm:$0xff] %v241
                %v243 = vld [vmem:[%s195 + $0x158] sm:$0xff]
                %244 = vst [vmem:[%s196 + $0xb8] sm:$0xff] %v243
                %v245 = vld [vmem:[%s195 + $0x180] sm:$0xff]
                %246 = vst [vmem:[%s196 + $0xc0] sm:$0xff] %v245
                %v247 = vld [vmem:[%s195 + $0x188] sm:$0xff]
                %248 = vst [vmem:[%s196 + $0xc8] sm:$0xff] %v247
                %v249 = vld [vmem:[%s195 + $0x190] sm:$0xff]
                %250 = vst [vmem:[%s196 + $0xd0] sm:$0xff] %v249
                %v251 = vld [vmem:[%s195 + $0x198] sm:$0xff]
                %252 = vst [vmem:[%s196 + $0xd8] sm:$0xff] %v251
                %v253 = vld [vmem:[%s195 + $0x1c0] sm:$0xff]
                %254 = vst [vmem:[%s196 + $0xe0] sm:$0xff] %v253
                %v255 = vld [vmem:[%s195 + $0x1c8] sm:$0xff]
                %256 = vst [vmem:[%s196 + $0xe8] sm:$0xff] %v255
                %v257 = vld [vmem:[%s195 + $0x1d0] sm:$0xff]
                %258 = vst [vmem:[%s196 + $0xf0] sm:$0xff] %v257
                %v259 = vld [vmem:[%s195 + $0x1d8] sm:$0xff]
                %260 = vst [vmem:[%s196 + $0xf8] sm:$0xff] %v259
                %v261 = vld [vmem:[%s195 + $0x200] sm:$0xff]
                %262 = vst [vmem:[%s196 + $0x100] sm:$0xff] %v261
                %v263 = vld [vmem:[%s195 + $0x208] sm:$0xff]
                %264 = vst [vmem:[%s196 + $0x108] sm:$0xff] %v263
                %v265 = vld [vmem:[%s195 + $0x210] sm:$0xff]
                %266 = vst [vmem:[%s196 + $0x110] sm:$0xff] %v265
                %v267 = vld [vmem:[%s195 + $0x218] sm:$0xff]
                %268 = vst [vmem:[%s196 + $0x118] sm:$0xff] %v267
                %v269 = vld [vmem:[%s195 + $0x240] sm:$0xff]
                %270 = vst [vmem:[%s196 + $0x120] sm:$0xff] %v269
                %v271 = vld [vmem:[%s195 + $0x248] sm:$0xff]
                %272 = vst [vmem:[%s196 + $0x128] sm:$0xff] %v271
                %v273 = vld [vmem:[%s195 + $0x250] sm:$0xff]
                %274 = vst [vmem:[%s196 + $0x130] sm:$0xff] %v273
                %v275 = vld [vmem:[%s195 + $0x258] sm:$0xff]
                %276 = vst [vmem:[%s196 + $0x138] sm:$0xff] %v275
                %v277 = vld [vmem:[%s195 + $0x280] sm:$0xff]
                %278 = vst [vmem:[%s196 + $0x140] sm:$0xff] %v277
                %v279 = vld [vmem:[%s195 + $0x288] sm:$0xff]
                %280 = vst [vmem:[%s196 + $0x148] sm:$0xff] %v279
                %v281 = vld [vmem:[%s195 + $0x290] sm:$0xff]
                %282 = vst [vmem:[%s196 + $0x150] sm:$0xff] %v281
                %v283 = vld [vmem:[%s195 + $0x298] sm:$0xff]
                %284 = vst [vmem:[%s196 + $0x158] sm:$0xff] %v283
                %v285 = vld [vmem:[%s195 + $0x2c0] sm:$0xff]
                %286 = vst [vmem:[%s196 + $0x160] sm:$0xff] %v285
                %v287 = vld [vmem:[%s195 + $0x2c8] sm:$0xff]
                %288 = vst [vmem:[%s196 + $0x168] sm:$0xff] %v287
                %v289 = vld [vmem:[%s195 + $0x2d0] sm:$0xff]
                %290 = vst [vmem:[%s196 + $0x170] sm:$0xff] %v289
                %v291 = vld [vmem:[%s195 + $0x2d8] sm:$0xff]
                %292 = vst [vmem:[%s196 + $0x178] sm:$0xff] %v291
                %v293 = vld [vmem:[%s195 + $0x300] sm:$0xff]
                %294 = vst [vmem:[%s196 + $0x180] sm:$0xff] %v293
                %v295 = vld [vmem:[%s195 + $0x308] sm:$0xff]
                %296 = vst [vmem:[%s196 + $0x188] sm:$0xff] %v295
                %v297 = vld [vmem:[%s195 + $0x310] sm:$0xff]
                %298 = vst [vmem:[%s196 + $0x190] sm:$0xff] %v297
                %v299 = vld [vmem:[%s195 + $0x318] sm:$0xff]
                %300 = vst [vmem:[%s196 + $0x198] sm:$0xff] %v299
                %v301 = vld [vmem:[%s195 + $0x340] sm:$0xff]
                %302 = vst [vmem:[%s196 + $0x1a0] sm:$0xff] %v301
                %v303 = vld [vmem:[%s195 + $0x348] sm:$0xff]
                %304 = vst [vmem:[%s196 + $0x1a8] sm:$0xff] %v303
                %v305 = vld [vmem:[%s195 + $0x350] sm:$0xff]
                %306 = vst [vmem:[%s196 + $0x1b0] sm:$0xff] %v305
                %v307 = vld [vmem:[%s195 + $0x358] sm:$0xff]
                %308 = vst [vmem:[%s196 + $0x1b8] sm:$0xff] %v307
                %v309 = vld [vmem:[%s195 + $0x380] sm:$0xff]
                %310 = vst [vmem:[%s196 + $0x1c0] sm:$0xff] %v309
                %v311 = vld [vmem:[%s195 + $0x388] sm:$0xff]
                %312 = vst [vmem:[%s196 + $0x1c8] sm:$0xff] %v311
                %v313 = vld [vmem:[%s195 + $0x390] sm:$0xff]
                %314 = vst [vmem:[%s196 + $0x1d0] sm:$0xff] %v313
                %v315 = vld [vmem:[%s195 + $0x398] sm:$0xff]
                %316 = vst [vmem:[%s196 + $0x1d8] sm:$0xff] %v315
                %v317 = vld [vmem:[%s195 + $0x3c0] sm:$0xff]
                %318 = vst [vmem:[%s196 + $0x1e0] sm:$0xff] %v317
                %v319 = vld [vmem:[%s195 + $0x3c8] sm:$0xff]
                %320 = vst [vmem:[%s196 + $0x1e8] sm:$0xff] %v319
                %v321 = vld [vmem:[%s195 + $0x3d0] sm:$0xff]
                %322 = vst [vmem:[%s196 + $0x1f0] sm:$0xff] %v321
                %v323 = vld [vmem:[%s195 + $0x3d8] sm:$0xff]
                %324 = vst [vmem:[%s196 + $0x1f8] sm:$0xff] %v323
                %v325 = vld [vmem:[%s195 + $0x400] sm:$0xff]
                %326 = vst [vmem:[%s196 + $0x200] sm:$0xff] %v325
                %v327 = vld [vmem:[%s195 + $0x408] sm:$0xff]
                %328 = vst [vmem:[%s196 + $0x208] sm:$0xff] %v327
                %v329 = vld [vmem:[%s195 + $0x410] sm:$0xff]
                %330 = vst [vmem:[%s196 + $0x210] sm:$0xff] %v329
                %v331 = vld [vmem:[%s195 + $0x418] sm:$0xff]
                %332 = vst [vmem:[%s196 + $0x218] sm:$0xff] %v331
                %v333 = vld [vmem:[%s195 + $0x440] sm:$0xff]
                %334 = vst [vmem:[%s196 + $0x220] sm:$0xff] %v333
                %v335 = vld [vmem:[%s195 + $0x448] sm:$0xff]
                %336 = vst [vmem:[%s196 + $0x228] sm:$0xff] %v335
                %v337 = vld [vmem:[%s195 + $0x450] sm:$0xff]
                %338 = vst [vmem:[%s196 + $0x230] sm:$0xff] %v337
                %v339 = vld [vmem:[%s195 + $0x458] sm:$0xff]
                %340 = vst [vmem:[%s196 + $0x238] sm:$0xff] %v339
                %v341 = vld [vmem:[%s195 + $0x480] sm:$0xff]
                %342 = vst [vmem:[%s196 + $0x240] sm:$0xff] %v341
                %v343 = vld [vmem:[%s195 + $0x488] sm:$0xff]
                %344 = vst [vmem:[%s196 + $0x248] sm:$0xff] %v343
                %v345 = vld [vmem:[%s195 + $0x490] sm:$0xff]
                %346 = vst [vmem:[%s196 + $0x250] sm:$0xff] %v345
                %v347 = vld [vmem:[%s195 + $0x498] sm:$0xff]
                %348 = vst [vmem:[%s196 + $0x258] sm:$0xff] %v347
                %v349 = vld [vmem:[%s195 + $0x4c0] sm:$0xff]
                %350 = vst [vmem:[%s196 + $0x260] sm:$0xff] %v349
                %v351 = vld [vmem:[%s195 + $0x4c8] sm:$0xff]
                %352 = vst [vmem:[%s196 + $0x268] sm:$0xff] %v351
                %v353 = vld [vmem:[%s195 + $0x4d0] sm:$0xff]
                %354 = vst [vmem:[%s196 + $0x270] sm:$0xff] %v353
                %v355 = vld [vmem:[%s195 + $0x4d8] sm:$0xff]
                %356 = vst [vmem:[%s196 + $0x278] sm:$0xff] %v355
                %v357 = vld [vmem:[%s195 + $0x500] sm:$0xff]
                %358 = vst [vmem:[%s196 + $0x280] sm:$0xff] %v357
                %v359 = vld [vmem:[%s195 + $0x508] sm:$0xff]
                %360 = vst [vmem:[%s196 + $0x288] sm:$0xff] %v359
                %v361 = vld [vmem:[%s195 + $0x510] sm:$0xff]
                %362 = vst [vmem:[%s196 + $0x290] sm:$0xff] %v361
                %v363 = vld [vmem:[%s195 + $0x518] sm:$0xff]
                %364 = vst [vmem:[%s196 + $0x298] sm:$0xff] %v363
                %v365 = vld [vmem:[%s195 + $0x540] sm:$0xff]
                %366 = vst [vmem:[%s196 + $0x2a0] sm:$0xff] %v365
                %v367 = vld [vmem:[%s195 + $0x548] sm:$0xff]
                %368 = vst [vmem:[%s196 + $0x2a8] sm:$0xff] %v367
                %v369 = vld [vmem:[%s195 + $0x550] sm:$0xff]
                %370 = vst [vmem:[%s196 + $0x2b0] sm:$0xff] %v369
                %v371 = vld [vmem:[%s195 + $0x558] sm:$0xff]
                %372 = vst [vmem:[%s196 + $0x2b8] sm:$0xff] %v371
                %v373 = vld [vmem:[%s195 + $0x580] sm:$0xff]
                %374 = vst [vmem:[%s196 + $0x2c0] sm:$0xff] %v373
                %v375 = vld [vmem:[%s195 + $0x588] sm:$0xff]
                %376 = vst [vmem:[%s196 + $0x2c8] sm:$0xff] %v375
                %v377 = vld [vmem:[%s195 + $0x590] sm:$0xff]
                %378 = vst [vmem:[%s196 + $0x2d0] sm:$0xff] %v377
                %v379 = vld [vmem:[%s195 + $0x598] sm:$0xff]
                %380 = vst [vmem:[%s196 + $0x2d8] sm:$0xff] %v379
                %v381 = vld [vmem:[%s195 + $0x5c0] sm:$0xff]
                %382 = vst [vmem:[%s196 + $0x2e0] sm:$0xff] %v381
                %v383 = vld [vmem:[%s195 + $0x5c8] sm:$0xff]
                %384 = vst [vmem:[%s196 + $0x2e8] sm:$0xff] %v383
                %v385 = vld [vmem:[%s195 + $0x5d0] sm:$0xff]
                %386 = vst [vmem:[%s196 + $0x2f0] sm:$0xff] %v385
                %v387 = vld [vmem:[%s195 + $0x5d8] sm:$0xff]
                %388 = vst [vmem:[%s196 + $0x2f8] sm:$0xff] %v387
                %v389 = vld [vmem:[%s195 + $0x600] sm:$0xff]
                %390 = vst [vmem:[%s196 + $0x300] sm:$0xff] %v389
                %v391 = vld [vmem:[%s195 + $0x608] sm:$0xff]
                %392 = vst [vmem:[%s196 + $0x308] sm:$0xff] %v391
                %v393 = vld [vmem:[%s195 + $0x610] sm:$0xff]
                %394 = vst [vmem:[%s196 + $0x310] sm:$0xff] %v393
                %v395 = vld [vmem:[%s195 + $0x618] sm:$0xff]
                %396 = vst [vmem:[%s196 + $0x318] sm:$0xff] %v395
                %v397 = vld [vmem:[%s195 + $0x640] sm:$0xff]
                %398 = vst [vmem:[%s196 + $0x320] sm:$0xff] %v397
                %v399 = vld [vmem:[%s195 + $0x648] sm:$0xff]
                %400 = vst [vmem:[%s196 + $0x328] sm:$0xff] %v399
                %v401 = vld [vmem:[%s195 + $0x650] sm:$0xff]
                %402 = vst [vmem:[%s196 + $0x330] sm:$0xff] %v401
                %v403 = vld [vmem:[%s195 + $0x658] sm:$0xff]
                %404 = vst [vmem:[%s196 + $0x338] sm:$0xff] %v403
                %v405 = vld [vmem:[%s195 + $0x680] sm:$0xff]
                %406 = vst [vmem:[%s196 + $0x340] sm:$0xff] %v405
                %v407 = vld [vmem:[%s195 + $0x688] sm:$0xff]
                %408 = vst [vmem:[%s196 + $0x348] sm:$0xff] %v407
                %v409 = vld [vmem:[%s195 + $0x690] sm:$0xff]
                %410 = vst [vmem:[%s196 + $0x350] sm:$0xff] %v409
                %v411 = vld [vmem:[%s195 + $0x698] sm:$0xff]
                %412 = vst [vmem:[%s196 + $0x358] sm:$0xff] %v411
                %v413 = vld [vmem:[%s195 + $0x6c0] sm:$0xff]
                %414 = vst [vmem:[%s196 + $0x360] sm:$0xff] %v413
                %v415 = vld [vmem:[%s195 + $0x6c8] sm:$0xff]
                %416 = vst [vmem:[%s196 + $0x368] sm:$0xff] %v415
                %v417 = vld [vmem:[%s195 + $0x6d0] sm:$0xff]
                %418 = vst [vmem:[%s196 + $0x370] sm:$0xff] %v417
                %v419 = vld [vmem:[%s195 + $0x6d8] sm:$0xff]
                %420 = vst [vmem:[%s196 + $0x378] sm:$0xff] %v419
                %v421 = vld [vmem:[%s195 + $0x700] sm:$0xff]
                %422 = vst [vmem:[%s196 + $0x380] sm:$0xff] %v421
                %v423 = vld [vmem:[%s195 + $0x708] sm:$0xff]
                %424 = vst [vmem:[%s196 + $0x388] sm:$0xff] %v423
                %v425 = vld [vmem:[%s195 + $0x710] sm:$0xff]
                %426 = vst [vmem:[%s196 + $0x390] sm:$0xff] %v425
                %v427 = vld [vmem:[%s195 + $0x718] sm:$0xff]
                %428 = vst [vmem:[%s196 + $0x398] sm:$0xff] %v427
                %v429 = vld [vmem:[%s195 + $0x740] sm:$0xff]
                %430 = vst [vmem:[%s196 + $0x3a0] sm:$0xff] %v429
                %v431 = vld [vmem:[%s195 + $0x748] sm:$0xff]
                %432 = vst [vmem:[%s196 + $0x3a8] sm:$0xff] %v431
                %v433 = vld [vmem:[%s195 + $0x750] sm:$0xff]
                %434 = vst [vmem:[%s196 + $0x3b0] sm:$0xff] %v433
                %v435 = vld [vmem:[%s195 + $0x758] sm:$0xff]
                %436 = vst [vmem:[%s196 + $0x3b8] sm:$0xff] %v435
                %v437 = vld [vmem:[%s195 + $0x780] sm:$0xff]
                %438 = vst [vmem:[%s196 + $0x3c0] sm:$0xff] %v437
                %v439 = vld [vmem:[%s195 + $0x788] sm:$0xff]
                %440 = vst [vmem:[%s196 + $0x3c8] sm:$0xff] %v439
                %v441 = vld [vmem:[%s195 + $0x790] sm:$0xff]
                %442 = vst [vmem:[%s196 + $0x3d0] sm:$0xff] %v441
                %v443 = vld [vmem:[%s195 + $0x798] sm:$0xff]
                %444 = vst [vmem:[%s196 + $0x3d8] sm:$0xff] %v443
                %v445 = vld [vmem:[%s195 + $0x7c0] sm:$0xff]
                %446 = vst [vmem:[%s196 + $0x3e0] sm:$0xff] %v445
                %v447 = vld [vmem:[%s195 + $0x7c8] sm:$0xff]
                %448 = vst [vmem:[%s196 + $0x3e8] sm:$0xff] %v447
                %v449 = vld [vmem:[%s195 + $0x7d0] sm:$0xff]
                %450 = vst [vmem:[%s196 + $0x3f0] sm:$0xff] %v449
                %v451 = vld [vmem:[%s195 + $0x7d8] sm:$0xff]
                %452 = vst [vmem:[%s196 + $0x3f8] sm:$0xff] %v451
              $region37: #{qwen2_5_vision_attention.4} parent=31 // loop_footer
                %s194 = sadd.s32 1, %s190
              $region38: #{qwen2_5_vision_attention.4} parent=31 // loop_footer_branch
                %189 = sbr.rel target = $region34
              $region39: #{qwen2_5_vision_attention.4} parent=31 // loop_exit
                _
            $region32: #{qwen2_5_vision_attention.4} parent=27 // pred_fallthru
              _
            // Predicated region
            $region40: #{qwen2_5_vision_attention.4} parent=27 // pred_check
              _
            $region41: #{qwen2_5_vision_attention.4} parent=27 // pred_check_branch
              %454 = sbr.rel target = $region43
            $region42: #{qwen2_5_vision_attention.4} parent=27 // pred_region
              _
            $region43: #{qwen2_5_vision_attention.4} parent=27 // pred_fallthru
              _
          $region28: #{qwen2_5_vision_attention.4} parent=23 // pred_fallthru
            _
          %455 = vnop
        $region24: #{qwen2_5_vision_attention.4} parent=19 // pred_fallthru
          _
        // Predicated region
        $region44: #{qwen2_5_vision_attention.4} parent=19 // pred_check
          %p456 = pneg %p104
        $region45: #{qwen2_5_vision_attention.4} parent=19 // pred_check_branch
          %458 = sbr.rel (%p456) target = $region47
        $region46: #{qwen2_5_vision_attention.4} parent=19 // pred_region
          %s459 = smul.u32 4, %s17
          %p460 = scmp.lt.s32.totalorder %s459, 7
          %s461 = scalar_select %p460, %s459, 7
          %s462 = scalar_lea.vmem %s2, %s461
          %s463 = smul.u32 4, %s17
        $region47: #{qwen2_5_vision_attention.4} parent=19 // pred_fallthru
          _
      $region20: #{qwen2_5_vision_attention.4} parent=5 // pred_fallthru
        _
      %p464 = scmp.le.s32.totalorder 1, %s9
      %p465 = scmp.lt.s32.totalorder %s9, 3
      %p466 = pnand %p464, %p465
      %p467 = pneg %p466
      // Predicated region
      $region48: #{qwen2_5_vision_attention.4} parent=5 // pred_check
        _
      $region49: #{qwen2_5_vision_attention.4} parent=5 // pred_check_branch
        %469 = sbr.rel (%p466) target = $region51
      $region50: #{qwen2_5_vision_attention.4} parent=5 // pred_region
        %s470 = ssub.s32 %s9, 1
        %s471 = sand.u32 %s71, 1
        %s472 = sand.u32 %s71, 1
        %s473 = smul.addr %s472, 1024
        %s474 = scalar_lea.vmem [#allocation3], %s473
        // Predicated region
        $region52: #{qwen2_5_vision_attention.4} parent=50 // pred_check
          %p475 = pneg %p84
        $region53: #{qwen2_5_vision_attention.4} parent=50 // pred_check_branch
          %477 = sbr.rel (%p475) target = $region55
        $region54: #{qwen2_5_vision_attention.4} parent=50 // pred_region
          _
        $region55: #{qwen2_5_vision_attention.4} parent=50 // pred_fallthru
          _
        %s478 = smul.u32 32, %s19
        %s479 = smul.u32 2, %s21
        %p480 = scmp.lt.s32.totalorder %s478, 31
        %s481 = scalar_select %p480, %s478, 31
        %p482 = scmp.lt.s32.totalorder %s479, 1
        %s483 = scalar_select %p482, %s479, 1
        %s484 = smul.addr %s481, 2
        %s485 = sadd.s32 %s483, %s484
        %s486 = smul.addr %s485, 8
        %s487 = scalar_lea.vmem %s0, %s486
        %p488 = pneg %p56
        %p489 = pneg %p53
        %s490 = sand.u32 %s71, 1
        %s491 = sand.u32 %s71, 1
        %s492 = smul.addr %s491, 1024
        %s493 = scalar_lea.vmem [#allocation3], %s492
        %p494 = pneg %p84
        %p495 = pneg %p81
        %s496 = smul.u32 4, %s20
        %p497 = scmp.lt.s32.totalorder %s496, 7
        %s498 = scalar_select %p497, %s496, 7
        %s499 = scalar_lea.vmem %s2, %s498
        %p500 = pneg %p110
        %p501 = pneg %p107
        %p502 = pneg %p138
        %p503 = pneg %p135
        %s504 = sand.u32 %s125, 1
        %s505 = sand.u32 %s125, 1
        %s506 = smul.addr %s505, 1024
        %s507 = scalar_lea.vmem [#allocation4], %s506
        %s508 = smul.u32 32, %s19
        %s509 = smul.u32 2, %s21
        %p510 = scmp.lt.s32.totalorder %s508, 31
        %s511 = scalar_select %p510, %s508, 31
        %p512 = scmp.lt.s32.totalorder %s509, 1
        %s513 = scalar_select %p512, %s509, 1
        %s514 = smul.addr %s511, 2
        %s515 = sadd.s32 %s513, %s514
        %s516 = smul.addr %s515, 8
        %s517 = scalar_lea.vmem %s0, %s516
        %s518 = smul.u32 32, %s19
        %s519 = smul.u32 2, %s21
        %s520 = smul.u32 32, %s21
        %s521 = smul.u32 4, %s20
        %s522 = smul.u32 4, %s20
        %p523 = scmp.lt.s32.totalorder %s522, 7
        %s524 = scalar_select %p523, %s522, 7
        %s525 = scalar_lea.vmem %s2, %s524
        %s526 = smul.u32 4, %s20
        %s527 = smul.u32 32, %s19
        %s528 = smul.u32 4, %s20
        %p529 = scmp.eq.s32.totalorder %s21, 0
        // Predicated region
        $region56: #{qwen2_5_vision_attention.4} parent=50 // pred_check
          %p530 = pneg %p529
        $region57: #{qwen2_5_vision_attention.4} parent=50 // pred_check_branch
          %532 = sbr.rel (%p530) target = $region59
        $region58: #{qwen2_5_vision_attention.4} parent=50 // pred_region
          %533 = vst [vmem:[#allocation2] sm:$0xff] 0.0
          %534 = vst [vmem:[#allocation2 + $0x8] sm:$0xff] 0.0
          %535 = vst [vmem:[#allocation2 + $0x10] sm:$0xff] 0.0
          %536 = vst [vmem:[#allocation2 + $0x18] sm:$0xff] 0.0
          %537 = vst [vmem:[#allocation2 + $0x20] sm:$0xff] 0.0
          %538 = vst [vmem:[#allocation2 + $0x28] sm:$0xff] 0.0
          %539 = vst [vmem:[#allocation2 + $0x30] sm:$0xff] 0.0
          %540 = vst [vmem:[#allocation2 + $0x38] sm:$0xff] 0.0
          %541 = vst [vmem:[#allocation2 + $0x40] sm:$0xff] 0.0
          %542 = vst [vmem:[#allocation2 + $0x48] sm:$0xff] 0.0
          %543 = vst [vmem:[#allocation2 + $0x50] sm:$0xff] 0.0
          %544 = vst [vmem:[#allocation2 + $0x58] sm:$0xff] 0.0
          %545 = vst [vmem:[#allocation2 + $0x60] sm:$0xff] 0.0
          %546 = vst [vmem:[#allocation2 + $0x68] sm:$0xff] 0.0
          %547 = vst [vmem:[#allocation2 + $0x70] sm:$0xff] 0.0
          %548 = vst [vmem:[#allocation2 + $0x78] sm:$0xff] 0.0
          %549 = vst [vmem:[#allocation2 + $0x80] sm:$0xff] 0.0
          %550 = vst [vmem:[#allocation2 + $0x88] sm:$0xff] 0.0
          %551 = vst [vmem:[#allocation2 + $0x90] sm:$0xff] 0.0
          %552 = vst [vmem:[#allocation2 + $0x98] sm:$0xff] 0.0
          %553 = vst [vmem:[#allocation2 + $0xa0] sm:$0xff] 0.0
          %554 = vst [vmem:[#allocation2 + $0xa8] sm:$0xff] 0.0
          %555 = vst [vmem:[#allocation2 + $0xb0] sm:$0xff] 0.0
          %556 = vst [vmem:[#allocation2 + $0xb8] sm:$0xff] 0.0
          %557 = vst [vmem:[#allocation2 + $0xc0] sm:$0xff] 0.0
          %558 = vst [vmem:[#allocation2 + $0xc8] sm:$0xff] 0.0
          %559 = vst [vmem:[#allocation2 + $0xd0] sm:$0xff] 0.0
          %560 = vst [vmem:[#allocation2 + $0xd8] sm:$0xff] 0.0
          %561 = vst [vmem:[#allocation2 + $0xe0] sm:$0xff] 0.0
          %562 = vst [vmem:[#allocation2 + $0xe8] sm:$0xff] 0.0
          %563 = vst [vmem:[#allocation2 + $0xf0] sm:$0xff] 0.0
          %564 = vst [vmem:[#allocation2 + $0xf8] sm:$0xff] 0.0
          %565 = vst [vmem:[#allocation2 + $0x100] sm:$0xff] 0.0
          %566 = vst [vmem:[#allocation2 + $0x108] sm:$0xff] 0.0
          %567 = vst [vmem:[#allocation2 + $0x110] sm:$0xff] 0.0
          %568 = vst [vmem:[#allocation2 + $0x118] sm:$0xff] 0.0
          %569 = vst [vmem:[#allocation2 + $0x120] sm:$0xff] 0.0
          %570 = vst [vmem:[#allocation2 + $0x128] sm:$0xff] 0.0
          %571 = vst [vmem:[#allocation2 + $0x130] sm:$0xff] 0.0
          %572 = vst [vmem:[#allocation2 + $0x138] sm:$0xff] 0.0
          %573 = vst [vmem:[#allocation2 + $0x140] sm:$0xff] 0.0
          %574 = vst [vmem:[#allocation2 + $0x148] sm:$0xff] 0.0
          %575 = vst [vmem:[#allocation2 + $0x150] sm:$0xff] 0.0
          %576 = vst [vmem:[#allocation2 + $0x158] sm:$0xff] 0.0
          %577 = vst [vmem:[#allocation2 + $0x160] sm:$0xff] 0.0
          %578 = vst [vmem:[#allocation2 + $0x168] sm:$0xff] 0.0
          %579 = vst [vmem:[#allocation2 + $0x170] sm:$0xff] 0.0
          %580 = vst [vmem:[#allocation2 + $0x178] sm:$0xff] 0.0
          %581 = vst [vmem:[#allocation2 + $0x180] sm:$0xff] 0.0
          %582 = vst [vmem:[#allocation2 + $0x188] sm:$0xff] 0.0
          %583 = vst [vmem:[#allocation2 + $0x190] sm:$0xff] 0.0
          %584 = vst [vmem:[#allocation2 + $0x198] sm:$0xff] 0.0
          %585 = vst [vmem:[#allocation2 + $0x1a0] sm:$0xff] 0.0
          %586 = vst [vmem:[#allocation2 + $0x1a8] sm:$0xff] 0.0
          %587 = vst [vmem:[#allocation2 + $0x1b0] sm:$0xff] 0.0
          %588 = vst [vmem:[#allocation2 + $0x1b8] sm:$0xff] 0.0
          %589 = vst [vmem:[#allocation2 + $0x1c0] sm:$0xff] 0.0
          %590 = vst [vmem:[#allocation2 + $0x1c8] sm:$0xff] 0.0
          %591 = vst [vmem:[#allocation2 + $0x1d0] sm:$0xff] 0.0
          %592 = vst [vmem:[#allocation2 + $0x1d8] sm:$0xff] 0.0
          %593 = vst [vmem:[#allocation2 + $0x1e0] sm:$0xff] 0.0
          %594 = vst [vmem:[#allocation2 + $0x1e8] sm:$0xff] 0.0
          %595 = vst [vmem:[#allocation2 + $0x1f0] sm:$0xff] 0.0
          %596 = vst [vmem:[#allocation2 + $0x1f8] sm:$0xff] 0.0
          %597 = vst [vmem:[#allocation2 + $0x200] sm:$0xff] 0.0
          %598 = vst [vmem:[#allocation2 + $0x208] sm:$0xff] 0.0
          %599 = vst [vmem:[#allocation2 + $0x210] sm:$0xff] 0.0
          %600 = vst [vmem:[#allocation2 + $0x218] sm:$0xff] 0.0
          %601 = vst [vmem:[#allocation2 + $0x220] sm:$0xff] 0.0
          %602 = vst [vmem:[#allocation2 + $0x228] sm:$0xff] 0.0
          %603 = vst [vmem:[#allocation2 + $0x230] sm:$0xff] 0.0
          %604 = vst [vmem:[#allocation2 + $0x238] sm:$0xff] 0.0
          %605 = vst [vmem:[#allocation2 + $0x240] sm:$0xff] 0.0
          %606 = vst [vmem:[#allocation2 + $0x248] sm:$0xff] 0.0
          %607 = vst [vmem:[#allocation2 + $0x250] sm:$0xff] 0.0
          %608 = vst [vmem:[#allocation2 + $0x258] sm:$0xff] 0.0
          %609 = vst [vmem:[#allocation2 + $0x260] sm:$0xff] 0.0
          %610 = vst [vmem:[#allocation2 + $0x268] sm:$0xff] 0.0
          %611 = vst [vmem:[#allocation2 + $0x270] sm:$0xff] 0.0
          %612 = vst [vmem:[#allocation2 + $0x278] sm:$0xff] 0.0
          %613 = vst [vmem:[#allocation2 + $0x280] sm:$0xff] 0.0
          %614 = vst [vmem:[#allocation2 + $0x288] sm:$0xff] 0.0
          %615 = vst [vmem:[#allocation2 + $0x290] sm:$0xff] 0.0
          %616 = vst [vmem:[#allocation2 + $0x298] sm:$0xff] 0.0
          %617 = vst [vmem:[#allocation2 + $0x2a0] sm:$0xff] 0.0
          %618 = vst [vmem:[#allocation2 + $0x2a8] sm:$0xff] 0.0
          %619 = vst [vmem:[#allocation2 + $0x2b0] sm:$0xff] 0.0
          %620 = vst [vmem:[#allocation2 + $0x2b8] sm:$0xff] 0.0
          %621 = vst [vmem:[#allocation2 + $0x2c0] sm:$0xff] 0.0
          %622 = vst [vmem:[#allocation2 + $0x2c8] sm:$0xff] 0.0
          %623 = vst [vmem:[#allocation2 + $0x2d0] sm:$0xff] 0.0
          %624 = vst [vmem:[#allocation2 + $0x2d8] sm:$0xff] 0.0
          %625 = vst [vmem:[#allocation2 + $0x2e0] sm:$0xff] 0.0
          %626 = vst [vmem:[#allocation2 + $0x2e8] sm:$0xff] 0.0
          %627 = vst [vmem:[#allocation2 + $0x2f0] sm:$0xff] 0.0
          %628 = vst [vmem:[#allocation2 + $0x2f8] sm:$0xff] 0.0
          %629 = vst [vmem:[#allocation2 + $0x300] sm:$0xff] 0.0
          %630 = vst [vmem:[#allocation2 + $0x308] sm:$0xff] 0.0
          %631 = vst [vmem:[#allocation2 + $0x310] sm:$0xff] 0.0
          %632 = vst [vmem:[#allocation2 + $0x318] sm:$0xff] 0.0
          %633 = vst [vmem:[#allocation2 + $0x320] sm:$0xff] 0.0
          %634 = vst [vmem:[#allocation2 + $0x328] sm:$0xff] 0.0
          %635 = vst [vmem:[#allocation2 + $0x330] sm:$0xff] 0.0
          %636 = vst [vmem:[#allocation2 + $0x338] sm:$0xff] 0.0
          %637 = vst [vmem:[#allocation2 + $0x340] sm:$0xff] 0.0
          %638 = vst [vmem:[#allocation2 + $0x348] sm:$0xff] 0.0
          %639 = vst [vmem:[#allocation2 + $0x350] sm:$0xff] 0.0
          %640 = vst [vmem:[#allocation2 + $0x358] sm:$0xff] 0.0
          %641 = vst [vmem:[#allocation2 + $0x360] sm:$0xff] 0.0
          %642 = vst [vmem:[#allocation2 + $0x368] sm:$0xff] 0.0
          %643 = vst [vmem:[#allocation2 + $0x370] sm:$0xff] 0.0
          %644 = vst [vmem:[#allocation2 + $0x378] sm:$0xff] 0.0
          %645 = vst [vmem:[#allocation2 + $0x380] sm:$0xff] 0.0
          %646 = vst [vmem:[#allocation2 + $0x388] sm:$0xff] 0.0
          %647 = vst [vmem:[#allocation2 + $0x390] sm:$0xff] 0.0
          %648 = vst [vmem:[#allocation2 + $0x398] sm:$0xff] 0.0
          %649 = vst [vmem:[#allocation2 + $0x3a0] sm:$0xff] 0.0
          %650 = vst [vmem:[#allocation2 + $0x3a8] sm:$0xff] 0.0
          %651 = vst [vmem:[#allocation2 + $0x3b0] sm:$0xff] 0.0
          %652 = vst [vmem:[#allocation2 + $0x3b8] sm:$0xff] 0.0
          %653 = vst [vmem:[#allocation2 + $0x3c0] sm:$0xff] 0.0
          %654 = vst [vmem:[#allocation2 + $0x3c8] sm:$0xff] 0.0
          %655 = vst [vmem:[#allocation2 + $0x3d0] sm:$0xff] 0.0
          %656 = vst [vmem:[#allocation2 + $0x3d8] sm:$0xff] 0.0
          %657 = vst [vmem:[#allocation2 + $0x3e0] sm:$0xff] 0.0
          %658 = vst [vmem:[#allocation2 + $0x3e8] sm:$0xff] 0.0
          %659 = vst [vmem:[#allocation2 + $0x3f0] sm:$0xff] 0.0
          %660 = vst [vmem:[#allocation2 + $0x3f8] sm:$0xff] 0.0
        $region59: #{qwen2_5_vision_attention.4} parent=50 // pred_fallthru
          _
        %v661 = vld [vmem:[#allocation2] sm:$0xff]
        %v662 = vld [vmem:[#allocation2 + $0x8] sm:$0xff]
        %v663 = vld [vmem:[#allocation2 + $0x10] sm:$0xff]
        %v664 = vld [vmem:[#allocation2 + $0x18] sm:$0xff]
        %v665 = vld [vmem:[#allocation2 + $0x20] sm:$0xff]
        %v666 = vld [vmem:[#allocation2 + $0x28] sm:$0xff]
        %v667 = vld [vmem:[#allocation2 + $0x30] sm:$0xff]
        %v668 = vld [vmem:[#allocation2 + $0x38] sm:$0xff]
        %v669 = vld [vmem:[#allocation2 + $0x40] sm:$0xff]
        %v670 = vld [vmem:[#allocation2 + $0x48] sm:$0xff]
        %v671 = vld [vmem:[#allocation2 + $0x50] sm:$0xff]
        %v672 = vld [vmem:[#allocation2 + $0x58] sm:$0xff]
        %v673 = vld [vmem:[#allocation2 + $0x60] sm:$0xff]
        %v674 = vld [vmem:[#allocation2 + $0x68] sm:$0xff]
        %v675 = vld [vmem:[#allocation2 + $0x70] sm:$0xff]
        %v676 = vld [vmem:[#allocation2 + $0x78] sm:$0xff]
        %v677 = vld [vmem:[#allocation2 + $0x80] sm:$0xff]
        %v678 = vld [vmem:[#allocation2 + $0x88] sm:$0xff]
        %v679 = vld [vmem:[#allocation2 + $0x90] sm:$0xff]
        %v680 = vld [vmem:[#allocation2 + $0x98] sm:$0xff]
        %v681 = vld [vmem:[#allocation2 + $0xa0] sm:$0xff]
        %v682 = vld [vmem:[#allocation2 + $0xa8] sm:$0xff]
        %v683 = vld [vmem:[#allocation2 + $0xb0] sm:$0xff]
        %v684 = vld [vmem:[#allocation2 + $0xb8] sm:$0xff]
        %v685 = vld [vmem:[#allocation2 + $0xc0] sm:$0xff]
        %v686 = vld [vmem:[#allocation2 + $0xc8] sm:$0xff]
        %v687 = vld [vmem:[#allocation2 + $0xd0] sm:$0xff]
        %v688 = vld [vmem:[#allocation2 + $0xd8] sm:$0xff]
        %v689 = vld [vmem:[#allocation2 + $0xe0] sm:$0xff]
        %v690 = vld [vmem:[#allocation2 + $0xe8] sm:$0xff]
        %v691 = vld [vmem:[#allocation2 + $0xf0] sm:$0xff]
        %v692 = vld [vmem:[#allocation2 + $0xf8] sm:$0xff]
        %v693 = vld [vmem:[#allocation2 + $0x100] sm:$0xff]
        %v694 = vld [vmem:[#allocation2 + $0x108] sm:$0xff]
        %v695 = vld [vmem:[#allocation2 + $0x110] sm:$0xff]
        %v696 = vld [vmem:[#allocation2 + $0x118] sm:$0xff]
        %v697 = vld [vmem:[#allocation2 + $0x120] sm:$0xff]
        %v698 = vld [vmem:[#allocation2 + $0x128] sm:$0xff]
        %v699 = vld [vmem:[#allocation2 + $0x130] sm:$0xff]
        %v700 = vld [vmem:[#allocation2 + $0x138] sm:$0xff]
        %v701 = vld [vmem:[#allocation2 + $0x140] sm:$0xff]
        %v702 = vld [vmem:[#allocation2 + $0x148] sm:$0xff]
        %v703 = vld [vmem:[#allocation2 + $0x150] sm:$0xff]
        %v704 = vld [vmem:[#allocation2 + $0x158] sm:$0xff]
        %v705 = vld [vmem:[#allocation2 + $0x160] sm:$0xff]
        %v706 = vld [vmem:[#allocation2 + $0x168] sm:$0xff]
        %v707 = vld [vmem:[#allocation2 + $0x170] sm:$0xff]
        %v708 = vld [vmem:[#allocation2 + $0x178] sm:$0xff]
        %v709 = vld [vmem:[#allocation2 + $0x180] sm:$0xff]
        %v710 = vld [vmem:[#allocation2 + $0x188] sm:$0xff]
        %v711 = vld [vmem:[#allocation2 + $0x190] sm:$0xff]
        %v712 = vld [vmem:[#allocation2 + $0x198] sm:$0xff]
        %v713 = vld [vmem:[#allocation2 + $0x1a0] sm:$0xff]
        %v714 = vld [vmem:[#allocation2 + $0x1a8] sm:$0xff]
        %v715 = vld [vmem:[#allocation2 + $0x1b0] sm:$0xff]
        %v716 = vld [vmem:[#allocation2 + $0x1b8] sm:$0xff]
        %v717 = vld [vmem:[#allocation2 + $0x1c0] sm:$0xff]
        %v718 = vld [vmem:[#allocation2 + $0x1c8] sm:$0xff]
        %v719 = vld [vmem:[#allocation2 + $0x1d0] sm:$0xff]
        %v720 = vld [vmem:[#allocation2 + $0x1d8] sm:$0xff]
        %v721 = vld [vmem:[#allocation2 + $0x1e0] sm:$0xff]
        %v722 = vld [vmem:[#allocation2 + $0x1e8] sm:$0xff]
        %v723 = vld [vmem:[#allocation2 + $0x1f0] sm:$0xff]
        %v724 = vld [vmem:[#allocation2 + $0x1f8] sm:$0xff]
        %v725 = vld [vmem:[#allocation2 + $0x200] sm:$0xff]
        %v726 = vld [vmem:[#allocation2 + $0x208] sm:$0xff]
        %v727 = vld [vmem:[#allocation2 + $0x210] sm:$0xff]
        %v728 = vld [vmem:[#allocation2 + $0x218] sm:$0xff]
        %v729 = vld [vmem:[#allocation2 + $0x220] sm:$0xff]
        %v730 = vld [vmem:[#allocation2 + $0x228] sm:$0xff]
        %v731 = vld [vmem:[#allocation2 + $0x230] sm:$0xff]
        %v732 = vld [vmem:[#allocation2 + $0x238] sm:$0xff]
        %v733 = vld [vmem:[#allocation2 + $0x240] sm:$0xff]
        %v734 = vld [vmem:[#allocation2 + $0x248] sm:$0xff]
        %v735 = vld [vmem:[#allocation2 + $0x250] sm:$0xff]
        %v736 = vld [vmem:[#allocation2 + $0x258] sm:$0xff]
        %v737 = vld [vmem:[#allocation2 + $0x260] sm:$0xff]
        %v738 = vld [vmem:[#allocation2 + $0x268] sm:$0xff]
        %v739 = vld [vmem:[#allocation2 + $0x270] sm:$0xff]
        %v740 = vld [vmem:[#allocation2 + $0x278] sm:$0xff]
        %v741 = vld [vmem:[#allocation2 + $0x280] sm:$0xff]
        %v742 = vld [vmem:[#allocation2 + $0x288] sm:$0xff]
        %v743 = vld [vmem:[#allocation2 + $0x290] sm:$0xff]
        %v744 = vld [vmem:[#allocation2 + $0x298] sm:$0xff]
        %v745 = vld [vmem:[#allocation2 + $0x2a0] sm:$0xff]
        %v746 = vld [vmem:[#allocation2 + $0x2a8] sm:$0xff]
        %v747 = vld [vmem:[#allocation2 + $0x2b0] sm:$0xff]
        %v748 = vld [vmem:[#allocation2 + $0x2b8] sm:$0xff]
        %v749 = vld [vmem:[#allocation2 + $0x2c0] sm:$0xff]
        %v750 = vld [vmem:[#allocation2 + $0x2c8] sm:$0xff]
        %v751 = vld [vmem:[#allocation2 + $0x2d0] sm:$0xff]
        %v752 = vld [vmem:[#allocation2 + $0x2d8] sm:$0xff]
        %v753 = vld [vmem:[#allocation2 + $0x2e0] sm:$0xff]
        %v754 = vld [vmem:[#allocation2 + $0x2e8] sm:$0xff]
        %v755 = vld [vmem:[#allocation2 + $0x2f0] sm:$0xff]
        %v756 = vld [vmem:[#allocation2 + $0x2f8] sm:$0xff]
        %v757 = vld [vmem:[#allocation2 + $0x300] sm:$0xff]
        %v758 = vld [vmem:[#allocation2 + $0x308] sm:$0xff]
        %v759 = vld [vmem:[#allocation2 + $0x310] sm:$0xff]
        %v760 = vld [vmem:[#allocation2 + $0x318] sm:$0xff]
        %v761 = vld [vmem:[#allocation2 + $0x320] sm:$0xff]
        %v762 = vld [vmem:[#allocation2 + $0x328] sm:$0xff]
        %v763 = vld [vmem:[#allocation2 + $0x330] sm:$0xff]
        %v764 = vld [vmem:[#allocation2 + $0x338] sm:$0xff]
        %v765 = vld [vmem:[#allocation2 + $0x340] sm:$0xff]
        %v766 = vld [vmem:[#allocation2 + $0x348] sm:$0xff]
        %v767 = vld [vmem:[#allocation2 + $0x350] sm:$0xff]
        %v768 = vld [vmem:[#allocation2 + $0x358] sm:$0xff]
        %v769 = vld [vmem:[#allocation2 + $0x360] sm:$0xff]
        %v770 = vld [vmem:[#allocation2 + $0x368] sm:$0xff]
        %v771 = vld [vmem:[#allocation2 + $0x370] sm:$0xff]
        %v772 = vld [vmem:[#allocation2 + $0x378] sm:$0xff]
        %v773 = vld [vmem:[#allocation2 + $0x380] sm:$0xff]
        %v774 = vld [vmem:[#allocation2 + $0x388] sm:$0xff]
        %v775 = vld [vmem:[#allocation2 + $0x390] sm:$0xff]
        %v776 = vld [vmem:[#allocation2 + $0x398] sm:$0xff]
        %v777 = vld [vmem:[#allocation2 + $0x3a0] sm:$0xff]
        %v778 = vld [vmem:[#allocation2 + $0x3a8] sm:$0xff]
        %v779 = vld [vmem:[#allocation2 + $0x3b0] sm:$0xff]
        %v780 = vld [vmem:[#allocation2 + $0x3b8] sm:$0xff]
        %v781 = vld [vmem:[#allocation2 + $0x3c0] sm:$0xff]
        %v782 = vld [vmem:[#allocation2 + $0x3c8] sm:$0xff]
        %v783 = vld [vmem:[#allocation2 + $0x3d0] sm:$0xff]
        %v784 = vld [vmem:[#allocation2 + $0x3d8] sm:$0xff]
        %v785 = vld [vmem:[#allocation2 + $0x3e0] sm:$0xff]
        %v786 = vld [vmem:[#allocation2 + $0x3e8] sm:$0xff]
        %v787 = vld [vmem:[#allocation2 + $0x3f0] sm:$0xff]
        %v788 = vld [vmem:[#allocation2 + $0x3f8] sm:$0xff]
        %v789 = vld [vmem:[%s517] sm:$0xff]
        %v790 = vld [vmem:[%s517 + $0x8] sm:$0xff]
        %v791 = vld [vmem:[%s517 + $0x10] sm:$0xff]
        %v792 = vld [vmem:[%s517 + $0x18] sm:$0xff]
        %v793 = vld [vmem:[%s517 + $0x20] sm:$0xff]
        %v794 = vld [vmem:[%s517 + $0x28] sm:$0xff]
        %v795 = vld [vmem:[%s517 + $0x30] sm:$0xff]
        %v796 = vld [vmem:[%s517 + $0x38] sm:$0xff]
        %v797 = vld [vmem:[%s517 + $0x40] sm:$0xff]
        %v798 = vld [vmem:[%s517 + $0x48] sm:$0xff]
        %v799 = vld [vmem:[%s517 + $0x50] sm:$0xff]
        %v800 = vld [vmem:[%s517 + $0x58] sm:$0xff]
        %v801 = vld [vmem:[%s517 + $0x60] sm:$0xff]
        %v802 = vld [vmem:[%s517 + $0x68] sm:$0xff]
        %v803 = vld [vmem:[%s517 + $0x70] sm:$0xff]
        %v804 = vld [vmem:[%s517 + $0x78] sm:$0xff]
        %v805 = vld [vmem:[%s517 + $0x80] sm:$0xff]
        %v806 = vld [vmem:[%s517 + $0x88] sm:$0xff]
        %v807 = vld [vmem:[%s517 + $0x90] sm:$0xff]
        %v808 = vld [vmem:[%s517 + $0x98] sm:$0xff]
        %v809 = vld [vmem:[%s517 + $0xa0] sm:$0xff]
        %v810 = vld [vmem:[%s517 + $0xa8] sm:$0xff]
        %v811 = vld [vmem:[%s517 + $0xb0] sm:$0xff]
        %v812 = vld [vmem:[%s517 + $0xb8] sm:$0xff]
        %v813 = vld [vmem:[%s517 + $0xc0] sm:$0xff]
        %v814 = vld [vmem:[%s517 + $0xc8] sm:$0xff]
        %v815 = vld [vmem:[%s517 + $0xd0] sm:$0xff]
        %v816 = vld [vmem:[%s517 + $0xd8] sm:$0xff]
        %v817 = vld [vmem:[%s517 + $0xe0] sm:$0xff]
        %v818 = vld [vmem:[%s517 + $0xe8] sm:$0xff]
        %v819 = vld [vmem:[%s517 + $0xf0] sm:$0xff]
        %v820 = vld [vmem:[%s517 + $0xf8] sm:$0xff]
        %v821 = vld [vmem:[%s517 + $0x100] sm:$0xff]
        %v822 = vld [vmem:[%s517 + $0x108] sm:$0xff]
        %v823 = vld [vmem:[%s517 + $0x110] sm:$0xff]
        %v824 = vld [vmem:[%s517 + $0x118] sm:$0xff]
        %v825 = vld [vmem:[%s517 + $0x120] sm:$0xff]
        %v826 = vld [vmem:[%s517 + $0x128] sm:$0xff]
        %v827 = vld [vmem:[%s517 + $0x130] sm:$0xff]
        %v828 = vld [vmem:[%s517 + $0x138] sm:$0xff]
        %v829 = vld [vmem:[%s517 + $0x140] sm:$0xff]
        %v830 = vld [vmem:[%s517 + $0x148] sm:$0xff]
        %v831 = vld [vmem:[%s517 + $0x150] sm:$0xff]
        %v832 = vld [vmem:[%s517 + $0x158] sm:$0xff]
        %v833 = vld [vmem:[%s517 + $0x160] sm:$0xff]
        %v834 = vld [vmem:[%s517 + $0x168] sm:$0xff]
        %v835 = vld [vmem:[%s517 + $0x170] sm:$0xff]
        %v836 = vld [vmem:[%s517 + $0x178] sm:$0xff]
        %v837 = vld [vmem:[%s517 + $0x180] sm:$0xff]
        %v838 = vld [vmem:[%s517 + $0x188] sm:$0xff]
        %v839 = vld [vmem:[%s517 + $0x190] sm:$0xff]
        %v840 = vld [vmem:[%s517 + $0x198] sm:$0xff]
        %v841 = vld [vmem:[%s517 + $0x1a0] sm:$0xff]
        %v842 = vld [vmem:[%s517 + $0x1a8] sm:$0xff]
        %v843 = vld [vmem:[%s517 + $0x1b0] sm:$0xff]
        %v844 = vld [vmem:[%s517 + $0x1b8] sm:$0xff]
        %v845 = vld [vmem:[%s517 + $0x1c0] sm:$0xff]
        %v846 = vld [vmem:[%s517 + $0x1c8] sm:$0xff]
        %v847 = vld [vmem:[%s517 + $0x1d0] sm:$0xff]
        %v848 = vld [vmem:[%s517 + $0x1d8] sm:$0xff]
        %v849 = vld [vmem:[%s517 + $0x1e0] sm:$0xff]
        %v850 = vld [vmem:[%s517 + $0x1e8] sm:$0xff]
        %v851 = vld [vmem:[%s517 + $0x1f0] sm:$0xff]
        %v852 = vld [vmem:[%s517 + $0x1f8] sm:$0xff]
        %v853 = vld [vmem:[%s474] sm:$0xff]
        %v854 = vld [vmem:[%s474 + $0x8] sm:$0xff]
        %v855 = vld [vmem:[%s474 + $0x10] sm:$0xff]
        %v856 = vld [vmem:[%s474 + $0x18] sm:$0xff]
        %v857 = vld [vmem:[%s474 + $0x20] sm:$0xff]
        %v858 = vld [vmem:[%s474 + $0x28] sm:$0xff]
        %v859 = vld [vmem:[%s474 + $0x30] sm:$0xff]
        %v860 = vld [vmem:[%s474 + $0x38] sm:$0xff]
        %v861 = vld [vmem:[%s474 + $0x40] sm:$0xff]
        %v862 = vld [vmem:[%s474 + $0x48] sm:$0xff]
        %v863 = vld [vmem:[%s474 + $0x50] sm:$0xff]
        %v864 = vld [vmem:[%s474 + $0x58] sm:$0xff]
        %v865 = vld [vmem:[%s474 + $0x60] sm:$0xff]
        %v866 = vld [vmem:[%s474 + $0x68] sm:$0xff]
        %v867 = vld [vmem:[%s474 + $0x70] sm:$0xff]
        %v868 = vld [vmem:[%s474 + $0x78] sm:$0xff]
        %v869 = vld [vmem:[%s474 + $0x80] sm:$0xff]
        %v870 = vld [vmem:[%s474 + $0x88] sm:$0xff]
        %v871 = vld [vmem:[%s474 + $0x90] sm:$0xff]
        %v872 = vld [vmem:[%s474 + $0x98] sm:$0xff]
        %v873 = vld [vmem:[%s474 + $0xa0] sm:$0xff]
        %v874 = vld [vmem:[%s474 + $0xa8] sm:$0xff]
        %v875 = vld [vmem:[%s474 + $0xb0] sm:$0xff]
        %v876 = vld [vmem:[%s474 + $0xb8] sm:$0xff]
        %v877 = vld [vmem:[%s474 + $0xc0] sm:$0xff]
        %v878 = vld [vmem:[%s474 + $0xc8] sm:$0xff]
        %v879 = vld [vmem:[%s474 + $0xd0] sm:$0xff]
        %v880 = vld [vmem:[%s474 + $0xd8] sm:$0xff]
        %v881 = vld [vmem:[%s474 + $0xe0] sm:$0xff]
        %v882 = vld [vmem:[%s474 + $0xe8] sm:$0xff]
        %v883 = vld [vmem:[%s474 + $0xf0] sm:$0xff]
        %v884 = vld [vmem:[%s474 + $0xf8] sm:$0xff]
        %v885 = vld [vmem:[%s474 + $0x100] sm:$0xff]
        %v886 = vld [vmem:[%s474 + $0x108] sm:$0xff]
        %v887 = vld [vmem:[%s474 + $0x110] sm:$0xff]
        %v888 = vld [vmem:[%s474 + $0x118] sm:$0xff]
        %v889 = vld [vmem:[%s474 + $0x120] sm:$0xff]
        %v890 = vld [vmem:[%s474 + $0x128] sm:$0xff]
        %v891 = vld [vmem:[%s474 + $0x130] sm:$0xff]
        %v892 = vld [vmem:[%s474 + $0x138] sm:$0xff]
        %v893 = vld [vmem:[%s474 + $0x140] sm:$0xff]
        %v894 = vld [vmem:[%s474 + $0x148] sm:$0xff]
        %v895 = vld [vmem:[%s474 + $0x150] sm:$0xff]
        %v896 = vld [vmem:[%s474 + $0x158] sm:$0xff]
        %v897 = vld [vmem:[%s474 + $0x160] sm:$0xff]
        %v898 = vld [vmem:[%s474 + $0x168] sm:$0xff]
        %v899 = vld [vmem:[%s474 + $0x170] sm:$0xff]
        %v900 = vld [vmem:[%s474 + $0x178] sm:$0xff]
        %v901 = vld [vmem:[%s474 + $0x180] sm:$0xff]
        %v902 = vld [vmem:[%s474 + $0x188] sm:$0xff]
        %v903 = vld [vmem:[%s474 + $0x190] sm:$0xff]
        %v904 = vld [vmem:[%s474 + $0x198] sm:$0xff]
        %v905 = vld [vmem:[%s474 + $0x1a0] sm:$0xff]
        %v906 = vld [vmem:[%s474 + $0x1a8] sm:$0xff]
        %v907 = vld [vmem:[%s474 + $0x1b0] sm:$0xff]
        %v908 = vld [vmem:[%s474 + $0x1b8] sm:$0xff]
        %v909 = vld [vmem:[%s474 + $0x1c0] sm:$0xff]
        %v910 = vld [vmem:[%s474 + $0x1c8] sm:$0xff]
        %v911 = vld [vmem:[%s474 + $0x1d0] sm:$0xff]
        %v912 = vld [vmem:[%s474 + $0x1d8] sm:$0xff]
        %v913 = vld [vmem:[%s474 + $0x1e0] sm:$0xff]
        %v914 = vld [vmem:[%s474 + $0x1e8] sm:$0xff]
        %v915 = vld [vmem:[%s474 + $0x1f0] sm:$0xff]
        %v916 = vld [vmem:[%s474 + $0x1f8] sm:$0xff]
        %v917 = vld [vmem:[%s474 + $0x200] sm:$0xff]
        %v918 = vld [vmem:[%s474 + $0x208] sm:$0xff]
        %v919 = vld [vmem:[%s474 + $0x210] sm:$0xff]
        %v920 = vld [vmem:[%s474 + $0x218] sm:$0xff]
        %v921 = vld [vmem:[%s474 + $0x220] sm:$0xff]
        %v922 = vld [vmem:[%s474 + $0x228] sm:$0xff]
        %v923 = vld [vmem:[%s474 + $0x230] sm:$0xff]
        %v924 = vld [vmem:[%s474 + $0x238] sm:$0xff]
        %v925 = vld [vmem:[%s474 + $0x240] sm:$0xff]
        %v926 = vld [vmem:[%s474 + $0x248] sm:$0xff]
        %v927 = vld [vmem:[%s474 + $0x250] sm:$0xff]
        %v928 = vld [vmem:[%s474 + $0x258] sm:$0xff]
        %v929 = vld [vmem:[%s474 + $0x260] sm:$0xff]
        %v930 = vld [vmem:[%s474 + $0x268] sm:$0xff]
        %v931 = vld [vmem:[%s474 + $0x270] sm:$0xff]
        %v932 = vld [vmem:[%s474 + $0x278] sm:$0xff]
        %v933 = vld [vmem:[%s474 + $0x280] sm:$0xff]
        %v934 = vld [vmem:[%s474 + $0x288] sm:$0xff]
        %v935 = vld [vmem:[%s474 + $0x290] sm:$0xff]
        %v936 = vld [vmem:[%s474 + $0x298] sm:$0xff]
        %v937 = vld [vmem:[%s474 + $0x2a0] sm:$0xff]
        %v938 = vld [vmem:[%s474 + $0x2a8] sm:$0xff]
        %v939 = vld [vmem:[%s474 + $0x2b0] sm:$0xff]
        %v940 = vld [vmem:[%s474 + $0x2b8] sm:$0xff]
        %v941 = vld [vmem:[%s474 + $0x2c0] sm:$0xff]
        %v942 = vld [vmem:[%s474 + $0x2c8] sm:$0xff]
        %v943 = vld [vmem:[%s474 + $0x2d0] sm:$0xff]
        %v944 = vld [vmem:[%s474 + $0x2d8] sm:$0xff]
        %v945 = vld [vmem:[%s474 + $0x2e0] sm:$0xff]
        %v946 = vld [vmem:[%s474 + $0x2e8] sm:$0xff]
        %v947 = vld [vmem:[%s474 + $0x2f0] sm:$0xff]
        %v948 = vld [vmem:[%s474 + $0x2f8] sm:$0xff]
        %v949 = vld [vmem:[%s474 + $0x300] sm:$0xff]
        %v950 = vld [vmem:[%s474 + $0x308] sm:$0xff]
        %v951 = vld [vmem:[%s474 + $0x310] sm:$0xff]
        %v952 = vld [vmem:[%s474 + $0x318] sm:$0xff]
        %v953 = vld [vmem:[%s474 + $0x320] sm:$0xff]
        %v954 = vld [vmem:[%s474 + $0x328] sm:$0xff]
        %v955 = vld [vmem:[%s474 + $0x330] sm:$0xff]
        %v956 = vld [vmem:[%s474 + $0x338] sm:$0xff]
        %v957 = vld [vmem:[%s474 + $0x340] sm:$0xff]
        %v958 = vld [vmem:[%s474 + $0x348] sm:$0xff]
        %v959 = vld [vmem:[%s474 + $0x350] sm:$0xff]
        %v960 = vld [vmem:[%s474 + $0x358] sm:$0xff]
        %v961 = vld [vmem:[%s474 + $0x360] sm:$0xff]
        %v962 = vld [vmem:[%s474 + $0x368] sm:$0xff]
        %v963 = vld [vmem:[%s474 + $0x370] sm:$0xff]
        %v964 = vld [vmem:[%s474 + $0x378] sm:$0xff]
        %v965 = vld [vmem:[%s474 + $0x380] sm:$0xff]
        %v966 = vld [vmem:[%s474 + $0x388] sm:$0xff]
        %v967 = vld [vmem:[%s474 + $0x390] sm:$0xff]
        %v968 = vld [vmem:[%s474 + $0x398] sm:$0xff]
        %v969 = vld [vmem:[%s474 + $0x3a0] sm:$0xff]
        %v970 = vld [vmem:[%s474 + $0x3a8] sm:$0xff]
        %v971 = vld [vmem:[%s474 + $0x3b0] sm:$0xff]
        %v972 = vld [vmem:[%s474 + $0x3b8] sm:$0xff]
        %v973 = vld [vmem:[%s474 + $0x3c0] sm:$0xff]
        %v974 = vld [vmem:[%s474 + $0x3c8] sm:$0xff]
        %v975 = vld [vmem:[%s474 + $0x3d0] sm:$0xff]
        %v976 = vld [vmem:[%s474 + $0x3d8] sm:$0xff]
        %v977 = vld [vmem:[%s474 + $0x3e0] sm:$0xff]
        %v978 = vld [vmem:[%s474 + $0x3e8] sm:$0xff]
        %v979 = vld [vmem:[%s474 + $0x3f0] sm:$0xff]
        %v980 = vld [vmem:[%s474 + $0x3f8] sm:$0xff]
        %981 = vmatpush.msra.mxu0 %v913
        %982 = vmatpush.msra.mxu0 %v909
        %983 = vmatpush.msra.mxu0 %v905
        %984 = vmatpush.msra.mxu0 %v901
        %985 = vmatpush.msra.mxu0 %v897
        %986 = vmatpush.msra.mxu0 %v893
        %987 = vmatpush.msra.mxu0 %v889
        %988 = vmatpush.msra.mxu0 %v885
        %989 = vmatpush.msra.mxu0 %v881
        %990 = vmatpush.msra.mxu0 %v877
        %991 = vmatpush.msra.mxu0 %v873
        %992 = vmatpush.msra.mxu0 %v869
        %993 = vmatpush.msra.mxu0 %v865
        %994 = vmatpush.msra.mxu0 %v861
        %995 = vmatpush.msra.mxu0 %v857
        %996 = vmatpush.msra.mxu0 %v853
        %997 = vmatmul.f32.gmra.mxu0 %v789
        %v998 = vpop.f32.mrf.mxu0
        %v999 = vadd.f32 0.0, %v998
        %1000 = vmatmul.f32.gmra.mxu0 %v791
        %v1001 = vpop.f32.mrf.mxu0
        %v1002 = vadd.f32 0.0, %v1001
        %1003 = vmatmul.f32.gmra.mxu0 %v793
        %v1004 = vpop.f32.mrf.mxu0
        %v1005 = vadd.f32 0.0, %v1004
        %1006 = vmatmul.f32.gmra.mxu0 %v795
        %v1007 = vpop.f32.mrf.mxu0
        %v1008 = vadd.f32 0.0, %v1007
        %1009 = vmatmul.f32.gmra.mxu0 %v797
        %v1010 = vpop.f32.mrf.mxu0
        %v1011 = vadd.f32 0.0, %v1010
        %1012 = vmatmul.f32.gmra.mxu0 %v799
        %v1013 = vpop.f32.mrf.mxu0
        %v1014 = vadd.f32 0.0, %v1013
        %1015 = vmatmul.f32.gmra.mxu0 %v801
        %v1016 = vpop.f32.mrf.mxu0
        %v1017 = vadd.f32 0.0, %v1016
        %1018 = vmatmul.f32.gmra.mxu0 %v803
        %v1019 = vpop.f32.mrf.mxu0
        %v1020 = vadd.f32 0.0, %v1019
        %1021 = vmatmul.f32.gmra.mxu0 %v805
        %v1022 = vpop.f32.mrf.mxu0
        %v1023 = vadd.f32 0.0, %v1022
        %1024 = vmatmul.f32.gmra.mxu0 %v807
        %v1025 = vpop.f32.mrf.mxu0
        %v1026 = vadd.f32 0.0, %v1025
        %1027 = vmatmul.f32.gmra.mxu0 %v809
        %v1028 = vpop.f32.mrf.mxu0
        %v1029 = vadd.f32 0.0, %v1028
        %1030 = vmatmul.f32.gmra.mxu0 %v811
        %v1031 = vpop.f32.mrf.mxu0
        %v1032 = vadd.f32 0.0, %v1031
        %1033 = vmatmul.f32.gmra.mxu0 %v813
        %v1034 = vpop.f32.mrf.mxu0
        %v1035 = vadd.f32 0.0, %v1034
        %1036 = vmatmul.f32.gmra.mxu0 %v815
        %v1037 = vpop.f32.mrf.mxu0
        %v1038 = vadd.f32 0.0, %v1037
        %1039 = vmatmul.f32.gmra.mxu0 %v817
        %v1040 = vpop.f32.mrf.mxu0
        %v1041 = vadd.f32 0.0, %v1040
        %1042 = vmatmul.f32.gmra.mxu0 %v819
        %v1043 = vpop.f32.mrf.mxu0
        %v1044 = vadd.f32 0.0, %v1043
        %1045 = vmatmul.f32.gmra.mxu0 %v821
        %v1046 = vpop.f32.mrf.mxu0
        %v1047 = vadd.f32 0.0, %v1046
        %1048 = vmatmul.f32.gmra.mxu0 %v823
        %v1049 = vpop.f32.mrf.mxu0
        %v1050 = vadd.f32 0.0, %v1049
        %1051 = vmatmul.f32.gmra.mxu0 %v825
        %v1052 = vpop.f32.mrf.mxu0
        %v1053 = vadd.f32 0.0, %v1052
        %1054 = vmatmul.f32.gmra.mxu0 %v827
        %v1055 = vpop.f32.mrf.mxu0
        %v1056 = vadd.f32 0.0, %v1055
        %1057 = vmatmul.f32.gmra.mxu0 %v829
        %v1058 = vpop.f32.mrf.mxu0
        %v1059 = vadd.f32 0.0, %v1058
        %1060 = vmatmul.f32.gmra.mxu0 %v831
        %v1061 = vpop.f32.mrf.mxu0
        %v1062 = vadd.f32 0.0, %v1061
        %1063 = vmatmul.f32.gmra.mxu0 %v833
        %v1064 = vpop.f32.mrf.mxu0
        %v1065 = vadd.f32 0.0, %v1064
        %1066 = vmatmul.f32.gmra.mxu0 %v835
        %v1067 = vpop.f32.mrf.mxu0
        %v1068 = vadd.f32 0.0, %v1067
        %1069 = vmatmul.f32.gmra.mxu0 %v837
        %v1070 = vpop.f32.mrf.mxu0
        %v1071 = vadd.f32 0.0, %v1070
        %1072 = vmatmul.f32.gmra.mxu0 %v839
        %v1073 = vpop.f32.mrf.mxu0
        %v1074 = vadd.f32 0.0, %v1073
        %1075 = vmatmul.f32.gmra.mxu0 %v841
        %v1076 = vpop.f32.mrf.mxu0
        %v1077 = vadd.f32 0.0, %v1076
        %1078 = vmatmul.f32.gmra.mxu0 %v843
        %v1079 = vpop.f32.mrf.mxu0
        %v1080 = vadd.f32 0.0, %v1079
        %1081 = vmatmul.f32.gmra.mxu0 %v845
        %v1082 = vpop.f32.mrf.mxu0
        %v1083 = vadd.f32 0.0, %v1082
        %1084 = vmatmul.f32.gmra.mxu0 %v847
        %v1085 = vpop.f32.mrf.mxu0
        %v1086 = vadd.f32 0.0, %v1085
        %1087 = vmatmul.f32.gmra.mxu0 %v849
        %v1088 = vpop.f32.mrf.mxu0
        %v1089 = vadd.f32 0.0, %v1088
        %1090 = vmatmul.f32.gmra.mxu0 %v851
        %v1091 = vpop.f32.mrf.mxu0
        %v1092 = vadd.f32 0.0, %v1091
        %1093 = vdwg.mxu0
        %1094 = vmatpush.msra.mxu0 %v977
        %1095 = vmatpush.msra.mxu0 %v973
        %1096 = vmatpush.msra.mxu0 %v969
        %1097 = vmatpush.msra.mxu0 %v965
        %1098 = vmatpush.msra.mxu0 %v961
        %1099 = vmatpush.msra.mxu0 %v957
        %1100 = vmatpush.msra.mxu0 %v953
        %1101 = vmatpush.msra.mxu0 %v949
        %1102 = vmatpush.msra.mxu0 %v945
        %1103 = vmatpush.msra.mxu0 %v941
        %1104 = vmatpush.msra.mxu0 %v937
        %1105 = vmatpush.msra.mxu0 %v933
        %1106 = vmatpush.msra.mxu0 %v929
        %1107 = vmatpush.msra.mxu0 %v925
        %1108 = vmatpush.msra.mxu0 %v921
        %1109 = vmatpush.msra.mxu0 %v917
        %1110 = vmatmul.f32.gmra.mxu0 %v790
        %v1111 = vpop.f32.mrf.mxu0
        %v1112 = vadd.f32 %v999, %v1111
        %1113 = vmatmul.f32.gmra.mxu0 %v792
        %v1114 = vpop.f32.mrf.mxu0
        %v1115 = vadd.f32 %v1002, %v1114
        %1116 = vmatmul.f32.gmra.mxu0 %v794
        %v1117 = vpop.f32.mrf.mxu0
        %v1118 = vadd.f32 %v1005, %v1117
        %1119 = vmatmul.f32.gmra.mxu0 %v796
        %v1120 = vpop.f32.mrf.mxu0
        %v1121 = vadd.f32 %v1008, %v1120
        %1122 = vmatmul.f32.gmra.mxu0 %v798
        %v1123 = vpop.f32.mrf.mxu0
        %v1124 = vadd.f32 %v1011, %v1123
        %1125 = vmatmul.f32.gmra.mxu0 %v800
        %v1126 = vpop.f32.mrf.mxu0
        %v1127 = vadd.f32 %v1014, %v1126
        %1128 = vmatmul.f32.gmra.mxu0 %v802
        %v1129 = vpop.f32.mrf.mxu0
        %v1130 = vadd.f32 %v1017, %v1129
        %1131 = vmatmul.f32.gmra.mxu0 %v804
        %v1132 = vpop.f32.mrf.mxu0
        %v1133 = vadd.f32 %v1020, %v1132
        %1134 = vmatmul.f32.gmra.mxu0 %v806
        %v1135 = vpop.f32.mrf.mxu0
        %v1136 = vadd.f32 %v1023, %v1135
        %1137 = vmatmul.f32.gmra.mxu0 %v808
        %v1138 = vpop.f32.mrf.mxu0
        %v1139 = vadd.f32 %v1026, %v1138
        %1140 = vmatmul.f32.gmra.mxu0 %v810
        %v1141 = vpop.f32.mrf.mxu0
        %v1142 = vadd.f32 %v1029, %v1141
        %1143 = vmatmul.f32.gmra.mxu0 %v812
        %v1144 = vpop.f32.mrf.mxu0
        %v1145 = vadd.f32 %v1032, %v1144
        %1146 = vmatmul.f32.gmra.mxu0 %v814
        %v1147 = vpop.f32.mrf.mxu0
        %v1148 = vadd.f32 %v1035, %v1147
        %1149 = vmatmul.f32.gmra.mxu0 %v816
        %v1150 = vpop.f32.mrf.mxu0
        %v1151 = vadd.f32 %v1038, %v1150
        %1152 = vmatmul.f32.gmra.mxu0 %v818
        %v1153 = vpop.f32.mrf.mxu0
        %v1154 = vadd.f32 %v1041, %v1153
        %1155 = vmatmul.f32.gmra.mxu0 %v820
        %v1156 = vpop.f32.mrf.mxu0
        %v1157 = vadd.f32 %v1044, %v1156
        %1158 = vmatmul.f32.gmra.mxu0 %v822
        %v1159 = vpop.f32.mrf.mxu0
        %v1160 = vadd.f32 %v1047, %v1159
        %1161 = vmatmul.f32.gmra.mxu0 %v824
        %v1162 = vpop.f32.mrf.mxu0
        %v1163 = vadd.f32 %v1050, %v1162
        %1164 = vmatmul.f32.gmra.mxu0 %v826
        %v1165 = vpop.f32.mrf.mxu0
        %v1166 = vadd.f32 %v1053, %v1165
        %1167 = vmatmul.f32.gmra.mxu0 %v828
        %v1168 = vpop.f32.mrf.mxu0
        %v1169 = vadd.f32 %v1056, %v1168
        %1170 = vmatmul.f32.gmra.mxu0 %v830
        %v1171 = vpop.f32.mrf.mxu0
        %v1172 = vadd.f32 %v1059, %v1171
        %1173 = vmatmul.f32.gmra.mxu0 %v832
        %v1174 = vpop.f32.mrf.mxu0
        %v1175 = vadd.f32 %v1062, %v1174
        %1176 = vmatmul.f32.gmra.mxu0 %v834
        %v1177 = vpop.f32.mrf.mxu0
        %v1178 = vadd.f32 %v1065, %v1177
        %1179 = vmatmul.f32.gmra.mxu0 %v836
        %v1180 = vpop.f32.mrf.mxu0
        %v1181 = vadd.f32 %v1068, %v1180
        %1182 = vmatmul.f32.gmra.mxu0 %v838
        %v1183 = vpop.f32.mrf.mxu0
        %v1184 = vadd.f32 %v1071, %v1183
        %1185 = vmatmul.f32.gmra.mxu0 %v840
        %v1186 = vpop.f32.mrf.mxu0
        %v1187 = vadd.f32 %v1074, %v1186
        %1188 = vmatmul.f32.gmra.mxu0 %v842
        %v1189 = vpop.f32.mrf.mxu0
        %v1190 = vadd.f32 %v1077, %v1189
        %1191 = vmatmul.f32.gmra.mxu0 %v844
        %v1192 = vpop.f32.mrf.mxu0
        %v1193 = vadd.f32 %v1080, %v1192
        %1194 = vmatmul.f32.gmra.mxu0 %v846
        %v1195 = vpop.f32.mrf.mxu0
        %v1196 = vadd.f32 %v1083, %v1195
        %1197 = vmatmul.f32.gmra.mxu0 %v848
        %v1198 = vpop.f32.mrf.mxu0
        %v1199 = vadd.f32 %v1086, %v1198
        %1200 = vmatmul.f32.gmra.mxu0 %v850
        %v1201 = vpop.f32.mrf.mxu0
        %v1202 = vadd.f32 %v1089, %v1201
        %1203 = vmatmul.f32.gmra.mxu0 %v852
        %v1204 = vpop.f32.mrf.mxu0
        %v1205 = vadd.f32 %v1092, %v1204
        %1206 = vdwg.mxu0
        %1207 = vmatpush.msra.mxu0 %v914
        %1208 = vmatpush.msra.mxu0 %v910
        %1209 = vmatpush.msra.mxu0 %v906
        %1210 = vmatpush.msra.mxu0 %v902
        %1211 = vmatpush.msra.mxu0 %v898
        %1212 = vmatpush.msra.mxu0 %v894
        %1213 = vmatpush.msra.mxu0 %v890
        %1214 = vmatpush.msra.mxu0 %v886
        %1215 = vmatpush.msra.mxu0 %v882
        %1216 = vmatpush.msra.mxu0 %v878
        %1217 = vmatpush.msra.mxu0 %v874
        %1218 = vmatpush.msra.mxu0 %v870
        %1219 = vmatpush.msra.mxu0 %v866
        %1220 = vmatpush.msra.mxu0 %v862
        %1221 = vmatpush.msra.mxu0 %v858
        %1222 = vmatpush.msra.mxu0 %v854
        %1223 = vmatmul.f32.gmra.mxu0 %v789
        %v1224 = vpop.f32.mrf.mxu0
        %v1225 = vadd.f32 0.0, %v1224
        %1226 = vmatmul.f32.gmra.mxu0 %v791
        %v1227 = vpop.f32.mrf.mxu0
        %v1228 = vadd.f32 0.0, %v1227
        %1229 = vmatmul.f32.gmra.mxu0 %v793
        %v1230 = vpop.f32.mrf.mxu0
        %v1231 = vadd.f32 0.0, %v1230
        %1232 = vmatmul.f32.gmra.mxu0 %v795
        %v1233 = vpop.f32.mrf.mxu0
        %v1234 = vadd.f32 0.0, %v1233
        %1235 = vmatmul.f32.gmra.mxu0 %v797
        %v1236 = vpop.f32.mrf.mxu0
        %v1237 = vadd.f32 0.0, %v1236
        %1238 = vmatmul.f32.gmra.mxu0 %v799
        %v1239 = vpop.f32.mrf.mxu0
        %v1240 = vadd.f32 0.0, %v1239
        %1241 = vmatmul.f32.gmra.mxu0 %v801
        %v1242 = vpop.f32.mrf.mxu0
        %v1243 = vadd.f32 0.0, %v1242
        %1244 = vmatmul.f32.gmra.mxu0 %v803
        %v1245 = vpop.f32.mrf.mxu0
        %v1246 = vadd.f32 0.0, %v1245
        %1247 = vmatmul.f32.gmra.mxu0 %v805
        %v1248 = vpop.f32.mrf.mxu0
        %v1249 = vadd.f32 0.0, %v1248
        %1250 = vmatmul.f32.gmra.mxu0 %v807
        %v1251 = vpop.f32.mrf.mxu0
        %v1252 = vadd.f32 0.0, %v1251
        %1253 = vmatmul.f32.gmra.mxu0 %v809
        %v1254 = vpop.f32.mrf.mxu0
        %v1255 = vadd.f32 0.0, %v1254
        %1256 = vmatmul.f32.gmra.mxu0 %v811
        %v1257 = vpop.f32.mrf.mxu0
        %v1258 = vadd.f32 0.0, %v1257
        %1259 = vmatmul.f32.gmra.mxu0 %v813
        %v1260 = vpop.f32.mrf.mxu0
        %v1261 = vadd.f32 0.0, %v1260
        %1262 = vmatmul.f32.gmra.mxu0 %v815
        %v1263 = vpop.f32.mrf.mxu0
        %v1264 = vadd.f32 0.0, %v1263
        %1265 = vmatmul.f32.gmra.mxu0 %v817
        %v1266 = vpop.f32.mrf.mxu0
        %v1267 = vadd.f32 0.0, %v1266
        %1268 = vmatmul.f32.gmra.mxu0 %v819
        %v1269 = vpop.f32.mrf.mxu0
        %v1270 = vadd.f32 0.0, %v1269
        %1271 = vmatmul.f32.gmra.mxu0 %v821
        %v1272 = vpop.f32.mrf.mxu0
        %v1273 = vadd.f32 0.0, %v1272
        %1274 = vmatmul.f32.gmra.mxu0 %v823
        %v1275 = vpop.f32.mrf.mxu0
        %v1276 = vadd.f32 0.0, %v1275
        %1277 = vmatmul.f32.gmra.mxu0 %v825
        %v1278 = vpop.f32.mrf.mxu0
        %v1279 = vadd.f32 0.0, %v1278
        %1280 = vmatmul.f32.gmra.mxu0 %v827
        %v1281 = vpop.f32.mrf.mxu0
        %v1282 = vadd.f32 0.0, %v1281
        %1283 = vmatmul.f32.gmra.mxu0 %v829
        %v1284 = vpop.f32.mrf.mxu0
        %v1285 = vadd.f32 0.0, %v1284
        %1286 = vmatmul.f32.gmra.mxu0 %v831
        %v1287 = vpop.f32.mrf.mxu0
        %v1288 = vadd.f32 0.0, %v1287
        %1289 = vmatmul.f32.gmra.mxu0 %v833
        %v1290 = vpop.f32.mrf.mxu0
        %v1291 = vadd.f32 0.0, %v1290
        %1292 = vmatmul.f32.gmra.mxu0 %v835
        %v1293 = vpop.f32.mrf.mxu0
        %v1294 = vadd.f32 0.0, %v1293
        %1295 = vmatmul.f32.gmra.mxu0 %v837
        %v1296 = vpop.f32.mrf.mxu0
        %v1297 = vadd.f32 0.0, %v1296
        %1298 = vmatmul.f32.gmra.mxu0 %v839
        %v1299 = vpop.f32.mrf.mxu0
        %v1300 = vadd.f32 0.0, %v1299
        %1301 = vmatmul.f32.gmra.mxu0 %v841
        %v1302 = vpop.f32.mrf.mxu0
        %v1303 = vadd.f32 0.0, %v1302
        %1304 = vmatmul.f32.gmra.mxu0 %v843
        %v1305 = vpop.f32.mrf.mxu0
        %v1306 = vadd.f32 0.0, %v1305
        %1307 = vmatmul.f32.gmra.mxu0 %v845
        %v1308 = vpop.f32.mrf.mxu0
        %v1309 = vadd.f32 0.0, %v1308
        %1310 = vmatmul.f32.gmra.mxu0 %v847
        %v1311 = vpop.f32.mrf.mxu0
        %v1312 = vadd.f32 0.0, %v1311
        %1313 = vmatmul.f32.gmra.mxu0 %v849
        %v1314 = vpop.f32.mrf.mxu0
        %v1315 = vadd.f32 0.0, %v1314
        %1316 = vmatmul.f32.gmra.mxu0 %v851
        %v1317 = vpop.f32.mrf.mxu0
        %v1318 = vadd.f32 0.0, %v1317
        %1319 = vdwg.mxu0
        %1320 = vmatpush.msra.mxu0 %v978
        %1321 = vmatpush.msra.mxu0 %v974
        %1322 = vmatpush.msra.mxu0 %v970
        %1323 = vmatpush.msra.mxu0 %v966
        %1324 = vmatpush.msra.mxu0 %v962
        %1325 = vmatpush.msra.mxu0 %v958
        %1326 = vmatpush.msra.mxu0 %v954
        %1327 = vmatpush.msra.mxu0 %v950
        %1328 = vmatpush.msra.mxu0 %v946
        %1329 = vmatpush.msra.mxu0 %v942
        %1330 = vmatpush.msra.mxu0 %v938
        %1331 = vmatpush.msra.mxu0 %v934
        %1332 = vmatpush.msra.mxu0 %v930
        %1333 = vmatpush.msra.mxu0 %v926
        %1334 = vmatpush.msra.mxu0 %v922
        %1335 = vmatpush.msra.mxu0 %v918
        %1336 = vmatmul.f32.gmra.mxu0 %v790
        %v1337 = vpop.f32.mrf.mxu0
        %v1338 = vadd.f32 %v1225, %v1337
        %1339 = vmatmul.f32.gmra.mxu0 %v792
        %v1340 = vpop.f32.mrf.mxu0
        %v1341 = vadd.f32 %v1228, %v1340
        %1342 = vmatmul.f32.gmra.mxu0 %v794
        %v1343 = vpop.f32.mrf.mxu0
        %v1344 = vadd.f32 %v1231, %v1343
        %1345 = vmatmul.f32.gmra.mxu0 %v796
        %v1346 = vpop.f32.mrf.mxu0
        %v1347 = vadd.f32 %v1234, %v1346
        %1348 = vmatmul.f32.gmra.mxu0 %v798
        %v1349 = vpop.f32.mrf.mxu0
        %v1350 = vadd.f32 %v1237, %v1349
        %1351 = vmatmul.f32.gmra.mxu0 %v800
        %v1352 = vpop.f32.mrf.mxu0
        %v1353 = vadd.f32 %v1240, %v1352
        %1354 = vmatmul.f32.gmra.mxu0 %v802
        %v1355 = vpop.f32.mrf.mxu0
        %v1356 = vadd.f32 %v1243, %v1355
        %1357 = vmatmul.f32.gmra.mxu0 %v804
        %v1358 = vpop.f32.mrf.mxu0
        %v1359 = vadd.f32 %v1246, %v1358
        %1360 = vmatmul.f32.gmra.mxu0 %v806
        %v1361 = vpop.f32.mrf.mxu0
        %v1362 = vadd.f32 %v1249, %v1361
        %1363 = vmatmul.f32.gmra.mxu0 %v808
        %v1364 = vpop.f32.mrf.mxu0
        %v1365 = vadd.f32 %v1252, %v1364
        %1366 = vmatmul.f32.gmra.mxu0 %v810
        %v1367 = vpop.f32.mrf.mxu0
        %v1368 = vadd.f32 %v1255, %v1367
        %1369 = vmatmul.f32.gmra.mxu0 %v812
        %v1370 = vpop.f32.mrf.mxu0
        %v1371 = vadd.f32 %v1258, %v1370
        %1372 = vmatmul.f32.gmra.mxu0 %v814
        %v1373 = vpop.f32.mrf.mxu0
        %v1374 = vadd.f32 %v1261, %v1373
        %1375 = vmatmul.f32.gmra.mxu0 %v816
        %v1376 = vpop.f32.mrf.mxu0
        %v1377 = vadd.f32 %v1264, %v1376
        %1378 = vmatmul.f32.gmra.mxu0 %v818
        %v1379 = vpop.f32.mrf.mxu0
        %v1380 = vadd.f32 %v1267, %v1379
        %1381 = vmatmul.f32.gmra.mxu0 %v820
        %v1382 = vpop.f32.mrf.mxu0
        %v1383 = vadd.f32 %v1270, %v1382
        %1384 = vmatmul.f32.gmra.mxu0 %v822
        %v1385 = vpop.f32.mrf.mxu0
        %v1386 = vadd.f32 %v1273, %v1385
        %1387 = vmatmul.f32.gmra.mxu0 %v824
        %v1388 = vpop.f32.mrf.mxu0
        %v1389 = vadd.f32 %v1276, %v1388
        %1390 = vmatmul.f32.gmra.mxu0 %v826
        %v1391 = vpop.f32.mrf.mxu0
        %v1392 = vadd.f32 %v1279, %v1391
        %1393 = vmatmul.f32.gmra.mxu0 %v828
        %v1394 = vpop.f32.mrf.mxu0
        %v1395 = vadd.f32 %v1282, %v1394
        %1396 = vmatmul.f32.gmra.mxu0 %v830
        %v1397 = vpop.f32.mrf.mxu0
        %v1398 = vadd.f32 %v1285, %v1397
        %1399 = vmatmul.f32.gmra.mxu0 %v832
        %v1400 = vpop.f32.mrf.mxu0
        %v1401 = vadd.f32 %v1288, %v1400
        %1402 = vmatmul.f32.gmra.mxu0 %v834
        %v1403 = vpop.f32.mrf.mxu0
        %v1404 = vadd.f32 %v1291, %v1403
        %1405 = vmatmul.f32.gmra.mxu0 %v836
        %v1406 = vpop.f32.mrf.mxu0
        %v1407 = vadd.f32 %v1294, %v1406
        %1408 = vmatmul.f32.gmra.mxu0 %v838
        %v1409 = vpop.f32.mrf.mxu0
        %v1410 = vadd.f32 %v1297, %v1409
        %1411 = vmatmul.f32.gmra.mxu0 %v840
        %v1412 = vpop.f32.mrf.mxu0
        %v1413 = vadd.f32 %v1300, %v1412
        %1414 = vmatmul.f32.gmra.mxu0 %v842
        %v1415 = vpop.f32.mrf.mxu0
        %v1416 = vadd.f32 %v1303, %v1415
        %1417 = vmatmul.f32.gmra.mxu0 %v844
        %v1418 = vpop.f32.mrf.mxu0
        %v1419 = vadd.f32 %v1306, %v1418
        %1420 = vmatmul.f32.gmra.mxu0 %v846
        %v1421 = vpop.f32.mrf.mxu0
        %v1422 = vadd.f32 %v1309, %v1421
        %1423 = vmatmul.f32.gmra.mxu0 %v848
        %v1424 = vpop.f32.mrf.mxu0
        %v1425 = vadd.f32 %v1312, %v1424
        %1426 = vmatmul.f32.gmra.mxu0 %v850
        %v1427 = vpop.f32.mrf.mxu0
        %v1428 = vadd.f32 %v1315, %v1427
        %1429 = vmatmul.f32.gmra.mxu0 %v852
        %v1430 = vpop.f32.mrf.mxu0
        %v1431 = vadd.f32 %v1318, %v1430
        %1432 = vdwg.mxu0
        %1433 = vmatpush.msra.mxu0 %v915
        %1434 = vmatpush.msra.mxu0 %v911
        %1435 = vmatpush.msra.mxu0 %v907
        %1436 = vmatpush.msra.mxu0 %v903
        %1437 = vmatpush.msra.mxu0 %v899
        %1438 = vmatpush.msra.mxu0 %v895
        %1439 = vmatpush.msra.mxu0 %v891
        %1440 = vmatpush.msra.mxu0 %v887
        %1441 = vmatpush.msra.mxu0 %v883
        %1442 = vmatpush.msra.mxu0 %v879
        %1443 = vmatpush.msra.mxu0 %v875
        %1444 = vmatpush.msra.mxu0 %v871
        %1445 = vmatpush.msra.mxu0 %v867
        %1446 = vmatpush.msra.mxu0 %v863
        %1447 = vmatpush.msra.mxu0 %v859
        %1448 = vmatpush.msra.mxu0 %v855
        %1449 = vmatmul.f32.gmra.mxu0 %v789
        %v1450 = vpop.f32.mrf.mxu0
        %v1451 = vadd.f32 0.0, %v1450
        %1452 = vmatmul.f32.gmra.mxu0 %v791
        %v1453 = vpop.f32.mrf.mxu0
        %v1454 = vadd.f32 0.0, %v1453
        %1455 = vmatmul.f32.gmra.mxu0 %v793
        %v1456 = vpop.f32.mrf.mxu0
        %v1457 = vadd.f32 0.0, %v1456
        %1458 = vmatmul.f32.gmra.mxu0 %v795
        %v1459 = vpop.f32.mrf.mxu0
        %v1460 = vadd.f32 0.0, %v1459
        %1461 = vmatmul.f32.gmra.mxu0 %v797
        %v1462 = vpop.f32.mrf.mxu0
        %v1463 = vadd.f32 0.0, %v1462
        %1464 = vmatmul.f32.gmra.mxu0 %v799
        %v1465 = vpop.f32.mrf.mxu0
        %v1466 = vadd.f32 0.0, %v1465
        %1467 = vmatmul.f32.gmra.mxu0 %v801
        %v1468 = vpop.f32.mrf.mxu0
        %v1469 = vadd.f32 0.0, %v1468
        %1470 = vmatmul.f32.gmra.mxu0 %v803
        %v1471 = vpop.f32.mrf.mxu0
        %v1472 = vadd.f32 0.0, %v1471
        %1473 = vmatmul.f32.gmra.mxu0 %v805
        %v1474 = vpop.f32.mrf.mxu0
        %v1475 = vadd.f32 0.0, %v1474
        %1476 = vmatmul.f32.gmra.mxu0 %v807
        %v1477 = vpop.f32.mrf.mxu0
        %v1478 = vadd.f32 0.0, %v1477
        %1479 = vmatmul.f32.gmra.mxu0 %v809
        %v1480 = vpop.f32.mrf.mxu0
        %v1481 = vadd.f32 0.0, %v1480
        %1482 = vmatmul.f32.gmra.mxu0 %v811
        %v1483 = vpop.f32.mrf.mxu0
        %v1484 = vadd.f32 0.0, %v1483
        %1485 = vmatmul.f32.gmra.mxu0 %v813
        %v1486 = vpop.f32.mrf.mxu0
        %v1487 = vadd.f32 0.0, %v1486
        %1488 = vmatmul.f32.gmra.mxu0 %v815
        %v1489 = vpop.f32.mrf.mxu0
        %v1490 = vadd.f32 0.0, %v1489
        %1491 = vmatmul.f32.gmra.mxu0 %v817
        %v1492 = vpop.f32.mrf.mxu0
        %v1493 = vadd.f32 0.0, %v1492
        %1494 = vmatmul.f32.gmra.mxu0 %v819
        %v1495 = vpop.f32.mrf.mxu0
        %v1496 = vadd.f32 0.0, %v1495
        %1497 = vmatmul.f32.gmra.mxu0 %v821
        %v1498 = vpop.f32.mrf.mxu0
        %v1499 = vadd.f32 0.0, %v1498
        %1500 = vmatmul.f32.gmra.mxu0 %v823
        %v1501 = vpop.f32.mrf.mxu0
        %v1502 = vadd.f32 0.0, %v1501
        %1503 = vmatmul.f32.gmra.mxu0 %v825
        %v1504 = vpop.f32.mrf.mxu0
        %v1505 = vadd.f32 0.0, %v1504
        %1506 = vmatmul.f32.gmra.mxu0 %v827
        %v1507 = vpop.f32.mrf.mxu0
        %v1508 = vadd.f32 0.0, %v1507
        %1509 = vmatmul.f32.gmra.mxu0 %v829
        %v1510 = vpop.f32.mrf.mxu0
        %v1511 = vadd.f32 0.0, %v1510
        %1512 = vmatmul.f32.gmra.mxu0 %v831
        %v1513 = vpop.f32.mrf.mxu0
        %v1514 = vadd.f32 0.0, %v1513
        %1515 = vmatmul.f32.gmra.mxu0 %v833
        %v1516 = vpop.f32.mrf.mxu0
        %v1517 = vadd.f32 0.0, %v1516
        %1518 = vmatmul.f32.gmra.mxu0 %v835
        %v1519 = vpop.f32.mrf.mxu0
        %v1520 = vadd.f32 0.0, %v1519
        %1521 = vmatmul.f32.gmra.mxu0 %v837
        %v1522 = vpop.f32.mrf.mxu0
        %v1523 = vadd.f32 0.0, %v1522
        %1524 = vmatmul.f32.gmra.mxu0 %v839
        %v1525 = vpop.f32.mrf.mxu0
        %v1526 = vadd.f32 0.0, %v1525
        %1527 = vmatmul.f32.gmra.mxu0 %v841
        %v1528 = vpop.f32.mrf.mxu0
        %v1529 = vadd.f32 0.0, %v1528
        %1530 = vmatmul.f32.gmra.mxu0 %v843
        %v1531 = vpop.f32.mrf.mxu0
        %v1532 = vadd.f32 0.0, %v1531
        %1533 = vmatmul.f32.gmra.mxu0 %v845
        %v1534 = vpop.f32.mrf.mxu0
        %v1535 = vadd.f32 0.0, %v1534
        %1536 = vmatmul.f32.gmra.mxu0 %v847
        %v1537 = vpop.f32.mrf.mxu0
        %v1538 = vadd.f32 0.0, %v1537
        %1539 = vmatmul.f32.gmra.mxu0 %v849
        %v1540 = vpop.f32.mrf.mxu0
        %v1541 = vadd.f32 0.0, %v1540
        %1542 = vmatmul.f32.gmra.mxu0 %v851
        %v1543 = vpop.f32.mrf.mxu0
        %v1544 = vadd.f32 0.0, %v1543
        %1545 = vdwg.mxu0
        %1546 = vmatpush.msra.mxu0 %v979
        %1547 = vmatpush.msra.mxu0 %v975
        %1548 = vmatpush.msra.mxu0 %v971
        %1549 = vmatpush.msra.mxu0 %v967
        %1550 = vmatpush.msra.mxu0 %v963
        %1551 = vmatpush.msra.mxu0 %v959
        %1552 = vmatpush.msra.mxu0 %v955
        %1553 = vmatpush.msra.mxu0 %v951
        %1554 = vmatpush.msra.mxu0 %v947
        %1555 = vmatpush.msra.mxu0 %v943
        %1556 = vmatpush.msra.mxu0 %v939
        %1557 = vmatpush.msra.mxu0 %v935
        %1558 = vmatpush.msra.mxu0 %v931
        %1559 = vmatpush.msra.mxu0 %v927
        %1560 = vmatpush.msra.mxu0 %v923
        %1561 = vmatpush.msra.mxu0 %v919
        %1562 = vmatmul.f32.gmra.mxu0 %v790
        %v1563 = vpop.f32.mrf.mxu0
        %v1564 = vadd.f32 %v1451, %v1563
        %1565 = vmatmul.f32.gmra.mxu0 %v792
        %v1566 = vpop.f32.mrf.mxu0
        %v1567 = vadd.f32 %v1454, %v1566
        %1568 = vmatmul.f32.gmra.mxu0 %v794
        %v1569 = vpop.f32.mrf.mxu0
        %v1570 = vadd.f32 %v1457, %v1569
        %1571 = vmatmul.f32.gmra.mxu0 %v796
        %v1572 = vpop.f32.mrf.mxu0
        %v1573 = vadd.f32 %v1460, %v1572
        %1574 = vmatmul.f32.gmra.mxu0 %v798
        %v1575 = vpop.f32.mrf.mxu0
        %v1576 = vadd.f32 %v1463, %v1575
        %1577 = vmatmul.f32.gmra.mxu0 %v800
        %v1578 = vpop.f32.mrf.mxu0
        %v1579 = vadd.f32 %v1466, %v1578
        %1580 = vmatmul.f32.gmra.mxu0 %v802
        %v1581 = vpop.f32.mrf.mxu0
        %v1582 = vadd.f32 %v1469, %v1581
        %1583 = vmatmul.f32.gmra.mxu0 %v804
        %v1584 = vpop.f32.mrf.mxu0
        %v1585 = vadd.f32 %v1472, %v1584
        %1586 = vmatmul.f32.gmra.mxu0 %v806
        %v1587 = vpop.f32.mrf.mxu0
        %v1588 = vadd.f32 %v1475, %v1587
        %1589 = vmatmul.f32.gmra.mxu0 %v808
        %v1590 = vpop.f32.mrf.mxu0
        %v1591 = vadd.f32 %v1478, %v1590
        %1592 = vmatmul.f32.gmra.mxu0 %v810
        %v1593 = vpop.f32.mrf.mxu0
        %v1594 = vadd.f32 %v1481, %v1593
        %1595 = vmatmul.f32.gmra.mxu0 %v812
        %v1596 = vpop.f32.mrf.mxu0
        %v1597 = vadd.f32 %v1484, %v1596
        %1598 = vmatmul.f32.gmra.mxu0 %v814
        %v1599 = vpop.f32.mrf.mxu0
        %v1600 = vadd.f32 %v1487, %v1599
        %1601 = vmatmul.f32.gmra.mxu0 %v816
        %v1602 = vpop.f32.mrf.mxu0
        %v1603 = vadd.f32 %v1490, %v1602
        %1604 = vmatmul.f32.gmra.mxu0 %v818
        %v1605 = vpop.f32.mrf.mxu0
        %v1606 = vadd.f32 %v1493, %v1605
        %1607 = vmatmul.f32.gmra.mxu0 %v820
        %v1608 = vpop.f32.mrf.mxu0
        %v1609 = vadd.f32 %v1496, %v1608
        %1610 = vmatmul.f32.gmra.mxu0 %v822
        %v1611 = vpop.f32.mrf.mxu0
        %v1612 = vadd.f32 %v1499, %v1611
        %1613 = vmatmul.f32.gmra.mxu0 %v824
        %v1614 = vpop.f32.mrf.mxu0
        %v1615 = vadd.f32 %v1502, %v1614
        %1616 = vmatmul.f32.gmra.mxu0 %v826
        %v1617 = vpop.f32.mrf.mxu0
        %v1618 = vadd.f32 %v1505, %v1617
        %1619 = vmatmul.f32.gmra.mxu0 %v828
        %v1620 = vpop.f32.mrf.mxu0
        %v1621 = vadd.f32 %v1508, %v1620
        %1622 = vmatmul.f32.gmra.mxu0 %v830
        %v1623 = vpop.f32.mrf.mxu0
        %v1624 = vadd.f32 %v1511, %v1623
        %1625 = vmatmul.f32.gmra.mxu0 %v832
        %v1626 = vpop.f32.mrf.mxu0
        %v1627 = vadd.f32 %v1514, %v1626
        %1628 = vmatmul.f32.gmra.mxu0 %v834
        %v1629 = vpop.f32.mrf.mxu0
        %v1630 = vadd.f32 %v1517, %v1629
        %1631 = vmatmul.f32.gmra.mxu0 %v836
        %v1632 = vpop.f32.mrf.mxu0
        %v1633 = vadd.f32 %v1520, %v1632
        %1634 = vmatmul.f32.gmra.mxu0 %v838
        %v1635 = vpop.f32.mrf.mxu0
        %v1636 = vadd.f32 %v1523, %v1635
        %1637 = vmatmul.f32.gmra.mxu0 %v840
        %v1638 = vpop.f32.mrf.mxu0
        %v1639 = vadd.f32 %v1526, %v1638
        %1640 = vmatmul.f32.gmra.mxu0 %v842
        %v1641 = vpop.f32.mrf.mxu0
        %v1642 = vadd.f32 %v1529, %v1641
        %1643 = vmatmul.f32.gmra.mxu0 %v844
        %v1644 = vpop.f32.mrf.mxu0
        %v1645 = vadd.f32 %v1532, %v1644
        %1646 = vmatmul.f32.gmra.mxu0 %v846
        %v1647 = vpop.f32.mrf.mxu0
        %v1648 = vadd.f32 %v1535, %v1647
        %1649 = vmatmul.f32.gmra.mxu0 %v848
        %v1650 = vpop.f32.mrf.mxu0
        %v1651 = vadd.f32 %v1538, %v1650
        %1652 = vmatmul.f32.gmra.mxu0 %v850
        %v1653 = vpop.f32.mrf.mxu0
        %v1654 = vadd.f32 %v1541, %v1653
        %1655 = vmatmul.f32.gmra.mxu0 %v852
        %v1656 = vpop.f32.mrf.mxu0
        %v1657 = vadd.f32 %v1544, %v1656
        %1658 = vdwg.mxu0
        %1659 = vmatpush.msra.mxu0 %v916
        %1660 = vmatpush.msra.mxu0 %v912
        %1661 = vmatpush.msra.mxu0 %v908
        %1662 = vmatpush.msra.mxu0 %v904
        %1663 = vmatpush.msra.mxu0 %v900
        %1664 = vmatpush.msra.mxu0 %v896
        %1665 = vmatpush.msra.mxu0 %v892
        %1666 = vmatpush.msra.mxu0 %v888
        %1667 = vmatpush.msra.mxu0 %v884
        %1668 = vmatpush.msra.mxu0 %v880
        %1669 = vmatpush.msra.mxu0 %v876
        %1670 = vmatpush.msra.mxu0 %v872
        %1671 = vmatpush.msra.mxu0 %v868
        %1672 = vmatpush.msra.mxu0 %v864
        %1673 = vmatpush.msra.mxu0 %v860
        %1674 = vmatpush.msra.mxu0 %v856
        %1675 = vmatmul.f32.gmra.mxu0 %v789
        %v1676 = vpop.f32.mrf.mxu0
        %v1677 = vadd.f32 0.0, %v1676
        %1678 = vmatmul.f32.gmra.mxu0 %v791
        %v1679 = vpop.f32.mrf.mxu0
        %v1680 = vadd.f32 0.0, %v1679
        %1681 = vmatmul.f32.gmra.mxu0 %v793
        %v1682 = vpop.f32.mrf.mxu0
        %v1683 = vadd.f32 0.0, %v1682
        %1684 = vmatmul.f32.gmra.mxu0 %v795
        %v1685 = vpop.f32.mrf.mxu0
        %v1686 = vadd.f32 0.0, %v1685
        %1687 = vmatmul.f32.gmra.mxu0 %v797
        %v1688 = vpop.f32.mrf.mxu0
        %v1689 = vadd.f32 0.0, %v1688
        %1690 = vmatmul.f32.gmra.mxu0 %v799
        %v1691 = vpop.f32.mrf.mxu0
        %v1692 = vadd.f32 0.0, %v1691
        %1693 = vmatmul.f32.gmra.mxu0 %v801
        %v1694 = vpop.f32.mrf.mxu0
        %v1695 = vadd.f32 0.0, %v1694
        %1696 = vmatmul.f32.gmra.mxu0 %v803
        %v1697 = vpop.f32.mrf.mxu0
        %v1698 = vadd.f32 0.0, %v1697
        %1699 = vmatmul.f32.gmra.mxu0 %v805
        %v1700 = vpop.f32.mrf.mxu0
        %v1701 = vadd.f32 0.0, %v1700
        %1702 = vmatmul.f32.gmra.mxu0 %v807
        %v1703 = vpop.f32.mrf.mxu0
        %v1704 = vadd.f32 0.0, %v1703
        %1705 = vmatmul.f32.gmra.mxu0 %v809
        %v1706 = vpop.f32.mrf.mxu0
        %v1707 = vadd.f32 0.0, %v1706
        %1708 = vmatmul.f32.gmra.mxu0 %v811
        %v1709 = vpop.f32.mrf.mxu0
        %v1710 = vadd.f32 0.0, %v1709
        %1711 = vmatmul.f32.gmra.mxu0 %v813
        %v1712 = vpop.f32.mrf.mxu0
        %v1713 = vadd.f32 0.0, %v1712
        %1714 = vmatmul.f32.gmra.mxu0 %v815
        %v1715 = vpop.f32.mrf.mxu0
        %v1716 = vadd.f32 0.0, %v1715
        %1717 = vmatmul.f32.gmra.mxu0 %v817
        %v1718 = vpop.f32.mrf.mxu0
        %v1719 = vadd.f32 0.0, %v1718
        %1720 = vmatmul.f32.gmra.mxu0 %v819
        %v1721 = vpop.f32.mrf.mxu0
        %v1722 = vadd.f32 0.0, %v1721
        %1723 = vmatmul.f32.gmra.mxu0 %v821
        %v1724 = vpop.f32.mrf.mxu0
        %v1725 = vadd.f32 0.0, %v1724
        %1726 = vmatmul.f32.gmra.mxu0 %v823
        %v1727 = vpop.f32.mrf.mxu0
        %v1728 = vadd.f32 0.0, %v1727
        %1729 = vmatmul.f32.gmra.mxu0 %v825
        %v1730 = vpop.f32.mrf.mxu0
        %v1731 = vadd.f32 0.0, %v1730
        %1732 = vmatmul.f32.gmra.mxu0 %v827
        %v1733 = vpop.f32.mrf.mxu0
        %v1734 = vadd.f32 0.0, %v1733
        %1735 = vmatmul.f32.gmra.mxu0 %v829
        %v1736 = vpop.f32.mrf.mxu0
        %v1737 = vadd.f32 0.0, %v1736
        %1738 = vmatmul.f32.gmra.mxu0 %v831
        %v1739 = vpop.f32.mrf.mxu0
        %v1740 = vadd.f32 0.0, %v1739
        %1741 = vmatmul.f32.gmra.mxu0 %v833
        %v1742 = vpop.f32.mrf.mxu0
        %v1743 = vadd.f32 0.0, %v1742
        %1744 = vmatmul.f32.gmra.mxu0 %v835
        %v1745 = vpop.f32.mrf.mxu0
        %v1746 = vadd.f32 0.0, %v1745
        %1747 = vmatmul.f32.gmra.mxu0 %v837
        %v1748 = vpop.f32.mrf.mxu0
        %v1749 = vadd.f32 0.0, %v1748
        %1750 = vmatmul.f32.gmra.mxu0 %v839
        %v1751 = vpop.f32.mrf.mxu0
        %v1752 = vadd.f32 0.0, %v1751
        %1753 = vmatmul.f32.gmra.mxu0 %v841
        %v1754 = vpop.f32.mrf.mxu0
        %v1755 = vadd.f32 0.0, %v1754
        %1756 = vmatmul.f32.gmra.mxu0 %v843
        %v1757 = vpop.f32.mrf.mxu0
        %v1758 = vadd.f32 0.0, %v1757
        %1759 = vmatmul.f32.gmra.mxu0 %v845
        %v1760 = vpop.f32.mrf.mxu0
        %v1761 = vadd.f32 0.0, %v1760
        %1762 = vmatmul.f32.gmra.mxu0 %v847
        %v1763 = vpop.f32.mrf.mxu0
        %v1764 = vadd.f32 0.0, %v1763
        %1765 = vmatmul.f32.gmra.mxu0 %v849
        %v1766 = vpop.f32.mrf.mxu0
        %v1767 = vadd.f32 0.0, %v1766
        %1768 = vmatmul.f32.gmra.mxu0 %v851
        %v1769 = vpop.f32.mrf.mxu0
        %v1770 = vadd.f32 0.0, %v1769
        %1771 = vdwg.mxu0
        %1772 = vmatpush.msra.mxu0 %v980
        %1773 = vmatpush.msra.mxu0 %v976
        %1774 = vmatpush.msra.mxu0 %v972
        %1775 = vmatpush.msra.mxu0 %v968
        %1776 = vmatpush.msra.mxu0 %v964
        %1777 = vmatpush.msra.mxu0 %v960
        %1778 = vmatpush.msra.mxu0 %v956
        %1779 = vmatpush.msra.mxu0 %v952
        %1780 = vmatpush.msra.mxu0 %v948
        %1781 = vmatpush.msra.mxu0 %v944
        %1782 = vmatpush.msra.mxu0 %v940
        %1783 = vmatpush.msra.mxu0 %v936
        %1784 = vmatpush.msra.mxu0 %v932
        %1785 = vmatpush.msra.mxu0 %v928
        %1786 = vmatpush.msra.mxu0 %v924
        %1787 = vmatpush.msra.mxu0 %v920
        %1788 = vmatmul.f32.gmra.mxu0 %v790
        %v1789 = vpop.f32.mrf.mxu0
        %v1790 = vadd.f32 %v1677, %v1789
        %1791 = vmatmul.f32.gmra.mxu0 %v792
        %v1792 = vpop.f32.mrf.mxu0
        %v1793 = vadd.f32 %v1680, %v1792
        %1794 = vmatmul.f32.gmra.mxu0 %v794
        %v1795 = vpop.f32.mrf.mxu0
        %v1796 = vadd.f32 %v1683, %v1795
        %1797 = vmatmul.f32.gmra.mxu0 %v796
        %v1798 = vpop.f32.mrf.mxu0
        %v1799 = vadd.f32 %v1686, %v1798
        %1800 = vmatmul.f32.gmra.mxu0 %v798
        %v1801 = vpop.f32.mrf.mxu0
        %v1802 = vadd.f32 %v1689, %v1801
        %1803 = vmatmul.f32.gmra.mxu0 %v800
        %v1804 = vpop.f32.mrf.mxu0
        %v1805 = vadd.f32 %v1692, %v1804
        %1806 = vmatmul.f32.gmra.mxu0 %v802
        %v1807 = vpop.f32.mrf.mxu0
        %v1808 = vadd.f32 %v1695, %v1807
        %1809 = vmatmul.f32.gmra.mxu0 %v804
        %v1810 = vpop.f32.mrf.mxu0
        %v1811 = vadd.f32 %v1698, %v1810
        %1812 = vmatmul.f32.gmra.mxu0 %v806
        %v1813 = vpop.f32.mrf.mxu0
        %v1814 = vadd.f32 %v1701, %v1813
        %1815 = vmatmul.f32.gmra.mxu0 %v808
        %v1816 = vpop.f32.mrf.mxu0
        %v1817 = vadd.f32 %v1704, %v1816
        %1818 = vmatmul.f32.gmra.mxu0 %v810
        %v1819 = vpop.f32.mrf.mxu0
        %v1820 = vadd.f32 %v1707, %v1819
        %1821 = vmatmul.f32.gmra.mxu0 %v812
        %v1822 = vpop.f32.mrf.mxu0
        %v1823 = vadd.f32 %v1710, %v1822
        %1824 = vmatmul.f32.gmra.mxu0 %v814
        %v1825 = vpop.f32.mrf.mxu0
        %v1826 = vadd.f32 %v1713, %v1825
        %1827 = vmatmul.f32.gmra.mxu0 %v816
        %v1828 = vpop.f32.mrf.mxu0
        %v1829 = vadd.f32 %v1716, %v1828
        %1830 = vmatmul.f32.gmra.mxu0 %v818
        %v1831 = vpop.f32.mrf.mxu0
        %v1832 = vadd.f32 %v1719, %v1831
        %1833 = vmatmul.f32.gmra.mxu0 %v820
        %v1834 = vpop.f32.mrf.mxu0
        %v1835 = vadd.f32 %v1722, %v1834
        %1836 = vmatmul.f32.gmra.mxu0 %v822
        %v1837 = vpop.f32.mrf.mxu0
        %v1838 = vadd.f32 %v1725, %v1837
        %1839 = vmatmul.f32.gmra.mxu0 %v824
        %v1840 = vpop.f32.mrf.mxu0
        %v1841 = vadd.f32 %v1728, %v1840
        %1842 = vmatmul.f32.gmra.mxu0 %v826
        %v1843 = vpop.f32.mrf.mxu0
        %v1844 = vadd.f32 %v1731, %v1843
        %1845 = vmatmul.f32.gmra.mxu0 %v828
        %v1846 = vpop.f32.mrf.mxu0
        %v1847 = vadd.f32 %v1734, %v1846
        %1848 = vmatmul.f32.gmra.mxu0 %v830
        %v1849 = vpop.f32.mrf.mxu0
        %v1850 = vadd.f32 %v1737, %v1849
        %1851 = vmatmul.f32.gmra.mxu0 %v832
        %v1852 = vpop.f32.mrf.mxu0
        %v1853 = vadd.f32 %v1740, %v1852
        %1854 = vmatmul.f32.gmra.mxu0 %v834
        %v1855 = vpop.f32.mrf.mxu0
        %v1856 = vadd.f32 %v1743, %v1855
        %1857 = vmatmul.f32.gmra.mxu0 %v836
        %v1858 = vpop.f32.mrf.mxu0
        %v1859 = vadd.f32 %v1746, %v1858
        %1860 = vmatmul.f32.gmra.mxu0 %v838
        %v1861 = vpop.f32.mrf.mxu0
        %v1862 = vadd.f32 %v1749, %v1861
        %1863 = vmatmul.f32.gmra.mxu0 %v840
        %v1864 = vpop.f32.mrf.mxu0
        %v1865 = vadd.f32 %v1752, %v1864
        %1866 = vmatmul.f32.gmra.mxu0 %v842
        %v1867 = vpop.f32.mrf.mxu0
        %v1868 = vadd.f32 %v1755, %v1867
        %1869 = vmatmul.f32.gmra.mxu0 %v844
        %v1870 = vpop.f32.mrf.mxu0
        %v1871 = vadd.f32 %v1758, %v1870
        %1872 = vmatmul.f32.gmra.mxu0 %v846
        %v1873 = vpop.f32.mrf.mxu0
        %v1874 = vadd.f32 %v1761, %v1873
        %1875 = vmatmul.f32.gmra.mxu0 %v848
        %v1876 = vpop.f32.mrf.mxu0
        %v1877 = vadd.f32 %v1764, %v1876
        %1878 = vmatmul.f32.gmra.mxu0 %v850
        %v1879 = vpop.f32.mrf.mxu0
        %v1880 = vadd.f32 %v1767, %v1879
        %1881 = vmatmul.f32.gmra.mxu0 %v852
        %v1882 = vpop.f32.mrf.mxu0
        %v1883 = vadd.f32 %v1770, %v1882
        %1884 = vdwg.mxu0
        %v1885 = vadd.f32 %v661, %v1112
        %v1886 = vadd.f32 %v662, %v1338
        %v1887 = vadd.f32 %v663, %v1564
        %v1888 = vadd.f32 %v664, %v1790
        %v1889 = vadd.f32 %v665, %v1115
        %v1890 = vadd.f32 %v666, %v1341
        %v1891 = vadd.f32 %v667, %v1567
        %v1892 = vadd.f32 %v668, %v1793
        %v1893 = vadd.f32 %v669, %v1118
        %v1894 = vadd.f32 %v670, %v1344
        %v1895 = vadd.f32 %v671, %v1570
        %v1896 = vadd.f32 %v672, %v1796
        %v1897 = vadd.f32 %v673, %v1121
        %v1898 = vadd.f32 %v674, %v1347
        %v1899 = vadd.f32 %v675, %v1573
        %v1900 = vadd.f32 %v676, %v1799
        %v1901 = vadd.f32 %v677, %v1124
        %v1902 = vadd.f32 %v678, %v1350
        %v1903 = vadd.f32 %v679, %v1576
        %v1904 = vadd.f32 %v680, %v1802
        %v1905 = vadd.f32 %v681, %v1127
        %v1906 = vadd.f32 %v682, %v1353
        %v1907 = vadd.f32 %v683, %v1579
        %v1908 = vadd.f32 %v684, %v1805
        %v1909 = vadd.f32 %v685, %v1130
        %v1910 = vadd.f32 %v686, %v1356
        %v1911 = vadd.f32 %v687, %v1582
        %v1912 = vadd.f32 %v688, %v1808
        %v1913 = vadd.f32 %v689, %v1133
        %v1914 = vadd.f32 %v690, %v1359
        %v1915 = vadd.f32 %v691, %v1585
        %v1916 = vadd.f32 %v692, %v1811
        %v1917 = vadd.f32 %v693, %v1136
        %v1918 = vadd.f32 %v694, %v1362
        %v1919 = vadd.f32 %v695, %v1588
        %v1920 = vadd.f32 %v696, %v1814
        %v1921 = vadd.f32 %v697, %v1139
        %v1922 = vadd.f32 %v698, %v1365
        %v1923 = vadd.f32 %v699, %v1591
        %v1924 = vadd.f32 %v700, %v1817
        %v1925 = vadd.f32 %v701, %v1142
        %v1926 = vadd.f32 %v702, %v1368
        %v1927 = vadd.f32 %v703, %v1594
        %v1928 = vadd.f32 %v704, %v1820
        %v1929 = vadd.f32 %v705, %v1145
        %v1930 = vadd.f32 %v706, %v1371
        %v1931 = vadd.f32 %v707, %v1597
        %v1932 = vadd.f32 %v708, %v1823
        %v1933 = vadd.f32 %v709, %v1148
        %v1934 = vadd.f32 %v710, %v1374
        %v1935 = vadd.f32 %v711, %v1600
        %v1936 = vadd.f32 %v712, %v1826
        %v1937 = vadd.f32 %v713, %v1151
        %v1938 = vadd.f32 %v714, %v1377
        %v1939 = vadd.f32 %v715, %v1603
        %v1940 = vadd.f32 %v716, %v1829
        %v1941 = vadd.f32 %v717, %v1154
        %v1942 = vadd.f32 %v718, %v1380
        %v1943 = vadd.f32 %v719, %v1606
        %v1944 = vadd.f32 %v720, %v1832
        %v1945 = vadd.f32 %v721, %v1157
        %v1946 = vadd.f32 %v722, %v1383
        %v1947 = vadd.f32 %v723, %v1609
        %v1948 = vadd.f32 %v724, %v1835
        %v1949 = vadd.f32 %v725, %v1160
        %v1950 = vadd.f32 %v726, %v1386
        %v1951 = vadd.f32 %v727, %v1612
        %v1952 = vadd.f32 %v728, %v1838
        %v1953 = vadd.f32 %v729, %v1163
        %v1954 = vadd.f32 %v730, %v1389
        %v1955 = vadd.f32 %v731, %v1615
        %v1956 = vadd.f32 %v732, %v1841
        %v1957 = vadd.f32 %v733, %v1166
        %v1958 = vadd.f32 %v734, %v1392
        %v1959 = vadd.f32 %v735, %v1618
        %v1960 = vadd.f32 %v736, %v1844
        %v1961 = vadd.f32 %v737, %v1169
        %v1962 = vadd.f32 %v738, %v1395
        %v1963 = vadd.f32 %v739, %v1621
        %v1964 = vadd.f32 %v740, %v1847
        %v1965 = vadd.f32 %v741, %v1172
        %v1966 = vadd.f32 %v742, %v1398
        %v1967 = vadd.f32 %v743, %v1624
        %v1968 = vadd.f32 %v744, %v1850
        %v1969 = vadd.f32 %v745, %v1175
        %v1970 = vadd.f32 %v746, %v1401
        %v1971 = vadd.f32 %v747, %v1627
        %v1972 = vadd.f32 %v748, %v1853
        %v1973 = vadd.f32 %v749, %v1178
        %v1974 = vadd.f32 %v750, %v1404
        %v1975 = vadd.f32 %v751, %v1630
        %v1976 = vadd.f32 %v752, %v1856
        %v1977 = vadd.f32 %v753, %v1181
        %v1978 = vadd.f32 %v754, %v1407
        %v1979 = vadd.f32 %v755, %v1633
        %v1980 = vadd.f32 %v756, %v1859
        %v1981 = vadd.f32 %v757, %v1184
        %v1982 = vadd.f32 %v758, %v1410
        %v1983 = vadd.f32 %v759, %v1636
        %v1984 = vadd.f32 %v760, %v1862
        %v1985 = vadd.f32 %v761, %v1187
        %v1986 = vadd.f32 %v762, %v1413
        %v1987 = vadd.f32 %v763, %v1639
        %v1988 = vadd.f32 %v764, %v1865
        %v1989 = vadd.f32 %v765, %v1190
        %v1990 = vadd.f32 %v766, %v1416
        %v1991 = vadd.f32 %v767, %v1642
        %v1992 = vadd.f32 %v768, %v1868
        %v1993 = vadd.f32 %v769, %v1193
        %v1994 = vadd.f32 %v770, %v1419
        %v1995 = vadd.f32 %v771, %v1645
        %v1996 = vadd.f32 %v772, %v1871
        %v1997 = vadd.f32 %v773, %v1196
        %v1998 = vadd.f32 %v774, %v1422
        %v1999 = vadd.f32 %v775, %v1648
        %v2000 = vadd.f32 %v776, %v1874
        %v2001 = vadd.f32 %v777, %v1199
        %v2002 = vadd.f32 %v778, %v1425
        %v2003 = vadd.f32 %v779, %v1651
        %v2004 = vadd.f32 %v780, %v1877
        %v2005 = vadd.f32 %v781, %v1202
        %v2006 = vadd.f32 %v782, %v1428
        %v2007 = vadd.f32 %v783, %v1654
        %v2008 = vadd.f32 %v784, %v1880
        %v2009 = vadd.f32 %v785, %v1205
        %v2010 = vadd.f32 %v786, %v1431
        %v2011 = vadd.f32 %v787, %v1657
        %v2012 = vadd.f32 %v788, %v1883
        %2013 = vst [vmem:[#allocation2] sm:$0xff] %v1885
        %2014 = vst [vmem:[#allocation2 + $0x8] sm:$0xff] %v1886
        %2015 = vst [vmem:[#allocation2 + $0x10] sm:$0xff] %v1887
        %2016 = vst [vmem:[#allocation2 + $0x18] sm:$0xff] %v1888
        %2017 = vst [vmem:[#allocation2 + $0x20] sm:$0xff] %v1889
        %2018 = vst [vmem:[#allocation2 + $0x28] sm:$0xff] %v1890
        %2019 = vst [vmem:[#allocation2 + $0x30] sm:$0xff] %v1891
        %2020 = vst [vmem:[#allocation2 + $0x38] sm:$0xff] %v1892
        %2021 = vst [vmem:[#allocation2 + $0x40] sm:$0xff] %v1893
        %2022 = vst [vmem:[#allocation2 + $0x48] sm:$0xff] %v1894
        %2023 = vst [vmem:[#allocation2 + $0x50] sm:$0xff] %v1895
        %2024 = vst [vmem:[#allocation2 + $0x58] sm:$0xff] %v1896
        %2025 = vst [vmem:[#allocation2 + $0x60] sm:$0xff] %v1897
        %2026 = vst [vmem:[#allocation2 + $0x68] sm:$0xff] %v1898
        %2027 = vst [vmem:[#allocation2 + $0x70] sm:$0xff] %v1899
        %2028 = vst [vmem:[#allocation2 + $0x78] sm:$0xff] %v1900
        %2029 = vst [vmem:[#allocation2 + $0x80] sm:$0xff] %v1901
        %2030 = vst [vmem:[#allocation2 + $0x88] sm:$0xff] %v1902
        %2031 = vst [vmem:[#allocation2 + $0x90] sm:$0xff] %v1903
        %2032 = vst [vmem:[#allocation2 + $0x98] sm:$0xff] %v1904
        %2033 = vst [vmem:[#allocation2 + $0xa0] sm:$0xff] %v1905
        %2034 = vst [vmem:[#allocation2 + $0xa8] sm:$0xff] %v1906
        %2035 = vst [vmem:[#allocation2 + $0xb0] sm:$0xff] %v1907
        %2036 = vst [vmem:[#allocation2 + $0xb8] sm:$0xff] %v1908
        %2037 = vst [vmem:[#allocation2 + $0xc0] sm:$0xff] %v1909
        %2038 = vst [vmem:[#allocation2 + $0xc8] sm:$0xff] %v1910
        %2039 = vst [vmem:[#allocation2 + $0xd0] sm:$0xff] %v1911
        %2040 = vst [vmem:[#allocation2 + $0xd8] sm:$0xff] %v1912
        %2041 = vst [vmem:[#allocation2 + $0xe0] sm:$0xff] %v1913
        %2042 = vst [vmem:[#allocation2 + $0xe8] sm:$0xff] %v1914
        %2043 = vst [vmem:[#allocation2 + $0xf0] sm:$0xff] %v1915
        %2044 = vst [vmem:[#allocation2 + $0xf8] sm:$0xff] %v1916
        %2045 = vst [vmem:[#allocation2 + $0x100] sm:$0xff] %v1917
        %2046 = vst [vmem:[#allocation2 + $0x108] sm:$0xff] %v1918
        %2047 = vst [vmem:[#allocation2 + $0x110] sm:$0xff] %v1919
        %2048 = vst [vmem:[#allocation2 + $0x118] sm:$0xff] %v1920
        %2049 = vst [vmem:[#allocation2 + $0x120] sm:$0xff] %v1921
        %2050 = vst [vmem:[#allocation2 + $0x128] sm:$0xff] %v1922
        %2051 = vst [vmem:[#allocation2 + $0x130] sm:$0xff] %v1923
        %2052 = vst [vmem:[#allocation2 + $0x138] sm:$0xff] %v1924
        %2053 = vst [vmem:[#allocation2 + $0x140] sm:$0xff] %v1925
        %2054 = vst [vmem:[#allocation2 + $0x148] sm:$0xff] %v1926
        %2055 = vst [vmem:[#allocation2 + $0x150] sm:$0xff] %v1927
        %2056 = vst [vmem:[#allocation2 + $0x158] sm:$0xff] %v1928
        %2057 = vst [vmem:[#allocation2 + $0x160] sm:$0xff] %v1929
        %2058 = vst [vmem:[#allocation2 + $0x168] sm:$0xff] %v1930
        %2059 = vst [vmem:[#allocation2 + $0x170] sm:$0xff] %v1931
        %2060 = vst [vmem:[#allocation2 + $0x178] sm:$0xff] %v1932
        %2061 = vst [vmem:[#allocation2 + $0x180] sm:$0xff] %v1933
        %2062 = vst [vmem:[#allocation2 + $0x188] sm:$0xff] %v1934
        %2063 = vst [vmem:[#allocation2 + $0x190] sm:$0xff] %v1935
        %2064 = vst [vmem:[#allocation2 + $0x198] sm:$0xff] %v1936
        %2065 = vst [vmem:[#allocation2 + $0x1a0] sm:$0xff] %v1937
        %2066 = vst [vmem:[#allocation2 + $0x1a8] sm:$0xff] %v1938
        %2067 = vst [vmem:[#allocation2 + $0x1b0] sm:$0xff] %v1939
        %2068 = vst [vmem:[#allocation2 + $0x1b8] sm:$0xff] %v1940
        %2069 = vst [vmem:[#allocation2 + $0x1c0] sm:$0xff] %v1941
        %2070 = vst [vmem:[#allocation2 + $0x1c8] sm:$0xff] %v1942
        %2071 = vst [vmem:[#allocation2 + $0x1d0] sm:$0xff] %v1943
        %2072 = vst [vmem:[#allocation2 + $0x1d8] sm:$0xff] %v1944
        %2073 = vst [vmem:[#allocation2 + $0x1e0] sm:$0xff] %v1945
        %2074 = vst [vmem:[#allocation2 + $0x1e8] sm:$0xff] %v1946
        %2075 = vst [vmem:[#allocation2 + $0x1f0] sm:$0xff] %v1947
        %2076 = vst [vmem:[#allocation2 + $0x1f8] sm:$0xff] %v1948
        %2077 = vst [vmem:[#allocation2 + $0x200] sm:$0xff] %v1949
        %2078 = vst [vmem:[#allocation2 + $0x208] sm:$0xff] %v1950
        %2079 = vst [vmem:[#allocation2 + $0x210] sm:$0xff] %v1951
        %2080 = vst [vmem:[#allocation2 + $0x218] sm:$0xff] %v1952
        %2081 = vst [vmem:[#allocation2 + $0x220] sm:$0xff] %v1953
        %2082 = vst [vmem:[#allocation2 + $0x228] sm:$0xff] %v1954
        %2083 = vst [vmem:[#allocation2 + $0x230] sm:$0xff] %v1955
        %2084 = vst [vmem:[#allocation2 + $0x238] sm:$0xff] %v1956
        %2085 = vst [vmem:[#allocation2 + $0x240] sm:$0xff] %v1957
        %2086 = vst [vmem:[#allocation2 + $0x248] sm:$0xff] %v1958
        %2087 = vst [vmem:[#allocation2 + $0x250] sm:$0xff] %v1959
        %2088 = vst [vmem:[#allocation2 + $0x258] sm:$0xff] %v1960
        %2089 = vst [vmem:[#allocation2 + $0x260] sm:$0xff] %v1961
        %2090 = vst [vmem:[#allocation2 + $0x268] sm:$0xff] %v1962
        %2091 = vst [vmem:[#allocation2 + $0x270] sm:$0xff] %v1963
        %2092 = vst [vmem:[#allocation2 + $0x278] sm:$0xff] %v1964
        %2093 = vst [vmem:[#allocation2 + $0x280] sm:$0xff] %v1965
        %2094 = vst [vmem:[#allocation2 + $0x288] sm:$0xff] %v1966
        %2095 = vst [vmem:[#allocation2 + $0x290] sm:$0xff] %v1967
        %2096 = vst [vmem:[#allocation2 + $0x298] sm:$0xff] %v1968
        %2097 = vst [vmem:[#allocation2 + $0x2a0] sm:$0xff] %v1969
        %2098 = vst [vmem:[#allocation2 + $0x2a8] sm:$0xff] %v1970
        %2099 = vst [vmem:[#allocation2 + $0x2b0] sm:$0xff] %v1971
        %2100 = vst [vmem:[#allocation2 + $0x2b8] sm:$0xff] %v1972
        %2101 = vst [vmem:[#allocation2 + $0x2c0] sm:$0xff] %v1973
        %2102 = vst [vmem:[#allocation2 + $0x2c8] sm:$0xff] %v1974
        %2103 = vst [vmem:[#allocation2 + $0x2d0] sm:$0xff] %v1975
        %2104 = vst [vmem:[#allocation2 + $0x2d8] sm:$0xff] %v1976
        %2105 = vst [vmem:[#allocation2 + $0x2e0] sm:$0xff] %v1977
        %2106 = vst [vmem:[#allocation2 + $0x2e8] sm:$0xff] %v1978
        %2107 = vst [vmem:[#allocation2 + $0x2f0] sm:$0xff] %v1979
        %2108 = vst [vmem:[#allocation2 + $0x2f8] sm:$0xff] %v1980
        %2109 = vst [vmem:[#allocation2 + $0x300] sm:$0xff] %v1981
        %2110 = vst [vmem:[#allocation2 + $0x308] sm:$0xff] %v1982
        %2111 = vst [vmem:[#allocation2 + $0x310] sm:$0xff] %v1983
        %2112 = vst [vmem:[#allocation2 + $0x318] sm:$0xff] %v1984
        %2113 = vst [vmem:[#allocation2 + $0x320] sm:$0xff] %v1985
        %2114 = vst [vmem:[#allocation2 + $0x328] sm:$0xff] %v1986
        %2115 = vst [vmem:[#allocation2 + $0x330] sm:$0xff] %v1987
        %2116 = vst [vmem:[#allocation2 + $0x338] sm:$0xff] %v1988
        %2117 = vst [vmem:[#allocation2 + $0x340] sm:$0xff] %v1989
        %2118 = vst [vmem:[#allocation2 + $0x348] sm:$0xff] %v1990
        %2119 = vst [vmem:[#allocation2 + $0x350] sm:$0xff] %v1991
        %2120 = vst [vmem:[#allocation2 + $0x358] sm:$0xff] %v1992
        %2121 = vst [vmem:[#allocation2 + $0x360] sm:$0xff] %v1993
        %2122 = vst [vmem:[#allocation2 + $0x368] sm:$0xff] %v1994
        %2123 = vst [vmem:[#allocation2 + $0x370] sm:$0xff] %v1995
        %2124 = vst [vmem:[#allocation2 + $0x378] sm:$0xff] %v1996
        %2125 = vst [vmem:[#allocation2 + $0x380] sm:$0xff] %v1997
        %2126 = vst [vmem:[#allocation2 + $0x388] sm:$0xff] %v1998
        %2127 = vst [vmem:[#allocation2 + $0x390] sm:$0xff] %v1999
        %2128 = vst [vmem:[#allocation2 + $0x398] sm:$0xff] %v2000
        %2129 = vst [vmem:[#allocation2 + $0x3a0] sm:$0xff] %v2001
        %2130 = vst [vmem:[#allocation2 + $0x3a8] sm:$0xff] %v2002
        %2131 = vst [vmem:[#allocation2 + $0x3b0] sm:$0xff] %v2003
        %2132 = vst [vmem:[#allocation2 + $0x3b8] sm:$0xff] %v2004
        %2133 = vst [vmem:[#allocation2 + $0x3c0] sm:$0xff] %v2005
        %2134 = vst [vmem:[#allocation2 + $0x3c8] sm:$0xff] %v2006
        %2135 = vst [vmem:[#allocation2 + $0x3d0] sm:$0xff] %v2007
        %2136 = vst [vmem:[#allocation2 + $0x3d8] sm:$0xff] %v2008
        %2137 = vst [vmem:[#allocation2 + $0x3e0] sm:$0xff] %v2009
        %2138 = vst [vmem:[#allocation2 + $0x3e8] sm:$0xff] %v2010
        %2139 = vst [vmem:[#allocation2 + $0x3f0] sm:$0xff] %v2011
        %2140 = vst [vmem:[#allocation2 + $0x3f8] sm:$0xff] %v2012
        // Predicated region
        $region60: #{qwen2_5_vision_attention.4} parent=50 // pred_check
          %p2141 = pneg %p529
        $region61: #{qwen2_5_vision_attention.4} parent=50 // pred_check_branch
          %2143 = sbr.rel (%p2141) target = $region63
        $region62: #{qwen2_5_vision_attention.4} parent=50 // pred_region
          %v2144 = vld [vmem:[#allocation2] sm:$0xff]
          %v2145 = vld [vmem:[#allocation2 + $0x8] sm:$0xff]
          %v2146 = vld [vmem:[#allocation2 + $0x10] sm:$0xff]
          %v2147 = vld [vmem:[#allocation2 + $0x18] sm:$0xff]
          %v2148 = vld [vmem:[#allocation2 + $0x20] sm:$0xff]
          %v2149 = vld [vmem:[#allocation2 + $0x28] sm:$0xff]
          %v2150 = vld [vmem:[#allocation2 + $0x30] sm:$0xff]
          %v2151 = vld [vmem:[#allocation2 + $0x38] sm:$0xff]
          %v2152 = vld [vmem:[#allocation2 + $0x40] sm:$0xff]
          %v2153 = vld [vmem:[#allocation2 + $0x48] sm:$0xff]
          %v2154 = vld [vmem:[#allocation2 + $0x50] sm:$0xff]
          %v2155 = vld [vmem:[#allocation2 + $0x58] sm:$0xff]
          %v2156 = vld [vmem:[#allocation2 + $0x60] sm:$0xff]
          %v2157 = vld [vmem:[#allocation2 + $0x68] sm:$0xff]
          %v2158 = vld [vmem:[#allocation2 + $0x70] sm:$0xff]
          %v2159 = vld [vmem:[#allocation2 + $0x78] sm:$0xff]
          %v2160 = vld [vmem:[#allocation2 + $0x80] sm:$0xff]
          %v2161 = vld [vmem:[#allocation2 + $0x88] sm:$0xff]
          %v2162 = vld [vmem:[#allocation2 + $0x90] sm:$0xff]
          %v2163 = vld [vmem:[#allocation2 + $0x98] sm:$0xff]
          %v2164 = vld [vmem:[#allocation2 + $0xa0] sm:$0xff]
          %v2165 = vld [vmem:[#allocation2 + $0xa8] sm:$0xff]
          %v2166 = vld [vmem:[#allocation2 + $0xb0] sm:$0xff]
          %v2167 = vld [vmem:[#allocation2 + $0xb8] sm:$0xff]
          %v2168 = vld [vmem:[#allocation2 + $0xc0] sm:$0xff]
          %v2169 = vld [vmem:[#allocation2 + $0xc8] sm:$0xff]
          %v2170 = vld [vmem:[#allocation2 + $0xd0] sm:$0xff]
          %v2171 = vld [vmem:[#allocation2 + $0xd8] sm:$0xff]
          %v2172 = vld [vmem:[#allocation2 + $0xe0] sm:$0xff]
          %v2173 = vld [vmem:[#allocation2 + $0xe8] sm:$0xff]
          %v2174 = vld [vmem:[#allocation2 + $0xf0] sm:$0xff]
          %v2175 = vld [vmem:[#allocation2 + $0xf8] sm:$0xff]
          %v2176 = vld [vmem:[#allocation2 + $0x100] sm:$0xff]
          %v2177 = vld [vmem:[#allocation2 + $0x108] sm:$0xff]
          %v2178 = vld [vmem:[#allocation2 + $0x110] sm:$0xff]
          %v2179 = vld [vmem:[#allocation2 + $0x118] sm:$0xff]
          %v2180 = vld [vmem:[#allocation2 + $0x120] sm:$0xff]
          %v2181 = vld [vmem:[#allocation2 + $0x128] sm:$0xff]
          %v2182 = vld [vmem:[#allocation2 + $0x130] sm:$0xff]
          %v2183 = vld [vmem:[#allocation2 + $0x138] sm:$0xff]
          %v2184 = vld [vmem:[#allocation2 + $0x140] sm:$0xff]
          %v2185 = vld [vmem:[#allocation2 + $0x148] sm:$0xff]
          %v2186 = vld [vmem:[#allocation2 + $0x150] sm:$0xff]
          %v2187 = vld [vmem:[#allocation2 + $0x158] sm:$0xff]
          %v2188 = vld [vmem:[#allocation2 + $0x160] sm:$0xff]
          %v2189 = vld [vmem:[#allocation2 + $0x168] sm:$0xff]
          %v2190 = vld [vmem:[#allocation2 + $0x170] sm:$0xff]
          %v2191 = vld [vmem:[#allocation2 + $0x178] sm:$0xff]
          %v2192 = vld [vmem:[#allocation2 + $0x180] sm:$0xff]
          %v2193 = vld [vmem:[#allocation2 + $0x188] sm:$0xff]
          %v2194 = vld [vmem:[#allocation2 + $0x190] sm:$0xff]
          %v2195 = vld [vmem:[#allocation2 + $0x198] sm:$0xff]
          %v2196 = vld [vmem:[#allocation2 + $0x1a0] sm:$0xff]
          %v2197 = vld [vmem:[#allocation2 + $0x1a8] sm:$0xff]
          %v2198 = vld [vmem:[#allocation2 + $0x1b0] sm:$0xff]
          %v2199 = vld [vmem:[#allocation2 + $0x1b8] sm:$0xff]
          %v2200 = vld [vmem:[#allocation2 + $0x1c0] sm:$0xff]
          %v2201 = vld [vmem:[#allocation2 + $0x1c8] sm:$0xff]
          %v2202 = vld [vmem:[#allocation2 + $0x1d0] sm:$0xff]
          %v2203 = vld [vmem:[#allocation2 + $0x1d8] sm:$0xff]
          %v2204 = vld [vmem:[#allocation2 + $0x1e0] sm:$0xff]
          %v2205 = vld [vmem:[#allocation2 + $0x1e8] sm:$0xff]
          %v2206 = vld [vmem:[#allocation2 + $0x1f0] sm:$0xff]
          %v2207 = vld [vmem:[#allocation2 + $0x1f8] sm:$0xff]
          %v2208 = vld [vmem:[#allocation2 + $0x200] sm:$0xff]
          %v2209 = vld [vmem:[#allocation2 + $0x208] sm:$0xff]
          %v2210 = vld [vmem:[#allocation2 + $0x210] sm:$0xff]
          %v2211 = vld [vmem:[#allocation2 + $0x218] sm:$0xff]
          %v2212 = vld [vmem:[#allocation2 + $0x220] sm:$0xff]
          %v2213 = vld [vmem:[#allocation2 + $0x228] sm:$0xff]
          %v2214 = vld [vmem:[#allocation2 + $0x230] sm:$0xff]
          %v2215 = vld [vmem:[#allocation2 + $0x238] sm:$0xff]
          %v2216 = vld [vmem:[#allocation2 + $0x240] sm:$0xff]
          %v2217 = vld [vmem:[#allocation2 + $0x248] sm:$0xff]
          %v2218 = vld [vmem:[#allocation2 + $0x250] sm:$0xff]
          %v2219 = vld [vmem:[#allocation2 + $0x258] sm:$0xff]
          %v2220 = vld [vmem:[#allocation2 + $0x260] sm:$0xff]
          %v2221 = vld [vmem:[#allocation2 + $0x268] sm:$0xff]
          %v2222 = vld [vmem:[#allocation2 + $0x270] sm:$0xff]
          %v2223 = vld [vmem:[#allocation2 + $0x278] sm:$0xff]
          %v2224 = vld [vmem:[#allocation2 + $0x280] sm:$0xff]
          %v2225 = vld [vmem:[#allocation2 + $0x288] sm:$0xff]
          %v2226 = vld [vmem:[#allocation2 + $0x290] sm:$0xff]
          %v2227 = vld [vmem:[#allocation2 + $0x298] sm:$0xff]
          %v2228 = vld [vmem:[#allocation2 + $0x2a0] sm:$0xff]
          %v2229 = vld [vmem:[#allocation2 + $0x2a8] sm:$0xff]
          %v2230 = vld [vmem:[#allocation2 + $0x2b0] sm:$0xff]
          %v2231 = vld [vmem:[#allocation2 + $0x2b8] sm:$0xff]
          %v2232 = vld [vmem:[#allocation2 + $0x2c0] sm:$0xff]
          %v2233 = vld [vmem:[#allocation2 + $0x2c8] sm:$0xff]
          %v2234 = vld [vmem:[#allocation2 + $0x2d0] sm:$0xff]
          %v2235 = vld [vmem:[#allocation2 + $0x2d8] sm:$0xff]
          %v2236 = vld [vmem:[#allocation2 + $0x2e0] sm:$0xff]
          %v2237 = vld [vmem:[#allocation2 + $0x2e8] sm:$0xff]
          %v2238 = vld [vmem:[#allocation2 + $0x2f0] sm:$0xff]
          %v2239 = vld [vmem:[#allocation2 + $0x2f8] sm:$0xff]
          %v2240 = vld [vmem:[#allocation2 + $0x300] sm:$0xff]
          %v2241 = vld [vmem:[#allocation2 + $0x308] sm:$0xff]
          %v2242 = vld [vmem:[#allocation2 + $0x310] sm:$0xff]
          %v2243 = vld [vmem:[#allocation2 + $0x318] sm:$0xff]
          %v2244 = vld [vmem:[#allocation2 + $0x320] sm:$0xff]
          %v2245 = vld [vmem:[#allocation2 + $0x328] sm:$0xff]
          %v2246 = vld [vmem:[#allocation2 + $0x330] sm:$0xff]
          %v2247 = vld [vmem:[#allocation2 + $0x338] sm:$0xff]
          %v2248 = vld [vmem:[#allocation2 + $0x340] sm:$0xff]
          %v2249 = vld [vmem:[#allocation2 + $0x348] sm:$0xff]
          %v2250 = vld [vmem:[#allocation2 + $0x350] sm:$0xff]
          %v2251 = vld [vmem:[#allocation2 + $0x358] sm:$0xff]
          %v2252 = vld [vmem:[#allocation2 + $0x360] sm:$0xff]
          %v2253 = vld [vmem:[#allocation2 + $0x368] sm:$0xff]
          %v2254 = vld [vmem:[#allocation2 + $0x370] sm:$0xff]
          %v2255 = vld [vmem:[#allocation2 + $0x378] sm:$0xff]
          %v2256 = vld [vmem:[#allocation2 + $0x380] sm:$0xff]
          %v2257 = vld [vmem:[#allocation2 + $0x388] sm:$0xff]
          %v2258 = vld [vmem:[#allocation2 + $0x390] sm:$0xff]
          %v2259 = vld [vmem:[#allocation2 + $0x398] sm:$0xff]
          %v2260 = vld [vmem:[#allocation2 + $0x3a0] sm:$0xff]
          %v2261 = vld [vmem:[#allocation2 + $0x3a8] sm:$0xff]
          %v2262 = vld [vmem:[#allocation2 + $0x3b0] sm:$0xff]
          %v2263 = vld [vmem:[#allocation2 + $0x3b8] sm:$0xff]
          %v2264 = vld [vmem:[#allocation2 + $0x3c0] sm:$0xff]
          %v2265 = vld [vmem:[#allocation2 + $0x3c8] sm:$0xff]
          %v2266 = vld [vmem:[#allocation2 + $0x3d0] sm:$0xff]
          %v2267 = vld [vmem:[#allocation2 + $0x3d8] sm:$0xff]
          %v2268 = vld [vmem:[#allocation2 + $0x3e0] sm:$0xff]
          %v2269 = vld [vmem:[#allocation2 + $0x3e8] sm:$0xff]
          %v2270 = vld [vmem:[#allocation2 + $0x3f0] sm:$0xff]
          %v2271 = vld [vmem:[#allocation2 + $0x3f8] sm:$0xff]
          %v2272 = vld [vmem:[%s525] sm:$0xf]
          %v2274 = vperm.slane %v2272, 0
          %v2275 = vperm.slane %v2272, 1
          %v2276 = vperm.slane %v2272, 2
          %v2277 = vperm.slane %v2272, 3
          %v2282 = vadd.f32 %v2144, %v2274
          %v2283 = vadd.f32 %v2145, %v2275
          %v2284 = vadd.f32 %v2146, %v2276
          %v2285 = vadd.f32 %v2147, %v2277
          %v2286 = vadd.f32 %v2148, %v2274
          %v2287 = vadd.f32 %v2149, %v2275
          %v2288 = vadd.f32 %v2150, %v2276
          %v2289 = vadd.f32 %v2151, %v2277
          %v2290 = vadd.f32 %v2152, %v2274
          %v2291 = vadd.f32 %v2153, %v2275
          %v2292 = vadd.f32 %v2154, %v2276
          %v2293 = vadd.f32 %v2155, %v2277
          %v2294 = vadd.f32 %v2156, %v2274
          %v2295 = vadd.f32 %v2157, %v2275
          %v2296 = vadd.f32 %v2158, %v2276
          %v2297 = vadd.f32 %v2159, %v2277
          %v2298 = vadd.f32 %v2160, %v2274
          %v2299 = vadd.f32 %v2161, %v2275
          %v2300 = vadd.f32 %v2162, %v2276
          %v2301 = vadd.f32 %v2163, %v2277
          %v2302 = vadd.f32 %v2164, %v2274
          %v2303 = vadd.f32 %v2165, %v2275
          %v2304 = vadd.f32 %v2166, %v2276
          %v2305 = vadd.f32 %v2167, %v2277
          %v2306 = vadd.f32 %v2168, %v2274
          %v2307 = vadd.f32 %v2169, %v2275
          %v2308 = vadd.f32 %v2170, %v2276
          %v2309 = vadd.f32 %v2171, %v2277
          %v2310 = vadd.f32 %v2172, %v2274
          %v2311 = vadd.f32 %v2173, %v2275
          %v2312 = vadd.f32 %v2174, %v2276
          %v2313 = vadd.f32 %v2175, %v2277
          %v2314 = vadd.f32 %v2176, %v2274
          %v2315 = vadd.f32 %v2177, %v2275
          %v2316 = vadd.f32 %v2178, %v2276
          %v2317 = vadd.f32 %v2179, %v2277
          %v2318 = vadd.f32 %v2180, %v2274
          %v2319 = vadd.f32 %v2181, %v2275
          %v2320 = vadd.f32 %v2182, %v2276
          %v2321 = vadd.f32 %v2183, %v2277
          %v2322 = vadd.f32 %v2184, %v2274
          %v2323 = vadd.f32 %v2185, %v2275
          %v2324 = vadd.f32 %v2186, %v2276
          %v2325 = vadd.f32 %v2187, %v2277
          %v2326 = vadd.f32 %v2188, %v2274
          %v2327 = vadd.f32 %v2189, %v2275
          %v2328 = vadd.f32 %v2190, %v2276
          %v2329 = vadd.f32 %v2191, %v2277
          %v2330 = vadd.f32 %v2192, %v2274
          %v2331 = vadd.f32 %v2193, %v2275
          %v2332 = vadd.f32 %v2194, %v2276
          %v2333 = vadd.f32 %v2195, %v2277
          %v2334 = vadd.f32 %v2196, %v2274
          %v2335 = vadd.f32 %v2197, %v2275
          %v2336 = vadd.f32 %v2198, %v2276
          %v2337 = vadd.f32 %v2199, %v2277
          %v2338 = vadd.f32 %v2200, %v2274
          %v2339 = vadd.f32 %v2201, %v2275
          %v2340 = vadd.f32 %v2202, %v2276
          %v2341 = vadd.f32 %v2203, %v2277
          %v2342 = vadd.f32 %v2204, %v2274
          %v2343 = vadd.f32 %v2205, %v2275
          %v2344 = vadd.f32 %v2206, %v2276
          %v2345 = vadd.f32 %v2207, %v2277
          %v2346 = vadd.f32 %v2208, %v2274
          %v2347 = vadd.f32 %v2209, %v2275
          %v2348 = vadd.f32 %v2210, %v2276
          %v2349 = vadd.f32 %v2211, %v2277
          %v2350 = vadd.f32 %v2212, %v2274
          %v2351 = vadd.f32 %v2213, %v2275
          %v2352 = vadd.f32 %v2214, %v2276
          %v2353 = vadd.f32 %v2215, %v2277
          %v2354 = vadd.f32 %v2216, %v2274
          %v2355 = vadd.f32 %v2217, %v2275
          %v2356 = vadd.f32 %v2218, %v2276
          %v2357 = vadd.f32 %v2219, %v2277
          %v2358 = vadd.f32 %v2220, %v2274
          %v2359 = vadd.f32 %v2221, %v2275
          %v2360 = vadd.f32 %v2222, %v2276
          %v2361 = vadd.f32 %v2223, %v2277
          %v2362 = vadd.f32 %v2224, %v2274
          %v2363 = vadd.f32 %v2225, %v2275
          %v2364 = vadd.f32 %v2226, %v2276
          %v2365 = vadd.f32 %v2227, %v2277
          %v2366 = vadd.f32 %v2228, %v2274
          %v2367 = vadd.f32 %v2229, %v2275
          %v2368 = vadd.f32 %v2230, %v2276
          %v2369 = vadd.f32 %v2231, %v2277
          %v2370 = vadd.f32 %v2232, %v2274
          %v2371 = vadd.f32 %v2233, %v2275
          %v2372 = vadd.f32 %v2234, %v2276
          %v2373 = vadd.f32 %v2235, %v2277
          %v2374 = vadd.f32 %v2236, %v2274
          %v2375 = vadd.f32 %v2237, %v2275
          %v2376 = vadd.f32 %v2238, %v2276
          %v2377 = vadd.f32 %v2239, %v2277
          %v2378 = vadd.f32 %v2240, %v2274
          %v2379 = vadd.f32 %v2241, %v2275
          %v2380 = vadd.f32 %v2242, %v2276
          %v2381 = vadd.f32 %v2243, %v2277
          %v2382 = vadd.f32 %v2244, %v2274
          %v2383 = vadd.f32 %v2245, %v2275
          %v2384 = vadd.f32 %v2246, %v2276
          %v2385 = vadd.f32 %v2247, %v2277
          %v2386 = vadd.f32 %v2248, %v2274
          %v2387 = vadd.f32 %v2249, %v2275
          %v2388 = vadd.f32 %v2250, %v2276
          %v2389 = vadd.f32 %v2251, %v2277
          %v2390 = vadd.f32 %v2252, %v2274
          %v2391 = vadd.f32 %v2253, %v2275
          %v2392 = vadd.f32 %v2254, %v2276
          %v2393 = vadd.f32 %v2255, %v2277
          %v2394 = vadd.f32 %v2256, %v2274
          %v2395 = vadd.f32 %v2257, %v2275
          %v2396 = vadd.f32 %v2258, %v2276
          %v2397 = vadd.f32 %v2259, %v2277
          %v2398 = vadd.f32 %v2260, %v2274
          %v2399 = vadd.f32 %v2261, %v2275
          %v2400 = vadd.f32 %v2262, %v2276
          %v2401 = vadd.f32 %v2263, %v2277
          %v2402 = vadd.f32 %v2264, %v2274
          %v2403 = vadd.f32 %v2265, %v2275
          %v2404 = vadd.f32 %v2266, %v2276
          %v2405 = vadd.f32 %v2267, %v2277
          %v2406 = vadd.f32 %v2268, %v2274
          %v2407 = vadd.f32 %v2269, %v2275
          %v2408 = vadd.f32 %v2270, %v2276
          %v2409 = vadd.f32 %v2271, %v2277
          %2410 = vst [vmem:[%s507] sm:$0xff] %v2282
          %2411 = vst [vmem:[%s507 + $0x8] sm:$0xff] %v2283
          %2412 = vst [vmem:[%s507 + $0x10] sm:$0xff] %v2284
          %2413 = vst [vmem:[%s507 + $0x18] sm:$0xff] %v2285
          %2414 = vst [vmem:[%s507 + $0x20] sm:$0xff] %v2286
          %2415 = vst [vmem:[%s507 + $0x28] sm:$0xff] %v2287
          %2416 = vst [vmem:[%s507 + $0x30] sm:$0xff] %v2288
          %2417 = vst [vmem:[%s507 + $0x38] sm:$0xff] %v2289
          %2418 = vst [vmem:[%s507 + $0x40] sm:$0xff] %v2290
          %2419 = vst [vmem:[%s507 + $0x48] sm:$0xff] %v2291
          %2420 = vst [vmem:[%s507 + $0x50] sm:$0xff] %v2292
          %2421 = vst [vmem:[%s507 + $0x58] sm:$0xff] %v2293
          %2422 = vst [vmem:[%s507 + $0x60] sm:$0xff] %v2294
          %2423 = vst [vmem:[%s507 + $0x68] sm:$0xff] %v2295
          %2424 = vst [vmem:[%s507 + $0x70] sm:$0xff] %v2296
          %2425 = vst [vmem:[%s507 + $0x78] sm:$0xff] %v2297
          %2426 = vst [vmem:[%s507 + $0x80] sm:$0xff] %v2298
          %2427 = vst [vmem:[%s507 + $0x88] sm:$0xff] %v2299
          %2428 = vst [vmem:[%s507 + $0x90] sm:$0xff] %v2300
          %2429 = vst [vmem:[%s507 + $0x98] sm:$0xff] %v2301
          %2430 = vst [vmem:[%s507 + $0xa0] sm:$0xff] %v2302
          %2431 = vst [vmem:[%s507 + $0xa8] sm:$0xff] %v2303
          %2432 = vst [vmem:[%s507 + $0xb0] sm:$0xff] %v2304
          %2433 = vst [vmem:[%s507 + $0xb8] sm:$0xff] %v2305
          %2434 = vst [vmem:[%s507 + $0xc0] sm:$0xff] %v2306
          %2435 = vst [vmem:[%s507 + $0xc8] sm:$0xff] %v2307
          %2436 = vst [vmem:[%s507 + $0xd0] sm:$0xff] %v2308
          %2437 = vst [vmem:[%s507 + $0xd8] sm:$0xff] %v2309
          %2438 = vst [vmem:[%s507 + $0xe0] sm:$0xff] %v2310
          %2439 = vst [vmem:[%s507 + $0xe8] sm:$0xff] %v2311
          %2440 = vst [vmem:[%s507 + $0xf0] sm:$0xff] %v2312
          %2441 = vst [vmem:[%s507 + $0xf8] sm:$0xff] %v2313
          %2442 = vst [vmem:[%s507 + $0x100] sm:$0xff] %v2314
          %2443 = vst [vmem:[%s507 + $0x108] sm:$0xff] %v2315
          %2444 = vst [vmem:[%s507 + $0x110] sm:$0xff] %v2316
          %2445 = vst [vmem:[%s507 + $0x118] sm:$0xff] %v2317
          %2446 = vst [vmem:[%s507 + $0x120] sm:$0xff] %v2318
          %2447 = vst [vmem:[%s507 + $0x128] sm:$0xff] %v2319
          %2448 = vst [vmem:[%s507 + $0x130] sm:$0xff] %v2320
          %2449 = vst [vmem:[%s507 + $0x138] sm:$0xff] %v2321
          %2450 = vst [vmem:[%s507 + $0x140] sm:$0xff] %v2322
          %2451 = vst [vmem:[%s507 + $0x148] sm:$0xff] %v2323
          %2452 = vst [vmem:[%s507 + $0x150] sm:$0xff] %v2324
          %2453 = vst [vmem:[%s507 + $0x158] sm:$0xff] %v2325
          %2454 = vst [vmem:[%s507 + $0x160] sm:$0xff] %v2326
          %2455 = vst [vmem:[%s507 + $0x168] sm:$0xff] %v2327
          %2456 = vst [vmem:[%s507 + $0x170] sm:$0xff] %v2328
          %2457 = vst [vmem:[%s507 + $0x178] sm:$0xff] %v2329
          %2458 = vst [vmem:[%s507 + $0x180] sm:$0xff] %v2330
          %2459 = vst [vmem:[%s507 + $0x188] sm:$0xff] %v2331
          %2460 = vst [vmem:[%s507 + $0x190] sm:$0xff] %v2332
          %2461 = vst [vmem:[%s507 + $0x198] sm:$0xff] %v2333
          %2462 = vst [vmem:[%s507 + $0x1a0] sm:$0xff] %v2334
          %2463 = vst [vmem:[%s507 + $0x1a8] sm:$0xff] %v2335
          %2464 = vst [vmem:[%s507 + $0x1b0] sm:$0xff] %v2336
          %2465 = vst [vmem:[%s507 + $0x1b8] sm:$0xff] %v2337
          %2466 = vst [vmem:[%s507 + $0x1c0] sm:$0xff] %v2338
          %2467 = vst [vmem:[%s507 + $0x1c8] sm:$0xff] %v2339
          %2468 = vst [vmem:[%s507 + $0x1d0] sm:$0xff] %v2340
          %2469 = vst [vmem:[%s507 + $0x1d8] sm:$0xff] %v2341
          %2470 = vst [vmem:[%s507 + $0x1e0] sm:$0xff] %v2342
          %2471 = vst [vmem:[%s507 + $0x1e8] sm:$0xff] %v2343
          %2472 = vst [vmem:[%s507 + $0x1f0] sm:$0xff] %v2344
          %2473 = vst [vmem:[%s507 + $0x1f8] sm:$0xff] %v2345
          %2474 = vst [vmem:[%s507 + $0x200] sm:$0xff] %v2346
          %2475 = vst [vmem:[%s507 + $0x208] sm:$0xff] %v2347
          %2476 = vst [vmem:[%s507 + $0x210] sm:$0xff] %v2348
          %2477 = vst [vmem:[%s507 + $0x218] sm:$0xff] %v2349
          %2478 = vst [vmem:[%s507 + $0x220] sm:$0xff] %v2350
          %2479 = vst [vmem:[%s507 + $0x228] sm:$0xff] %v2351
          %2480 = vst [vmem:[%s507 + $0x230] sm:$0xff] %v2352
          %2481 = vst [vmem:[%s507 + $0x238] sm:$0xff] %v2353
          %2482 = vst [vmem:[%s507 + $0x240] sm:$0xff] %v2354
          %2483 = vst [vmem:[%s507 + $0x248] sm:$0xff] %v2355
          %2484 = vst [vmem:[%s507 + $0x250] sm:$0xff] %v2356
          %2485 = vst [vmem:[%s507 + $0x258] sm:$0xff] %v2357
          %2486 = vst [vmem:[%s507 + $0x260] sm:$0xff] %v2358
          %2487 = vst [vmem:[%s507 + $0x268] sm:$0xff] %v2359
          %2488 = vst [vmem:[%s507 + $0x270] sm:$0xff] %v2360
          %2489 = vst [vmem:[%s507 + $0x278] sm:$0xff] %v2361
          %2490 = vst [vmem:[%s507 + $0x280] sm:$0xff] %v2362
          %2491 = vst [vmem:[%s507 + $0x288] sm:$0xff] %v2363
          %2492 = vst [vmem:[%s507 + $0x290] sm:$0xff] %v2364
          %2493 = vst [vmem:[%s507 + $0x298] sm:$0xff] %v2365
          %2494 = vst [vmem:[%s507 + $0x2a0] sm:$0xff] %v2366
          %2495 = vst [vmem:[%s507 + $0x2a8] sm:$0xff] %v2367
          %2496 = vst [vmem:[%s507 + $0x2b0] sm:$0xff] %v2368
          %2497 = vst [vmem:[%s507 + $0x2b8] sm:$0xff] %v2369
          %2498 = vst [vmem:[%s507 + $0x2c0] sm:$0xff] %v2370
          %2499 = vst [vmem:[%s507 + $0x2c8] sm:$0xff] %v2371
          %2500 = vst [vmem:[%s507 + $0x2d0] sm:$0xff] %v2372
          %2501 = vst [vmem:[%s507 + $0x2d8] sm:$0xff] %v2373
          %2502 = vst [vmem:[%s507 + $0x2e0] sm:$0xff] %v2374
          %2503 = vst [vmem:[%s507 + $0x2e8] sm:$0xff] %v2375
          %2504 = vst [vmem:[%s507 + $0x2f0] sm:$0xff] %v2376
          %2505 = vst [vmem:[%s507 + $0x2f8] sm:$0xff] %v2377
          %2506 = vst [vmem:[%s507 + $0x300] sm:$0xff] %v2378
          %2507 = vst [vmem:[%s507 + $0x308] sm:$0xff] %v2379
          %2508 = vst [vmem:[%s507 + $0x310] sm:$0xff] %v2380
          %2509 = vst [vmem:[%s507 + $0x318] sm:$0xff] %v2381
          %2510 = vst [vmem:[%s507 + $0x320] sm:$0xff] %v2382
          %2511 = vst [vmem:[%s507 + $0x328] sm:$0xff] %v2383
          %2512 = vst [vmem:[%s507 + $0x330] sm:$0xff] %v2384
          %2513 = vst [vmem:[%s507 + $0x338] sm:$0xff] %v2385
          %2514 = vst [vmem:[%s507 + $0x340] sm:$0xff] %v2386
          %2515 = vst [vmem:[%s507 + $0x348] sm:$0xff] %v2387
          %2516 = vst [vmem:[%s507 + $0x350] sm:$0xff] %v2388
          %2517 = vst [vmem:[%s507 + $0x358] sm:$0xff] %v2389
          %2518 = vst [vmem:[%s507 + $0x360] sm:$0xff] %v2390
          %2519 = vst [vmem:[%s507 + $0x368] sm:$0xff] %v2391
          %2520 = vst [vmem:[%s507 + $0x370] sm:$0xff] %v2392
          %2521 = vst [vmem:[%s507 + $0x378] sm:$0xff] %v2393
          %2522 = vst [vmem:[%s507 + $0x380] sm:$0xff] %v2394
          %2523 = vst [vmem:[%s507 + $0x388] sm:$0xff] %v2395
          %2524 = vst [vmem:[%s507 + $0x390] sm:$0xff] %v2396
          %2525 = vst [vmem:[%s507 + $0x398] sm:$0xff] %v2397
          %2526 = vst [vmem:[%s507 + $0x3a0] sm:$0xff] %v2398
          %2527 = vst [vmem:[%s507 + $0x3a8] sm:$0xff] %v2399
          %2528 = vst [vmem:[%s507 + $0x3b0] sm:$0xff] %v2400
          %2529 = vst [vmem:[%s507 + $0x3b8] sm:$0xff] %v2401
          %2530 = vst [vmem:[%s507 + $0x3c0] sm:$0xff] %v2402
          %2531 = vst [vmem:[%s507 + $0x3c8] sm:$0xff] %v2403
          %2532 = vst [vmem:[%s507 + $0x3d0] sm:$0xff] %v2404
          %2533 = vst [vmem:[%s507 + $0x3d8] sm:$0xff] %v2405
          %2534 = vst [vmem:[%s507 + $0x3e0] sm:$0xff] %v2406
          %2535 = vst [vmem:[%s507 + $0x3e8] sm:$0xff] %v2407
          %2536 = vst [vmem:[%s507 + $0x3f0] sm:$0xff] %v2408
          %2537 = vst [vmem:[%s507 + $0x3f8] sm:$0xff] %v2409
        $region63: #{qwen2_5_vision_attention.4} parent=50 // pred_fallthru
          _
        %s2538 = sand.u32 %s125, 1
        %s2539 = sand.u32 %s125, 1
        %s2540 = smul.addr %s2539, 1024
        %s2541 = scalar_lea.vmem [#allocation4], %s2540
        // Predicated region
        $region64: #{qwen2_5_vision_attention.4} parent=50 // pred_check
          %p2542 = pneg %p135
        $region65: #{qwen2_5_vision_attention.4} parent=50 // pred_check_branch
          %2544 = sbr.rel (%p2542) target = $region67
        $region66: #{qwen2_5_vision_attention.4} parent=50 // pred_region
          %s2545 = smul.u32 32, %s19
          %s2546 = smul.u32 4, %s20
          %s2547 = smul.addr %s2545, 8
          %s2548 = sadd.s32 %s2546, %s2547
          %s2549 = smul.addr %s2548, 8
          %s2550 = scalar_lea.vmem %s3, %s2549
          // Predicated region
          $region68: #{qwen2_5_vision_attention.4} parent=66 // pred_check
            _
          $region69: #{qwen2_5_vision_attention.4} parent=66 // pred_check_branch
            %2552 = sbr.rel (0) target = $region71
          $region70: #{qwen2_5_vision_attention.4} parent=66 // pred_region
            // Predicated region
            $region72: #{qwen2_5_vision_attention.4} parent=70 // pred_check
              _
            $region73: #{qwen2_5_vision_attention.4} parent=70 // pred_check_branch
              %2554 = sbr.rel (0) target = $region75
            $region74: #{qwen2_5_vision_attention.4} parent=70 // pred_region
              loop: start=0, step=1, limit=1
              $region76: #{qwen2_5_vision_attention.4} parent=74 // loop_pre_header
                _
              $region77: #{qwen2_5_vision_attention.4} parent=74 // loop_header
                %s2556 = sphi 0, %s2560
                %p2557 = scmp.ge.s32.totalorder %s2556, 1
                %s2561 = sphi %s2541, %s2541
                %s2562 = sphi %s2550, %s2550
              $region78: #{qwen2_5_vision_attention.4} parent=74 // loop_header_branch
                %2559 = sbr.rel (%p2557) target = $region82
              $region79: #{qwen2_5_vision_attention.4} parent=74 // loop_body
                %v2563 = vld [vmem:[%s2561] sm:$0xff]
                %2564 = vst [vmem:[%s2562] sm:$0xff] %v2563
                %v2565 = vld [vmem:[%s2561 + $0x8] sm:$0xff]
                %2566 = vst [vmem:[%s2562 + $0x8] sm:$0xff] %v2565
                %v2567 = vld [vmem:[%s2561 + $0x10] sm:$0xff]
                %2568 = vst [vmem:[%s2562 + $0x10] sm:$0xff] %v2567
                %v2569 = vld [vmem:[%s2561 + $0x18] sm:$0xff]
                %2570 = vst [vmem:[%s2562 + $0x18] sm:$0xff] %v2569
                %v2571 = vld [vmem:[%s2561 + $0x20] sm:$0xff]
                %2572 = vst [vmem:[%s2562 + $0x40] sm:$0xff] %v2571
                %v2573 = vld [vmem:[%s2561 + $0x28] sm:$0xff]
                %2574 = vst [vmem:[%s2562 + $0x48] sm:$0xff] %v2573
                %v2575 = vld [vmem:[%s2561 + $0x30] sm:$0xff]
                %2576 = vst [vmem:[%s2562 + $0x50] sm:$0xff] %v2575
                %v2577 = vld [vmem:[%s2561 + $0x38] sm:$0xff]
                %2578 = vst [vmem:[%s2562 + $0x58] sm:$0xff] %v2577
                %v2579 = vld [vmem:[%s2561 + $0x40] sm:$0xff]
                %2580 = vst [vmem:[%s2562 + $0x80] sm:$0xff] %v2579
                %v2581 = vld [vmem:[%s2561 + $0x48] sm:$0xff]
                %2582 = vst [vmem:[%s2562 + $0x88] sm:$0xff] %v2581
                %v2583 = vld [vmem:[%s2561 + $0x50] sm:$0xff]
                %2584 = vst [vmem:[%s2562 + $0x90] sm:$0xff] %v2583
                %v2585 = vld [vmem:[%s2561 + $0x58] sm:$0xff]
                %2586 = vst [vmem:[%s2562 + $0x98] sm:$0xff] %v2585
                %v2587 = vld [vmem:[%s2561 + $0x60] sm:$0xff]
                %2588 = vst [vmem:[%s2562 + $0xc0] sm:$0xff] %v2587
                %v2589 = vld [vmem:[%s2561 + $0x68] sm:$0xff]
                %2590 = vst [vmem:[%s2562 + $0xc8] sm:$0xff] %v2589
                %v2591 = vld [vmem:[%s2561 + $0x70] sm:$0xff]
                %2592 = vst [vmem:[%s2562 + $0xd0] sm:$0xff] %v2591
                %v2593 = vld [vmem:[%s2561 + $0x78] sm:$0xff]
                %2594 = vst [vmem:[%s2562 + $0xd8] sm:$0xff] %v2593
                %v2595 = vld [vmem:[%s2561 + $0x80] sm:$0xff]
                %2596 = vst [vmem:[%s2562 + $0x100] sm:$0xff] %v2595
                %v2597 = vld [vmem:[%s2561 + $0x88] sm:$0xff]
                %2598 = vst [vmem:[%s2562 + $0x108] sm:$0xff] %v2597
                %v2599 = vld [vmem:[%s2561 + $0x90] sm:$0xff]
                %2600 = vst [vmem:[%s2562 + $0x110] sm:$0xff] %v2599
                %v2601 = vld [vmem:[%s2561 + $0x98] sm:$0xff]
                %2602 = vst [vmem:[%s2562 + $0x118] sm:$0xff] %v2601
                %v2603 = vld [vmem:[%s2561 + $0xa0] sm:$0xff]
                %2604 = vst [vmem:[%s2562 + $0x140] sm:$0xff] %v2603
                %v2605 = vld [vmem:[%s2561 + $0xa8] sm:$0xff]
                %2606 = vst [vmem:[%s2562 + $0x148] sm:$0xff] %v2605
                %v2607 = vld [vmem:[%s2561 + $0xb0] sm:$0xff]
                %2608 = vst [vmem:[%s2562 + $0x150] sm:$0xff] %v2607
                %v2609 = vld [vmem:[%s2561 + $0xb8] sm:$0xff]
                %2610 = vst [vmem:[%s2562 + $0x158] sm:$0xff] %v2609
                %v2611 = vld [vmem:[%s2561 + $0xc0] sm:$0xff]
                %2612 = vst [vmem:[%s2562 + $0x180] sm:$0xff] %v2611
                %v2613 = vld [vmem:[%s2561 + $0xc8] sm:$0xff]
                %2614 = vst [vmem:[%s2562 + $0x188] sm:$0xff] %v2613
                %v2615 = vld [vmem:[%s2561 + $0xd0] sm:$0xff]
                %2616 = vst [vmem:[%s2562 + $0x190] sm:$0xff] %v2615
                %v2617 = vld [vmem:[%s2561 + $0xd8] sm:$0xff]
                %2618 = vst [vmem:[%s2562 + $0x198] sm:$0xff] %v2617
                %v2619 = vld [vmem:[%s2561 + $0xe0] sm:$0xff]
                %2620 = vst [vmem:[%s2562 + $0x1c0] sm:$0xff] %v2619
                %v2621 = vld [vmem:[%s2561 + $0xe8] sm:$0xff]
                %2622 = vst [vmem:[%s2562 + $0x1c8] sm:$0xff] %v2621
                %v2623 = vld [vmem:[%s2561 + $0xf0] sm:$0xff]
                %2624 = vst [vmem:[%s2562 + $0x1d0] sm:$0xff] %v2623
                %v2625 = vld [vmem:[%s2561 + $0xf8] sm:$0xff]
                %2626 = vst [vmem:[%s2562 + $0x1d8] sm:$0xff] %v2625
                %v2627 = vld [vmem:[%s2561 + $0x100] sm:$0xff]
                %2628 = vst [vmem:[%s2562 + $0x200] sm:$0xff] %v2627
                %v2629 = vld [vmem:[%s2561 + $0x108] sm:$0xff]
                %2630 = vst [vmem:[%s2562 + $0x208] sm:$0xff] %v2629
                %v2631 = vld [vmem:[%s2561 + $0x110] sm:$0xff]
                %2632 = vst [vmem:[%s2562 + $0x210] sm:$0xff] %v2631
                %v2633 = vld [vmem:[%s2561 + $0x118] sm:$0xff]
                %2634 = vst [vmem:[%s2562 + $0x218] sm:$0xff] %v2633
                %v2635 = vld [vmem:[%s2561 + $0x120] sm:$0xff]
                %2636 = vst [vmem:[%s2562 + $0x240] sm:$0xff] %v2635
                %v2637 = vld [vmem:[%s2561 + $0x128] sm:$0xff]
                %2638 = vst [vmem:[%s2562 + $0x248] sm:$0xff] %v2637
                %v2639 = vld [vmem:[%s2561 + $0x130] sm:$0xff]
                %2640 = vst [vmem:[%s2562 + $0x250] sm:$0xff] %v2639
                %v2641 = vld [vmem:[%s2561 + $0x138] sm:$0xff]
                %2642 = vst [vmem:[%s2562 + $0x258] sm:$0xff] %v2641
                %v2643 = vld [vmem:[%s2561 + $0x140] sm:$0xff]
                %2644 = vst [vmem:[%s2562 + $0x280] sm:$0xff] %v2643
                %v2645 = vld [vmem:[%s2561 + $0x148] sm:$0xff]
                %2646 = vst [vmem:[%s2562 + $0x288] sm:$0xff] %v2645
                %v2647 = vld [vmem:[%s2561 + $0x150] sm:$0xff]
                %2648 = vst [vmem:[%s2562 + $0x290] sm:$0xff] %v2647
                %v2649 = vld [vmem:[%s2561 + $0x158] sm:$0xff]
                %2650 = vst [vmem:[%s2562 + $0x298] sm:$0xff] %v2649
                %v2651 = vld [vmem:[%s2561 + $0x160] sm:$0xff]
                %2652 = vst [vmem:[%s2562 + $0x2c0] sm:$0xff] %v2651
                %v2653 = vld [vmem:[%s2561 + $0x168] sm:$0xff]
                %2654 = vst [vmem:[%s2562 + $0x2c8] sm:$0xff] %v2653
                %v2655 = vld [vmem:[%s2561 + $0x170] sm:$0xff]
                %2656 = vst [vmem:[%s2562 + $0x2d0] sm:$0xff] %v2655
                %v2657 = vld [vmem:[%s2561 + $0x178] sm:$0xff]
                %2658 = vst [vmem:[%s2562 + $0x2d8] sm:$0xff] %v2657
                %v2659 = vld [vmem:[%s2561 + $0x180] sm:$0xff]
                %2660 = vst [vmem:[%s2562 + $0x300] sm:$0xff] %v2659
                %v2661 = vld [vmem:[%s2561 + $0x188] sm:$0xff]
                %2662 = vst [vmem:[%s2562 + $0x308] sm:$0xff] %v2661
                %v2663 = vld [vmem:[%s2561 + $0x190] sm:$0xff]
                %2664 = vst [vmem:[%s2562 + $0x310] sm:$0xff] %v2663
                %v2665 = vld [vmem:[%s2561 + $0x198] sm:$0xff]
                %2666 = vst [vmem:[%s2562 + $0x318] sm:$0xff] %v2665
                %v2667 = vld [vmem:[%s2561 + $0x1a0] sm:$0xff]
                %2668 = vst [vmem:[%s2562 + $0x340] sm:$0xff] %v2667
                %v2669 = vld [vmem:[%s2561 + $0x1a8] sm:$0xff]
                %2670 = vst [vmem:[%s2562 + $0x348] sm:$0xff] %v2669
                %v2671 = vld [vmem:[%s2561 + $0x1b0] sm:$0xff]
                %2672 = vst [vmem:[%s2562 + $0x350] sm:$0xff] %v2671
                %v2673 = vld [vmem:[%s2561 + $0x1b8] sm:$0xff]
                %2674 = vst [vmem:[%s2562 + $0x358] sm:$0xff] %v2673
                %v2675 = vld [vmem:[%s2561 + $0x1c0] sm:$0xff]
                %2676 = vst [vmem:[%s2562 + $0x380] sm:$0xff] %v2675
                %v2677 = vld [vmem:[%s2561 + $0x1c8] sm:$0xff]
                %2678 = vst [vmem:[%s2562 + $0x388] sm:$0xff] %v2677
                %v2679 = vld [vmem:[%s2561 + $0x1d0] sm:$0xff]
                %2680 = vst [vmem:[%s2562 + $0x390] sm:$0xff] %v2679
                %v2681 = vld [vmem:[%s2561 + $0x1d8] sm:$0xff]
                %2682 = vst [vmem:[%s2562 + $0x398] sm:$0xff] %v2681
                %v2683 = vld [vmem:[%s2561 + $0x1e0] sm:$0xff]
                %2684 = vst [vmem:[%s2562 + $0x3c0] sm:$0xff] %v2683
                %v2685 = vld [vmem:[%s2561 + $0x1e8] sm:$0xff]
                %2686 = vst [vmem:[%s2562 + $0x3c8] sm:$0xff] %v2685
                %v2687 = vld [vmem:[%s2561 + $0x1f0] sm:$0xff]
                %2688 = vst [vmem:[%s2562 + $0x3d0] sm:$0xff] %v2687
                %v2689 = vld [vmem:[%s2561 + $0x1f8] sm:$0xff]
                %2690 = vst [vmem:[%s2562 + $0x3d8] sm:$0xff] %v2689
                %v2691 = vld [vmem:[%s2561 + $0x200] sm:$0xff]
                %2692 = vst [vmem:[%s2562 + $0x400] sm:$0xff] %v2691
                %v2693 = vld [vmem:[%s2561 + $0x208] sm:$0xff]
                %2694 = vst [vmem:[%s2562 + $0x408] sm:$0xff] %v2693
                %v2695 = vld [vmem:[%s2561 + $0x210] sm:$0xff]
                %2696 = vst [vmem:[%s2562 + $0x410] sm:$0xff] %v2695
                %v2697 = vld [vmem:[%s2561 + $0x218] sm:$0xff]
                %2698 = vst [vmem:[%s2562 + $0x418] sm:$0xff] %v2697
                %v2699 = vld [vmem:[%s2561 + $0x220] sm:$0xff]
                %2700 = vst [vmem:[%s2562 + $0x440] sm:$0xff] %v2699
                %v2701 = vld [vmem:[%s2561 + $0x228] sm:$0xff]
                %2702 = vst [vmem:[%s2562 + $0x448] sm:$0xff] %v2701
                %v2703 = vld [vmem:[%s2561 + $0x230] sm:$0xff]
                %2704 = vst [vmem:[%s2562 + $0x450] sm:$0xff] %v2703
                %v2705 = vld [vmem:[%s2561 + $0x238] sm:$0xff]
                %2706 = vst [vmem:[%s2562 + $0x458] sm:$0xff] %v2705
                %v2707 = vld [vmem:[%s2561 + $0x240] sm:$0xff]
                %2708 = vst [vmem:[%s2562 + $0x480] sm:$0xff] %v2707
                %v2709 = vld [vmem:[%s2561 + $0x248] sm:$0xff]
                %2710 = vst [vmem:[%s2562 + $0x488] sm:$0xff] %v2709
                %v2711 = vld [vmem:[%s2561 + $0x250] sm:$0xff]
                %2712 = vst [vmem:[%s2562 + $0x490] sm:$0xff] %v2711
                %v2713 = vld [vmem:[%s2561 + $0x258] sm:$0xff]
                %2714 = vst [vmem:[%s2562 + $0x498] sm:$0xff] %v2713
                %v2715 = vld [vmem:[%s2561 + $0x260] sm:$0xff]
                %2716 = vst [vmem:[%s2562 + $0x4c0] sm:$0xff] %v2715
                %v2717 = vld [vmem:[%s2561 + $0x268] sm:$0xff]
                %2718 = vst [vmem:[%s2562 + $0x4c8] sm:$0xff] %v2717
                %v2719 = vld [vmem:[%s2561 + $0x270] sm:$0xff]
                %2720 = vst [vmem:[%s2562 + $0x4d0] sm:$0xff] %v2719
                %v2721 = vld [vmem:[%s2561 + $0x278] sm:$0xff]
                %2722 = vst [vmem:[%s2562 + $0x4d8] sm:$0xff] %v2721
                %v2723 = vld [vmem:[%s2561 + $0x280] sm:$0xff]
                %2724 = vst [vmem:[%s2562 + $0x500] sm:$0xff] %v2723
                %v2725 = vld [vmem:[%s2561 + $0x288] sm:$0xff]
                %2726 = vst [vmem:[%s2562 + $0x508] sm:$0xff] %v2725
                %v2727 = vld [vmem:[%s2561 + $0x290] sm:$0xff]
                %2728 = vst [vmem:[%s2562 + $0x510] sm:$0xff] %v2727
                %v2729 = vld [vmem:[%s2561 + $0x298] sm:$0xff]
                %2730 = vst [vmem:[%s2562 + $0x518] sm:$0xff] %v2729
                %v2731 = vld [vmem:[%s2561 + $0x2a0] sm:$0xff]
                %2732 = vst [vmem:[%s2562 + $0x540] sm:$0xff] %v2731
                %v2733 = vld [vmem:[%s2561 + $0x2a8] sm:$0xff]
                %2734 = vst [vmem:[%s2562 + $0x548] sm:$0xff] %v2733
                %v2735 = vld [vmem:[%s2561 + $0x2b0] sm:$0xff]
                %2736 = vst [vmem:[%s2562 + $0x550] sm:$0xff] %v2735
                %v2737 = vld [vmem:[%s2561 + $0x2b8] sm:$0xff]
                %2738 = vst [vmem:[%s2562 + $0x558] sm:$0xff] %v2737
                %v2739 = vld [vmem:[%s2561 + $0x2c0] sm:$0xff]
                %2740 = vst [vmem:[%s2562 + $0x580] sm:$0xff] %v2739
                %v2741 = vld [vmem:[%s2561 + $0x2c8] sm:$0xff]
                %2742 = vst [vmem:[%s2562 + $0x588] sm:$0xff] %v2741
                %v2743 = vld [vmem:[%s2561 + $0x2d0] sm:$0xff]
                %2744 = vst [vmem:[%s2562 + $0x590] sm:$0xff] %v2743
                %v2745 = vld [vmem:[%s2561 + $0x2d8] sm:$0xff]
                %2746 = vst [vmem:[%s2562 + $0x598] sm:$0xff] %v2745
                %v2747 = vld [vmem:[%s2561 + $0x2e0] sm:$0xff]
                %2748 = vst [vmem:[%s2562 + $0x5c0] sm:$0xff] %v2747
                %v2749 = vld [vmem:[%s2561 + $0x2e8] sm:$0xff]
                %2750 = vst [vmem:[%s2562 + $0x5c8] sm:$0xff] %v2749
                %v2751 = vld [vmem:[%s2561 + $0x2f0] sm:$0xff]
                %2752 = vst [vmem:[%s2562 + $0x5d0] sm:$0xff] %v2751
                %v2753 = vld [vmem:[%s2561 + $0x2f8] sm:$0xff]
                %2754 = vst [vmem:[%s2562 + $0x5d8] sm:$0xff] %v2753
                %v2755 = vld [vmem:[%s2561 + $0x300] sm:$0xff]
                %2756 = vst [vmem:[%s2562 + $0x600] sm:$0xff] %v2755
                %v2757 = vld [vmem:[%s2561 + $0x308] sm:$0xff]
                %2758 = vst [vmem:[%s2562 + $0x608] sm:$0xff] %v2757
                %v2759 = vld [vmem:[%s2561 + $0x310] sm:$0xff]
                %2760 = vst [vmem:[%s2562 + $0x610] sm:$0xff] %v2759
                %v2761 = vld [vmem:[%s2561 + $0x318] sm:$0xff]
                %2762 = vst [vmem:[%s2562 + $0x618] sm:$0xff] %v2761
                %v2763 = vld [vmem:[%s2561 + $0x320] sm:$0xff]
                %2764 = vst [vmem:[%s2562 + $0x640] sm:$0xff] %v2763
                %v2765 = vld [vmem:[%s2561 + $0x328] sm:$0xff]
                %2766 = vst [vmem:[%s2562 + $0x648] sm:$0xff] %v2765
                %v2767 = vld [vmem:[%s2561 + $0x330] sm:$0xff]
                %2768 = vst [vmem:[%s2562 + $0x650] sm:$0xff] %v2767
                %v2769 = vld [vmem:[%s2561 + $0x338] sm:$0xff]
                %2770 = vst [vmem:[%s2562 + $0x658] sm:$0xff] %v2769
                %v2771 = vld [vmem:[%s2561 + $0x340] sm:$0xff]
                %2772 = vst [vmem:[%s2562 + $0x680] sm:$0xff] %v2771
                %v2773 = vld [vmem:[%s2561 + $0x348] sm:$0xff]
                %2774 = vst [vmem:[%s2562 + $0x688] sm:$0xff] %v2773
                %v2775 = vld [vmem:[%s2561 + $0x350] sm:$0xff]
                %2776 = vst [vmem:[%s2562 + $0x690] sm:$0xff] %v2775
                %v2777 = vld [vmem:[%s2561 + $0x358] sm:$0xff]
                %2778 = vst [vmem:[%s2562 + $0x698] sm:$0xff] %v2777
                %v2779 = vld [vmem:[%s2561 + $0x360] sm:$0xff]
                %2780 = vst [vmem:[%s2562 + $0x6c0] sm:$0xff] %v2779
                %v2781 = vld [vmem:[%s2561 + $0x368] sm:$0xff]
                %2782 = vst [vmem:[%s2562 + $0x6c8] sm:$0xff] %v2781
                %v2783 = vld [vmem:[%s2561 + $0x370] sm:$0xff]
                %2784 = vst [vmem:[%s2562 + $0x6d0] sm:$0xff] %v2783
                %v2785 = vld [vmem:[%s2561 + $0x378] sm:$0xff]
                %2786 = vst [vmem:[%s2562 + $0x6d8] sm:$0xff] %v2785
                %v2787 = vld [vmem:[%s2561 + $0x380] sm:$0xff]
                %2788 = vst [vmem:[%s2562 + $0x700] sm:$0xff] %v2787
                %v2789 = vld [vmem:[%s2561 + $0x388] sm:$0xff]
                %2790 = vst [vmem:[%s2562 + $0x708] sm:$0xff] %v2789
                %v2791 = vld [vmem:[%s2561 + $0x390] sm:$0xff]
                %2792 = vst [vmem:[%s2562 + $0x710] sm:$0xff] %v2791
                %v2793 = vld [vmem:[%s2561 + $0x398] sm:$0xff]
                %2794 = vst [vmem:[%s2562 + $0x718] sm:$0xff] %v2793
                %v2795 = vld [vmem:[%s2561 + $0x3a0] sm:$0xff]
                %2796 = vst [vmem:[%s2562 + $0x740] sm:$0xff] %v2795
                %v2797 = vld [vmem:[%s2561 + $0x3a8] sm:$0xff]
                %2798 = vst [vmem:[%s2562 + $0x748] sm:$0xff] %v2797
                %v2799 = vld [vmem:[%s2561 + $0x3b0] sm:$0xff]
                %2800 = vst [vmem:[%s2562 + $0x750] sm:$0xff] %v2799
                %v2801 = vld [vmem:[%s2561 + $0x3b8] sm:$0xff]
                %2802 = vst [vmem:[%s2562 + $0x758] sm:$0xff] %v2801
                %v2803 = vld [vmem:[%s2561 + $0x3c0] sm:$0xff]
                %2804 = vst [vmem:[%s2562 + $0x780] sm:$0xff] %v2803
                %v2805 = vld [vmem:[%s2561 + $0x3c8] sm:$0xff]
                %2806 = vst [vmem:[%s2562 + $0x788] sm:$0xff] %v2805
                %v2807 = vld [vmem:[%s2561 + $0x3d0] sm:$0xff]
                %2808 = vst [vmem:[%s2562 + $0x790] sm:$0xff] %v2807
                %v2809 = vld [vmem:[%s2561 + $0x3d8] sm:$0xff]
                %2810 = vst [vmem:[%s2562 + $0x798] sm:$0xff] %v2809
                %v2811 = vld [vmem:[%s2561 + $0x3e0] sm:$0xff]
                %2812 = vst [vmem:[%s2562 + $0x7c0] sm:$0xff] %v2811
                %v2813 = vld [vmem:[%s2561 + $0x3e8] sm:$0xff]
                %2814 = vst [vmem:[%s2562 + $0x7c8] sm:$0xff] %v2813
                %v2815 = vld [vmem:[%s2561 + $0x3f0] sm:$0xff]
                %2816 = vst [vmem:[%s2562 + $0x7d0] sm:$0xff] %v2815
                %v2817 = vld [vmem:[%s2561 + $0x3f8] sm:$0xff]
                %2818 = vst [vmem:[%s2562 + $0x7d8] sm:$0xff] %v2817
              $region80: #{qwen2_5_vision_attention.4} parent=74 // loop_footer
                %s2560 = sadd.s32 1, %s2556
              $region81: #{qwen2_5_vision_attention.4} parent=74 // loop_footer_branch
                %2555 = sbr.rel target = $region77
              $region82: #{qwen2_5_vision_attention.4} parent=74 // loop_exit
                _
            $region75: #{qwen2_5_vision_attention.4} parent=70 // pred_fallthru
              _
            // Predicated region
            $region83: #{qwen2_5_vision_attention.4} parent=70 // pred_check
              _
            $region84: #{qwen2_5_vision_attention.4} parent=70 // pred_check_branch
              %2820 = sbr.rel target = $region86
            $region85: #{qwen2_5_vision_attention.4} parent=70 // pred_region
              _
            $region86: #{qwen2_5_vision_attention.4} parent=70 // pred_fallthru
              _
          $region71: #{qwen2_5_vision_attention.4} parent=66 // pred_fallthru
            _
          %2821 = vnop
        $region67: #{qwen2_5_vision_attention.4} parent=50 // pred_fallthru
          _
      $region51: #{qwen2_5_vision_attention.4} parent=5 // pred_fallthru
        _
      %p2822 = scmp.le.s32.totalorder 2, %s9
      // Predicated region
      $region87: #{qwen2_5_vision_attention.4} parent=5 // pred_check
        %p2823 = pneg %p2822
      $region88: #{qwen2_5_vision_attention.4} parent=5 // pred_check_branch
        %2825 = sbr.rel (%p2823) target = $region90
      $region89: #{qwen2_5_vision_attention.4} parent=5 // pred_region
        %s2826 = ssub.s32 %s9, 2
        // Predicated region
        $region91: #{qwen2_5_vision_attention.4} parent=89 // pred_check
          %p2827 = pneg %p141
        $region92: #{qwen2_5_vision_attention.4} parent=89 // pred_check_branch
          %2829 = sbr.rel (%p2827) target = $region94
        $region93: #{qwen2_5_vision_attention.4} parent=89 // pred_region
          %s2830 = sand.u32 %s126, 1
          %s2831 = sand.u32 %s126, 1
          %s2832 = smul.addr %s2831, 1024
          %s2833 = scalar_lea.vmem [#allocation4], %s2832
        $region94: #{qwen2_5_vision_attention.4} parent=89 // pred_fallthru
          _
      $region90: #{qwen2_5_vision_attention.4} parent=5 // pred_fallthru
        _
    $region6: #{qwen2_5_vision_attention.4} parent=1 // loop_footer
      %s13 = sadd.s32 1, %s9
    $region7: #{qwen2_5_vision_attention.4} parent=1 // loop_footer_branch
      %8 = sbr.rel target = $region3
    $region8: #{qwen2_5_vision_attention.4} parent=1 // loop_exit
      _

</llo_original>
